<compile_context>
chip_gen: v7x
topology: tpu7x:2x2x1
jax: 0.10.0
libtpu: 0.0.40
codegen_flags: <defaults>
</compile_context>

<pallas_src>
import functools

import jax
import jax.numpy as jnp
import numpy as np
from jax.experimental import pallas as pl
from jax.experimental.pallas import tpu as pltpu

KSIZE = 7
PAD = 3          # 7x7 conv, stride 1, padding 3
LEFT = 8         # left halo width in the padded scratch; multiple of 8 -> aligned interior store


def _round_up(x, m):
    return (x + m - 1) // m * m


def _gelu(x, approx):
    if approx:
        # tanh approximation -> EUP slot; small deviation from PyTorch's default exact-erf GELU.
        c = 0.7978845608028654  # sqrt(2/pi)
        return 0.5 * x * (1.0 + jnp.tanh(c * (x + 0.044715 * x * x * x)))
    return 0.5 * x * (1.0 + jax.lax.erf(x * 0.7071067811865475))


def convnext_block_kernel(
    x_ref,        # (1, H, W, C)   input image (NHWC)
    dw_w_ref,     # (7, 7, C)      depthwise conv weights (ky, kx, c), f32
    dw_b_ref,     # (1, C)         depthwise conv bias, f32
    w1_ref,       # (C, 4C)        Linear1 weight with LN scale folded in, bf16
    b1_ref,       # (1, 4C)        Linear1 bias with LN shift folded in, f32
    g_gamma_ref,  # (1, 4C)        GRN gamma, f32
    w2_ref,       # (4C, C)        Linear2 weight, bf16 (GRN gain folded in-kernel)
    b2_ref,       # (1, C)         Linear2 bias with GRN beta folded in, f32
    o_ref,        # (1, H, W, C)   output image (NHWC)
    padded_ref,   # VMEM scratch (H + 2*PAD, WP, C) f32 : zero-halo conv input
    stash_ref,    # VMEM scratch (H*W, 4C) bf16 if stash_y else (H*W, C) bf16
    *,
    tile_h: int,
    stash_y: bool,
    approx_gelu: bool,
):
    H, W, C = x_ref.shape[1], x_ref.shape[2], x_ref.shape[3]
    C4 = 4 * C
    TH = tile_h
    n_tiles = H // TH
    HP = H + 2 * PAD

    # ---- stage the input into the zero-padded conv scratch ---------------------------
    # Re-zeroed every grid step on purpose: with dimension_semantics=("parallel",) each
    # TensorCore has its own scratch, so a program_id==0 one-time init is unsafe.
    # Only the halo actually read by the 7 column windows (cols [LEFT-PAD, LEFT+W+PAD))
    # is zeroed; everything else is never read.
    padded_ref[0:PAD, LEFT - PAD:LEFT + W + PAD, :] = jnp.zeros((PAD, W + 2 * PAD, C), jnp.float32)
    padded_ref[PAD + H:HP, LEFT - PAD:LEFT + W + PAD, :] = jnp.zeros((PAD, W + 2 * PAD, C), jnp.float32)
    padded_ref[PAD:PAD + H, LEFT - PAD:LEFT, :] = jnp.zeros((H, PAD, C), jnp.float32)
    padded_ref[PAD:PAD + H, LEFT + W:LEFT + W + PAD, :] = jnp.zeros((H, PAD, C), jnp.float32)
    # Interior stored at column offset LEFT (=8, sublane aligned).
    padded_ref[PAD:PAD + H, LEFT:LEFT + W, :] = x_ref[0].astype(jnp.float32)

    dw_b = dw_b_ref[0]            # (C,)
    w1e = w1_ref[...]             # (C, 4C)  bf16 (LN affine pre-folded)
    b1e = b1_ref[0]               # (4C,)    f32

    # ---- pass 1 (per row tile): depthwise conv + LN + Linear1 + GELU + GRN ssq -------
    ssq = jnp.zeros((1, C4), jnp.float32)
    for t in range(n_tiles):
        h0 = t * TH
        r0 = t * TH * W
        rows = TH * W

        # 7x7 depthwise conv for this tile: 7 column-window loads (misaligned cols
        # handled once per kx), ky handled as free leading-axis shifts.
        acc = jnp.zeros((TH, W, C), jnp.float32)
        for kx in range(KSIZE):
            col0 = LEFT - PAD + kx                            # 5 .. 11
            colwin = padded_ref[h0:h0 + TH + 2 * PAD, col0:col0 + W, :]   # (TH+6, W, C)
            for ky in range(KSIZE):
                acc = acc + colwin[ky:ky + TH] * dw_w_ref[ky, kx, :]
        acc = acc + dw_b                                      # (TH, W, C) f32

        # LayerNorm over channels (eps=1e-6), two-pass statistics; the affine (ln_w, ln_b)
        # is folded into w1/b1, so only the normalized xhat is needed here.
        flat = acc.reshape(rows, C)
        mu = jnp.mean(flat, axis=-1, keepdims=True)
        d = flat - mu
        var = jnp.mean(d * d, axis=-1, keepdims=True)
        xn_bf = (d * jax.lax.rsqrt(var + 1e-6)).astype(jnp.bfloat16)      # (rows, C)

        # Linear C->4C (bf16 MXU, f32 accumulate) + GELU + GRN sum-of-squares (f32).
        y = jnp.dot(xn_bf, w1e, preferred_element_type=jnp.float32) + b1e
        y = _gelu(y, approx_gelu)                             # (rows, 4C) f32
        ssq = ssq + jnp.sum(y * y, axis=0, keepdims=True)

        if stash_y:
            stash_ref[r0:r0 + rows, :] = y.astype(jnp.bfloat16)
        else:
            # Low-VMEM mode: stash only the narrow LN output; pass 2 recomputes matmul-1+GELU.
            stash_ref[r0:r0 + rows, :] = xn_bf

    # ---- GRN statistics (global over H, W) and fold of the gain into w2 --------------
    gx = jnp.sqrt(ssq)                                        # (1, 4C)
    nx = gx / (jnp.mean(gx, axis=-1, keepdims=True) + 1e-6)
    mult = g_gamma_ref[...] * nx + 1.0                        # (1, 4C);  gamma*(y*nx)+beta+y == y*(gamma*nx+1)+beta
    # Fold: (y * mult) @ w2 == y @ (mult^T * w2).  One-time (4C, C) rescale per image.
    w2e = (jnp.transpose(mult) * w2_ref[...].astype(jnp.float32)).astype(jnp.bfloat16)
    b2e = b2_ref[0]                                           # (C,)  (beta @ w2 + b2 folded in the wrapper)

    # ---- pass 2 (per row tile): Linear 4C->C + residual -------------------------------
    for t in range(n_tiles):
        h0 = t * TH
        r0 = t * TH * W
        rows = TH * W
        if stash_y:
            y_bf = stash_ref[r0:r0 + rows, :]                 # (rows, 4C) bf16
        else:
            xn_bf = stash_ref[r0:r0 + rows, :]                # (rows, C)  bf16
            y = jnp.dot(xn_bf, w1e, preferred_element_type=jnp.float32) + b1e
            y_bf = _gelu(y, approx_gelu).astype(jnp.bfloat16)
        o = jnp.dot(y_bf, w2e, preferred_element_type=jnp.float32) + b2e  # (rows, C) f32
        res = x_ref[0, h0:h0 + TH, :, :].astype(jnp.float32)
        # ---- StochasticDepth(mode='row'): identity in eval mode ----
        # TODO(synk): training-mode row-wise stochastic depth (random per-sample drop) not implemented.
        o_ref[0, h0:h0 + TH, :, :] = (o.reshape(TH, W, C) + res).astype(o_ref.dtype)


def _pick_tile_h(H, W, C, max_tile_pixels=None):
    """Row-tile height TH dividing H.

    Targets: per-tile f32 conv accumulator (TH*W*C*4 B) ~<= 128 KiB (stays mostly in vregs),
    MXU M dim (TH*W) reasonably large, TH*W a multiple of 16 when possible (bf16 sublane
    alignment of the stash slices)."""
    if max_tile_pixels is None:
        max_tile_pixels = max(256, (128 * 1024) // (4 * max(C, 1)))
    divs = [th for th in range(1, H + 1) if H % th == 0]
    ok = [th for th in divs if th * W <= max_tile_pixels]
    if not ok:
        return 1
    aligned = [th for th in ok if (th * W) % 16 == 0]
    pool = aligned if aligned else ok
    return max(pool)


def convnext_block_nhwc(x_nhwc, params, *, max_tile_pixels=None, stash_y=None, approx_gelu=False):
    """x_nhwc: (N, H, W, C). Returns (N, H, W, C). Preferred entry point (no transposes)."""
    N, H, W, C = x_nhwc.shape
    C4 = 4 * C
    (dw_w, dw_b, ln_w, ln_b, w1, b1, g_gamma, g_beta, w2, b2) = params
    hi = jax.lax.Precision.HIGHEST

    # Parameter-only pre-folds (plain XLA ops outside the kernel, negligible cost):
    #   LayerNorm affine -> matmul-1:  (xhat*ln_w + ln_b) @ w1 + b1
    #                               == xhat @ (ln_w[:,None]*w1) + (ln_b @ w1 + b1)
    #   GRN beta -> matmul-2 bias:     (... + beta) @ w2 + b2 adds (beta @ w2).
    w1f = w1.astype(jnp.float32)
    w2f = w2.astype(jnp.float32)
    w1_eff = (ln_w.reshape(C, 1) * w1f).astype(jnp.bfloat16)
    b1_eff = (b1.reshape(1, C4) + jnp.dot(ln_b.reshape(1, C), w1f, precision=hi)).astype(jnp.float32)
    b2_eff = (b2.reshape(1, C) + jnp.dot(g_beta.reshape(1, C4), w2f, precision=hi)).astype(jnp.float32)
    w2_bf = w2.astype(jnp.bfloat16)
    g_gamma2 = g_gamma.reshape(1, C4).astype(jnp.float32)

    TH = _pick_tile_h(H, W, C, max_tile_pixels)
    WP = _round_up(LEFT + W + PAD, 8)

    # ---- VMEM budget, capped by the device's physical VMEM (v7x: 64 MiB / TensorCore) ----
    phys = 64 * 2**20
    try:
        phys = int(getattr(pltpu.get_tpu_info(), "vmem_capacity_bytes", phys))
    except Exception:
        pass
    budget = phys - 12 * 2**20          # headroom for Mosaic-internal scratch

    f32b, bf16b = 4, 2
    xb = jnp.dtype(x_nhwc.dtype).itemsize
    io_bytes = 2 * 2 * H * W * C * xb                         # in + out image blocks, double-buffered
    w_bytes = 2 * 2 * C * C4 * bf16b                          # w1_eff + w2 (double-buffered)
    padded_bytes = (H + 2 * PAD) * WP * C * f32b
    tile_bytes = 2 * TH * W * C4 * f32b + (TH + 2 * PAD) * W * C * f32b + TH * W * C * f32b
    base = io_bytes + w_bytes + padded_bytes + tile_bytes + C * C4 * (f32b + bf16b) + (1 << 20)
    if stash_y is None:
        # Wide GELU stash only if it fits; otherwise recompute matmul-1+GELU in pass 2 (v7x path).
        stash_y = base + H * W * C4 * bf16b <= budget
    stash_cols = C4 if stash_y else C
    est = base + H * W * stash_cols * bf16b
    vmem_limit = int(min(budget, max(32 * 2**20, int(1.5 * est))))

    kernel = functools.partial(convnext_block_kernel, tile_h=TH, stash_y=stash_y,
                               approx_gelu=approx_gelu)
    full2 = lambda n: (0, 0)
    full3 = lambda n: (0, 0, 0)

    return pl.pallas_call(
        kernel,
        out_shape=jax.ShapeDtypeStruct((N, H, W, C), x_nhwc.dtype),
        grid_spec=pltpu.PrefetchScalarGridSpec(
            num_scalar_prefetch=0,
            # TODO(synk): for N=1 on v7x, split rows across the two TensorCores (halo overlap +
            # cross-core GRN ssq combine) instead of relying on batch parallelism.
            grid=(N,),
            in_specs=[
                pl.BlockSpec((1, H, W, C), lambda n: (n, 0, 0, 0)),
                pl.BlockSpec((KSIZE, KSIZE, C), full3),
                pl.BlockSpec((1, C), full2),
                pl.BlockSpec((C, C4), full2),
                pl.BlockSpec((1, C4), full2),
                pl.BlockSpec((1, C4), full2),
                pl.BlockSpec((C4, C), full2),
                pl.BlockSpec((1, C), full2),
            ],
            out_specs=pl.BlockSpec((1, H, W, C), lambda n: (n, 0, 0, 0)),
            scratch_shapes=[
                pltpu.VMEM((H + 2 * PAD, WP, C), jnp.float32),
                pltpu.VMEM((H * W, stash_cols), jnp.bfloat16),
            ],
        ),
        compiler_params=pltpu.CompilerParams(
            dimension_semantics=("parallel",),   # batch images are independent
            vmem_limit_bytes=vmem_limit,
        ),
    )(x_nhwc, dw_w, dw_b, w1_eff, b1_eff, g_gamma2, w2_bf, b2_eff)


def convnext_block(x_nchw, params, **kwargs):
    """PyTorch-layout wrapper: (N, C, H, W) -> (N, C, H, W).

    The NCHW<->NHWC transposes are full-tensor HBM round trips; in a full network keep
    activations NHWC and call convnext_block_nhwc directly."""
    x_nhwc = jnp.transpose(x_nchw, (0, 2, 3, 1))
    out_nhwc = convnext_block_nhwc(x_nhwc, params, **kwargs)
    return jnp.transpose(out_nhwc, (0, 3, 1, 2))


def make_params(key, channels):
    """Deterministic synthetic parameters with the same shapes as the PyTorch module.

    PyTorch shapes -> kernel layout:
      Conv2d(C, C, 7, groups=C).weight : (C, 1, 7, 7) -> (7, 7, C)
      Conv2d bias                      : (C,)         -> (1, C)
      LayerNorm(C) weight/bias         : (C,)         -> (1, C)
      Linear(C, 4C).weight             : (4C, C)      -> transposed (C, 4C)
      Linear(C, 4C).bias               : (4C,)        -> (1, 4C)
      GRN gamma/beta                   : (1,1,1,4C)   -> (1, 4C)
      Linear(4C, C).weight             : (C, 4C)      -> transposed (4C, C)
      Linear(4C, C).bias               : (C,)         -> (1, C)

    (Module init is zeros/ones for LN/GRN params; small random values are used here so the
    LN-affine / GRN-beta weight folds are actually exercised by the test.)"""
    C = channels
    C4 = 4 * C
    ks = jax.random.split(key, 10)
    dw_w = jax.random.normal(ks[0], (KSIZE, KSIZE, C), jnp.float32) * 0.1
    dw_b = jax.random.normal(ks[1], (1, C), jnp.float32) * 0.05
    ln_w = jnp.ones((1, C), jnp.float32) + 0.01 * jax.random.normal(ks[2], (1, C), jnp.float32)
    ln_b = 0.05 * jax.random.normal(ks[3], (1, C), jnp.float32)
    w1 = jax.random.normal(ks[4], (C, C4), jnp.float32) * (1.0 / jnp.sqrt(C))
    b1 = jax.random.normal(ks[5], (1, C4), jnp.float32) * 0.05
    g_gamma = 0.1 * jax.random.normal(ks[6], (1, C4), jnp.float32)
    g_beta = 0.05 * jax.random.normal(ks[7], (1, C4), jnp.float32)
    w2 = jax.random.normal(ks[8], (C4, C), jnp.float32) * (1.0 / jnp.sqrt(C4))
    b2 = jax.random.normal(ks[9], (1, C), jnp.float32) * 0.05
    return (dw_w, dw_b, ln_w, ln_b, w1, b1, g_gamma, g_beta, w2, b2)


def convnext_block_reference(x_nchw, params, *, approx_gelu=False):
    """Pure-JAX f32 reference of the PyTorch module forward (eval mode)."""
    (dw_w, dw_b, ln_w, ln_b, w1, b1, g_gamma, g_beta, w2, b2) = params
    hi = jax.lax.Precision.HIGHEST
    x = jnp.transpose(x_nchw, (0, 2, 3, 1)).astype(jnp.float32)   # NHWC
    C = x.shape[-1]
    ker = dw_w.reshape(KSIZE, KSIZE, 1, C)                        # HWIO, groups=C
    y = jax.lax.conv_general_dilated(
        x, ker, window_strides=(1, 1), padding=((PAD, PAD), (PAD, PAD)),
        dimension_numbers=("NHWC", "HWIO", "NHWC"), feature_group_count=C,
        precision=hi)
    y = y + dw_b[0]
    mu = jnp.mean(y, axis=-1, keepdims=True)
    var = jnp.mean((y - mu) ** 2, axis=-1, keepdims=True)
    y = (y - mu) / jnp.sqrt(var + 1e-6) * ln_w[0] + ln_b[0]
    y = jnp.dot(y, w1, precision=hi) + b1[0]
    y = _gelu(y, approx_gelu)
    gx = jnp.sqrt(jnp.sum(y * y, axis=(1, 2), keepdims=True))     # (N,1,1,4C)
    nx = gx / (jnp.mean(gx, axis=-1, keepdims=True) + 1e-6)
    y = g_gamma[0] * (y * nx) + g_beta[0] + y
    y = jnp.dot(y, w2, precision=hi) + b2[0]
    out = y + x
    return jnp.transpose(out, (0, 3, 1, 2))


if __name__ == "__main__":
    key = jax.random.PRNGKey(0)
    k_x, k_p = jax.random.split(key)

    N, C, H, W = 2, 4, 16, 16
    x = jax.random.normal(k_x, (N, C, H, W), jnp.float32)
    params = make_params(k_p, C)

    ref = convnext_block_reference(x, params)

    # 1) Default config: auto stash selection (wide bf16 GELU stash), whole-image row tile.
    out = convnext_block(x, params)
    jax.block_until_ready(out)
    assert out.shape == (N, C, H, W)
    np.testing.assert_allclose(np.asarray(out), np.asarray(ref), rtol=3e-2, atol=8e-2)

    # 2) Low-VMEM (v7x-style) config: 2 row tiles + recompute in pass 2 (no wide stash).
    out2 = convnext_block(x, params, max_tile_pixels=128, stash_y=False)
    jax.block_until_ready(out2)
    np.testing.assert_allclose(np.asarray(out2), np.asarray(ref), rtol=3e-2, atol=8e-2)

    # 3) tanh-approximate GELU (EUP) variant, checked against a matching reference.
    out3 = convnext_block(x, params, approx_gelu=True)
    jax.block_until_ready(out3)
    ref3 = convnext_block_reference(x, params, approx_gelu=True)
    np.testing.assert_allclose(np.asarray(out3), np.asarray(ref3), rtol=3e-2, atol=8e-2)

    print("KERNEL_OK")
</pallas_src>

<mosaic_0001>
module attributes {stable_mosaic.version = 11 : i64} {
  func.func @convnext_block_kernel(%arg0: i32, %arg1: memref<1x16x16x4xf32, #tpu.memory_space<vmem>>, %arg2: memref<7x7x4xf32, #tpu.memory_space<vmem>>, %arg3: memref<1x4xf32, #tpu.memory_space<vmem>>, %arg4: memref<4x16xbf16, #tpu.memory_space<vmem>>, %arg5: memref<1x16xf32, #tpu.memory_space<vmem>>, %arg6: memref<1x16xf32, #tpu.memory_space<vmem>>, %arg7: memref<16x4xbf16, #tpu.memory_space<vmem>>, %arg8: memref<1x4xf32, #tpu.memory_space<vmem>>, %arg9: memref<1x16x16x4xf32, #tpu.memory_space<vmem>>, %arg10: memref<22x32x4xf32, #tpu.memory_space<vmem>>, %arg11: memref<256x16xbf16, #tpu.memory_space<vmem>>) attributes {dimension_semantics = [#tpu.dimension_semantics<parallel>], iteration_bounds = array<i64: 2>, scalar_prefetch = 0 : i64, scratch_operands = 2 : i64, tpu.core_type = #tpu.core_type<tc>, window_params = [{transform_indices = @transform_0, window_bounds = array<i64: 1, 16, 16, 4>}, {pipeline_mode = #tpu.pipeline_mode<synchronous>, transform_indices = @transform_1, window_bounds = array<i64: 7, 7, 4>}, {pipeline_mode = #tpu.pipeline_mode<synchronous>, transform_indices = @transform_2, window_bounds = array<i64: 1, 4>}, {pipeline_mode = #tpu.pipeline_mode<synchronous>, transform_indices = @transform_3, window_bounds = array<i64: 4, 16>}, {pipeline_mode = #tpu.pipeline_mode<synchronous>, transform_indices = @transform_4, window_bounds = array<i64: 1, 16>}, {pipeline_mode = #tpu.pipeline_mode<synchronous>, transform_indices = @transform_5, window_bounds = array<i64: 1, 16>}, {pipeline_mode = #tpu.pipeline_mode<synchronous>, transform_indices = @transform_6, window_bounds = array<i64: 16, 4>}, {pipeline_mode = #tpu.pipeline_mode<synchronous>, transform_indices = @transform_7, window_bounds = array<i64: 1, 4>}, {transform_indices = @transform_8, window_bounds = array<i64: 1, 16, 16, 4>}]} {
    %cst = arith.constant 0.000000e+00 : f32
    %0 = vector.broadcast %cst : f32 to vector<3x22x4xf32>
    %c0 = arith.constant 0 : index
    %c5 = arith.constant 5 : index
    %c0_0 = arith.constant 0 : index
    %1 = vector.load %arg10[%c0, %c5, %c0_0] : memref<22x32x4xf32, #tpu.memory_space<vmem>>, vector<3x22x4xf32>
    tpu.vector_store %arg10[%c0, %c5, %c0_0], %0 {strides = array<i32>} : memref<22x32x4xf32, #tpu.memory_space<vmem>>, vector<3x22x4xf32>,
    %cst_1 = arith.constant 0.000000e+00 : f32
    %2 = vector.broadcast %cst_1 : f32 to vector<3x22x4xf32>
    %c19 = arith.constant 19 : index
    %c5_2 = arith.constant 5 : index
    %c0_3 = arith.constant 0 : index
    %3 = vector.load %arg10[%c19, %c5_2, %c0_3] : memref<22x32x4xf32, #tpu.memory_space<vmem>>, vector<3x22x4xf32>
    tpu.vector_store %arg10[%c19, %c5_2, %c0_3], %2 {strides = array<i32>} : memref<22x32x4xf32, #tpu.memory_space<vmem>>, vector<3x22x4xf32>,
    %cst_4 = arith.constant 0.000000e+00 : f32
    %4 = vector.broadcast %cst_4 : f32 to vector<16x3x4xf32>
    %c3 = arith.constant 3 : index
    %c5_5 = arith.constant 5 : index
    %c0_6 = arith.constant 0 : index
    %5 = vector.load %arg10[%c3, %c5_5, %c0_6] : memref<22x32x4xf32, #tpu.memory_space<vmem>>, vector<16x3x4xf32>
    tpu.vector_store %arg10[%c3, %c5_5, %c0_6], %4 {strides = array<i32>} : memref<22x32x4xf32, #tpu.memory_space<vmem>>, vector<16x3x4xf32>,
    %cst_7 = arith.constant 0.000000e+00 : f32
    %6 = vector.broadcast %cst_7 : f32 to vector<16x3x4xf32>
    %c3_8 = arith.constant 3 : index
    %c24 = arith.constant 24 : index
    %c0_9 = arith.constant 0 : index
    %7 = vector.load %arg10[%c3_8, %c24, %c0_9] : memref<22x32x4xf32, #tpu.memory_space<vmem>>, vector<16x3x4xf32>
    tpu.vector_store %arg10[%c3_8, %c24, %c0_9], %6 {strides = array<i32>} : memref<22x32x4xf32, #tpu.memory_space<vmem>>, vector<16x3x4xf32>,
    %c0_10 = arith.constant 0 : index
    %c0_11 = arith.constant 0 : index
    %c0_12 = arith.constant 0 : index
    %c0_13 = arith.constant 0 : index
    %8 = vector.load %arg1[%c0_10, %c0_11, %c0_12, %c0_13] : memref<1x16x16x4xf32, #tpu.memory_space<vmem>>, vector<1x16x16x4xf32>
    %9 = vector.shape_cast %8 : vector<1x16x16x4xf32> to vector<16x16x4xf32>
    %c3_14 = arith.constant 3 : index
    %c8 = arith.constant 8 : index
    %c0_15 = arith.constant 0 : index
    %10 = vector.load %arg10[%c3_14, %c8, %c0_15] : memref<22x32x4xf32, #tpu.memory_space<vmem>>, vector<16x16x4xf32>
    tpu.vector_store %arg10[%c3_14, %c8, %c0_15], %9 {strides = array<i32>} : memref<22x32x4xf32, #tpu.memory_space<vmem>>, vector<16x16x4xf32>,
    %c0_16 = arith.constant 0 : index
    %c0_17 = arith.constant 0 : index
    %11 = vector.load %arg3[%c0_16, %c0_17] : memref<1x4xf32, #tpu.memory_space<vmem>>, vector<1x4xf32>
    %12 = vector.shape_cast %11 : vector<1x4xf32> to vector<4xf32>
    %c0_18 = arith.constant 0 : index
    %c0_19 = arith.constant 0 : index
    %13 = vector.load %arg4[%c0_18, %c0_19] : memref<4x16xbf16, #tpu.memory_space<vmem>>, vector<4x16xbf16>
    %c0_20 = arith.constant 0 : index
    %c0_21 = arith.constant 0 : index
    %14 = vector.load %arg5[%c0_20, %c0_21] : memref<1x16xf32, #tpu.memory_space<vmem>>, vector<1x16xf32>
    %15 = vector.shape_cast %14 : vector<1x16xf32> to vector<16xf32>
    %cst_22 = arith.constant 0.000000e+00 : f32
    %16 = vector.broadcast %cst_22 : f32 to vector<1x16xf32>
    %cst_23 = arith.constant 0.000000e+00 : f32
    %17 = vector.broadcast %cst_23 : f32 to vector<16x16x4xf32>
    %c0_24 = arith.constant 0 : index
    %c5_25 = arith.constant 5 : index
    %c0_26 = arith.constant 0 : index
    %18 = vector.load %arg10[%c0_24, %c5_25, %c0_26] : memref<22x32x4xf32, #tpu.memory_space<vmem>>, vector<22x16x4xf32>
    %19 = vector.extract_strided_slice %18 {offsets = [0, 0, 0], sizes = [16, 16, 4], strides = [1, 1, 1]} : vector<22x16x4xf32> to vector<16x16x4xf32>
    %c0_27 = arith.constant 0 : index
    %c0_28 = arith.constant 0 : index
    %c0_29 = arith.constant 0 : index
    %20 = vector.load %arg2[%c0_27, %c0_28, %c0_29] : memref<7x7x4xf32, #tpu.memory_space<vmem>>, vector<1x1x4xf32>
    %21 = vector.shape_cast %20 : vector<1x1x4xf32> to vector<4xf32>
    %22 = vector.shape_cast %21 : vector<4xf32> to vector<1x1x4xf32>
    %23 = vector.broadcast %22 : vector<1x1x4xf32> to vector<16x16x4xf32>
    %24 = arith.mulf %19, %23 : vector<16x16x4xf32>
    %25 = arith.addf %17, %24 : vector<16x16x4xf32>
    %26 = vector.extract_strided_slice %18 {offsets = [1, 0, 0], sizes = [16, 16, 4], strides = [1, 1, 1]} : vector<22x16x4xf32> to vector<16x16x4xf32>
    %c1 = arith.constant 1 : index
    %c0_30 = arith.constant 0 : index
    %c0_31 = arith.constant 0 : index
    %27 = vector.load %arg2[%c1, %c0_30, %c0_31] : memref<7x7x4xf32, #tpu.memory_space<vmem>>, vector<1x1x4xf32>
    %28 = vector.shape_cast %27 : vector<1x1x4xf32> to vector<4xf32>
    %29 = vector.shape_cast %28 : vector<4xf32> to vector<1x1x4xf32>
    %30 = vector.broadcast %29 : vector<1x1x4xf32> to vector<16x16x4xf32>
    %31 = arith.mulf %26, %30 : vector<16x16x4xf32>
    %32 = arith.addf %25, %31 : vector<16x16x4xf32>
    %33 = vector.extract_strided_slice %18 {offsets = [2, 0, 0], sizes = [16, 16, 4], strides = [1, 1, 1]} : vector<22x16x4xf32> to vector<16x16x4xf32>
    %c2 = arith.constant 2 : index
    %c0_32 = arith.constant 0 : index
    %c0_33 = arith.constant 0 : index
    %34 = vector.load %arg2[%c2, %c0_32, %c0_33] : memref<7x7x4xf32, #tpu.memory_space<vmem>>, vector<1x1x4xf32>
    %35 = vector.shape_cast %34 : vector<1x1x4xf32> to vector<4xf32>
    %36 = vector.shape_cast %35 : vector<4xf32> to vector<1x1x4xf32>
    %37 = vector.broadcast %36 : vector<1x1x4xf32> to vector<16x16x4xf32>
    %38 = arith.mulf %33, %37 : vector<16x16x4xf32>
    %39 = arith.addf %32, %38 : vector<16x16x4xf32>
    %40 = vector.extract_strided_slice %18 {offsets = [3, 0, 0], sizes = [16, 16, 4], strides = [1, 1, 1]} : vector<22x16x4xf32> to vector<16x16x4xf32>
    %c3_34 = arith.constant 3 : index
    %c0_35 = arith.constant 0 : index
    %c0_36 = arith.constant 0 : index
    %41 = vector.load %arg2[%c3_34, %c0_35, %c0_36] : memref<7x7x4xf32, #tpu.memory_space<vmem>>, vector<1x1x4xf32>
    %42 = vector.shape_cast %41 : vector<1x1x4xf32> to vector<4xf32>
    %43 = vector.shape_cast %42 : vector<4xf32> to vector<1x1x4xf32>
    %44 = vector.broadcast %43 : vector<1x1x4xf32> to vector<16x16x4xf32>
    %45 = arith.mulf %40, %44 : vector<16x16x4xf32>
    %46 = arith.addf %39, %45 : vector<16x16x4xf32>
    %47 = vector.extract_strided_slice %18 {offsets = [4, 0, 0], sizes = [16, 16, 4], strides = [1, 1, 1]} : vector<22x16x4xf32> to vector<16x16x4xf32>
    %c4 = arith.constant 4 : index
    %c0_37 = arith.constant 0 : index
    %c0_38 = arith.constant 0 : index
    %48 = vector.load %arg2[%c4, %c0_37, %c0_38] : memref<7x7x4xf32, #tpu.memory_space<vmem>>, vector<1x1x4xf32>
    %49 = vector.shape_cast %48 : vector<1x1x4xf32> to vector<4xf32>
    %50 = vector.shape_cast %49 : vector<4xf32> to vector<1x1x4xf32>
    %51 = vector.broadcast %50 : vector<1x1x4xf32> to vector<16x16x4xf32>
    %52 = arith.mulf %47, %51 : vector<16x16x4xf32>
    %53 = arith.addf %46, %52 : vector<16x16x4xf32>
    %54 = vector.extract_strided_slice %18 {offsets = [5, 0, 0], sizes = [16, 16, 4], strides = [1, 1, 1]} : vector<22x16x4xf32> to vector<16x16x4xf32>
    %c5_39 = arith.constant 5 : index
    %c0_40 = arith.constant 0 : index
    %c0_41 = arith.constant 0 : index
    %55 = vector.load %arg2[%c5_39, %c0_40, %c0_41] : memref<7x7x4xf32, #tpu.memory_space<vmem>>, vector<1x1x4xf32>
    %56 = vector.shape_cast %55 : vector<1x1x4xf32> to vector<4xf32>
    %57 = vector.shape_cast %56 : vector<4xf32> to vector<1x1x4xf32>
    %58 = vector.broadcast %57 : vector<1x1x4xf32> to vector<16x16x4xf32>
    %59 = arith.mulf %54, %58 : vector<16x16x4xf32>
    %60 = arith.addf %53, %59 : vector<16x16x4xf32>
    %61 = vector.extract_strided_slice %18 {offsets = [6, 0, 0], sizes = [16, 16, 4], strides = [1, 1, 1]} : vector<22x16x4xf32> to vector<16x16x4xf32>
    %c6 = arith.constant 6 : index
    %c0_42 = arith.constant 0 : index
    %c0_43 = arith.constant 0 : index
    %62 = vector.load %arg2[%c6, %c0_42, %c0_43] : memref<7x7x4xf32, #tpu.memory_space<vmem>>, vector<1x1x4xf32>
    %63 = vector.shape_cast %62 : vector<1x1x4xf32> to vector<4xf32>
    %64 = vector.shape_cast %63 : vector<4xf32> to vector<1x1x4xf32>
    %65 = vector.broadcast %64 : vector<1x1x4xf32> to vector<16x16x4xf32>
    %66 = arith.mulf %61, %65 : vector<16x16x4xf32>
    %67 = arith.addf %60, %66 : vector<16x16x4xf32>
    %c0_44 = arith.constant 0 : index
    %c6_45 = arith.constant 6 : index
    %c0_46 = arith.constant 0 : index
    %68 = vector.load %arg10[%c0_44, %c6_45, %c0_46] : memref<22x32x4xf32, #tpu.memory_space<vmem>>, vector<22x16x4xf32>
    %69 = vector.extract_strided_slice %68 {offsets = [0, 0, 0], sizes = [16, 16, 4], strides = [1, 1, 1]} : vector<22x16x4xf32> to vector<16x16x4xf32>
    %c0_47 = arith.constant 0 : index
    %c1_48 = arith.constant 1 : index
    %c0_49 = arith.constant 0 : index
    %70 = vector.load %arg2[%c0_47, %c1_48, %c0_49] : memref<7x7x4xf32, #tpu.memory_space<vmem>>, vector<1x1x4xf32>
    %71 = vector.shape_cast %70 : vector<1x1x4xf32> to vector<4xf32>
    %72 = vector.shape_cast %71 : vector<4xf32> to vector<1x1x4xf32>
    %73 = vector.broadcast %72 : vector<1x1x4xf32> to vector<16x16x4xf32>
    %74 = arith.mulf %69, %73 : vector<16x16x4xf32>
    %75 = arith.addf %67, %74 : vector<16x16x4xf32>
    %76 = vector.extract_strided_slice %68 {offsets = [1, 0, 0], sizes = [16, 16, 4], strides = [1, 1, 1]} : vector<22x16x4xf32> to vector<16x16x4xf32>
    %c1_50 = arith.constant 1 : index
    %c1_51 = arith.constant 1 : index
    %c0_52 = arith.constant 0 : index
    %77 = vector.load %arg2[%c1_50, %c1_51, %c0_52] : memref<7x7x4xf32, #tpu.memory_space<vmem>>, vector<1x1x4xf32>
    %78 = vector.shape_cast %77 : vector<1x1x4xf32> to vector<4xf32>
    %79 = vector.shape_cast %78 : vector<4xf32> to vector<1x1x4xf32>
    %80 = vector.broadcast %79 : vector<1x1x4xf32> to vector<16x16x4xf32>
    %81 = arith.mulf %76, %80 : vector<16x16x4xf32>
    %82 = arith.addf %75, %81 : vector<16x16x4xf32>
    %83 = vector.extract_strided_slice %68 {offsets = [2, 0, 0], sizes = [16, 16, 4], strides = [1, 1, 1]} : vector<22x16x4xf32> to vector<16x16x4xf32>
    %c2_53 = arith.constant 2 : index
    %c1_54 = arith.constant 1 : index
    %c0_55 = arith.constant 0 : index
    %84 = vector.load %arg2[%c2_53, %c1_54, %c0_55] : memref<7x7x4xf32, #tpu.memory_space<vmem>>, vector<1x1x4xf32>
    %85 = vector.shape_cast %84 : vector<1x1x4xf32> to vector<4xf32>
    %86 = vector.shape_cast %85 : vector<4xf32> to vector<1x1x4xf32>
    %87 = vector.broadcast %86 : vector<1x1x4xf32> to vector<16x16x4xf32>
    %88 = arith.mulf %83, %87 : vector<16x16x4xf32>
    %89 = arith.addf %82, %88 : vector<16x16x4xf32>
    %90 = vector.extract_strided_slice %68 {offsets = [3, 0, 0], sizes = [16, 16, 4], strides = [1, 1, 1]} : vector<22x16x4xf32> to vector<16x16x4xf32>
    %c3_56 = arith.constant 3 : index
    %c1_57 = arith.constant 1 : index
    %c0_58 = arith.constant 0 : index
    %91 = vector.load %arg2[%c3_56, %c1_57, %c0_58] : memref<7x7x4xf32, #tpu.memory_space<vmem>>, vector<1x1x4xf32>
    %92 = vector.shape_cast %91 : vector<1x1x4xf32> to vector<4xf32>
    %93 = vector.shape_cast %92 : vector<4xf32> to vector<1x1x4xf32>
    %94 = vector.broadcast %93 : vector<1x1x4xf32> to vector<16x16x4xf32>
    %95 = arith.mulf %90, %94 : vector<16x16x4xf32>
    %96 = arith.addf %89, %95 : vector<16x16x4xf32>
    %97 = vector.extract_strided_slice %68 {offsets = [4, 0, 0], sizes = [16, 16, 4], strides = [1, 1, 1]} : vector<22x16x4xf32> to vector<16x16x4xf32>
    %c4_59 = arith.constant 4 : index
    %c1_60 = arith.constant 1 : index
    %c0_61 = arith.constant 0 : index
    %98 = vector.load %arg2[%c4_59, %c1_60, %c0_61] : memref<7x7x4xf32, #tpu.memory_space<vmem>>, vector<1x1x4xf32>
    %99 = vector.shape_cast %98 : vector<1x1x4xf32> to vector<4xf32>
    %100 = vector.shape_cast %99 : vector<4xf32> to vector<1x1x4xf32>
    %101 = vector.broadcast %100 : vector<1x1x4xf32> to vector<16x16x4xf32>
    %102 = arith.mulf %97, %101 : vector<16x16x4xf32>
    %103 = arith.addf %96, %102 : vector<16x16x4xf32>
    %104 = vector.extract_strided_slice %68 {offsets = [5, 0, 0], sizes = [16, 16, 4], strides = [1, 1, 1]} : vector<22x16x4xf32> to vector<16x16x4xf32>
    %c5_62 = arith.constant 5 : index
    %c1_63 = arith.constant 1 : index
    %c0_64 = arith.constant 0 : index
    %105 = vector.load %arg2[%c5_62, %c1_63, %c0_64] : memref<7x7x4xf32, #tpu.memory_space<vmem>>, vector<1x1x4xf32>
    %106 = vector.shape_cast %105 : vector<1x1x4xf32> to vector<4xf32>
    %107 = vector.shape_cast %106 : vector<4xf32> to vector<1x1x4xf32>
    %108 = vector.broadcast %107 : vector<1x1x4xf32> to vector<16x16x4xf32>
    %109 = arith.mulf %104, %108 : vector<16x16x4xf32>
    %110 = arith.addf %103, %109 : vector<16x16x4xf32>
    %111 = vector.extract_strided_slice %68 {offsets = [6, 0, 0], sizes = [16, 16, 4], strides = [1, 1, 1]} : vector<22x16x4xf32> to vector<16x16x4xf32>
    %c6_65 = arith.constant 6 : index
    %c1_66 = arith.constant 1 : index
    %c0_67 = arith.constant 0 : index
    %112 = vector.load %arg2[%c6_65, %c1_66, %c0_67] : memref<7x7x4xf32, #tpu.memory_space<vmem>>, vector<1x1x4xf32>
    %113 = vector.shape_cast %112 : vector<1x1x4xf32> to vector<4xf32>
    %114 = vector.shape_cast %113 : vector<4xf32> to vector<1x1x4xf32>
    %115 = vector.broadcast %114 : vector<1x1x4xf32> to vector<16x16x4xf32>
    %116 = arith.mulf %111, %115 : vector<16x16x4xf32>
    %117 = arith.addf %110, %116 : vector<16x16x4xf32>
    %c0_68 = arith.constant 0 : index
    %c7 = arith.constant 7 : index
    %c0_69 = arith.constant 0 : index
    %118 = vector.load %arg10[%c0_68, %c7, %c0_69] : memref<22x32x4xf32, #tpu.memory_space<vmem>>, vector<22x16x4xf32>
    %119 = vector.extract_strided_slice %118 {offsets = [0, 0, 0], sizes = [16, 16, 4], strides = [1, 1, 1]} : vector<22x16x4xf32> to vector<16x16x4xf32>
    %c0_70 = arith.constant 0 : index
    %c2_71 = arith.constant 2 : index
    %c0_72 = arith.constant 0 : index
    %120 = vector.load %arg2[%c0_70, %c2_71, %c0_72] : memref<7x7x4xf32, #tpu.memory_space<vmem>>, vector<1x1x4xf32>
    %121 = vector.shape_cast %120 : vector<1x1x4xf32> to vector<4xf32>
    %122 = vector.shape_cast %121 : vector<4xf32> to vector<1x1x4xf32>
    %123 = vector.broadcast %122 : vector<1x1x4xf32> to vector<16x16x4xf32>
    %124 = arith.mulf %119, %123 : vector<16x16x4xf32>
    %125 = arith.addf %117, %124 : vector<16x16x4xf32>
    %126 = vector.extract_strided_slice %118 {offsets = [1, 0, 0], sizes = [16, 16, 4], strides = [1, 1, 1]} : vector<22x16x4xf32> to vector<16x16x4xf32>
    %c1_73 = arith.constant 1 : index
    %c2_74 = arith.constant 2 : index
    %c0_75 = arith.constant 0 : index
    %127 = vector.load %arg2[%c1_73, %c2_74, %c0_75] : memref<7x7x4xf32, #tpu.memory_space<vmem>>, vector<1x1x4xf32>
    %128 = vector.shape_cast %127 : vector<1x1x4xf32> to vector<4xf32>
    %129 = vector.shape_cast %128 : vector<4xf32> to vector<1x1x4xf32>
    %130 = vector.broadcast %129 : vector<1x1x4xf32> to vector<16x16x4xf32>
    %131 = arith.mulf %126, %130 : vector<16x16x4xf32>
    %132 = arith.addf %125, %131 : vector<16x16x4xf32>
    %133 = vector.extract_strided_slice %118 {offsets = [2, 0, 0], sizes = [16, 16, 4], strides = [1, 1, 1]} : vector<22x16x4xf32> to vector<16x16x4xf32>
    %c2_76 = arith.constant 2 : index
    %c2_77 = arith.constant 2 : index
    %c0_78 = arith.constant 0 : index
    %134 = vector.load %arg2[%c2_76, %c2_77, %c0_78] : memref<7x7x4xf32, #tpu.memory_space<vmem>>, vector<1x1x4xf32>
    %135 = vector.shape_cast %134 : vector<1x1x4xf32> to vector<4xf32>
    %136 = vector.shape_cast %135 : vector<4xf32> to vector<1x1x4xf32>
    %137 = vector.broadcast %136 : vector<1x1x4xf32> to vector<16x16x4xf32>
    %138 = arith.mulf %133, %137 : vector<16x16x4xf32>
    %139 = arith.addf %132, %138 : vector<16x16x4xf32>
    %140 = vector.extract_strided_slice %118 {offsets = [3, 0, 0], sizes = [16, 16, 4], strides = [1, 1, 1]} : vector<22x16x4xf32> to vector<16x16x4xf32>
    %c3_79 = arith.constant 3 : index
    %c2_80 = arith.constant 2 : index
    %c0_81 = arith.constant 0 : index
    %141 = vector.load %arg2[%c3_79, %c2_80, %c0_81] : memref<7x7x4xf32, #tpu.memory_space<vmem>>, vector<1x1x4xf32>
    %142 = vector.shape_cast %141 : vector<1x1x4xf32> to vector<4xf32>
    %143 = vector.shape_cast %142 : vector<4xf32> to vector<1x1x4xf32>
    %144 = vector.broadcast %143 : vector<1x1x4xf32> to vector<16x16x4xf32>
    %145 = arith.mulf %140, %144 : vector<16x16x4xf32>
    %146 = arith.addf %139, %145 : vector<16x16x4xf32>
    %147 = vector.extract_strided_slice %118 {offsets = [4, 0, 0], sizes = [16, 16, 4], strides = [1, 1, 1]} : vector<22x16x4xf32> to vector<16x16x4xf32>
    %c4_82 = arith.constant 4 : index
    %c2_83 = arith.constant 2 : index
    %c0_84 = arith.constant 0 : index
    %148 = vector.load %arg2[%c4_82, %c2_83, %c0_84] : memref<7x7x4xf32, #tpu.memory_space<vmem>>, vector<1x1x4xf32>
    %149 = vector.shape_cast %148 : vector<1x1x4xf32> to vector<4xf32>
    %150 = vector.shape_cast %149 : vector<4xf32> to vector<1x1x4xf32>
    %151 = vector.broadcast %150 : vector<1x1x4xf32> to vector<16x16x4xf32>
    %152 = arith.mulf %147, %151 : vector<16x16x4xf32>
    %153 = arith.addf %146, %152 : vector<16x16x4xf32>
    %154 = vector.extract_strided_slice %118 {offsets = [5, 0, 0], sizes = [16, 16, 4], strides = [1, 1, 1]} : vector<22x16x4xf32> to vector<16x16x4xf32>
    %c5_85 = arith.constant 5 : index
    %c2_86 = arith.constant 2 : index
    %c0_87 = arith.constant 0 : index
    %155 = vector.load %arg2[%c5_85, %c2_86, %c0_87] : memref<7x7x4xf32, #tpu.memory_space<vmem>>, vector<1x1x4xf32>
    %156 = vector.shape_cast %155 : vector<1x1x4xf32> to vector<4xf32>
    %157 = vector.shape_cast %156 : vector<4xf32> to vector<1x1x4xf32>
    %158 = vector.broadcast %157 : vector<1x1x4xf32> to vector<16x16x4xf32>
    %159 = arith.mulf %154, %158 : vector<16x16x4xf32>
    %160 = arith.addf %153, %159 : vector<16x16x4xf32>
    %161 = vector.extract_strided_slice %118 {offsets = [6, 0, 0], sizes = [16, 16, 4], strides = [1, 1, 1]} : vector<22x16x4xf32> to vector<16x16x4xf32>
    %c6_88 = arith.constant 6 : index
    %c2_89 = arith.constant 2 : index
    %c0_90 = arith.constant 0 : index
    %162 = vector.load %arg2[%c6_88, %c2_89, %c0_90] : memref<7x7x4xf32, #tpu.memory_space<vmem>>, vector<1x1x4xf32>
    %163 = vector.shape_cast %162 : vector<1x1x4xf32> to vector<4xf32>
    %164 = vector.shape_cast %163 : vector<4xf32> to vector<1x1x4xf32>
    %165 = vector.broadcast %164 : vector<1x1x4xf32> to vector<16x16x4xf32>
    %166 = arith.mulf %161, %165 : vector<16x16x4xf32>
    %167 = arith.addf %160, %166 : vector<16x16x4xf32>
    %c0_91 = arith.constant 0 : index
    %c8_92 = arith.constant 8 : index
    %c0_93 = arith.constant 0 : index
    %168 = vector.load %arg10[%c0_91, %c8_92, %c0_93] : memref<22x32x4xf32, #tpu.memory_space<vmem>>, vector<22x16x4xf32>
    %169 = vector.extract_strided_slice %168 {offsets = [0, 0, 0], sizes = [16, 16, 4], strides = [1, 1, 1]} : vector<22x16x4xf32> to vector<16x16x4xf32>
    %c0_94 = arith.constant 0 : index
    %c3_95 = arith.constant 3 : index
    %c0_96 = arith.constant 0 : index
    %170 = vector.load %arg2[%c0_94, %c3_95, %c0_96] : memref<7x7x4xf32, #tpu.memory_space<vmem>>, vector<1x1x4xf32>
    %171 = vector.shape_cast %170 : vector<1x1x4xf32> to vector<4xf32>
    %172 = vector.shape_cast %171 : vector<4xf32> to vector<1x1x4xf32>
    %173 = vector.broadcast %172 : vector<1x1x4xf32> to vector<16x16x4xf32>
    %174 = arith.mulf %169, %173 : vector<16x16x4xf32>
    %175 = arith.addf %167, %174 : vector<16x16x4xf32>
    %176 = vector.extract_strided_slice %168 {offsets = [1, 0, 0], sizes = [16, 16, 4], strides = [1, 1, 1]} : vector<22x16x4xf32> to vector<16x16x4xf32>
    %c1_97 = arith.constant 1 : index
    %c3_98 = arith.constant 3 : index
    %c0_99 = arith.constant 0 : index
    %177 = vector.load %arg2[%c1_97, %c3_98, %c0_99] : memref<7x7x4xf32, #tpu.memory_space<vmem>>, vector<1x1x4xf32>
    %178 = vector.shape_cast %177 : vector<1x1x4xf32> to vector<4xf32>
    %179 = vector.shape_cast %178 : vector<4xf32> to vector<1x1x4xf32>
    %180 = vector.broadcast %179 : vector<1x1x4xf32> to vector<16x16x4xf32>
    %181 = arith.mulf %176, %180 : vector<16x16x4xf32>
    %182 = arith.addf %175, %181 : vector<16x16x4xf32>
    %183 = vector.extract_strided_slice %168 {offsets = [2, 0, 0], sizes = [16, 16, 4], strides = [1, 1, 1]} : vector<22x16x4xf32> to vector<16x16x4xf32>
    %c2_100 = arith.constant 2 : index
    %c3_101 = arith.constant 3 : index
    %c0_102 = arith.constant 0 : index
    %184 = vector.load %arg2[%c2_100, %c3_101, %c0_102] : memref<7x7x4xf32, #tpu.memory_space<vmem>>, vector<1x1x4xf32>
    %185 = vector.shape_cast %184 : vector<1x1x4xf32> to vector<4xf32>
    %186 = vector.shape_cast %185 : vector<4xf32> to vector<1x1x4xf32>
    %187 = vector.broadcast %186 : vector<1x1x4xf32> to vector<16x16x4xf32>
    %188 = arith.mulf %183, %187 : vector<16x16x4xf32>
    %189 = arith.addf %182, %188 : vector<16x16x4xf32>
    %190 = vector.extract_strided_slice %168 {offsets = [3, 0, 0], sizes = [16, 16, 4], strides = [1, 1, 1]} : vector<22x16x4xf32> to vector<16x16x4xf32>
    %c3_103 = arith.constant 3 : index
    %c3_104 = arith.constant 3 : index
    %c0_105 = arith.constant 0 : index
    %191 = vector.load %arg2[%c3_103, %c3_104, %c0_105] : memref<7x7x4xf32, #tpu.memory_space<vmem>>, vector<1x1x4xf32>
    %192 = vector.shape_cast %191 : vector<1x1x4xf32> to vector<4xf32>
    %193 = vector.shape_cast %192 : vector<4xf32> to vector<1x1x4xf32>
    %194 = vector.broadcast %193 : vector<1x1x4xf32> to vector<16x16x4xf32>
    %195 = arith.mulf %190, %194 : vector<16x16x4xf32>
    %196 = arith.addf %189, %195 : vector<16x16x4xf32>
    %197 = vector.extract_strided_slice %168 {offsets = [4, 0, 0], sizes = [16, 16, 4], strides = [1, 1, 1]} : vector<22x16x4xf32> to vector<16x16x4xf32>
    %c4_106 = arith.constant 4 : index
    %c3_107 = arith.constant 3 : index
    %c0_108 = arith.constant 0 : index
    %198 = vector.load %arg2[%c4_106, %c3_107, %c0_108] : memref<7x7x4xf32, #tpu.memory_space<vmem>>, vector<1x1x4xf32>
    %199 = vector.shape_cast %198 : vector<1x1x4xf32> to vector<4xf32>
    %200 = vector.shape_cast %199 : vector<4xf32> to vector<1x1x4xf32>
    %201 = vector.broadcast %200 : vector<1x1x4xf32> to vector<16x16x4xf32>
    %202 = arith.mulf %197, %201 : vector<16x16x4xf32>
    %203 = arith.addf %196, %202 : vector<16x16x4xf32>
    %204 = vector.extract_strided_slice %168 {offsets = [5, 0, 0], sizes = [16, 16, 4], strides = [1, 1, 1]} : vector<22x16x4xf32> to vector<16x16x4xf32>
    %c5_109 = arith.constant 5 : index
    %c3_110 = arith.constant 3 : index
    %c0_111 = arith.constant 0 : index
    %205 = vector.load %arg2[%c5_109, %c3_110, %c0_111] : memref<7x7x4xf32, #tpu.memory_space<vmem>>, vector<1x1x4xf32>
    %206 = vector.shape_cast %205 : vector<1x1x4xf32> to vector<4xf32>
    %207 = vector.shape_cast %206 : vector<4xf32> to vector<1x1x4xf32>
    %208 = vector.broadcast %207 : vector<1x1x4xf32> to vector<16x16x4xf32>
    %209 = arith.mulf %204, %208 : vector<16x16x4xf32>
    %210 = arith.addf %203, %209 : vector<16x16x4xf32>
    %211 = vector.extract_strided_slice %168 {offsets = [6, 0, 0], sizes = [16, 16, 4], strides = [1, 1, 1]} : vector<22x16x4xf32> to vector<16x16x4xf32>
    %c6_112 = arith.constant 6 : index
    %c3_113 = arith.constant 3 : index
    %c0_114 = arith.constant 0 : index
    %212 = vector.load %arg2[%c6_112, %c3_113, %c0_114] : memref<7x7x4xf32, #tpu.memory_space<vmem>>, vector<1x1x4xf32>
    %213 = vector.shape_cast %212 : vector<1x1x4xf32> to vector<4xf32>
    %214 = vector.shape_cast %213 : vector<4xf32> to vector<1x1x4xf32>
    %215 = vector.broadcast %214 : vector<1x1x4xf32> to vector<16x16x4xf32>
    %216 = arith.mulf %211, %215 : vector<16x16x4xf32>
    %217 = arith.addf %210, %216 : vector<16x16x4xf32>
    %c0_115 = arith.constant 0 : index
    %c9 = arith.constant 9 : index
    %c0_116 = arith.constant 0 : index
    %218 = vector.load %arg10[%c0_115, %c9, %c0_116] : memref<22x32x4xf32, #tpu.memory_space<vmem>>, vector<22x16x4xf32>
    %219 = vector.extract_strided_slice %218 {offsets = [0, 0, 0], sizes = [16, 16, 4], strides = [1, 1, 1]} : vector<22x16x4xf32> to vector<16x16x4xf32>
    %c0_117 = arith.constant 0 : index
    %c4_118 = arith.constant 4 : index
    %c0_119 = arith.constant 0 : index
    %220 = vector.load %arg2[%c0_117, %c4_118, %c0_119] : memref<7x7x4xf32, #tpu.memory_space<vmem>>, vector<1x1x4xf32>
    %221 = vector.shape_cast %220 : vector<1x1x4xf32> to vector<4xf32>
    %222 = vector.shape_cast %221 : vector<4xf32> to vector<1x1x4xf32>
    %223 = vector.broadcast %222 : vector<1x1x4xf32> to vector<16x16x4xf32>
    %224 = arith.mulf %219, %223 : vector<16x16x4xf32>
    %225 = arith.addf %217, %224 : vector<16x16x4xf32>
    %226 = vector.extract_strided_slice %218 {offsets = [1, 0, 0], sizes = [16, 16, 4], strides = [1, 1, 1]} : vector<22x16x4xf32> to vector<16x16x4xf32>
    %c1_120 = arith.constant 1 : index
    %c4_121 = arith.constant 4 : index
    %c0_122 = arith.constant 0 : index
    %227 = vector.load %arg2[%c1_120, %c4_121, %c0_122] : memref<7x7x4xf32, #tpu.memory_space<vmem>>, vector<1x1x4xf32>
    %228 = vector.shape_cast %227 : vector<1x1x4xf32> to vector<4xf32>
    %229 = vector.shape_cast %228 : vector<4xf32> to vector<1x1x4xf32>
    %230 = vector.broadcast %229 : vector<1x1x4xf32> to vector<16x16x4xf32>
    %231 = arith.mulf %226, %230 : vector<16x16x4xf32>
    %232 = arith.addf %225, %231 : vector<16x16x4xf32>
    %233 = vector.extract_strided_slice %218 {offsets = [2, 0, 0], sizes = [16, 16, 4], strides = [1, 1, 1]} : vector<22x16x4xf32> to vector<16x16x4xf32>
    %c2_123 = arith.constant 2 : index
    %c4_124 = arith.constant 4 : index
    %c0_125 = arith.constant 0 : index
    %234 = vector.load %arg2[%c2_123, %c4_124, %c0_125] : memref<7x7x4xf32, #tpu.memory_space<vmem>>, vector<1x1x4xf32>
    %235 = vector.shape_cast %234 : vector<1x1x4xf32> to vector<4xf32>
    %236 = vector.shape_cast %235 : vector<4xf32> to vector<1x1x4xf32>
    %237 = vector.broadcast %236 : vector<1x1x4xf32> to vector<16x16x4xf32>
    %238 = arith.mulf %233, %237 : vector<16x16x4xf32>
    %239 = arith.addf %232, %238 : vector<16x16x4xf32>
    %240 = vector.extract_strided_slice %218 {offsets = [3, 0, 0], sizes = [16, 16, 4], strides = [1, 1, 1]} : vector<22x16x4xf32> to vector<16x16x4xf32>
    %c3_126 = arith.constant 3 : index
    %c4_127 = arith.constant 4 : index
    %c0_128 = arith.constant 0 : index
    %241 = vector.load %arg2[%c3_126, %c4_127, %c0_128] : memref<7x7x4xf32, #tpu.memory_space<vmem>>, vector<1x1x4xf32>
    %242 = vector.shape_cast %241 : vector<1x1x4xf32> to vector<4xf32>
    %243 = vector.shape_cast %242 : vector<4xf32> to vector<1x1x4xf32>
    %244 = vector.broadcast %243 : vector<1x1x4xf32> to vector<16x16x4xf32>
    %245 = arith.mulf %240, %244 : vector<16x16x4xf32>
    %246 = arith.addf %239, %245 : vector<16x16x4xf32>
    %247 = vector.extract_strided_slice %218 {offsets = [4, 0, 0], sizes = [16, 16, 4], strides = [1, 1, 1]} : vector<22x16x4xf32> to vector<16x16x4xf32>
    %c4_129 = arith.constant 4 : index
    %c4_130 = arith.constant 4 : index
    %c0_131 = arith.constant 0 : index
    %248 = vector.load %arg2[%c4_129, %c4_130, %c0_131] : memref<7x7x4xf32, #tpu.memory_space<vmem>>, vector<1x1x4xf32>
    %249 = vector.shape_cast %248 : vector<1x1x4xf32> to vector<4xf32>
    %250 = vector.shape_cast %249 : vector<4xf32> to vector<1x1x4xf32>
    %251 = vector.broadcast %250 : vector<1x1x4xf32> to vector<16x16x4xf32>
    %252 = arith.mulf %247, %251 : vector<16x16x4xf32>
    %253 = arith.addf %246, %252 : vector<16x16x4xf32>
    %254 = vector.extract_strided_slice %218 {offsets = [5, 0, 0], sizes = [16, 16, 4], strides = [1, 1, 1]} : vector<22x16x4xf32> to vector<16x16x4xf32>
    %c5_132 = arith.constant 5 : index
    %c4_133 = arith.constant 4 : index
    %c0_134 = arith.constant 0 : index
    %255 = vector.load %arg2[%c5_132, %c4_133, %c0_134] : memref<7x7x4xf32, #tpu.memory_space<vmem>>, vector<1x1x4xf32>
    %256 = vector.shape_cast %255 : vector<1x1x4xf32> to vector<4xf32>
    %257 = vector.shape_cast %256 : vector<4xf32> to vector<1x1x4xf32>
    %258 = vector.broadcast %257 : vector<1x1x4xf32> to vector<16x16x4xf32>
    %259 = arith.mulf %254, %258 : vector<16x16x4xf32>
    %260 = arith.addf %253, %259 : vector<16x16x4xf32>
    %261 = vector.extract_strided_slice %218 {offsets = [6, 0, 0], sizes = [16, 16, 4], strides = [1, 1, 1]} : vector<22x16x4xf32> to vector<16x16x4xf32>
    %c6_135 = arith.constant 6 : index
    %c4_136 = arith.constant 4 : index
    %c0_137 = arith.constant 0 : index
    %262 = vector.load %arg2[%c6_135, %c4_136, %c0_137] : memref<7x7x4xf32, #tpu.memory_space<vmem>>, vector<1x1x4xf32>
    %263 = vector.shape_cast %262 : vector<1x1x4xf32> to vector<4xf32>
    %264 = vector.shape_cast %263 : vector<4xf32> to vector<1x1x4xf32>
    %265 = vector.broadcast %264 : vector<1x1x4xf32> to vector<16x16x4xf32>
    %266 = arith.mulf %261, %265 : vector<16x16x4xf32>
    %267 = arith.addf %260, %266 : vector<16x16x4xf32>
    %c0_138 = arith.constant 0 : index
    %c10 = arith.constant 10 : index
    %c0_139 = arith.constant 0 : index
    %268 = vector.load %arg10[%c0_138, %c10, %c0_139] : memref<22x32x4xf32, #tpu.memory_space<vmem>>, vector<22x16x4xf32>
    %269 = vector.extract_strided_slice %268 {offsets = [0, 0, 0], sizes = [16, 16, 4], strides = [1, 1, 1]} : vector<22x16x4xf32> to vector<16x16x4xf32>
    %c0_140 = arith.constant 0 : index
    %c5_141 = arith.constant 5 : index
    %c0_142 = arith.constant 0 : index
    %270 = vector.load %arg2[%c0_140, %c5_141, %c0_142] : memref<7x7x4xf32, #tpu.memory_space<vmem>>, vector<1x1x4xf32>
    %271 = vector.shape_cast %270 : vector<1x1x4xf32> to vector<4xf32>
    %272 = vector.shape_cast %271 : vector<4xf32> to vector<1x1x4xf32>
    %273 = vector.broadcast %272 : vector<1x1x4xf32> to vector<16x16x4xf32>
    %274 = arith.mulf %269, %273 : vector<16x16x4xf32>
    %275 = arith.addf %267, %274 : vector<16x16x4xf32>
    %276 = vector.extract_strided_slice %268 {offsets = [1, 0, 0], sizes = [16, 16, 4], strides = [1, 1, 1]} : vector<22x16x4xf32> to vector<16x16x4xf32>
    %c1_143 = arith.constant 1 : index
    %c5_144 = arith.constant 5 : index
    %c0_145 = arith.constant 0 : index
    %277 = vector.load %arg2[%c1_143, %c5_144, %c0_145] : memref<7x7x4xf32, #tpu.memory_space<vmem>>, vector<1x1x4xf32>
    %278 = vector.shape_cast %277 : vector<1x1x4xf32> to vector<4xf32>
    %279 = vector.shape_cast %278 : vector<4xf32> to vector<1x1x4xf32>
    %280 = vector.broadcast %279 : vector<1x1x4xf32> to vector<16x16x4xf32>
    %281 = arith.mulf %276, %280 : vector<16x16x4xf32>
    %282 = arith.addf %275, %281 : vector<16x16x4xf32>
    %283 = vector.extract_strided_slice %268 {offsets = [2, 0, 0], sizes = [16, 16, 4], strides = [1, 1, 1]} : vector<22x16x4xf32> to vector<16x16x4xf32>
    %c2_146 = arith.constant 2 : index
    %c5_147 = arith.constant 5 : index
    %c0_148 = arith.constant 0 : index
    %284 = vector.load %arg2[%c2_146, %c5_147, %c0_148] : memref<7x7x4xf32, #tpu.memory_space<vmem>>, vector<1x1x4xf32>
    %285 = vector.shape_cast %284 : vector<1x1x4xf32> to vector<4xf32>
    %286 = vector.shape_cast %285 : vector<4xf32> to vector<1x1x4xf32>
    %287 = vector.broadcast %286 : vector<1x1x4xf32> to vector<16x16x4xf32>
    %288 = arith.mulf %283, %287 : vector<16x16x4xf32>
    %289 = arith.addf %282, %288 : vector<16x16x4xf32>
    %290 = vector.extract_strided_slice %268 {offsets = [3, 0, 0], sizes = [16, 16, 4], strides = [1, 1, 1]} : vector<22x16x4xf32> to vector<16x16x4xf32>
    %c3_149 = arith.constant 3 : index
    %c5_150 = arith.constant 5 : index
    %c0_151 = arith.constant 0 : index
    %291 = vector.load %arg2[%c3_149, %c5_150, %c0_151] : memref<7x7x4xf32, #tpu.memory_space<vmem>>, vector<1x1x4xf32>
    %292 = vector.shape_cast %291 : vector<1x1x4xf32> to vector<4xf32>
    %293 = vector.shape_cast %292 : vector<4xf32> to vector<1x1x4xf32>
    %294 = vector.broadcast %293 : vector<1x1x4xf32> to vector<16x16x4xf32>
    %295 = arith.mulf %290, %294 : vector<16x16x4xf32>
    %296 = arith.addf %289, %295 : vector<16x16x4xf32>
    %297 = vector.extract_strided_slice %268 {offsets = [4, 0, 0], sizes = [16, 16, 4], strides = [1, 1, 1]} : vector<22x16x4xf32> to vector<16x16x4xf32>
    %c4_152 = arith.constant 4 : index
    %c5_153 = arith.constant 5 : index
    %c0_154 = arith.constant 0 : index
    %298 = vector.load %arg2[%c4_152, %c5_153, %c0_154] : memref<7x7x4xf32, #tpu.memory_space<vmem>>, vector<1x1x4xf32>
    %299 = vector.shape_cast %298 : vector<1x1x4xf32> to vector<4xf32>
    %300 = vector.shape_cast %299 : vector<4xf32> to vector<1x1x4xf32>
    %301 = vector.broadcast %300 : vector<1x1x4xf32> to vector<16x16x4xf32>
    %302 = arith.mulf %297, %301 : vector<16x16x4xf32>
    %303 = arith.addf %296, %302 : vector<16x16x4xf32>
    %304 = vector.extract_strided_slice %268 {offsets = [5, 0, 0], sizes = [16, 16, 4], strides = [1, 1, 1]} : vector<22x16x4xf32> to vector<16x16x4xf32>
    %c5_155 = arith.constant 5 : index
    %c5_156 = arith.constant 5 : index
    %c0_157 = arith.constant 0 : index
    %305 = vector.load %arg2[%c5_155, %c5_156, %c0_157] : memref<7x7x4xf32, #tpu.memory_space<vmem>>, vector<1x1x4xf32>
    %306 = vector.shape_cast %305 : vector<1x1x4xf32> to vector<4xf32>
    %307 = vector.shape_cast %306 : vector<4xf32> to vector<1x1x4xf32>
    %308 = vector.broadcast %307 : vector<1x1x4xf32> to vector<16x16x4xf32>
    %309 = arith.mulf %304, %308 : vector<16x16x4xf32>
    %310 = arith.addf %303, %309 : vector<16x16x4xf32>
    %311 = vector.extract_strided_slice %268 {offsets = [6, 0, 0], sizes = [16, 16, 4], strides = [1, 1, 1]} : vector<22x16x4xf32> to vector<16x16x4xf32>
    %c6_158 = arith.constant 6 : index
    %c5_159 = arith.constant 5 : index
    %c0_160 = arith.constant 0 : index
    %312 = vector.load %arg2[%c6_158, %c5_159, %c0_160] : memref<7x7x4xf32, #tpu.memory_space<vmem>>, vector<1x1x4xf32>
    %313 = vector.shape_cast %312 : vector<1x1x4xf32> to vector<4xf32>
    %314 = vector.shape_cast %313 : vector<4xf32> to vector<1x1x4xf32>
    %315 = vector.broadcast %314 : vector<1x1x4xf32> to vector<16x16x4xf32>
    %316 = arith.mulf %311, %315 : vector<16x16x4xf32>
    %317 = arith.addf %310, %316 : vector<16x16x4xf32>
    %c0_161 = arith.constant 0 : index
    %c11 = arith.constant 11 : index
    %c0_162 = arith.constant 0 : index
    %318 = vector.load %arg10[%c0_161, %c11, %c0_162] : memref<22x32x4xf32, #tpu.memory_space<vmem>>, vector<22x16x4xf32>
    %319 = vector.extract_strided_slice %318 {offsets = [0, 0, 0], sizes = [16, 16, 4], strides = [1, 1, 1]} : vector<22x16x4xf32> to vector<16x16x4xf32>
    %c0_163 = arith.constant 0 : index
    %c6_164 = arith.constant 6 : index
    %c0_165 = arith.constant 0 : index
    %320 = vector.load %arg2[%c0_163, %c6_164, %c0_165] : memref<7x7x4xf32, #tpu.memory_space<vmem>>, vector<1x1x4xf32>
    %321 = vector.shape_cast %320 : vector<1x1x4xf32> to vector<4xf32>
    %322 = vector.shape_cast %321 : vector<4xf32> to vector<1x1x4xf32>
    %323 = vector.broadcast %322 : vector<1x1x4xf32> to vector<16x16x4xf32>
    %324 = arith.mulf %319, %323 : vector<16x16x4xf32>
    %325 = arith.addf %317, %324 : vector<16x16x4xf32>
    %326 = vector.extract_strided_slice %318 {offsets = [1, 0, 0], sizes = [16, 16, 4], strides = [1, 1, 1]} : vector<22x16x4xf32> to vector<16x16x4xf32>
    %c1_166 = arith.constant 1 : index
    %c6_167 = arith.constant 6 : index
    %c0_168 = arith.constant 0 : index
    %327 = vector.load %arg2[%c1_166, %c6_167, %c0_168] : memref<7x7x4xf32, #tpu.memory_space<vmem>>, vector<1x1x4xf32>
    %328 = vector.shape_cast %327 : vector<1x1x4xf32> to vector<4xf32>
    %329 = vector.shape_cast %328 : vector<4xf32> to vector<1x1x4xf32>
    %330 = vector.broadcast %329 : vector<1x1x4xf32> to vector<16x16x4xf32>
    %331 = arith.mulf %326, %330 : vector<16x16x4xf32>
    %332 = arith.addf %325, %331 : vector<16x16x4xf32>
    %333 = vector.extract_strided_slice %318 {offsets = [2, 0, 0], sizes = [16, 16, 4], strides = [1, 1, 1]} : vector<22x16x4xf32> to vector<16x16x4xf32>
    %c2_169 = arith.constant 2 : index
    %c6_170 = arith.constant 6 : index
    %c0_171 = arith.constant 0 : index
    %334 = vector.load %arg2[%c2_169, %c6_170, %c0_171] : memref<7x7x4xf32, #tpu.memory_space<vmem>>, vector<1x1x4xf32>
    %335 = vector.shape_cast %334 : vector<1x1x4xf32> to vector<4xf32>
    %336 = vector.shape_cast %335 : vector<4xf32> to vector<1x1x4xf32>
    %337 = vector.broadcast %336 : vector<1x1x4xf32> to vector<16x16x4xf32>
    %338 = arith.mulf %333, %337 : vector<16x16x4xf32>
    %339 = arith.addf %332, %338 : vector<16x16x4xf32>
    %340 = vector.extract_strided_slice %318 {offsets = [3, 0, 0], sizes = [16, 16, 4], strides = [1, 1, 1]} : vector<22x16x4xf32> to vector<16x16x4xf32>
    %c3_172 = arith.constant 3 : index
    %c6_173 = arith.constant 6 : index
    %c0_174 = arith.constant 0 : index
    %341 = vector.load %arg2[%c3_172, %c6_173, %c0_174] : memref<7x7x4xf32, #tpu.memory_space<vmem>>, vector<1x1x4xf32>
    %342 = vector.shape_cast %341 : vector<1x1x4xf32> to vector<4xf32>
    %343 = vector.shape_cast %342 : vector<4xf32> to vector<1x1x4xf32>
    %344 = vector.broadcast %343 : vector<1x1x4xf32> to vector<16x16x4xf32>
    %345 = arith.mulf %340, %344 : vector<16x16x4xf32>
    %346 = arith.addf %339, %345 : vector<16x16x4xf32>
    %347 = vector.extract_strided_slice %318 {offsets = [4, 0, 0], sizes = [16, 16, 4], strides = [1, 1, 1]} : vector<22x16x4xf32> to vector<16x16x4xf32>
    %c4_175 = arith.constant 4 : index
    %c6_176 = arith.constant 6 : index
    %c0_177 = arith.constant 0 : index
    %348 = vector.load %arg2[%c4_175, %c6_176, %c0_177] : memref<7x7x4xf32, #tpu.memory_space<vmem>>, vector<1x1x4xf32>
    %349 = vector.shape_cast %348 : vector<1x1x4xf32> to vector<4xf32>
    %350 = vector.shape_cast %349 : vector<4xf32> to vector<1x1x4xf32>
    %351 = vector.broadcast %350 : vector<1x1x4xf32> to vector<16x16x4xf32>
    %352 = arith.mulf %347, %351 : vector<16x16x4xf32>
    %353 = arith.addf %346, %352 : vector<16x16x4xf32>
    %354 = vector.extract_strided_slice %318 {offsets = [5, 0, 0], sizes = [16, 16, 4], strides = [1, 1, 1]} : vector<22x16x4xf32> to vector<16x16x4xf32>
    %c5_178 = arith.constant 5 : index
    %c6_179 = arith.constant 6 : index
    %c0_180 = arith.constant 0 : index
    %355 = vector.load %arg2[%c5_178, %c6_179, %c0_180] : memref<7x7x4xf32, #tpu.memory_space<vmem>>, vector<1x1x4xf32>
    %356 = vector.shape_cast %355 : vector<1x1x4xf32> to vector<4xf32>
    %357 = vector.shape_cast %356 : vector<4xf32> to vector<1x1x4xf32>
    %358 = vector.broadcast %357 : vector<1x1x4xf32> to vector<16x16x4xf32>
    %359 = arith.mulf %354, %358 : vector<16x16x4xf32>
    %360 = arith.addf %353, %359 : vector<16x16x4xf32>
    %361 = vector.extract_strided_slice %318 {offsets = [6, 0, 0], sizes = [16, 16, 4], strides = [1, 1, 1]} : vector<22x16x4xf32> to vector<16x16x4xf32>
    %c6_181 = arith.constant 6 : index
    %c6_182 = arith.constant 6 : index
    %c0_183 = arith.constant 0 : index
    %362 = vector.load %arg2[%c6_181, %c6_182, %c0_183] : memref<7x7x4xf32, #tpu.memory_space<vmem>>, vector<1x1x4xf32>
    %363 = vector.shape_cast %362 : vector<1x1x4xf32> to vector<4xf32>
    %364 = vector.shape_cast %363 : vector<4xf32> to vector<1x1x4xf32>
    %365 = vector.broadcast %364 : vector<1x1x4xf32> to vector<16x16x4xf32>
    %366 = arith.mulf %361, %365 : vector<16x16x4xf32>
    %367 = arith.addf %360, %366 : vector<16x16x4xf32>
    %368 = vector.shape_cast %12 : vector<4xf32> to vector<1x1x4xf32>
    %369 = vector.broadcast %368 : vector<1x1x4xf32> to vector<16x16x4xf32>
    %370 = arith.addf %367, %369 : vector<16x16x4xf32>
    %371 = vector.shape_cast %370 : vector<16x16x4xf32> to vector<256x4xf32>
    %cst_184 = arith.constant dense<0.000000e+00> : vector<256xf32>
    %372 = vector.multi_reduction <add>, %371, %cst_184 [1] : vector<256x4xf32> to vector<256xf32>
    %373 = vector.shape_cast %372 : vector<256xf32> to vector<256x1xf32>
    %cst_185 = arith.constant 4.000000e+00 : f32
    %374 = vector.broadcast %cst_185 : f32 to vector<256x1xf32>
    %375 = arith.divf %373, %374 : vector<256x1xf32>
    %376 = vector.broadcast %375 : vector<256x1xf32> to vector<256x4xf32>
    %377 = arith.subf %371, %376 : vector<256x4xf32>
    %378 = arith.mulf %377, %377 : vector<256x4xf32>
    %cst_186 = arith.constant dense<0.000000e+00> : vector<256xf32>
    %379 = vector.multi_reduction <add>, %378, %cst_186 [1] : vector<256x4xf32> to vector<256xf32>
    %380 = vector.shape_cast %379 : vector<256xf32> to vector<256x1xf32>
    %cst_187 = arith.constant 4.000000e+00 : f32
    %381 = vector.broadcast %cst_187 : f32 to vector<256x1xf32>
    %382 = arith.divf %380, %381 : vector<256x1xf32>
    %cst_188 = arith.constant 9.99999997E-7 : f32
    %383 = vector.broadcast %cst_188 : f32 to vector<256x1xf32>
    %384 = arith.addf %382, %383 : vector<256x1xf32>
    %385 = math.rsqrt %384 : vector<256x1xf32>
    %386 = vector.broadcast %385 : vector<256x1xf32> to vector<256x4xf32>
    %387 = arith.mulf %377, %386 : vector<256x4xf32>
    %388 = arith.truncf %387 : vector<256x4xf32> to vector<256x4xbf16>
    %cst_189 = arith.constant dense<0.000000e+00> : vector<256x16xf32>
    %389 = tpu.matmul %388, %13, %cst_189 {dimension_numbers = #tpu.dot_dimension_numbers<[1], [0], [0], [1], [0, 0, 1, 1], [], []>} : vector<256x4xbf16>, vector<4x16xbf16>, vector<256x16xf32> -> vector<256x16xf32>
    %390 = vector.shape_cast %15 : vector<16xf32> to vector<1x16xf32>
    %391 = vector.broadcast %390 : vector<1x16xf32> to vector<256x16xf32>
    %392 = arith.addf %389, %391 : vector<256x16xf32>
    %cst_190 = arith.constant 5.000000e-01 : f32
    %393 = vector.broadcast %cst_190 : f32 to vector<256x16xf32>
    %394 = arith.mulf %393, %392 : vector<256x16xf32>
    %cst_191 = arith.constant 0.707106769 : f32
    %395 = vector.broadcast %cst_191 : f32 to vector<256x16xf32>
    %396 = arith.mulf %392, %395 : vector<256x16xf32>
    %397 = math.erf %396 : vector<256x16xf32>
    %cst_192 = arith.constant 1.000000e+00 : f32
    %398 = vector.broadcast %cst_192 : f32 to vector<256x16xf32>
    %399 = arith.addf %398, %397 : vector<256x16xf32>
    %400 = arith.mulf %394, %399 : vector<256x16xf32>
    %401 = arith.mulf %400, %400 : vector<256x16xf32>
    %cst_193 = arith.constant dense<0.000000e+00> : vector<16xf32>
    %402 = vector.multi_reduction <add>, %401, %cst_193 [0] : vector<256x16xf32> to vector<16xf32>
    %403 = vector.shape_cast %402 : vector<16xf32> to vector<1x16xf32>
    %404 = arith.addf %16, %403 : vector<1x16xf32>
    %405 = arith.truncf %400 : vector<256x16xf32> to vector<256x16xbf16>
    %c0_194 = arith.constant 0 : index
    %c0_195 = arith.constant 0 : index
    %406 = vector.load %arg11[%c0_194, %c0_195] : memref<256x16xbf16, #tpu.memory_space<vmem>>, vector<256x16xbf16>
    tpu.vector_store %arg11[%c0_194, %c0_195], %405 {strides = array<i32>} : memref<256x16xbf16, #tpu.memory_space<vmem>>, vector<256x16xbf16>,
    %407 = math.sqrt %404 : vector<1x16xf32>
    %cst_196 = arith.constant dense<0.000000e+00> : vector<1xf32>
    %408 = vector.multi_reduction <add>, %407, %cst_196 [1] : vector<1x16xf32> to vector<1xf32>
    %409 = vector.shape_cast %408 : vector<1xf32> to vector<1x1xf32>
    %cst_197 = arith.constant 1.600000e+01 : f32
    %410 = vector.broadcast %cst_197 : f32 to vector<1x1xf32>
    %411 = arith.divf %409, %410 : vector<1x1xf32>
    %cst_198 = arith.constant 9.99999997E-7 : f32
    %412 = vector.broadcast %cst_198 : f32 to vector<1x1xf32>
    %413 = arith.addf %411, %412 : vector<1x1xf32>
    %414 = vector.broadcast %413 : vector<1x1xf32> to vector<1x16xf32>
    %415 = arith.divf %407, %414 : vector<1x16xf32>
    %c0_199 = arith.constant 0 : index
    %c0_200 = arith.constant 0 : index
    %416 = vector.load %arg6[%c0_199, %c0_200] : memref<1x16xf32, #tpu.memory_space<vmem>>, vector<1x16xf32>
    %417 = arith.mulf %416, %415 : vector<1x16xf32>
    %cst_201 = arith.constant 1.000000e+00 : f32
    %418 = vector.broadcast %cst_201 : f32 to vector<1x16xf32>
    %419 = arith.addf %417, %418 : vector<1x16xf32>
    %420 = tpu.transpose %419, [1, 0] : vector<1x16xf32> -> vector<16x1xf32>
    %c0_202 = arith.constant 0 : index
    %c0_203 = arith.constant 0 : index
    %421 = vector.load %arg7[%c0_202, %c0_203] : memref<16x4xbf16, #tpu.memory_space<vmem>>, vector<16x4xbf16>
    %422 = arith.extf %421 : vector<16x4xbf16> to vector<16x4xf32>
    %423 = vector.broadcast %420 : vector<16x1xf32> to vector<16x4xf32>
    %424 = arith.mulf %423, %422 : vector<16x4xf32>
    %425 = arith.truncf %424 : vector<16x4xf32> to vector<16x4xbf16>
    %c0_204 = arith.constant 0 : index
    %c0_205 = arith.constant 0 : index
    %426 = vector.load %arg8[%c0_204, %c0_205] : memref<1x4xf32, #tpu.memory_space<vmem>>, vector<1x4xf32>
    %427 = vector.shape_cast %426 : vector<1x4xf32> to vector<4xf32>
    %c0_206 = arith.constant 0 : index
    %c0_207 = arith.constant 0 : index
    %428 = vector.load %arg11[%c0_206, %c0_207] : memref<256x16xbf16, #tpu.memory_space<vmem>>, vector<256x16xbf16>
    %cst_208 = arith.constant dense<0.000000e+00> : vector<256x4xf32>
    %429 = tpu.matmul %428, %425, %cst_208 {dimension_numbers = #tpu.dot_dimension_numbers<[1], [0], [0], [1], [0, 0, 1, 1], [], []>} : vector<256x16xbf16>, vector<16x4xbf16>, vector<256x4xf32> -> vector<256x4xf32>
    %430 = vector.shape_cast %427 : vector<4xf32> to vector<1x4xf32>
    %431 = vector.broadcast %430 : vector<1x4xf32> to vector<256x4xf32>
    %432 = arith.addf %429, %431 : vector<256x4xf32>
    %c0_209 = arith.constant 0 : index
    %c0_210 = arith.constant 0 : index
    %c0_211 = arith.constant 0 : index
    %c0_212 = arith.constant 0 : index
    %433 = vector.load %arg1[%c0_209, %c0_210, %c0_211, %c0_212] : memref<1x16x16x4xf32, #tpu.memory_space<vmem>>, vector<1x16x16x4xf32>
    %434 = vector.shape_cast %433 : vector<1x16x16x4xf32> to vector<16x16x4xf32>
    %435 = vector.shape_cast %432 : vector<256x4xf32> to vector<16x16x4xf32>
    %436 = arith.addf %435, %434 : vector<16x16x4xf32>
    %c0_213 = arith.constant 0 : index
    %c0_214 = arith.constant 0 : index
    %c0_215 = arith.constant 0 : index
    %c0_216 = arith.constant 0 : index
    %437 = vector.load %arg9[%c0_213, %c0_214, %c0_215, %c0_216] : memref<1x16x16x4xf32, #tpu.memory_space<vmem>>, vector<1x16x16x4xf32>
    %438 = vector.shape_cast %437 : vector<1x16x16x4xf32> to vector<16x16x4xf32>
    %439 = vector.shape_cast %436 : vector<16x16x4xf32> to vector<1x16x16x4xf32>
    tpu.vector_store %arg9[%c0_213, %c0_214, %c0_215, %c0_216], %439 {strides = array<i32>} : memref<1x16x16x4xf32, #tpu.memory_space<vmem>>, vector<1x16x16x4xf32>,
    return
  }
  func.func @transform_0(%arg0: i32) -> (i32, i32, i32, i32) {
    %c0_i32 = arith.constant 0 : i32
    %c0_i32_0 = arith.constant 0 : i32
    %c0_i32_1 = arith.constant 0 : i32
    %c0_i32_2 = arith.constant 0 : i32
    return %arg0, %c0_i32, %c0_i32_0, %c0_i32_1 : i32, i32, i32, i32
  }
  func.func @transform_1(%arg0: i32) -> (i32, i32, i32) {
    %c0_i32 = arith.constant 0 : i32
    %c0_i32_0 = arith.constant 0 : i32
    %c0_i32_1 = arith.constant 0 : i32
    %c0_i32_2 = arith.constant 0 : i32
    return %c0_i32, %c0_i32_0, %c0_i32_1 : i32, i32, i32
  }
  func.func @transform_2(%arg0: i32) -> (i32, i32) {
    %c0_i32 = arith.constant 0 : i32
    %c0_i32_0 = arith.constant 0 : i32
    %c0_i32_1 = arith.constant 0 : i32
    return %c0_i32, %c0_i32_0 : i32, i32
  }
  func.func @transform_3(%arg0: i32) -> (i32, i32) {
    %c0_i32 = arith.constant 0 : i32
    %c0_i32_0 = arith.constant 0 : i32
    %c0_i32_1 = arith.constant 0 : i32
    return %c0_i32, %c0_i32_0 : i32, i32
  }
  func.func @transform_4(%arg0: i32) -> (i32, i32) {
    %c0_i32 = arith.constant 0 : i32
    %c0_i32_0 = arith.constant 0 : i32
    %c0_i32_1 = arith.constant 0 : i32
    return %c0_i32, %c0_i32_0 : i32, i32
  }
  func.func @transform_5(%arg0: i32) -> (i32, i32) {
    %c0_i32 = arith.constant 0 : i32
    %c0_i32_0 = arith.constant 0 : i32
    %c0_i32_1 = arith.constant 0 : i32
    return %c0_i32, %c0_i32_0 : i32, i32
  }
  func.func @transform_6(%arg0: i32) -> (i32, i32) {
    %c0_i32 = arith.constant 0 : i32
    %c0_i32_0 = arith.constant 0 : i32
    %c0_i32_1 = arith.constant 0 : i32
    return %c0_i32, %c0_i32_0 : i32, i32
  }
  func.func @transform_7(%arg0: i32) -> (i32, i32) {
    %c0_i32 = arith.constant 0 : i32
    %c0_i32_0 = arith.constant 0 : i32
    %c0_i32_1 = arith.constant 0 : i32
    return %c0_i32, %c0_i32_0 : i32, i32
  }
  func.func @transform_8(%arg0: i32) -> (i32, i32, i32, i32) {
    %c0_i32 = arith.constant 0 : i32
    %c0_i32_0 = arith.constant 0 : i32
    %c0_i32_1 = arith.constant 0 : i32
    %c0_i32_2 = arith.constant 0 : i32
    return %arg0, %c0_i32, %c0_i32_0, %c0_i32_1 : i32, i32, i32, i32
  }
}

</mosaic_0001>

<llo_original>
// kernel: tpu_custom_call.1
$region0: #{tpu_custom_call.1}
  #allocation0 [shape = 'u32[]', space=smem, size = 0x4, offset = 0x4, fixed_abs, tag = 'smem constant byte address 0x4 - core index']
  #allocation1 [shape = 'u32[144,128]{1,0:T(1,128)}', space=vmem, size = 0x12000, scoped, tag = 'internal scratch']
  #allocation2 [shape = 'f32[22,32,4]{2,1,0:T(8,128)}', space=vmem, size = 0x58000, scoped, tag = 'scratch operand']
  #allocation3 [shape = 'bf16[256,16]{1,0:T(16,128)(2,1)}', space=vmem, size = 0x10000, scoped, tag = 'scratch operand']
  %s0 = inlined_call_operand.vmem [shape: f32[2,16,16,4], index: 0, kind: input, shape index: {}]
  %s1 = inlined_call_operand.vmem [shape: f32[7,7,4], index: 1, kind: input, shape index: {}]
  %s2 = inlined_call_operand.vmem [shape: f32[1,4], index: 2, kind: input, shape index: {}]
  %s3 = inlined_call_operand.vmem [shape: bf16[4,16], index: 3, kind: input, shape index: {}]
  %s4 = inlined_call_operand.vmem [shape: f32[1,16], index: 4, kind: input, shape index: {}]
  %s5 = inlined_call_operand.vmem [shape: f32[1,16], index: 5, kind: input, shape index: {}]
  %s6 = inlined_call_operand.vmem [shape: bf16[16,4], index: 6, kind: input, shape index: {}]
  %s7 = inlined_call_operand.vmem [shape: f32[1,4], index: 7, kind: input, shape index: {}]
  %s8 = inlined_call_operand.vmem [shape: f32[2,16,16,4], index: 8, kind: output, shape index: {}]
  %s9 = sld [smem:[#allocation0]]
  $region65: #{tpu_custom_call.1} parent=0
    _
  %s11 = ssub.s32 1, %s9
  %s12 = scalar_select 0, %s11, %s9
  loop: start=0, step=1, limit=4
  $region2: #{tpu_custom_call.1} parent=0 // loop_pre_header
    _
  $region3: #{tpu_custom_call.1} parent=0 // loop_header
    %s14 = sphi 0, %s18
    %p15 = scmp.ge.s32.totalorder %s14, 4
    %s24 = sphi 0, %s26
    %s27 = sphi 0, %s24
    %s28 = sphi 0, %s27
    %s44 = sphi 0, %s28
    %s48 = sphi 0, %s48
    %s50 = sphi 0, %s48
    %s51 = sphi 0, %s50
    %s65 = sphi 0, %s51
    %s69 = sphi 0, %s69
    %s71 = sphi 0, %s69
    %s72 = sphi 0, %s71
    %s86 = sphi 0, %s72
    %s90 = sphi 0, %s90
    %s92 = sphi 0, %s90
    %s93 = sphi 0, %s92
    %s107 = sphi 0, %s93
    %s111 = sphi 0, %s111
    %s113 = sphi 0, %s111
    %s114 = sphi 0, %s113
    %s128 = sphi 0, %s114
    %s132 = sphi 0, %s132
    %s134 = sphi 0, %s132
    %s135 = sphi 0, %s134
    %s149 = sphi 0, %s135
    %s153 = sphi 0, %s153
    %s155 = sphi 0, %s153
    %s156 = sphi 0, %s155
    %s170 = sphi 0, %s156
    %s174 = sphi 0, %s174
    %s176 = sphi 0, %s174
    %s177 = sphi 0, %s176
    %s191 = sphi 0, %s177
    %s197 = sphi 0, %s199
    %s200 = sphi 0, %s197
    %s201 = sphi 0, %s200
    %s217 = sphi 0, %s201
  $region4: #{tpu_custom_call.1} parent=0 // loop_header_branch
    %17 = sbr.rel (%p15) target = $region8
  $region5: #{tpu_custom_call.1} parent=0 // loop_body
    %s19 = ssub.s32 %s14, 1
    %s20 = ssub.s32 %s14, 2
    %s21 = sadd.s32 %s14, 1
    %s22 = ssub.s32 %s14, %s21
    %p23 = scmp.eq.s32.totalorder %s22, 0
    %s25 = sadd.s32 %s24, 1
    %s26 = scalar_select %p23, %s24, %s25
    %p29 = pneg %p23
    %p30 = scmp.eq.s32.totalorder %s14, 1
    %p31 = por %p29, %p30
    %p32 = scmp.ne.s32.totalorder %s24, %s27
    %p33 = scmp.eq.s32.totalorder %s14, 0
    %p34 = por %p32, %p33
    %p35 = scmp.ne.s32.totalorder %s24, %s27
    %p36 = scmp.eq.s32.totalorder %s19, 1
    %p37 = por %p35, %p36
    %p38 = scmp.ne.s32.totalorder %s27, %s28
    %p39 = scmp.eq.s32.totalorder %s19, 0
    %p40 = por %p38, %p39
    %p41 = scmp.ne.s32.totalorder %s27, %s28
    %p42 = scmp.eq.s32.totalorder %s20, 1
    %p43 = por %p41, %p42
    %p45 = scmp.ne.s32.totalorder %s28, %s44
    %p46 = scmp.eq.s32.totalorder %s20, 0
    %p47 = por %p45, %p46
    %s49 = sadd.s32 %s48, 1
    %p52 = scmp.eq.s32.totalorder %s14, 1
    %p53 = scmp.ne.s32.totalorder %s48, %s50
    %p54 = scmp.eq.s32.totalorder %s14, 0
    %p55 = por %p53, %p54
    %p56 = scmp.ne.s32.totalorder %s48, %s50
    %p57 = scmp.eq.s32.totalorder %s19, 1
    %p58 = por %p56, %p57
    %p59 = scmp.ne.s32.totalorder %s50, %s51
    %p60 = scmp.eq.s32.totalorder %s19, 0
    %p61 = por %p59, %p60
    %p62 = scmp.ne.s32.totalorder %s50, %s51
    %p63 = scmp.eq.s32.totalorder %s20, 1
    %p64 = por %p62, %p63
    %p66 = scmp.ne.s32.totalorder %s51, %s65
    %p67 = scmp.eq.s32.totalorder %s20, 0
    %p68 = por %p66, %p67
    %s70 = sadd.s32 %s69, 1
    %p73 = scmp.eq.s32.totalorder %s14, 1
    %p74 = scmp.ne.s32.totalorder %s69, %s71
    %p75 = scmp.eq.s32.totalorder %s14, 0
    %p76 = por %p74, %p75
    %p77 = scmp.ne.s32.totalorder %s69, %s71
    %p78 = scmp.eq.s32.totalorder %s19, 1
    %p79 = por %p77, %p78
    %p80 = scmp.ne.s32.totalorder %s71, %s72
    %p81 = scmp.eq.s32.totalorder %s19, 0
    %p82 = por %p80, %p81
    %p83 = scmp.ne.s32.totalorder %s71, %s72
    %p84 = scmp.eq.s32.totalorder %s20, 1
    %p85 = por %p83, %p84
    %p87 = scmp.ne.s32.totalorder %s72, %s86
    %p88 = scmp.eq.s32.totalorder %s20, 0
    %p89 = por %p87, %p88
    %s91 = sadd.s32 %s90, 1
    %p94 = scmp.eq.s32.totalorder %s14, 1
    %p95 = scmp.ne.s32.totalorder %s90, %s92
    %p96 = scmp.eq.s32.totalorder %s14, 0
    %p97 = por %p95, %p96
    %p98 = scmp.ne.s32.totalorder %s90, %s92
    %p99 = scmp.eq.s32.totalorder %s19, 1
    %p100 = por %p98, %p99
    %p101 = scmp.ne.s32.totalorder %s92, %s93
    %p102 = scmp.eq.s32.totalorder %s19, 0
    %p103 = por %p101, %p102
    %p104 = scmp.ne.s32.totalorder %s92, %s93
    %p105 = scmp.eq.s32.totalorder %s20, 1
    %p106 = por %p104, %p105
    %p108 = scmp.ne.s32.totalorder %s93, %s107
    %p109 = scmp.eq.s32.totalorder %s20, 0
    %p110 = por %p108, %p109
    %s112 = sadd.s32 %s111, 1
    %p115 = scmp.eq.s32.totalorder %s14, 1
    %p116 = scmp.ne.s32.totalorder %s111, %s113
    %p117 = scmp.eq.s32.totalorder %s14, 0
    %p118 = por %p116, %p117
    %p119 = scmp.ne.s32.totalorder %s111, %s113
    %p120 = scmp.eq.s32.totalorder %s19, 1
    %p121 = por %p119, %p120
    %p122 = scmp.ne.s32.totalorder %s113, %s114
    %p123 = scmp.eq.s32.totalorder %s19, 0
    %p124 = por %p122, %p123
    %p125 = scmp.ne.s32.totalorder %s113, %s114
    %p126 = scmp.eq.s32.totalorder %s20, 1
    %p127 = por %p125, %p126
    %p129 = scmp.ne.s32.totalorder %s114, %s128
    %p130 = scmp.eq.s32.totalorder %s20, 0
    %p131 = por %p129, %p130
    %s133 = sadd.s32 %s132, 1
    %p136 = scmp.eq.s32.totalorder %s14, 1
    %p137 = scmp.ne.s32.totalorder %s132, %s134
    %p138 = scmp.eq.s32.totalorder %s14, 0
    %p139 = por %p137, %p138
    %p140 = scmp.ne.s32.totalorder %s132, %s134
    %p141 = scmp.eq.s32.totalorder %s19, 1
    %p142 = por %p140, %p141
    %p143 = scmp.ne.s32.totalorder %s134, %s135
    %p144 = scmp.eq.s32.totalorder %s19, 0
    %p145 = por %p143, %p144
    %p146 = scmp.ne.s32.totalorder %s134, %s135
    %p147 = scmp.eq.s32.totalorder %s20, 1
    %p148 = por %p146, %p147
    %p150 = scmp.ne.s32.totalorder %s135, %s149
    %p151 = scmp.eq.s32.totalorder %s20, 0
    %p152 = por %p150, %p151
    %s154 = sadd.s32 %s153, 1
    %p157 = scmp.eq.s32.totalorder %s14, 1
    %p158 = scmp.ne.s32.totalorder %s153, %s155
    %p159 = scmp.eq.s32.totalorder %s14, 0
    %p160 = por %p158, %p159
    %p161 = scmp.ne.s32.totalorder %s153, %s155
    %p162 = scmp.eq.s32.totalorder %s19, 1
    %p163 = por %p161, %p162
    %p164 = scmp.ne.s32.totalorder %s155, %s156
    %p165 = scmp.eq.s32.totalorder %s19, 0
    %p166 = por %p164, %p165
    %p167 = scmp.ne.s32.totalorder %s155, %s156
    %p168 = scmp.eq.s32.totalorder %s20, 1
    %p169 = por %p167, %p168
    %p171 = scmp.ne.s32.totalorder %s156, %s170
    %p172 = scmp.eq.s32.totalorder %s20, 0
    %p173 = por %p171, %p172
    %s175 = sadd.s32 %s174, 1
    %p178 = scmp.eq.s32.totalorder %s14, 1
    %p179 = scmp.ne.s32.totalorder %s174, %s176
    %p180 = scmp.eq.s32.totalorder %s14, 0
    %p181 = por %p179, %p180
    %p182 = scmp.ne.s32.totalorder %s174, %s176
    %p183 = scmp.eq.s32.totalorder %s19, 1
    %p184 = por %p182, %p183
    %p185 = scmp.ne.s32.totalorder %s176, %s177
    %p186 = scmp.eq.s32.totalorder %s19, 0
    %p187 = por %p185, %p186
    %p188 = scmp.ne.s32.totalorder %s176, %s177
    %p189 = scmp.eq.s32.totalorder %s20, 1
    %p190 = por %p188, %p189
    %p192 = scmp.ne.s32.totalorder %s177, %s191
    %p193 = scmp.eq.s32.totalorder %s20, 0
    %p194 = por %p192, %p193
    %s195 = ssub.s32 %s14, %s21
    %p196 = scmp.eq.s32.totalorder %s195, 0
    %s198 = sadd.s32 %s197, 1
    %s199 = scalar_select %p196, %s197, %s198
    %p202 = pneg %p196
    %p203 = scmp.eq.s32.totalorder %s14, 1
    %p204 = por %p202, %p203
    %p205 = scmp.ne.s32.totalorder %s197, %s200
    %p206 = scmp.eq.s32.totalorder %s14, 0
    %p207 = por %p205, %p206
    %p208 = scmp.ne.s32.totalorder %s197, %s200
    %p209 = scmp.eq.s32.totalorder %s19, 1
    %p210 = por %p208, %p209
    %p211 = scmp.ne.s32.totalorder %s200, %s201
    %p212 = scmp.eq.s32.totalorder %s19, 0
    %p213 = por %p211, %p212
    %p214 = scmp.ne.s32.totalorder %s200, %s201
    %p215 = scmp.eq.s32.totalorder %s20, 1
    %p216 = por %p214, %p215
    %p218 = scmp.ne.s32.totalorder %s201, %s217
    %p219 = scmp.eq.s32.totalorder %s20, 0
    %p220 = por %p218, %p219
    %p221 = scmp.le.s32.totalorder 1, %s14
    %p222 = scmp.lt.s32.totalorder %s14, 3
    %p223 = pnand %p221, %p222
    %p224 = pneg %p223
    // Predicated region
    $region9: #{tpu_custom_call.1} parent=5 // pred_check
      _
    $region10: #{tpu_custom_call.1} parent=5 // pred_check_branch
      %226 = sbr.rel (%p223) target = $region12
    $region11: #{tpu_custom_call.1} parent=5 // pred_region
      %s227 = ssub.s32 %s14, 1
      // Predicated region
      $region13: #{tpu_custom_call.1} parent=11 // pred_check
        %p228 = pneg %p61
      $region14: #{tpu_custom_call.1} parent=11 // pred_check_branch
        %230 = sbr.rel (%p228) target = $region16
      $region15: #{tpu_custom_call.1} parent=11 // pred_region
        _
      $region16: #{tpu_custom_call.1} parent=11 // pred_fallthru
        _
      // Predicated region
      $region17: #{tpu_custom_call.1} parent=11 // pred_check
        %p231 = pneg %p82
      $region18: #{tpu_custom_call.1} parent=11 // pred_check_branch
        %233 = sbr.rel (%p231) target = $region20
      $region19: #{tpu_custom_call.1} parent=11 // pred_region
        _
      $region20: #{tpu_custom_call.1} parent=11 // pred_fallthru
        _
      // Predicated region
      $region21: #{tpu_custom_call.1} parent=11 // pred_check
        %p234 = pneg %p103
      $region22: #{tpu_custom_call.1} parent=11 // pred_check_branch
        %236 = sbr.rel (%p234) target = $region24
      $region23: #{tpu_custom_call.1} parent=11 // pred_region
        _
      $region24: #{tpu_custom_call.1} parent=11 // pred_fallthru
        _
      // Predicated region
      $region25: #{tpu_custom_call.1} parent=11 // pred_check
        %p237 = pneg %p124
      $region26: #{tpu_custom_call.1} parent=11 // pred_check_branch
        %239 = sbr.rel (%p237) target = $region28
      $region27: #{tpu_custom_call.1} parent=11 // pred_region
        _
      $region28: #{tpu_custom_call.1} parent=11 // pred_fallthru
        _
      // Predicated region
      $region29: #{tpu_custom_call.1} parent=11 // pred_check
        %p240 = pneg %p145
      $region30: #{tpu_custom_call.1} parent=11 // pred_check_branch
        %242 = sbr.rel (%p240) target = $region32
      $region31: #{tpu_custom_call.1} parent=11 // pred_region
        _
      $region32: #{tpu_custom_call.1} parent=11 // pred_fallthru
        _
      // Predicated region
      $region33: #{tpu_custom_call.1} parent=11 // pred_check
        %p243 = pneg %p166
      $region34: #{tpu_custom_call.1} parent=11 // pred_check_branch
        %245 = sbr.rel (%p243) target = $region36
      $region35: #{tpu_custom_call.1} parent=11 // pred_region
        _
      $region36: #{tpu_custom_call.1} parent=11 // pred_fallthru
        _
      // Predicated region
      $region37: #{tpu_custom_call.1} parent=11 // pred_check
        %p246 = pneg %p187
      $region38: #{tpu_custom_call.1} parent=11 // pred_check_branch
        %248 = sbr.rel (%p246) target = $region40
      $region39: #{tpu_custom_call.1} parent=11 // pred_region
        _
      $region40: #{tpu_custom_call.1} parent=11 // pred_fallthru
        _
    $region12: #{tpu_custom_call.1} parent=5 // pred_fallthru
      _
    %p249 = scmp.lt.s32.totalorder %s14, 2
    // Predicated region
    $region41: #{tpu_custom_call.1} parent=5 // pred_check
      %p250 = pneg %p249
    $region42: #{tpu_custom_call.1} parent=5 // pred_check_branch
      %252 = sbr.rel (%p250) target = $region44
    $region43: #{tpu_custom_call.1} parent=5 // pred_region
      // Predicated region
      $region45: #{tpu_custom_call.1} parent=43 // pred_check
        %p253 = pneg %p34
      $region46: #{tpu_custom_call.1} parent=43 // pred_check_branch
        %255 = sbr.rel (%p253) target = $region48
      $region47: #{tpu_custom_call.1} parent=43 // pred_region
        %p256 = scmp.lt.s32.totalorder %s14, 1
        %s257 = scalar_select %p256, %s14, 1
        %s258 = smul.addr %s257, 32
        %s259 = smul.addr %s258, 8
        %s260 = scalar_lea.vmem %s0, %s259
      $region48: #{tpu_custom_call.1} parent=43 // pred_fallthru
        _
    $region44: #{tpu_custom_call.1} parent=5 // pred_fallthru
      _
    %p261 = scmp.le.s32.totalorder 1, %s14
    %p262 = scmp.lt.s32.totalorder %s14, 3
    %p263 = pnand %p261, %p262
    %p264 = pneg %p263
    // Predicated region
    $region49: #{tpu_custom_call.1} parent=5 // pred_check
      _
    $region50: #{tpu_custom_call.1} parent=5 // pred_check_branch
      %266 = sbr.rel (%p263) target = $region52
    $region51: #{tpu_custom_call.1} parent=5 // pred_region
      %s267 = ssub.s32 %s14, 1
      %p268 = scmp.lt.s32.totalorder %s19, 1
      %s269 = scalar_select %p268, %s19, 1
      %s270 = smul.addr %s269, 32
      %s271 = smul.addr %s270, 8
      %s272 = scalar_lea.vmem %s0, %s271
      %p273 = pneg %p40
      %p274 = pneg %p37
      %p275 = pneg %p61
      %p276 = pneg %p58
      %p277 = pneg %p82
      %p278 = pneg %p79
      %p279 = pneg %p103
      %p280 = pneg %p100
      %p281 = pneg %p124
      %p282 = pneg %p121
      %p283 = pneg %p145
      %p284 = pneg %p142
      %p285 = pneg %p166
      %p286 = pneg %p163
      %p287 = pneg %p187
      %p288 = pneg %p184
      %p289 = pneg %p213
      %p290 = pneg %p210
      %p291 = scmp.lt.s32.totalorder %s19, 1
      %s292 = scalar_select %p291, %s19, 1
      %s293 = smul.addr %s292, 32
      %s294 = smul.addr %s293, 8
      %s295 = scalar_lea.vmem %s8, %s294
      %p296 = scmp.lt.s32.totalorder %s19, 1
      %s297 = scalar_select %p296, %s19, 1
      %s298 = smul.addr %s297, 32
      %s299 = smul.addr %s298, 8
      %s300 = scalar_lea.vmem %s0, %s299
      %p301 = scmp.lt.s32.totalorder %s19, 1
      %s302 = scalar_select %p301, %s19, 1
      %s303 = smul.addr %s302, 32
      %s304 = smul.addr %s303, 8
      %s305 = scalar_lea.vmem %s8, %s304
      %vm307 = vcmask 31744
      %308 = vst.msk [vmem:[#allocation2 + $0x5] sm:$0xff] %vm307, 0.0
      %309 = vst.msk [vmem:[#allocation2 + $0xd] sm:$0xff] %vm307, 0.0
      %vm310 = vcmask 29696
      %311 = vst.msk [vmem:[#allocation2 + $0x15] sm:$0x3f] %vm310, 0.0
      %312 = vst.msk [vmem:[#allocation2 + $0x25] sm:$0xff] %vm307, 0.0
      %313 = vst.msk [vmem:[#allocation2 + $0x2d] sm:$0xff] %vm307, 0.0
      %314 = vst.msk [vmem:[#allocation2 + $0x35] sm:$0x3f] %vm310, 0.0
      %315 = vst.msk [vmem:[#allocation2 + $0x45] sm:$0xff] %vm307, 0.0
      %316 = vst.msk [vmem:[#allocation2 + $0x4d] sm:$0xff] %vm307, 0.0
      %317 = vst.msk [vmem:[#allocation2 + $0x55] sm:$0x3f] %vm310, 0.0
      %s318 = scalar_lea.vmem [#allocation2], 608
      %319 = vst.msk [vmem:[%s318 + $0x5] sm:$0xff] %vm307, 0.0
      %320 = vst.msk [vmem:[%s318 + $0xd] sm:$0xff] %vm307, 0.0
      %321 = vst.msk [vmem:[%s318 + $0x15] sm:$0x3f] %vm310, 0.0
      %322 = vst.msk [vmem:[%s318 + $0x25] sm:$0xff] %vm307, 0.0
      %323 = vst.msk [vmem:[%s318 + $0x2d] sm:$0xff] %vm307, 0.0
      %324 = vst.msk [vmem:[%s318 + $0x35] sm:$0x3f] %vm310, 0.0
      %325 = vst.msk [vmem:[%s318 + $0x45] sm:$0xff] %vm307, 0.0
      %326 = vst.msk [vmem:[%s318 + $0x4d] sm:$0xff] %vm307, 0.0
      %327 = vst.msk [vmem:[%s318 + $0x55] sm:$0x3f] %vm310, 0.0
      %s328 = scalar_lea.vmem [#allocation2], 96
      %vm329 = vcmask 26624
      %330 = vst.msk [vmem:[%s328 + $0x5] sm:$0x7] %vm329, 0.0
      %331 = vst.msk [vmem:[%s328 + $0x25] sm:$0x7] %vm329, 0.0
      %332 = vst.msk [vmem:[%s328 + $0x45] sm:$0x7] %vm329, 0.0
      %333 = vst.msk [vmem:[%s328 + $0x65] sm:$0x7] %vm329, 0.0
      %334 = vst.msk [vmem:[%s328 + $0x85] sm:$0x7] %vm329, 0.0
      %335 = vst.msk [vmem:[%s328 + $0xa5] sm:$0x7] %vm329, 0.0
      %336 = vst.msk [vmem:[%s328 + $0xc5] sm:$0x7] %vm329, 0.0
      %337 = vst.msk [vmem:[%s328 + $0xe5] sm:$0x7] %vm329, 0.0
      %338 = vst.msk [vmem:[%s328 + $0x105] sm:$0x7] %vm329, 0.0
      %339 = vst.msk [vmem:[%s328 + $0x125] sm:$0x7] %vm329, 0.0
      %340 = vst.msk [vmem:[%s328 + $0x145] sm:$0x7] %vm329, 0.0
      %341 = vst.msk [vmem:[%s328 + $0x165] sm:$0x7] %vm329, 0.0
      %342 = vst.msk [vmem:[%s328 + $0x185] sm:$0x7] %vm329, 0.0
      %343 = vst.msk [vmem:[%s328 + $0x1a5] sm:$0x7] %vm329, 0.0
      %344 = vst.msk [vmem:[%s328 + $0x1c5] sm:$0x7] %vm329, 0.0
      %345 = vst.msk [vmem:[%s328 + $0x1e5] sm:$0x7] %vm329, 0.0
      %346 = vst.msk [vmem:[%s328 + $0x18] sm:$0x7] %vm329, 0.0
      %347 = vst.msk [vmem:[%s328 + $0x38] sm:$0x7] %vm329, 0.0
      %348 = vst.msk [vmem:[%s328 + $0x58] sm:$0x7] %vm329, 0.0
      %349 = vst.msk [vmem:[%s328 + $0x78] sm:$0x7] %vm329, 0.0
      %350 = vst.msk [vmem:[%s328 + $0x98] sm:$0x7] %vm329, 0.0
      %351 = vst.msk [vmem:[%s328 + $0xb8] sm:$0x7] %vm329, 0.0
      %352 = vst.msk [vmem:[%s328 + $0xd8] sm:$0x7] %vm329, 0.0
      %353 = vst.msk [vmem:[%s328 + $0xf8] sm:$0x7] %vm329, 0.0
      %354 = vst.msk [vmem:[%s328 + $0x118] sm:$0x7] %vm329, 0.0
      %355 = vst.msk [vmem:[%s328 + $0x138] sm:$0x7] %vm329, 0.0
      %356 = vst.msk [vmem:[%s328 + $0x158] sm:$0x7] %vm329, 0.0
      %357 = vst.msk [vmem:[%s328 + $0x178] sm:$0x7] %vm329, 0.0
      %358 = vst.msk [vmem:[%s328 + $0x198] sm:$0x7] %vm329, 0.0
      %359 = vst.msk [vmem:[%s328 + $0x1b8] sm:$0x7] %vm329, 0.0
      %360 = vst.msk [vmem:[%s328 + $0x1d8] sm:$0x7] %vm329, 0.0
      %361 = vst.msk [vmem:[%s328 + $0x1f8] sm:$0x7] %vm329, 0.0
      %v362 = vld [vmem:[%s300] sm:$0xff]
      %v363 = vld [vmem:[%s300 + $0x8] sm:$0xff]
      %v364 = vld [vmem:[%s300 + $0x10] sm:$0xff]
      %v365 = vld [vmem:[%s300 + $0x18] sm:$0xff]
      %v366 = vld [vmem:[%s300 + $0x20] sm:$0xff]
      %v367 = vld [vmem:[%s300 + $0x28] sm:$0xff]
      %v368 = vld [vmem:[%s300 + $0x30] sm:$0xff]
      %v369 = vld [vmem:[%s300 + $0x38] sm:$0xff]
      %v370 = vld [vmem:[%s300 + $0x40] sm:$0xff]
      %v371 = vld [vmem:[%s300 + $0x48] sm:$0xff]
      %v372 = vld [vmem:[%s300 + $0x50] sm:$0xff]
      %v373 = vld [vmem:[%s300 + $0x58] sm:$0xff]
      %v374 = vld [vmem:[%s300 + $0x60] sm:$0xff]
      %v375 = vld [vmem:[%s300 + $0x68] sm:$0xff]
      %v376 = vld [vmem:[%s300 + $0x70] sm:$0xff]
      %v377 = vld [vmem:[%s300 + $0x78] sm:$0xff]
      %v378 = vld [vmem:[%s300 + $0x80] sm:$0xff]
      %v379 = vld [vmem:[%s300 + $0x88] sm:$0xff]
      %v380 = vld [vmem:[%s300 + $0x90] sm:$0xff]
      %v381 = vld [vmem:[%s300 + $0x98] sm:$0xff]
      %v382 = vld [vmem:[%s300 + $0xa0] sm:$0xff]
      %v383 = vld [vmem:[%s300 + $0xa8] sm:$0xff]
      %v384 = vld [vmem:[%s300 + $0xb0] sm:$0xff]
      %v385 = vld [vmem:[%s300 + $0xb8] sm:$0xff]
      %v386 = vld [vmem:[%s300 + $0xc0] sm:$0xff]
      %v387 = vld [vmem:[%s300 + $0xc8] sm:$0xff]
      %v388 = vld [vmem:[%s300 + $0xd0] sm:$0xff]
      %v389 = vld [vmem:[%s300 + $0xd8] sm:$0xff]
      %v390 = vld [vmem:[%s300 + $0xe0] sm:$0xff]
      %v391 = vld [vmem:[%s300 + $0xe8] sm:$0xff]
      %v392 = vld [vmem:[%s300 + $0xf0] sm:$0xff]
      %v393 = vld [vmem:[%s300 + $0xf8] sm:$0xff]
      %394 = vst.msk [vmem:[%s328 + $0x8] sm:$0xff] %vm307, %v362
      %395 = vst.msk [vmem:[%s328 + $0x10] sm:$0xff] %vm307, %v363
      %396 = vst.msk [vmem:[%s328 + $0x28] sm:$0xff] %vm307, %v364
      %397 = vst.msk [vmem:[%s328 + $0x30] sm:$0xff] %vm307, %v365
      %398 = vst.msk [vmem:[%s328 + $0x48] sm:$0xff] %vm307, %v366
      %399 = vst.msk [vmem:[%s328 + $0x50] sm:$0xff] %vm307, %v367
      %400 = vst.msk [vmem:[%s328 + $0x68] sm:$0xff] %vm307, %v368
      %401 = vst.msk [vmem:[%s328 + $0x70] sm:$0xff] %vm307, %v369
      %402 = vst.msk [vmem:[%s328 + $0x88] sm:$0xff] %vm307, %v370
      %403 = vst.msk [vmem:[%s328 + $0x90] sm:$0xff] %vm307, %v371
      %404 = vst.msk [vmem:[%s328 + $0xa8] sm:$0xff] %vm307, %v372
      %405 = vst.msk [vmem:[%s328 + $0xb0] sm:$0xff] %vm307, %v373
      %406 = vst.msk [vmem:[%s328 + $0xc8] sm:$0xff] %vm307, %v374
      %407 = vst.msk [vmem:[%s328 + $0xd0] sm:$0xff] %vm307, %v375
      %408 = vst.msk [vmem:[%s328 + $0xe8] sm:$0xff] %vm307, %v376
      %409 = vst.msk [vmem:[%s328 + $0xf0] sm:$0xff] %vm307, %v377
      %410 = vst.msk [vmem:[%s328 + $0x108] sm:$0xff] %vm307, %v378
      %411 = vst.msk [vmem:[%s328 + $0x110] sm:$0xff] %vm307, %v379
      %412 = vst.msk [vmem:[%s328 + $0x128] sm:$0xff] %vm307, %v380
      %413 = vst.msk [vmem:[%s328 + $0x130] sm:$0xff] %vm307, %v381
      %414 = vst.msk [vmem:[%s328 + $0x148] sm:$0xff] %vm307, %v382
      %415 = vst.msk [vmem:[%s328 + $0x150] sm:$0xff] %vm307, %v383
      %416 = vst.msk [vmem:[%s328 + $0x168] sm:$0xff] %vm307, %v384
      %417 = vst.msk [vmem:[%s328 + $0x170] sm:$0xff] %vm307, %v385
      %418 = vst.msk [vmem:[%s328 + $0x188] sm:$0xff] %vm307, %v386
      %419 = vst.msk [vmem:[%s328 + $0x190] sm:$0xff] %vm307, %v387
      %420 = vst.msk [vmem:[%s328 + $0x1a8] sm:$0xff] %vm307, %v388
      %421 = vst.msk [vmem:[%s328 + $0x1b0] sm:$0xff] %vm307, %v389
      %422 = vst.msk [vmem:[%s328 + $0x1c8] sm:$0xff] %vm307, %v390
      %423 = vst.msk [vmem:[%s328 + $0x1d0] sm:$0xff] %vm307, %v391
      %424 = vst.msk [vmem:[%s328 + $0x1e8] sm:$0xff] %vm307, %v392
      %425 = vst.msk [vmem:[%s328 + $0x1f0] sm:$0xff] %vm307, %v393
      %v426 = vld [vmem:[%s2] sm:$0x1]
      %v427 = vld [vmem:[%s3] sm:$0x3]
      %v428 = vld [vmem:[%s4] sm:$0x1]
      %v429 = vld [vmem:[#allocation2 + $0x5] sm:$0xff]
      %v430 = vld [vmem:[#allocation2 + $0xd] sm:$0xff]
      %v431 = vld [vmem:[#allocation2 + $0x25] sm:$0xff]
      %v432 = vld [vmem:[#allocation2 + $0x2d] sm:$0xff]
      %v433 = vld [vmem:[#allocation2 + $0x45] sm:$0xff]
      %v434 = vld [vmem:[#allocation2 + $0x4d] sm:$0xff]
      %v435 = vld [vmem:[#allocation2 + $0x65] sm:$0xff]
      %v436 = vld [vmem:[#allocation2 + $0x6d] sm:$0xff]
      %v437 = vld [vmem:[#allocation2 + $0x85] sm:$0xff]
      %v438 = vld [vmem:[#allocation2 + $0x8d] sm:$0xff]
      %v439 = vld [vmem:[#allocation2 + $0xa5] sm:$0xff]
      %v440 = vld [vmem:[#allocation2 + $0xad] sm:$0xff]
      %v441 = vld [vmem:[#allocation2 + $0xc5] sm:$0xff]
      %v442 = vld [vmem:[#allocation2 + $0xcd] sm:$0xff]
      %v443 = vld [vmem:[#allocation2 + $0xe5] sm:$0xff]
      %v444 = vld [vmem:[#allocation2 + $0xed] sm:$0xff]
      %v445 = vld [vmem:[#allocation2 + $0x105] sm:$0xff]
      %v446 = vld [vmem:[#allocation2 + $0x10d] sm:$0xff]
      %v447 = vld [vmem:[#allocation2 + $0x125] sm:$0xff]
      %v448 = vld [vmem:[#allocation2 + $0x12d] sm:$0xff]
      %v449 = vld [vmem:[#allocation2 + $0x145] sm:$0xff]
      %v450 = vld [vmem:[#allocation2 + $0x14d] sm:$0xff]
      %v451 = vld [vmem:[#allocation2 + $0x165] sm:$0xff]
      %v452 = vld [vmem:[#allocation2 + $0x16d] sm:$0xff]
      %v453 = vld [vmem:[#allocation2 + $0x185] sm:$0xff]
      %v454 = vld [vmem:[#allocation2 + $0x18d] sm:$0xff]
      %v455 = vld [vmem:[#allocation2 + $0x1a5] sm:$0xff]
      %v456 = vld [vmem:[#allocation2 + $0x1ad] sm:$0xff]
      %v457 = vld [vmem:[#allocation2 + $0x1c5] sm:$0xff]
      %v458 = vld [vmem:[#allocation2 + $0x1cd] sm:$0xff]
      %v459 = vld [vmem:[#allocation2 + $0x1e5] sm:$0xff]
      %v460 = vld [vmem:[#allocation2 + $0x1ed] sm:$0xff]
      %v461 = vld [vmem:[#allocation2 + $0x205] sm:$0xff]
      %v462 = vld [vmem:[#allocation2 + $0x20d] sm:$0xff]
      %v463 = vld [vmem:[#allocation2 + $0x225] sm:$0xff]
      %v464 = vld [vmem:[#allocation2 + $0x22d] sm:$0xff]
      %v465 = vld [vmem:[#allocation2 + $0x245] sm:$0xff]
      %v466 = vld [vmem:[#allocation2 + $0x24d] sm:$0xff]
      %v467 = vld [vmem:[#allocation2 + $0x265] sm:$0xff]
      %v468 = vld [vmem:[#allocation2 + $0x26d] sm:$0xff]
      %v469 = vld [vmem:[#allocation2 + $0x285] sm:$0xff]
      %v470 = vld [vmem:[#allocation2 + $0x28d] sm:$0xff]
      %v471 = vld [vmem:[#allocation2 + $0x2a5] sm:$0xff]
      %v472 = vld [vmem:[#allocation2 + $0x2ad] sm:$0xff]
      %v473 = vld [vmem:[%s1] sm:$0x1]
      %v474 = vlaneseq
      %v475 = vshrl.u32 %v474, 7
      %v476 = vsub.s32 0, %v475
      %v477 = vrot.slane %v473, %v476
      %v478 = vmul.f32 %v429, %v477
      %v479 = vmul.f32 %v430, %v477
      %v480 = vmul.f32 %v431, %v477
      %v481 = vmul.f32 %v432, %v477
      %v482 = vmul.f32 %v433, %v477
      %v483 = vmul.f32 %v434, %v477
      %v484 = vmul.f32 %v435, %v477
      %v485 = vmul.f32 %v436, %v477
      %v486 = vmul.f32 %v437, %v477
      %v487 = vmul.f32 %v438, %v477
      %v488 = vmul.f32 %v439, %v477
      %v489 = vmul.f32 %v440, %v477
      %v490 = vmul.f32 %v441, %v477
      %v491 = vmul.f32 %v442, %v477
      %v492 = vmul.f32 %v443, %v477
      %v493 = vmul.f32 %v444, %v477
      %v494 = vmul.f32 %v445, %v477
      %v495 = vmul.f32 %v446, %v477
      %v496 = vmul.f32 %v447, %v477
      %v497 = vmul.f32 %v448, %v477
      %v498 = vmul.f32 %v449, %v477
      %v499 = vmul.f32 %v450, %v477
      %v500 = vmul.f32 %v451, %v477
      %v501 = vmul.f32 %v452, %v477
      %v502 = vmul.f32 %v453, %v477
      %v503 = vmul.f32 %v454, %v477
      %v504 = vmul.f32 %v455, %v477
      %v505 = vmul.f32 %v456, %v477
      %v506 = vmul.f32 %v457, %v477
      %v507 = vmul.f32 %v458, %v477
      %v508 = vmul.f32 %v459, %v477
      %v509 = vmul.f32 %v460, %v477
      %v510 = vadd.f32 %v478, 0.0
      %v511 = vadd.f32 %v479, 0.0
      %v512 = vadd.f32 %v480, 0.0
      %v513 = vadd.f32 %v481, 0.0
      %v514 = vadd.f32 %v482, 0.0
      %v515 = vadd.f32 %v483, 0.0
      %v516 = vadd.f32 %v484, 0.0
      %v517 = vadd.f32 %v485, 0.0
      %v518 = vadd.f32 %v486, 0.0
      %v519 = vadd.f32 %v487, 0.0
      %v520 = vadd.f32 %v488, 0.0
      %v521 = vadd.f32 %v489, 0.0
      %v522 = vadd.f32 %v490, 0.0
      %v523 = vadd.f32 %v491, 0.0
      %v524 = vadd.f32 %v492, 0.0
      %v525 = vadd.f32 %v493, 0.0
      %v526 = vadd.f32 %v494, 0.0
      %v527 = vadd.f32 %v495, 0.0
      %v528 = vadd.f32 %v496, 0.0
      %v529 = vadd.f32 %v497, 0.0
      %v530 = vadd.f32 %v498, 0.0
      %v531 = vadd.f32 %v499, 0.0
      %v532 = vadd.f32 %v500, 0.0
      %v533 = vadd.f32 %v501, 0.0
      %v534 = vadd.f32 %v502, 0.0
      %v535 = vadd.f32 %v503, 0.0
      %v536 = vadd.f32 %v504, 0.0
      %v537 = vadd.f32 %v505, 0.0
      %v538 = vadd.f32 %v506, 0.0
      %v539 = vadd.f32 %v507, 0.0
      %v540 = vadd.f32 %v508, 0.0
      %v541 = vadd.f32 %v509, 0.0
      %s542 = scalar_lea.vmem %s1, 8
      %v543 = vld [vmem:[%s542] sm:$0x1]
      %v544 = vlaneseq
      %v545 = vshrl.u32 %v544, 7
      %v546 = vsub.s32 0, %v545
      %v547 = vrot.slane %v543, %v546
      %v548 = vmul.f32 %v431, %v547
      %v549 = vmul.f32 %v432, %v547
      %v550 = vmul.f32 %v433, %v547
      %v551 = vmul.f32 %v434, %v547
      %v552 = vmul.f32 %v435, %v547
      %v553 = vmul.f32 %v436, %v547
      %v554 = vmul.f32 %v437, %v547
      %v555 = vmul.f32 %v438, %v547
      %v556 = vmul.f32 %v439, %v547
      %v557 = vmul.f32 %v440, %v547
      %v558 = vmul.f32 %v441, %v547
      %v559 = vmul.f32 %v442, %v547
      %v560 = vmul.f32 %v443, %v547
      %v561 = vmul.f32 %v444, %v547
      %v562 = vmul.f32 %v445, %v547
      %v563 = vmul.f32 %v446, %v547
      %v564 = vmul.f32 %v447, %v547
      %v565 = vmul.f32 %v448, %v547
      %v566 = vmul.f32 %v449, %v547
      %v567 = vmul.f32 %v450, %v547
      %v568 = vmul.f32 %v451, %v547
      %v569 = vmul.f32 %v452, %v547
      %v570 = vmul.f32 %v453, %v547
      %v571 = vmul.f32 %v454, %v547
      %v572 = vmul.f32 %v455, %v547
      %v573 = vmul.f32 %v456, %v547
      %v574 = vmul.f32 %v457, %v547
      %v575 = vmul.f32 %v458, %v547
      %v576 = vmul.f32 %v459, %v547
      %v577 = vmul.f32 %v460, %v547
      %v578 = vmul.f32 %v461, %v547
      %v579 = vmul.f32 %v462, %v547
      %v580 = vadd.f32 %v510, %v548
      %v581 = vadd.f32 %v511, %v549
      %v582 = vadd.f32 %v512, %v550
      %v583 = vadd.f32 %v513, %v551
      %v584 = vadd.f32 %v514, %v552
      %v585 = vadd.f32 %v515, %v553
      %v586 = vadd.f32 %v516, %v554
      %v587 = vadd.f32 %v517, %v555
      %v588 = vadd.f32 %v518, %v556
      %v589 = vadd.f32 %v519, %v557
      %v590 = vadd.f32 %v520, %v558
      %v591 = vadd.f32 %v521, %v559
      %v592 = vadd.f32 %v522, %v560
      %v593 = vadd.f32 %v523, %v561
      %v594 = vadd.f32 %v524, %v562
      %v595 = vadd.f32 %v525, %v563
      %v596 = vadd.f32 %v526, %v564
      %v597 = vadd.f32 %v527, %v565
      %v598 = vadd.f32 %v528, %v566
      %v599 = vadd.f32 %v529, %v567
      %v600 = vadd.f32 %v530, %v568
      %v601 = vadd.f32 %v531, %v569
      %v602 = vadd.f32 %v532, %v570
      %v603 = vadd.f32 %v533, %v571
      %v604 = vadd.f32 %v534, %v572
      %v605 = vadd.f32 %v535, %v573
      %v606 = vadd.f32 %v536, %v574
      %v607 = vadd.f32 %v537, %v575
      %v608 = vadd.f32 %v538, %v576
      %v609 = vadd.f32 %v539, %v577
      %v610 = vadd.f32 %v540, %v578
      %v611 = vadd.f32 %v541, %v579
      %s612 = scalar_lea.vmem %s1, 16
      %v613 = vld [vmem:[%s612] sm:$0x1]
      %v614 = vlaneseq
      %v615 = vshrl.u32 %v614, 7
      %v616 = vsub.s32 0, %v615
      %v617 = vrot.slane %v613, %v616
      %v618 = vmul.f32 %v433, %v617
      %v619 = vmul.f32 %v434, %v617
      %v620 = vmul.f32 %v435, %v617
      %v621 = vmul.f32 %v436, %v617
      %v622 = vmul.f32 %v437, %v617
      %v623 = vmul.f32 %v438, %v617
      %v624 = vmul.f32 %v439, %v617
      %v625 = vmul.f32 %v440, %v617
      %v626 = vmul.f32 %v441, %v617
      %v627 = vmul.f32 %v442, %v617
      %v628 = vmul.f32 %v443, %v617
      %v629 = vmul.f32 %v444, %v617
      %v630 = vmul.f32 %v445, %v617
      %v631 = vmul.f32 %v446, %v617
      %v632 = vmul.f32 %v447, %v617
      %v633 = vmul.f32 %v448, %v617
      %v634 = vmul.f32 %v449, %v617
      %v635 = vmul.f32 %v450, %v617
      %v636 = vmul.f32 %v451, %v617
      %v637 = vmul.f32 %v452, %v617
      %v638 = vmul.f32 %v453, %v617
      %v639 = vmul.f32 %v454, %v617
      %v640 = vmul.f32 %v455, %v617
      %v641 = vmul.f32 %v456, %v617
      %v642 = vmul.f32 %v457, %v617
      %v643 = vmul.f32 %v458, %v617
      %v644 = vmul.f32 %v459, %v617
      %v645 = vmul.f32 %v460, %v617
      %v646 = vmul.f32 %v461, %v617
      %v647 = vmul.f32 %v462, %v617
      %v648 = vmul.f32 %v463, %v617
      %v649 = vmul.f32 %v464, %v617
      %v650 = vadd.f32 %v580, %v618
      %v651 = vadd.f32 %v581, %v619
      %v652 = vadd.f32 %v582, %v620
      %v653 = vadd.f32 %v583, %v621
      %v654 = vadd.f32 %v584, %v622
      %v655 = vadd.f32 %v585, %v623
      %v656 = vadd.f32 %v586, %v624
      %v657 = vadd.f32 %v587, %v625
      %v658 = vadd.f32 %v588, %v626
      %v659 = vadd.f32 %v589, %v627
      %v660 = vadd.f32 %v590, %v628
      %v661 = vadd.f32 %v591, %v629
      %v662 = vadd.f32 %v592, %v630
      %v663 = vadd.f32 %v593, %v631
      %v664 = vadd.f32 %v594, %v632
      %v665 = vadd.f32 %v595, %v633
      %v666 = vadd.f32 %v596, %v634
      %v667 = vadd.f32 %v597, %v635
      %v668 = vadd.f32 %v598, %v636
      %v669 = vadd.f32 %v599, %v637
      %v670 = vadd.f32 %v600, %v638
      %v671 = vadd.f32 %v601, %v639
      %v672 = vadd.f32 %v602, %v640
      %v673 = vadd.f32 %v603, %v641
      %v674 = vadd.f32 %v604, %v642
      %v675 = vadd.f32 %v605, %v643
      %v676 = vadd.f32 %v606, %v644
      %v677 = vadd.f32 %v607, %v645
      %v678 = vadd.f32 %v608, %v646
      %v679 = vadd.f32 %v609, %v647
      %v680 = vadd.f32 %v610, %v648
      %v681 = vadd.f32 %v611, %v649
      %s682 = scalar_lea.vmem %s1, 24
      %v683 = vld [vmem:[%s682] sm:$0x1]
      %v684 = vlaneseq
      %v685 = vshrl.u32 %v684, 7
      %v686 = vsub.s32 0, %v685
      %v687 = vrot.slane %v683, %v686
      %v688 = vmul.f32 %v435, %v687
      %v689 = vmul.f32 %v436, %v687
      %v690 = vmul.f32 %v437, %v687
      %v691 = vmul.f32 %v438, %v687
      %v692 = vmul.f32 %v439, %v687
      %v693 = vmul.f32 %v440, %v687
      %v694 = vmul.f32 %v441, %v687
      %v695 = vmul.f32 %v442, %v687
      %v696 = vmul.f32 %v443, %v687
      %v697 = vmul.f32 %v444, %v687
      %v698 = vmul.f32 %v445, %v687
      %v699 = vmul.f32 %v446, %v687
      %v700 = vmul.f32 %v447, %v687
      %v701 = vmul.f32 %v448, %v687
      %v702 = vmul.f32 %v449, %v687
      %v703 = vmul.f32 %v450, %v687
      %v704 = vmul.f32 %v451, %v687
      %v705 = vmul.f32 %v452, %v687
      %v706 = vmul.f32 %v453, %v687
      %v707 = vmul.f32 %v454, %v687
      %v708 = vmul.f32 %v455, %v687
      %v709 = vmul.f32 %v456, %v687
      %v710 = vmul.f32 %v457, %v687
      %v711 = vmul.f32 %v458, %v687
      %v712 = vmul.f32 %v459, %v687
      %v713 = vmul.f32 %v460, %v687
      %v714 = vmul.f32 %v461, %v687
      %v715 = vmul.f32 %v462, %v687
      %v716 = vmul.f32 %v463, %v687
      %v717 = vmul.f32 %v464, %v687
      %v718 = vmul.f32 %v465, %v687
      %v719 = vmul.f32 %v466, %v687
      %v720 = vadd.f32 %v650, %v688
      %v721 = vadd.f32 %v651, %v689
      %v722 = vadd.f32 %v652, %v690
      %v723 = vadd.f32 %v653, %v691
      %v724 = vadd.f32 %v654, %v692
      %v725 = vadd.f32 %v655, %v693
      %v726 = vadd.f32 %v656, %v694
      %v727 = vadd.f32 %v657, %v695
      %v728 = vadd.f32 %v658, %v696
      %v729 = vadd.f32 %v659, %v697
      %v730 = vadd.f32 %v660, %v698
      %v731 = vadd.f32 %v661, %v699
      %v732 = vadd.f32 %v662, %v700
      %v733 = vadd.f32 %v663, %v701
      %v734 = vadd.f32 %v664, %v702
      %v735 = vadd.f32 %v665, %v703
      %v736 = vadd.f32 %v666, %v704
      %v737 = vadd.f32 %v667, %v705
      %v738 = vadd.f32 %v668, %v706
      %v739 = vadd.f32 %v669, %v707
      %v740 = vadd.f32 %v670, %v708
      %v741 = vadd.f32 %v671, %v709
      %v742 = vadd.f32 %v672, %v710
      %v743 = vadd.f32 %v673, %v711
      %v744 = vadd.f32 %v674, %v712
      %v745 = vadd.f32 %v675, %v713
      %v746 = vadd.f32 %v676, %v714
      %v747 = vadd.f32 %v677, %v715
      %v748 = vadd.f32 %v678, %v716
      %v749 = vadd.f32 %v679, %v717
      %v750 = vadd.f32 %v680, %v718
      %v751 = vadd.f32 %v681, %v719
      %s752 = scalar_lea.vmem %s1, 32
      %v753 = vld [vmem:[%s752] sm:$0x1]
      %v754 = vlaneseq
      %v755 = vshrl.u32 %v754, 7
      %v756 = vsub.s32 0, %v755
      %v757 = vrot.slane %v753, %v756
      %v758 = vmul.f32 %v437, %v757
      %v759 = vmul.f32 %v438, %v757
      %v760 = vmul.f32 %v439, %v757
      %v761 = vmul.f32 %v440, %v757
      %v762 = vmul.f32 %v441, %v757
      %v763 = vmul.f32 %v442, %v757
      %v764 = vmul.f32 %v443, %v757
      %v765 = vmul.f32 %v444, %v757
      %v766 = vmul.f32 %v445, %v757
      %v767 = vmul.f32 %v446, %v757
      %v768 = vmul.f32 %v447, %v757
      %v769 = vmul.f32 %v448, %v757
      %v770 = vmul.f32 %v449, %v757
      %v771 = vmul.f32 %v450, %v757
      %v772 = vmul.f32 %v451, %v757
      %v773 = vmul.f32 %v452, %v757
      %v774 = vmul.f32 %v453, %v757
      %v775 = vmul.f32 %v454, %v757
      %v776 = vmul.f32 %v455, %v757
      %v777 = vmul.f32 %v456, %v757
      %v778 = vmul.f32 %v457, %v757
      %v779 = vmul.f32 %v458, %v757
      %v780 = vmul.f32 %v459, %v757
      %v781 = vmul.f32 %v460, %v757
      %v782 = vmul.f32 %v461, %v757
      %v783 = vmul.f32 %v462, %v757
      %v784 = vmul.f32 %v463, %v757
      %v785 = vmul.f32 %v464, %v757
      %v786 = vmul.f32 %v465, %v757
      %v787 = vmul.f32 %v466, %v757
      %v788 = vmul.f32 %v467, %v757
      %v789 = vmul.f32 %v468, %v757
      %v790 = vadd.f32 %v720, %v758
      %v791 = vadd.f32 %v721, %v759
      %v792 = vadd.f32 %v722, %v760
      %v793 = vadd.f32 %v723, %v761
      %v794 = vadd.f32 %v724, %v762
      %v795 = vadd.f32 %v725, %v763
      %v796 = vadd.f32 %v726, %v764
      %v797 = vadd.f32 %v727, %v765
      %v798 = vadd.f32 %v728, %v766
      %v799 = vadd.f32 %v729, %v767
      %v800 = vadd.f32 %v730, %v768
      %v801 = vadd.f32 %v731, %v769
      %v802 = vadd.f32 %v732, %v770
      %v803 = vadd.f32 %v733, %v771
      %v804 = vadd.f32 %v734, %v772
      %v805 = vadd.f32 %v735, %v773
      %v806 = vadd.f32 %v736, %v774
      %v807 = vadd.f32 %v737, %v775
      %v808 = vadd.f32 %v738, %v776
      %v809 = vadd.f32 %v739, %v777
      %v810 = vadd.f32 %v740, %v778
      %v811 = vadd.f32 %v741, %v779
      %v812 = vadd.f32 %v742, %v780
      %v813 = vadd.f32 %v743, %v781
      %v814 = vadd.f32 %v744, %v782
      %v815 = vadd.f32 %v745, %v783
      %v816 = vadd.f32 %v746, %v784
      %v817 = vadd.f32 %v747, %v785
      %v818 = vadd.f32 %v748, %v786
      %v819 = vadd.f32 %v749, %v787
      %v820 = vadd.f32 %v750, %v788
      %v821 = vadd.f32 %v751, %v789
      %s822 = scalar_lea.vmem %s1, 40
      %v823 = vld [vmem:[%s822] sm:$0x1]
      %v824 = vlaneseq
      %v825 = vshrl.u32 %v824, 7
      %v826 = vsub.s32 0, %v825
      %v827 = vrot.slane %v823, %v826
      %v828 = vmul.f32 %v439, %v827
      %v829 = vmul.f32 %v440, %v827
      %v830 = vmul.f32 %v441, %v827
      %v831 = vmul.f32 %v442, %v827
      %v832 = vmul.f32 %v443, %v827
      %v833 = vmul.f32 %v444, %v827
      %v834 = vmul.f32 %v445, %v827
      %v835 = vmul.f32 %v446, %v827
      %v836 = vmul.f32 %v447, %v827
      %v837 = vmul.f32 %v448, %v827
      %v838 = vmul.f32 %v449, %v827
      %v839 = vmul.f32 %v450, %v827
      %v840 = vmul.f32 %v451, %v827
      %v841 = vmul.f32 %v452, %v827
      %v842 = vmul.f32 %v453, %v827
      %v843 = vmul.f32 %v454, %v827
      %v844 = vmul.f32 %v455, %v827
      %v845 = vmul.f32 %v456, %v827
      %v846 = vmul.f32 %v457, %v827
      %v847 = vmul.f32 %v458, %v827
      %v848 = vmul.f32 %v459, %v827
      %v849 = vmul.f32 %v460, %v827
      %v850 = vmul.f32 %v461, %v827
      %v851 = vmul.f32 %v462, %v827
      %v852 = vmul.f32 %v463, %v827
      %v853 = vmul.f32 %v464, %v827
      %v854 = vmul.f32 %v465, %v827
      %v855 = vmul.f32 %v466, %v827
      %v856 = vmul.f32 %v467, %v827
      %v857 = vmul.f32 %v468, %v827
      %v858 = vmul.f32 %v469, %v827
      %v859 = vmul.f32 %v470, %v827
      %v860 = vadd.f32 %v790, %v828
      %v861 = vadd.f32 %v791, %v829
      %v862 = vadd.f32 %v792, %v830
      %v863 = vadd.f32 %v793, %v831
      %v864 = vadd.f32 %v794, %v832
      %v865 = vadd.f32 %v795, %v833
      %v866 = vadd.f32 %v796, %v834
      %v867 = vadd.f32 %v797, %v835
      %v868 = vadd.f32 %v798, %v836
      %v869 = vadd.f32 %v799, %v837
      %v870 = vadd.f32 %v800, %v838
      %v871 = vadd.f32 %v801, %v839
      %v872 = vadd.f32 %v802, %v840
      %v873 = vadd.f32 %v803, %v841
      %v874 = vadd.f32 %v804, %v842
      %v875 = vadd.f32 %v805, %v843
      %v876 = vadd.f32 %v806, %v844
      %v877 = vadd.f32 %v807, %v845
      %v878 = vadd.f32 %v808, %v846
      %v879 = vadd.f32 %v809, %v847
      %v880 = vadd.f32 %v810, %v848
      %v881 = vadd.f32 %v811, %v849
      %v882 = vadd.f32 %v812, %v850
      %v883 = vadd.f32 %v813, %v851
      %v884 = vadd.f32 %v814, %v852
      %v885 = vadd.f32 %v815, %v853
      %v886 = vadd.f32 %v816, %v854
      %v887 = vadd.f32 %v817, %v855
      %v888 = vadd.f32 %v818, %v856
      %v889 = vadd.f32 %v819, %v857
      %v890 = vadd.f32 %v820, %v858
      %v891 = vadd.f32 %v821, %v859
      %s892 = scalar_lea.vmem %s1, 48
      %v893 = vld [vmem:[%s892] sm:$0x1]
      %v894 = vlaneseq
      %v895 = vshrl.u32 %v894, 7
      %v896 = vsub.s32 0, %v895
      %v897 = vrot.slane %v893, %v896
      %v898 = vmul.f32 %v441, %v897
      %v899 = vmul.f32 %v442, %v897
      %v900 = vmul.f32 %v443, %v897
      %v901 = vmul.f32 %v444, %v897
      %v902 = vmul.f32 %v445, %v897
      %v903 = vmul.f32 %v446, %v897
      %v904 = vmul.f32 %v447, %v897
      %v905 = vmul.f32 %v448, %v897
      %v906 = vmul.f32 %v449, %v897
      %v907 = vmul.f32 %v450, %v897
      %v908 = vmul.f32 %v451, %v897
      %v909 = vmul.f32 %v452, %v897
      %v910 = vmul.f32 %v453, %v897
      %v911 = vmul.f32 %v454, %v897
      %v912 = vmul.f32 %v455, %v897
      %v913 = vmul.f32 %v456, %v897
      %v914 = vmul.f32 %v457, %v897
      %v915 = vmul.f32 %v458, %v897
      %v916 = vmul.f32 %v459, %v897
      %v917 = vmul.f32 %v460, %v897
      %v918 = vmul.f32 %v461, %v897
      %v919 = vmul.f32 %v462, %v897
      %v920 = vmul.f32 %v463, %v897
      %v921 = vmul.f32 %v464, %v897
      %v922 = vmul.f32 %v465, %v897
      %v923 = vmul.f32 %v466, %v897
      %v924 = vmul.f32 %v467, %v897
      %v925 = vmul.f32 %v468, %v897
      %v926 = vmul.f32 %v469, %v897
      %v927 = vmul.f32 %v470, %v897
      %v928 = vmul.f32 %v471, %v897
      %v929 = vmul.f32 %v472, %v897
      %v930 = vadd.f32 %v860, %v898
      %v931 = vadd.f32 %v861, %v899
      %v932 = vadd.f32 %v862, %v900
      %v933 = vadd.f32 %v863, %v901
      %v934 = vadd.f32 %v864, %v902
      %v935 = vadd.f32 %v865, %v903
      %v936 = vadd.f32 %v866, %v904
      %v937 = vadd.f32 %v867, %v905
      %v938 = vadd.f32 %v868, %v906
      %v939 = vadd.f32 %v869, %v907
      %v940 = vadd.f32 %v870, %v908
      %v941 = vadd.f32 %v871, %v909
      %v942 = vadd.f32 %v872, %v910
      %v943 = vadd.f32 %v873, %v911
      %v944 = vadd.f32 %v874, %v912
      %v945 = vadd.f32 %v875, %v913
      %v946 = vadd.f32 %v876, %v914
      %v947 = vadd.f32 %v877, %v915
      %v948 = vadd.f32 %v878, %v916
      %v949 = vadd.f32 %v879, %v917
      %v950 = vadd.f32 %v880, %v918
      %v951 = vadd.f32 %v881, %v919
      %v952 = vadd.f32 %v882, %v920
      %v953 = vadd.f32 %v883, %v921
      %v954 = vadd.f32 %v884, %v922
      %v955 = vadd.f32 %v885, %v923
      %v956 = vadd.f32 %v886, %v924
      %v957 = vadd.f32 %v887, %v925
      %v958 = vadd.f32 %v888, %v926
      %v959 = vadd.f32 %v889, %v927
      %v960 = vadd.f32 %v890, %v928
      %v961 = vadd.f32 %v891, %v929
      %v962 = vld [vmem:[#allocation2 + $0x6] sm:$0xff]
      %v963 = vld [vmem:[#allocation2 + $0xe] sm:$0xff]
      %v964 = vld [vmem:[#allocation2 + $0x26] sm:$0xff]
      %v965 = vld [vmem:[#allocation2 + $0x2e] sm:$0xff]
      %v966 = vld [vmem:[#allocation2 + $0x46] sm:$0xff]
      %v967 = vld [vmem:[#allocation2 + $0x4e] sm:$0xff]
      %v968 = vld [vmem:[#allocation2 + $0x66] sm:$0xff]
      %v969 = vld [vmem:[#allocation2 + $0x6e] sm:$0xff]
      %v970 = vld [vmem:[#allocation2 + $0x86] sm:$0xff]
      %v971 = vld [vmem:[#allocation2 + $0x8e] sm:$0xff]
      %v972 = vld [vmem:[#allocation2 + $0xa6] sm:$0xff]
      %v973 = vld [vmem:[#allocation2 + $0xae] sm:$0xff]
      %v974 = vld [vmem:[#allocation2 + $0xc6] sm:$0xff]
      %v975 = vld [vmem:[#allocation2 + $0xce] sm:$0xff]
      %v976 = vld [vmem:[#allocation2 + $0xe6] sm:$0xff]
      %v977 = vld [vmem:[#allocation2 + $0xee] sm:$0xff]
      %v978 = vld [vmem:[#allocation2 + $0x106] sm:$0xff]
      %v979 = vld [vmem:[#allocation2 + $0x10e] sm:$0xff]
      %v980 = vld [vmem:[#allocation2 + $0x126] sm:$0xff]
      %v981 = vld [vmem:[#allocation2 + $0x12e] sm:$0xff]
      %v982 = vld [vmem:[#allocation2 + $0x146] sm:$0xff]
      %v983 = vld [vmem:[#allocation2 + $0x14e] sm:$0xff]
      %v984 = vld [vmem:[#allocation2 + $0x166] sm:$0xff]
      %v985 = vld [vmem:[#allocation2 + $0x16e] sm:$0xff]
      %v986 = vld [vmem:[#allocation2 + $0x186] sm:$0xff]
      %v987 = vld [vmem:[#allocation2 + $0x18e] sm:$0xff]
      %v988 = vld [vmem:[#allocation2 + $0x1a6] sm:$0xff]
      %v989 = vld [vmem:[#allocation2 + $0x1ae] sm:$0xff]
      %v990 = vld [vmem:[#allocation2 + $0x1c6] sm:$0xff]
      %v991 = vld [vmem:[#allocation2 + $0x1ce] sm:$0xff]
      %v992 = vld [vmem:[#allocation2 + $0x1e6] sm:$0xff]
      %v993 = vld [vmem:[#allocation2 + $0x1ee] sm:$0xff]
      %v994 = vld [vmem:[#allocation2 + $0x206] sm:$0xff]
      %v995 = vld [vmem:[#allocation2 + $0x20e] sm:$0xff]
      %v996 = vld [vmem:[#allocation2 + $0x226] sm:$0xff]
      %v997 = vld [vmem:[#allocation2 + $0x22e] sm:$0xff]
      %v998 = vld [vmem:[#allocation2 + $0x246] sm:$0xff]
      %v999 = vld [vmem:[#allocation2 + $0x24e] sm:$0xff]
      %v1000 = vld [vmem:[#allocation2 + $0x266] sm:$0xff]
      %v1001 = vld [vmem:[#allocation2 + $0x26e] sm:$0xff]
      %v1002 = vld [vmem:[#allocation2 + $0x286] sm:$0xff]
      %v1003 = vld [vmem:[#allocation2 + $0x28e] sm:$0xff]
      %v1004 = vld [vmem:[#allocation2 + $0x2a6] sm:$0xff]
      %v1005 = vld [vmem:[#allocation2 + $0x2ae] sm:$0xff]
      %v1006 = vld [vmem:[%s1 + $0x1] sm:$0x1]
      %v1007 = vlaneseq
      %v1008 = vshrl.u32 %v1007, 7
      %v1009 = vsub.s32 0, %v1008
      %v1010 = vrot.slane %v1006, %v1009
      %v1011 = vmul.f32 %v962, %v1010
      %v1012 = vmul.f32 %v963, %v1010
      %v1013 = vmul.f32 %v964, %v1010
      %v1014 = vmul.f32 %v965, %v1010
      %v1015 = vmul.f32 %v966, %v1010
      %v1016 = vmul.f32 %v967, %v1010
      %v1017 = vmul.f32 %v968, %v1010
      %v1018 = vmul.f32 %v969, %v1010
      %v1019 = vmul.f32 %v970, %v1010
      %v1020 = vmul.f32 %v971, %v1010
      %v1021 = vmul.f32 %v972, %v1010
      %v1022 = vmul.f32 %v973, %v1010
      %v1023 = vmul.f32 %v974, %v1010
      %v1024 = vmul.f32 %v975, %v1010
      %v1025 = vmul.f32 %v976, %v1010
      %v1026 = vmul.f32 %v977, %v1010
      %v1027 = vmul.f32 %v978, %v1010
      %v1028 = vmul.f32 %v979, %v1010
      %v1029 = vmul.f32 %v980, %v1010
      %v1030 = vmul.f32 %v981, %v1010
      %v1031 = vmul.f32 %v982, %v1010
      %v1032 = vmul.f32 %v983, %v1010
      %v1033 = vmul.f32 %v984, %v1010
      %v1034 = vmul.f32 %v985, %v1010
      %v1035 = vmul.f32 %v986, %v1010
      %v1036 = vmul.f32 %v987, %v1010
      %v1037 = vmul.f32 %v988, %v1010
      %v1038 = vmul.f32 %v989, %v1010
      %v1039 = vmul.f32 %v990, %v1010
      %v1040 = vmul.f32 %v991, %v1010
      %v1041 = vmul.f32 %v992, %v1010
      %v1042 = vmul.f32 %v993, %v1010
      %v1043 = vadd.f32 %v930, %v1011
      %v1044 = vadd.f32 %v931, %v1012
      %v1045 = vadd.f32 %v932, %v1013
      %v1046 = vadd.f32 %v933, %v1014
      %v1047 = vadd.f32 %v934, %v1015
      %v1048 = vadd.f32 %v935, %v1016
      %v1049 = vadd.f32 %v936, %v1017
      %v1050 = vadd.f32 %v937, %v1018
      %v1051 = vadd.f32 %v938, %v1019
      %v1052 = vadd.f32 %v939, %v1020
      %v1053 = vadd.f32 %v940, %v1021
      %v1054 = vadd.f32 %v941, %v1022
      %v1055 = vadd.f32 %v942, %v1023
      %v1056 = vadd.f32 %v943, %v1024
      %v1057 = vadd.f32 %v944, %v1025
      %v1058 = vadd.f32 %v945, %v1026
      %v1059 = vadd.f32 %v946, %v1027
      %v1060 = vadd.f32 %v947, %v1028
      %v1061 = vadd.f32 %v948, %v1029
      %v1062 = vadd.f32 %v949, %v1030
      %v1063 = vadd.f32 %v950, %v1031
      %v1064 = vadd.f32 %v951, %v1032
      %v1065 = vadd.f32 %v952, %v1033
      %v1066 = vadd.f32 %v953, %v1034
      %v1067 = vadd.f32 %v954, %v1035
      %v1068 = vadd.f32 %v955, %v1036
      %v1069 = vadd.f32 %v956, %v1037
      %v1070 = vadd.f32 %v957, %v1038
      %v1071 = vadd.f32 %v958, %v1039
      %v1072 = vadd.f32 %v959, %v1040
      %v1073 = vadd.f32 %v960, %v1041
      %v1074 = vadd.f32 %v961, %v1042
      %v1075 = vld [vmem:[%s542 + $0x1] sm:$0x1]
      %v1076 = vlaneseq
      %v1077 = vshrl.u32 %v1076, 7
      %v1078 = vsub.s32 0, %v1077
      %v1079 = vrot.slane %v1075, %v1078
      %v1080 = vmul.f32 %v964, %v1079
      %v1081 = vmul.f32 %v965, %v1079
      %v1082 = vmul.f32 %v966, %v1079
      %v1083 = vmul.f32 %v967, %v1079
      %v1084 = vmul.f32 %v968, %v1079
      %v1085 = vmul.f32 %v969, %v1079
      %v1086 = vmul.f32 %v970, %v1079
      %v1087 = vmul.f32 %v971, %v1079
      %v1088 = vmul.f32 %v972, %v1079
      %v1089 = vmul.f32 %v973, %v1079
      %v1090 = vmul.f32 %v974, %v1079
      %v1091 = vmul.f32 %v975, %v1079
      %v1092 = vmul.f32 %v976, %v1079
      %v1093 = vmul.f32 %v977, %v1079
      %v1094 = vmul.f32 %v978, %v1079
      %v1095 = vmul.f32 %v979, %v1079
      %v1096 = vmul.f32 %v980, %v1079
      %v1097 = vmul.f32 %v981, %v1079
      %v1098 = vmul.f32 %v982, %v1079
      %v1099 = vmul.f32 %v983, %v1079
      %v1100 = vmul.f32 %v984, %v1079
      %v1101 = vmul.f32 %v985, %v1079
      %v1102 = vmul.f32 %v986, %v1079
      %v1103 = vmul.f32 %v987, %v1079
      %v1104 = vmul.f32 %v988, %v1079
      %v1105 = vmul.f32 %v989, %v1079
      %v1106 = vmul.f32 %v990, %v1079
      %v1107 = vmul.f32 %v991, %v1079
      %v1108 = vmul.f32 %v992, %v1079
      %v1109 = vmul.f32 %v993, %v1079
      %v1110 = vmul.f32 %v994, %v1079
      %v1111 = vmul.f32 %v995, %v1079
      %v1112 = vadd.f32 %v1043, %v1080
      %v1113 = vadd.f32 %v1044, %v1081
      %v1114 = vadd.f32 %v1045, %v1082
      %v1115 = vadd.f32 %v1046, %v1083
      %v1116 = vadd.f32 %v1047, %v1084
      %v1117 = vadd.f32 %v1048, %v1085
      %v1118 = vadd.f32 %v1049, %v1086
      %v1119 = vadd.f32 %v1050, %v1087
      %v1120 = vadd.f32 %v1051, %v1088
      %v1121 = vadd.f32 %v1052, %v1089
      %v1122 = vadd.f32 %v1053, %v1090
      %v1123 = vadd.f32 %v1054, %v1091
      %v1124 = vadd.f32 %v1055, %v1092
      %v1125 = vadd.f32 %v1056, %v1093
      %v1126 = vadd.f32 %v1057, %v1094
      %v1127 = vadd.f32 %v1058, %v1095
      %v1128 = vadd.f32 %v1059, %v1096
      %v1129 = vadd.f32 %v1060, %v1097
      %v1130 = vadd.f32 %v1061, %v1098
      %v1131 = vadd.f32 %v1062, %v1099
      %v1132 = vadd.f32 %v1063, %v1100
      %v1133 = vadd.f32 %v1064, %v1101
      %v1134 = vadd.f32 %v1065, %v1102
      %v1135 = vadd.f32 %v1066, %v1103
      %v1136 = vadd.f32 %v1067, %v1104
      %v1137 = vadd.f32 %v1068, %v1105
      %v1138 = vadd.f32 %v1069, %v1106
      %v1139 = vadd.f32 %v1070, %v1107
      %v1140 = vadd.f32 %v1071, %v1108
      %v1141 = vadd.f32 %v1072, %v1109
      %v1142 = vadd.f32 %v1073, %v1110
      %v1143 = vadd.f32 %v1074, %v1111
      %v1144 = vld [vmem:[%s612 + $0x1] sm:$0x1]
      %v1145 = vlaneseq
      %v1146 = vshrl.u32 %v1145, 7
      %v1147 = vsub.s32 0, %v1146
      %v1148 = vrot.slane %v1144, %v1147
      %v1149 = vmul.f32 %v966, %v1148
      %v1150 = vmul.f32 %v967, %v1148
      %v1151 = vmul.f32 %v968, %v1148
      %v1152 = vmul.f32 %v969, %v1148
      %v1153 = vmul.f32 %v970, %v1148
      %v1154 = vmul.f32 %v971, %v1148
      %v1155 = vmul.f32 %v972, %v1148
      %v1156 = vmul.f32 %v973, %v1148
      %v1157 = vmul.f32 %v974, %v1148
      %v1158 = vmul.f32 %v975, %v1148
      %v1159 = vmul.f32 %v976, %v1148
      %v1160 = vmul.f32 %v977, %v1148
      %v1161 = vmul.f32 %v978, %v1148
      %v1162 = vmul.f32 %v979, %v1148
      %v1163 = vmul.f32 %v980, %v1148
      %v1164 = vmul.f32 %v981, %v1148
      %v1165 = vmul.f32 %v982, %v1148
      %v1166 = vmul.f32 %v983, %v1148
      %v1167 = vmul.f32 %v984, %v1148
      %v1168 = vmul.f32 %v985, %v1148
      %v1169 = vmul.f32 %v986, %v1148
      %v1170 = vmul.f32 %v987, %v1148
      %v1171 = vmul.f32 %v988, %v1148
      %v1172 = vmul.f32 %v989, %v1148
      %v1173 = vmul.f32 %v990, %v1148
      %v1174 = vmul.f32 %v991, %v1148
      %v1175 = vmul.f32 %v992, %v1148
      %v1176 = vmul.f32 %v993, %v1148
      %v1177 = vmul.f32 %v994, %v1148
      %v1178 = vmul.f32 %v995, %v1148
      %v1179 = vmul.f32 %v996, %v1148
      %v1180 = vmul.f32 %v997, %v1148
      %v1181 = vadd.f32 %v1112, %v1149
      %v1182 = vadd.f32 %v1113, %v1150
      %v1183 = vadd.f32 %v1114, %v1151
      %v1184 = vadd.f32 %v1115, %v1152
      %v1185 = vadd.f32 %v1116, %v1153
      %v1186 = vadd.f32 %v1117, %v1154
      %v1187 = vadd.f32 %v1118, %v1155
      %v1188 = vadd.f32 %v1119, %v1156
      %v1189 = vadd.f32 %v1120, %v1157
      %v1190 = vadd.f32 %v1121, %v1158
      %v1191 = vadd.f32 %v1122, %v1159
      %v1192 = vadd.f32 %v1123, %v1160
      %v1193 = vadd.f32 %v1124, %v1161
      %v1194 = vadd.f32 %v1125, %v1162
      %v1195 = vadd.f32 %v1126, %v1163
      %v1196 = vadd.f32 %v1127, %v1164
      %v1197 = vadd.f32 %v1128, %v1165
      %v1198 = vadd.f32 %v1129, %v1166
      %v1199 = vadd.f32 %v1130, %v1167
      %v1200 = vadd.f32 %v1131, %v1168
      %v1201 = vadd.f32 %v1132, %v1169
      %v1202 = vadd.f32 %v1133, %v1170
      %v1203 = vadd.f32 %v1134, %v1171
      %v1204 = vadd.f32 %v1135, %v1172
      %v1205 = vadd.f32 %v1136, %v1173
      %v1206 = vadd.f32 %v1137, %v1174
      %v1207 = vadd.f32 %v1138, %v1175
      %v1208 = vadd.f32 %v1139, %v1176
      %v1209 = vadd.f32 %v1140, %v1177
      %v1210 = vadd.f32 %v1141, %v1178
      %v1211 = vadd.f32 %v1142, %v1179
      %v1212 = vadd.f32 %v1143, %v1180
      %v1213 = vld [vmem:[%s682 + $0x1] sm:$0x1]
      %v1214 = vlaneseq
      %v1215 = vshrl.u32 %v1214, 7
      %v1216 = vsub.s32 0, %v1215
      %v1217 = vrot.slane %v1213, %v1216
      %v1218 = vmul.f32 %v968, %v1217
      %v1219 = vmul.f32 %v969, %v1217
      %v1220 = vmul.f32 %v970, %v1217
      %v1221 = vmul.f32 %v971, %v1217
      %v1222 = vmul.f32 %v972, %v1217
      %v1223 = vmul.f32 %v973, %v1217
      %v1224 = vmul.f32 %v974, %v1217
      %v1225 = vmul.f32 %v975, %v1217
      %v1226 = vmul.f32 %v976, %v1217
      %v1227 = vmul.f32 %v977, %v1217
      %v1228 = vmul.f32 %v978, %v1217
      %v1229 = vmul.f32 %v979, %v1217
      %v1230 = vmul.f32 %v980, %v1217
      %v1231 = vmul.f32 %v981, %v1217
      %v1232 = vmul.f32 %v982, %v1217
      %v1233 = vmul.f32 %v983, %v1217
      %v1234 = vmul.f32 %v984, %v1217
      %v1235 = vmul.f32 %v985, %v1217
      %v1236 = vmul.f32 %v986, %v1217
      %v1237 = vmul.f32 %v987, %v1217
      %v1238 = vmul.f32 %v988, %v1217
      %v1239 = vmul.f32 %v989, %v1217
      %v1240 = vmul.f32 %v990, %v1217
      %v1241 = vmul.f32 %v991, %v1217
      %v1242 = vmul.f32 %v992, %v1217
      %v1243 = vmul.f32 %v993, %v1217
      %v1244 = vmul.f32 %v994, %v1217
      %v1245 = vmul.f32 %v995, %v1217
      %v1246 = vmul.f32 %v996, %v1217
      %v1247 = vmul.f32 %v997, %v1217
      %v1248 = vmul.f32 %v998, %v1217
      %v1249 = vmul.f32 %v999, %v1217
      %v1250 = vadd.f32 %v1181, %v1218
      %v1251 = vadd.f32 %v1182, %v1219
      %v1252 = vadd.f32 %v1183, %v1220
      %v1253 = vadd.f32 %v1184, %v1221
      %v1254 = vadd.f32 %v1185, %v1222
      %v1255 = vadd.f32 %v1186, %v1223
      %v1256 = vadd.f32 %v1187, %v1224
      %v1257 = vadd.f32 %v1188, %v1225
      %v1258 = vadd.f32 %v1189, %v1226
      %v1259 = vadd.f32 %v1190, %v1227
      %v1260 = vadd.f32 %v1191, %v1228
      %v1261 = vadd.f32 %v1192, %v1229
      %v1262 = vadd.f32 %v1193, %v1230
      %v1263 = vadd.f32 %v1194, %v1231
      %v1264 = vadd.f32 %v1195, %v1232
      %v1265 = vadd.f32 %v1196, %v1233
      %v1266 = vadd.f32 %v1197, %v1234
      %v1267 = vadd.f32 %v1198, %v1235
      %v1268 = vadd.f32 %v1199, %v1236
      %v1269 = vadd.f32 %v1200, %v1237
      %v1270 = vadd.f32 %v1201, %v1238
      %v1271 = vadd.f32 %v1202, %v1239
      %v1272 = vadd.f32 %v1203, %v1240
      %v1273 = vadd.f32 %v1204, %v1241
      %v1274 = vadd.f32 %v1205, %v1242
      %v1275 = vadd.f32 %v1206, %v1243
      %v1276 = vadd.f32 %v1207, %v1244
      %v1277 = vadd.f32 %v1208, %v1245
      %v1278 = vadd.f32 %v1209, %v1246
      %v1279 = vadd.f32 %v1210, %v1247
      %v1280 = vadd.f32 %v1211, %v1248
      %v1281 = vadd.f32 %v1212, %v1249
      %v1282 = vld [vmem:[%s752 + $0x1] sm:$0x1]
      %v1283 = vlaneseq
      %v1284 = vshrl.u32 %v1283, 7
      %v1285 = vsub.s32 0, %v1284
      %v1286 = vrot.slane %v1282, %v1285
      %v1287 = vmul.f32 %v970, %v1286
      %v1288 = vmul.f32 %v971, %v1286
      %v1289 = vmul.f32 %v972, %v1286
      %v1290 = vmul.f32 %v973, %v1286
      %v1291 = vmul.f32 %v974, %v1286
      %v1292 = vmul.f32 %v975, %v1286
      %v1293 = vmul.f32 %v976, %v1286
      %v1294 = vmul.f32 %v977, %v1286
      %v1295 = vmul.f32 %v978, %v1286
      %v1296 = vmul.f32 %v979, %v1286
      %v1297 = vmul.f32 %v980, %v1286
      %v1298 = vmul.f32 %v981, %v1286
      %v1299 = vmul.f32 %v982, %v1286
      %v1300 = vmul.f32 %v983, %v1286
      %v1301 = vmul.f32 %v984, %v1286
      %v1302 = vmul.f32 %v985, %v1286
      %v1303 = vmul.f32 %v986, %v1286
      %v1304 = vmul.f32 %v987, %v1286
      %v1305 = vmul.f32 %v988, %v1286
      %v1306 = vmul.f32 %v989, %v1286
      %v1307 = vmul.f32 %v990, %v1286
      %v1308 = vmul.f32 %v991, %v1286
      %v1309 = vmul.f32 %v992, %v1286
      %v1310 = vmul.f32 %v993, %v1286
      %v1311 = vmul.f32 %v994, %v1286
      %v1312 = vmul.f32 %v995, %v1286
      %v1313 = vmul.f32 %v996, %v1286
      %v1314 = vmul.f32 %v997, %v1286
      %v1315 = vmul.f32 %v998, %v1286
      %v1316 = vmul.f32 %v999, %v1286
      %v1317 = vmul.f32 %v1000, %v1286
      %v1318 = vmul.f32 %v1001, %v1286
      %v1319 = vadd.f32 %v1250, %v1287
      %v1320 = vadd.f32 %v1251, %v1288
      %v1321 = vadd.f32 %v1252, %v1289
      %v1322 = vadd.f32 %v1253, %v1290
      %v1323 = vadd.f32 %v1254, %v1291
      %v1324 = vadd.f32 %v1255, %v1292
      %v1325 = vadd.f32 %v1256, %v1293
      %v1326 = vadd.f32 %v1257, %v1294
      %v1327 = vadd.f32 %v1258, %v1295
      %v1328 = vadd.f32 %v1259, %v1296
      %v1329 = vadd.f32 %v1260, %v1297
      %v1330 = vadd.f32 %v1261, %v1298
      %v1331 = vadd.f32 %v1262, %v1299
      %v1332 = vadd.f32 %v1263, %v1300
      %v1333 = vadd.f32 %v1264, %v1301
      %v1334 = vadd.f32 %v1265, %v1302
      %v1335 = vadd.f32 %v1266, %v1303
      %v1336 = vadd.f32 %v1267, %v1304
      %v1337 = vadd.f32 %v1268, %v1305
      %v1338 = vadd.f32 %v1269, %v1306
      %v1339 = vadd.f32 %v1270, %v1307
      %v1340 = vadd.f32 %v1271, %v1308
      %v1341 = vadd.f32 %v1272, %v1309
      %v1342 = vadd.f32 %v1273, %v1310
      %v1343 = vadd.f32 %v1274, %v1311
      %v1344 = vadd.f32 %v1275, %v1312
      %v1345 = vadd.f32 %v1276, %v1313
      %v1346 = vadd.f32 %v1277, %v1314
      %v1347 = vadd.f32 %v1278, %v1315
      %v1348 = vadd.f32 %v1279, %v1316
      %v1349 = vadd.f32 %v1280, %v1317
      %v1350 = vadd.f32 %v1281, %v1318
      %v1351 = vld [vmem:[%s822 + $0x1] sm:$0x1]
      %v1352 = vlaneseq
      %v1353 = vshrl.u32 %v1352, 7
      %v1354 = vsub.s32 0, %v1353
      %v1355 = vrot.slane %v1351, %v1354
      %v1356 = vmul.f32 %v972, %v1355
      %v1357 = vmul.f32 %v973, %v1355
      %v1358 = vmul.f32 %v974, %v1355
      %v1359 = vmul.f32 %v975, %v1355
      %v1360 = vmul.f32 %v976, %v1355
      %v1361 = vmul.f32 %v977, %v1355
      %v1362 = vmul.f32 %v978, %v1355
      %v1363 = vmul.f32 %v979, %v1355
      %v1364 = vmul.f32 %v980, %v1355
      %v1365 = vmul.f32 %v981, %v1355
      %v1366 = vmul.f32 %v982, %v1355
      %v1367 = vmul.f32 %v983, %v1355
      %v1368 = vmul.f32 %v984, %v1355
      %v1369 = vmul.f32 %v985, %v1355
      %v1370 = vmul.f32 %v986, %v1355
      %v1371 = vmul.f32 %v987, %v1355
      %v1372 = vmul.f32 %v988, %v1355
      %v1373 = vmul.f32 %v989, %v1355
      %v1374 = vmul.f32 %v990, %v1355
      %v1375 = vmul.f32 %v991, %v1355
      %v1376 = vmul.f32 %v992, %v1355
      %v1377 = vmul.f32 %v993, %v1355
      %v1378 = vmul.f32 %v994, %v1355
      %v1379 = vmul.f32 %v995, %v1355
      %v1380 = vmul.f32 %v996, %v1355
      %v1381 = vmul.f32 %v997, %v1355
      %v1382 = vmul.f32 %v998, %v1355
      %v1383 = vmul.f32 %v999, %v1355
      %v1384 = vmul.f32 %v1000, %v1355
      %v1385 = vmul.f32 %v1001, %v1355
      %v1386 = vmul.f32 %v1002, %v1355
      %v1387 = vmul.f32 %v1003, %v1355
      %v1388 = vadd.f32 %v1319, %v1356
      %v1389 = vadd.f32 %v1320, %v1357
      %v1390 = vadd.f32 %v1321, %v1358
      %v1391 = vadd.f32 %v1322, %v1359
      %v1392 = vadd.f32 %v1323, %v1360
      %v1393 = vadd.f32 %v1324, %v1361
      %v1394 = vadd.f32 %v1325, %v1362
      %v1395 = vadd.f32 %v1326, %v1363
      %v1396 = vadd.f32 %v1327, %v1364
      %v1397 = vadd.f32 %v1328, %v1365
      %v1398 = vadd.f32 %v1329, %v1366
      %v1399 = vadd.f32 %v1330, %v1367
      %v1400 = vadd.f32 %v1331, %v1368
      %v1401 = vadd.f32 %v1332, %v1369
      %v1402 = vadd.f32 %v1333, %v1370
      %v1403 = vadd.f32 %v1334, %v1371
      %v1404 = vadd.f32 %v1335, %v1372
      %v1405 = vadd.f32 %v1336, %v1373
      %v1406 = vadd.f32 %v1337, %v1374
      %v1407 = vadd.f32 %v1338, %v1375
      %v1408 = vadd.f32 %v1339, %v1376
      %v1409 = vadd.f32 %v1340, %v1377
      %v1410 = vadd.f32 %v1341, %v1378
      %v1411 = vadd.f32 %v1342, %v1379
      %v1412 = vadd.f32 %v1343, %v1380
      %v1413 = vadd.f32 %v1344, %v1381
      %v1414 = vadd.f32 %v1345, %v1382
      %v1415 = vadd.f32 %v1346, %v1383
      %v1416 = vadd.f32 %v1347, %v1384
      %v1417 = vadd.f32 %v1348, %v1385
      %v1418 = vadd.f32 %v1349, %v1386
      %v1419 = vadd.f32 %v1350, %v1387
      %v1420 = vld [vmem:[%s892 + $0x1] sm:$0x1]
      %v1421 = vlaneseq
      %v1422 = vshrl.u32 %v1421, 7
      %v1423 = vsub.s32 0, %v1422
      %v1424 = vrot.slane %v1420, %v1423
      %v1425 = vmul.f32 %v974, %v1424
      %v1426 = vmul.f32 %v975, %v1424
      %v1427 = vmul.f32 %v976, %v1424
      %v1428 = vmul.f32 %v977, %v1424
      %v1429 = vmul.f32 %v978, %v1424
      %v1430 = vmul.f32 %v979, %v1424
      %v1431 = vmul.f32 %v980, %v1424
      %v1432 = vmul.f32 %v981, %v1424
      %v1433 = vmul.f32 %v982, %v1424
      %v1434 = vmul.f32 %v983, %v1424
      %v1435 = vmul.f32 %v984, %v1424
      %v1436 = vmul.f32 %v985, %v1424
      %v1437 = vmul.f32 %v986, %v1424
      %v1438 = vmul.f32 %v987, %v1424
      %v1439 = vmul.f32 %v988, %v1424
      %v1440 = vmul.f32 %v989, %v1424
      %v1441 = vmul.f32 %v990, %v1424
      %v1442 = vmul.f32 %v991, %v1424
      %v1443 = vmul.f32 %v992, %v1424
      %v1444 = vmul.f32 %v993, %v1424
      %v1445 = vmul.f32 %v994, %v1424
      %v1446 = vmul.f32 %v995, %v1424
      %v1447 = vmul.f32 %v996, %v1424
      %v1448 = vmul.f32 %v997, %v1424
      %v1449 = vmul.f32 %v998, %v1424
      %v1450 = vmul.f32 %v999, %v1424
      %v1451 = vmul.f32 %v1000, %v1424
      %v1452 = vmul.f32 %v1001, %v1424
      %v1453 = vmul.f32 %v1002, %v1424
      %v1454 = vmul.f32 %v1003, %v1424
      %v1455 = vmul.f32 %v1004, %v1424
      %v1456 = vmul.f32 %v1005, %v1424
      %v1457 = vadd.f32 %v1388, %v1425
      %v1458 = vadd.f32 %v1389, %v1426
      %v1459 = vadd.f32 %v1390, %v1427
      %v1460 = vadd.f32 %v1391, %v1428
      %v1461 = vadd.f32 %v1392, %v1429
      %v1462 = vadd.f32 %v1393, %v1430
      %v1463 = vadd.f32 %v1394, %v1431
      %v1464 = vadd.f32 %v1395, %v1432
      %v1465 = vadd.f32 %v1396, %v1433
      %v1466 = vadd.f32 %v1397, %v1434
      %v1467 = vadd.f32 %v1398, %v1435
      %v1468 = vadd.f32 %v1399, %v1436
      %v1469 = vadd.f32 %v1400, %v1437
      %v1470 = vadd.f32 %v1401, %v1438
      %v1471 = vadd.f32 %v1402, %v1439
      %v1472 = vadd.f32 %v1403, %v1440
      %v1473 = vadd.f32 %v1404, %v1441
      %v1474 = vadd.f32 %v1405, %v1442
      %v1475 = vadd.f32 %v1406, %v1443
      %v1476 = vadd.f32 %v1407, %v1444
      %v1477 = vadd.f32 %v1408, %v1445
      %v1478 = vadd.f32 %v1409, %v1446
      %v1479 = vadd.f32 %v1410, %v1447
      %v1480 = vadd.f32 %v1411, %v1448
      %v1481 = vadd.f32 %v1412, %v1449
      %v1482 = vadd.f32 %v1413, %v1450
      %v1483 = vadd.f32 %v1414, %v1451
      %v1484 = vadd.f32 %v1415, %v1452
      %v1485 = vadd.f32 %v1416, %v1453
      %v1486 = vadd.f32 %v1417, %v1454
      %v1487 = vadd.f32 %v1418, %v1455
      %v1488 = vadd.f32 %v1419, %v1456
      %v1489 = vld [vmem:[#allocation2 + $0x7] sm:$0xff]
      %v1490 = vld [vmem:[#allocation2 + $0xf] sm:$0xff]
      %v1491 = vld [vmem:[#allocation2 + $0x27] sm:$0xff]
      %v1492 = vld [vmem:[#allocation2 + $0x2f] sm:$0xff]
      %v1493 = vld [vmem:[#allocation2 + $0x47] sm:$0xff]
      %v1494 = vld [vmem:[#allocation2 + $0x4f] sm:$0xff]
      %v1495 = vld [vmem:[#allocation2 + $0x67] sm:$0xff]
      %v1496 = vld [vmem:[#allocation2 + $0x6f] sm:$0xff]
      %v1497 = vld [vmem:[#allocation2 + $0x87] sm:$0xff]
      %v1498 = vld [vmem:[#allocation2 + $0x8f] sm:$0xff]
      %v1499 = vld [vmem:[#allocation2 + $0xa7] sm:$0xff]
      %v1500 = vld [vmem:[#allocation2 + $0xaf] sm:$0xff]
      %v1501 = vld [vmem:[#allocation2 + $0xc7] sm:$0xff]
      %v1502 = vld [vmem:[#allocation2 + $0xcf] sm:$0xff]
      %v1503 = vld [vmem:[#allocation2 + $0xe7] sm:$0xff]
      %v1504 = vld [vmem:[#allocation2 + $0xef] sm:$0xff]
      %v1505 = vld [vmem:[#allocation2 + $0x107] sm:$0xff]
      %v1506 = vld [vmem:[#allocation2 + $0x10f] sm:$0xff]
      %v1507 = vld [vmem:[#allocation2 + $0x127] sm:$0xff]
      %v1508 = vld [vmem:[#allocation2 + $0x12f] sm:$0xff]
      %v1509 = vld [vmem:[#allocation2 + $0x147] sm:$0xff]
      %v1510 = vld [vmem:[#allocation2 + $0x14f] sm:$0xff]
      %v1511 = vld [vmem:[#allocation2 + $0x167] sm:$0xff]
      %v1512 = vld [vmem:[#allocation2 + $0x16f] sm:$0xff]
      %v1513 = vld [vmem:[#allocation2 + $0x187] sm:$0xff]
      %v1514 = vld [vmem:[#allocation2 + $0x18f] sm:$0xff]
      %v1515 = vld [vmem:[#allocation2 + $0x1a7] sm:$0xff]
      %v1516 = vld [vmem:[#allocation2 + $0x1af] sm:$0xff]
      %v1517 = vld [vmem:[#allocation2 + $0x1c7] sm:$0xff]
      %v1518 = vld [vmem:[#allocation2 + $0x1cf] sm:$0xff]
      %v1519 = vld [vmem:[#allocation2 + $0x1e7] sm:$0xff]
      %v1520 = vld [vmem:[#allocation2 + $0x1ef] sm:$0xff]
      %v1521 = vld [vmem:[#allocation2 + $0x207] sm:$0xff]
      %v1522 = vld [vmem:[#allocation2 + $0x20f] sm:$0xff]
      %v1523 = vld [vmem:[#allocation2 + $0x227] sm:$0xff]
      %v1524 = vld [vmem:[#allocation2 + $0x22f] sm:$0xff]
      %v1525 = vld [vmem:[#allocation2 + $0x247] sm:$0xff]
      %v1526 = vld [vmem:[#allocation2 + $0x24f] sm:$0xff]
      %v1527 = vld [vmem:[#allocation2 + $0x267] sm:$0xff]
      %v1528 = vld [vmem:[#allocation2 + $0x26f] sm:$0xff]
      %v1529 = vld [vmem:[#allocation2 + $0x287] sm:$0xff]
      %v1530 = vld [vmem:[#allocation2 + $0x28f] sm:$0xff]
      %v1531 = vld [vmem:[#allocation2 + $0x2a7] sm:$0xff]
      %v1532 = vld [vmem:[#allocation2 + $0x2af] sm:$0xff]
      %v1533 = vld [vmem:[%s1 + $0x2] sm:$0x1]
      %v1534 = vlaneseq
      %v1535 = vshrl.u32 %v1534, 7
      %v1536 = vsub.s32 0, %v1535
      %v1537 = vrot.slane %v1533, %v1536
      %v1538 = vmul.f32 %v1489, %v1537
      %v1539 = vmul.f32 %v1490, %v1537
      %v1540 = vmul.f32 %v1491, %v1537
      %v1541 = vmul.f32 %v1492, %v1537
      %v1542 = vmul.f32 %v1493, %v1537
      %v1543 = vmul.f32 %v1494, %v1537
      %v1544 = vmul.f32 %v1495, %v1537
      %v1545 = vmul.f32 %v1496, %v1537
      %v1546 = vmul.f32 %v1497, %v1537
      %v1547 = vmul.f32 %v1498, %v1537
      %v1548 = vmul.f32 %v1499, %v1537
      %v1549 = vmul.f32 %v1500, %v1537
      %v1550 = vmul.f32 %v1501, %v1537
      %v1551 = vmul.f32 %v1502, %v1537
      %v1552 = vmul.f32 %v1503, %v1537
      %v1553 = vmul.f32 %v1504, %v1537
      %v1554 = vmul.f32 %v1505, %v1537
      %v1555 = vmul.f32 %v1506, %v1537
      %v1556 = vmul.f32 %v1507, %v1537
      %v1557 = vmul.f32 %v1508, %v1537
      %v1558 = vmul.f32 %v1509, %v1537
      %v1559 = vmul.f32 %v1510, %v1537
      %v1560 = vmul.f32 %v1511, %v1537
      %v1561 = vmul.f32 %v1512, %v1537
      %v1562 = vmul.f32 %v1513, %v1537
      %v1563 = vmul.f32 %v1514, %v1537
      %v1564 = vmul.f32 %v1515, %v1537
      %v1565 = vmul.f32 %v1516, %v1537
      %v1566 = vmul.f32 %v1517, %v1537
      %v1567 = vmul.f32 %v1518, %v1537
      %v1568 = vmul.f32 %v1519, %v1537
      %v1569 = vmul.f32 %v1520, %v1537
      %v1570 = vadd.f32 %v1457, %v1538
      %v1571 = vadd.f32 %v1458, %v1539
      %v1572 = vadd.f32 %v1459, %v1540
      %v1573 = vadd.f32 %v1460, %v1541
      %v1574 = vadd.f32 %v1461, %v1542
      %v1575 = vadd.f32 %v1462, %v1543
      %v1576 = vadd.f32 %v1463, %v1544
      %v1577 = vadd.f32 %v1464, %v1545
      %v1578 = vadd.f32 %v1465, %v1546
      %v1579 = vadd.f32 %v1466, %v1547
      %v1580 = vadd.f32 %v1467, %v1548
      %v1581 = vadd.f32 %v1468, %v1549
      %v1582 = vadd.f32 %v1469, %v1550
      %v1583 = vadd.f32 %v1470, %v1551
      %v1584 = vadd.f32 %v1471, %v1552
      %v1585 = vadd.f32 %v1472, %v1553
      %v1586 = vadd.f32 %v1473, %v1554
      %v1587 = vadd.f32 %v1474, %v1555
      %v1588 = vadd.f32 %v1475, %v1556
      %v1589 = vadd.f32 %v1476, %v1557
      %v1590 = vadd.f32 %v1477, %v1558
      %v1591 = vadd.f32 %v1478, %v1559
      %v1592 = vadd.f32 %v1479, %v1560
      %v1593 = vadd.f32 %v1480, %v1561
      %v1594 = vadd.f32 %v1481, %v1562
      %v1595 = vadd.f32 %v1482, %v1563
      %v1596 = vadd.f32 %v1483, %v1564
      %v1597 = vadd.f32 %v1484, %v1565
      %v1598 = vadd.f32 %v1485, %v1566
      %v1599 = vadd.f32 %v1486, %v1567
      %v1600 = vadd.f32 %v1487, %v1568
      %v1601 = vadd.f32 %v1488, %v1569
      %v1602 = vld [vmem:[%s542 + $0x2] sm:$0x1]
      %v1603 = vlaneseq
      %v1604 = vshrl.u32 %v1603, 7
      %v1605 = vsub.s32 0, %v1604
      %v1606 = vrot.slane %v1602, %v1605
      %v1607 = vmul.f32 %v1491, %v1606
      %v1608 = vmul.f32 %v1492, %v1606
      %v1609 = vmul.f32 %v1493, %v1606
      %v1610 = vmul.f32 %v1494, %v1606
      %v1611 = vmul.f32 %v1495, %v1606
      %v1612 = vmul.f32 %v1496, %v1606
      %v1613 = vmul.f32 %v1497, %v1606
      %v1614 = vmul.f32 %v1498, %v1606
      %v1615 = vmul.f32 %v1499, %v1606
      %v1616 = vmul.f32 %v1500, %v1606
      %v1617 = vmul.f32 %v1501, %v1606
      %v1618 = vmul.f32 %v1502, %v1606
      %v1619 = vmul.f32 %v1503, %v1606
      %v1620 = vmul.f32 %v1504, %v1606
      %v1621 = vmul.f32 %v1505, %v1606
      %v1622 = vmul.f32 %v1506, %v1606
      %v1623 = vmul.f32 %v1507, %v1606
      %v1624 = vmul.f32 %v1508, %v1606
      %v1625 = vmul.f32 %v1509, %v1606
      %v1626 = vmul.f32 %v1510, %v1606
      %v1627 = vmul.f32 %v1511, %v1606
      %v1628 = vmul.f32 %v1512, %v1606
      %v1629 = vmul.f32 %v1513, %v1606
      %v1630 = vmul.f32 %v1514, %v1606
      %v1631 = vmul.f32 %v1515, %v1606
      %v1632 = vmul.f32 %v1516, %v1606
      %v1633 = vmul.f32 %v1517, %v1606
      %v1634 = vmul.f32 %v1518, %v1606
      %v1635 = vmul.f32 %v1519, %v1606
      %v1636 = vmul.f32 %v1520, %v1606
      %v1637 = vmul.f32 %v1521, %v1606
      %v1638 = vmul.f32 %v1522, %v1606
      %v1639 = vadd.f32 %v1570, %v1607
      %v1640 = vadd.f32 %v1571, %v1608
      %v1641 = vadd.f32 %v1572, %v1609
      %v1642 = vadd.f32 %v1573, %v1610
      %v1643 = vadd.f32 %v1574, %v1611
      %v1644 = vadd.f32 %v1575, %v1612
      %v1645 = vadd.f32 %v1576, %v1613
      %v1646 = vadd.f32 %v1577, %v1614
      %v1647 = vadd.f32 %v1578, %v1615
      %v1648 = vadd.f32 %v1579, %v1616
      %v1649 = vadd.f32 %v1580, %v1617
      %v1650 = vadd.f32 %v1581, %v1618
      %v1651 = vadd.f32 %v1582, %v1619
      %v1652 = vadd.f32 %v1583, %v1620
      %v1653 = vadd.f32 %v1584, %v1621
      %v1654 = vadd.f32 %v1585, %v1622
      %v1655 = vadd.f32 %v1586, %v1623
      %v1656 = vadd.f32 %v1587, %v1624
      %v1657 = vadd.f32 %v1588, %v1625
      %v1658 = vadd.f32 %v1589, %v1626
      %v1659 = vadd.f32 %v1590, %v1627
      %v1660 = vadd.f32 %v1591, %v1628
      %v1661 = vadd.f32 %v1592, %v1629
      %v1662 = vadd.f32 %v1593, %v1630
      %v1663 = vadd.f32 %v1594, %v1631
      %v1664 = vadd.f32 %v1595, %v1632
      %v1665 = vadd.f32 %v1596, %v1633
      %v1666 = vadd.f32 %v1597, %v1634
      %v1667 = vadd.f32 %v1598, %v1635
      %v1668 = vadd.f32 %v1599, %v1636
      %v1669 = vadd.f32 %v1600, %v1637
      %v1670 = vadd.f32 %v1601, %v1638
      %v1671 = vld [vmem:[%s612 + $0x2] sm:$0x1]
      %v1672 = vlaneseq
      %v1673 = vshrl.u32 %v1672, 7
      %v1674 = vsub.s32 0, %v1673
      %v1675 = vrot.slane %v1671, %v1674
      %v1676 = vmul.f32 %v1493, %v1675
      %v1677 = vmul.f32 %v1494, %v1675
      %v1678 = vmul.f32 %v1495, %v1675
      %v1679 = vmul.f32 %v1496, %v1675
      %v1680 = vmul.f32 %v1497, %v1675
      %v1681 = vmul.f32 %v1498, %v1675
      %v1682 = vmul.f32 %v1499, %v1675
      %v1683 = vmul.f32 %v1500, %v1675
      %v1684 = vmul.f32 %v1501, %v1675
      %v1685 = vmul.f32 %v1502, %v1675
      %v1686 = vmul.f32 %v1503, %v1675
      %v1687 = vmul.f32 %v1504, %v1675
      %v1688 = vmul.f32 %v1505, %v1675
      %v1689 = vmul.f32 %v1506, %v1675
      %v1690 = vmul.f32 %v1507, %v1675
      %v1691 = vmul.f32 %v1508, %v1675
      %v1692 = vmul.f32 %v1509, %v1675
      %v1693 = vmul.f32 %v1510, %v1675
      %v1694 = vmul.f32 %v1511, %v1675
      %v1695 = vmul.f32 %v1512, %v1675
      %v1696 = vmul.f32 %v1513, %v1675
      %v1697 = vmul.f32 %v1514, %v1675
      %v1698 = vmul.f32 %v1515, %v1675
      %v1699 = vmul.f32 %v1516, %v1675
      %v1700 = vmul.f32 %v1517, %v1675
      %v1701 = vmul.f32 %v1518, %v1675
      %v1702 = vmul.f32 %v1519, %v1675
      %v1703 = vmul.f32 %v1520, %v1675
      %v1704 = vmul.f32 %v1521, %v1675
      %v1705 = vmul.f32 %v1522, %v1675
      %v1706 = vmul.f32 %v1523, %v1675
      %v1707 = vmul.f32 %v1524, %v1675
      %v1708 = vadd.f32 %v1639, %v1676
      %v1709 = vadd.f32 %v1640, %v1677
      %v1710 = vadd.f32 %v1641, %v1678
      %v1711 = vadd.f32 %v1642, %v1679
      %v1712 = vadd.f32 %v1643, %v1680
      %v1713 = vadd.f32 %v1644, %v1681
      %v1714 = vadd.f32 %v1645, %v1682
      %v1715 = vadd.f32 %v1646, %v1683
      %v1716 = vadd.f32 %v1647, %v1684
      %v1717 = vadd.f32 %v1648, %v1685
      %v1718 = vadd.f32 %v1649, %v1686
      %v1719 = vadd.f32 %v1650, %v1687
      %v1720 = vadd.f32 %v1651, %v1688
      %v1721 = vadd.f32 %v1652, %v1689
      %v1722 = vadd.f32 %v1653, %v1690
      %v1723 = vadd.f32 %v1654, %v1691
      %v1724 = vadd.f32 %v1655, %v1692
      %v1725 = vadd.f32 %v1656, %v1693
      %v1726 = vadd.f32 %v1657, %v1694
      %v1727 = vadd.f32 %v1658, %v1695
      %v1728 = vadd.f32 %v1659, %v1696
      %v1729 = vadd.f32 %v1660, %v1697
      %v1730 = vadd.f32 %v1661, %v1698
      %v1731 = vadd.f32 %v1662, %v1699
      %v1732 = vadd.f32 %v1663, %v1700
      %v1733 = vadd.f32 %v1664, %v1701
      %v1734 = vadd.f32 %v1665, %v1702
      %v1735 = vadd.f32 %v1666, %v1703
      %v1736 = vadd.f32 %v1667, %v1704
      %v1737 = vadd.f32 %v1668, %v1705
      %v1738 = vadd.f32 %v1669, %v1706
      %v1739 = vadd.f32 %v1670, %v1707
      %v1740 = vld [vmem:[%s682 + $0x2] sm:$0x1]
      %v1741 = vlaneseq
      %v1742 = vshrl.u32 %v1741, 7
      %v1743 = vsub.s32 0, %v1742
      %v1744 = vrot.slane %v1740, %v1743
      %v1745 = vmul.f32 %v1495, %v1744
      %v1746 = vmul.f32 %v1496, %v1744
      %v1747 = vmul.f32 %v1497, %v1744
      %v1748 = vmul.f32 %v1498, %v1744
      %v1749 = vmul.f32 %v1499, %v1744
      %v1750 = vmul.f32 %v1500, %v1744
      %v1751 = vmul.f32 %v1501, %v1744
      %v1752 = vmul.f32 %v1502, %v1744
      %v1753 = vmul.f32 %v1503, %v1744
      %v1754 = vmul.f32 %v1504, %v1744
      %v1755 = vmul.f32 %v1505, %v1744
      %v1756 = vmul.f32 %v1506, %v1744
      %v1757 = vmul.f32 %v1507, %v1744
      %v1758 = vmul.f32 %v1508, %v1744
      %v1759 = vmul.f32 %v1509, %v1744
      %v1760 = vmul.f32 %v1510, %v1744
      %v1761 = vmul.f32 %v1511, %v1744
      %v1762 = vmul.f32 %v1512, %v1744
      %v1763 = vmul.f32 %v1513, %v1744
      %v1764 = vmul.f32 %v1514, %v1744
      %v1765 = vmul.f32 %v1515, %v1744
      %v1766 = vmul.f32 %v1516, %v1744
      %v1767 = vmul.f32 %v1517, %v1744
      %v1768 = vmul.f32 %v1518, %v1744
      %v1769 = vmul.f32 %v1519, %v1744
      %v1770 = vmul.f32 %v1520, %v1744
      %v1771 = vmul.f32 %v1521, %v1744
      %v1772 = vmul.f32 %v1522, %v1744
      %v1773 = vmul.f32 %v1523, %v1744
      %v1774 = vmul.f32 %v1524, %v1744
      %v1775 = vmul.f32 %v1525, %v1744
      %v1776 = vmul.f32 %v1526, %v1744
      %v1777 = vadd.f32 %v1708, %v1745
      %v1778 = vadd.f32 %v1709, %v1746
      %v1779 = vadd.f32 %v1710, %v1747
      %v1780 = vadd.f32 %v1711, %v1748
      %v1781 = vadd.f32 %v1712, %v1749
      %v1782 = vadd.f32 %v1713, %v1750
      %v1783 = vadd.f32 %v1714, %v1751
      %v1784 = vadd.f32 %v1715, %v1752
      %v1785 = vadd.f32 %v1716, %v1753
      %v1786 = vadd.f32 %v1717, %v1754
      %v1787 = vadd.f32 %v1718, %v1755
      %v1788 = vadd.f32 %v1719, %v1756
      %v1789 = vadd.f32 %v1720, %v1757
      %v1790 = vadd.f32 %v1721, %v1758
      %v1791 = vadd.f32 %v1722, %v1759
      %v1792 = vadd.f32 %v1723, %v1760
      %v1793 = vadd.f32 %v1724, %v1761
      %v1794 = vadd.f32 %v1725, %v1762
      %v1795 = vadd.f32 %v1726, %v1763
      %v1796 = vadd.f32 %v1727, %v1764
      %v1797 = vadd.f32 %v1728, %v1765
      %v1798 = vadd.f32 %v1729, %v1766
      %v1799 = vadd.f32 %v1730, %v1767
      %v1800 = vadd.f32 %v1731, %v1768
      %v1801 = vadd.f32 %v1732, %v1769
      %v1802 = vadd.f32 %v1733, %v1770
      %v1803 = vadd.f32 %v1734, %v1771
      %v1804 = vadd.f32 %v1735, %v1772
      %v1805 = vadd.f32 %v1736, %v1773
      %v1806 = vadd.f32 %v1737, %v1774
      %v1807 = vadd.f32 %v1738, %v1775
      %v1808 = vadd.f32 %v1739, %v1776
      %v1809 = vld [vmem:[%s752 + $0x2] sm:$0x1]
      %v1810 = vlaneseq
      %v1811 = vshrl.u32 %v1810, 7
      %v1812 = vsub.s32 0, %v1811
      %v1813 = vrot.slane %v1809, %v1812
      %v1814 = vmul.f32 %v1497, %v1813
      %v1815 = vmul.f32 %v1498, %v1813
      %v1816 = vmul.f32 %v1499, %v1813
      %v1817 = vmul.f32 %v1500, %v1813
      %v1818 = vmul.f32 %v1501, %v1813
      %v1819 = vmul.f32 %v1502, %v1813
      %v1820 = vmul.f32 %v1503, %v1813
      %v1821 = vmul.f32 %v1504, %v1813
      %v1822 = vmul.f32 %v1505, %v1813
      %v1823 = vmul.f32 %v1506, %v1813
      %v1824 = vmul.f32 %v1507, %v1813
      %v1825 = vmul.f32 %v1508, %v1813
      %v1826 = vmul.f32 %v1509, %v1813
      %v1827 = vmul.f32 %v1510, %v1813
      %v1828 = vmul.f32 %v1511, %v1813
      %v1829 = vmul.f32 %v1512, %v1813
      %v1830 = vmul.f32 %v1513, %v1813
      %v1831 = vmul.f32 %v1514, %v1813
      %v1832 = vmul.f32 %v1515, %v1813
      %v1833 = vmul.f32 %v1516, %v1813
      %v1834 = vmul.f32 %v1517, %v1813
      %v1835 = vmul.f32 %v1518, %v1813
      %v1836 = vmul.f32 %v1519, %v1813
      %v1837 = vmul.f32 %v1520, %v1813
      %v1838 = vmul.f32 %v1521, %v1813
      %v1839 = vmul.f32 %v1522, %v1813
      %v1840 = vmul.f32 %v1523, %v1813
      %v1841 = vmul.f32 %v1524, %v1813
      %v1842 = vmul.f32 %v1525, %v1813
      %v1843 = vmul.f32 %v1526, %v1813
      %v1844 = vmul.f32 %v1527, %v1813
      %v1845 = vmul.f32 %v1528, %v1813
      %v1846 = vadd.f32 %v1777, %v1814
      %v1847 = vadd.f32 %v1778, %v1815
      %v1848 = vadd.f32 %v1779, %v1816
      %v1849 = vadd.f32 %v1780, %v1817
      %v1850 = vadd.f32 %v1781, %v1818
      %v1851 = vadd.f32 %v1782, %v1819
      %v1852 = vadd.f32 %v1783, %v1820
      %v1853 = vadd.f32 %v1784, %v1821
      %v1854 = vadd.f32 %v1785, %v1822
      %v1855 = vadd.f32 %v1786, %v1823
      %v1856 = vadd.f32 %v1787, %v1824
      %v1857 = vadd.f32 %v1788, %v1825
      %v1858 = vadd.f32 %v1789, %v1826
      %v1859 = vadd.f32 %v1790, %v1827
      %v1860 = vadd.f32 %v1791, %v1828
      %v1861 = vadd.f32 %v1792, %v1829
      %v1862 = vadd.f32 %v1793, %v1830
      %v1863 = vadd.f32 %v1794, %v1831
      %v1864 = vadd.f32 %v1795, %v1832
      %v1865 = vadd.f32 %v1796, %v1833
      %v1866 = vadd.f32 %v1797, %v1834
      %v1867 = vadd.f32 %v1798, %v1835
      %v1868 = vadd.f32 %v1799, %v1836
      %v1869 = vadd.f32 %v1800, %v1837
      %v1870 = vadd.f32 %v1801, %v1838
      %v1871 = vadd.f32 %v1802, %v1839
      %v1872 = vadd.f32 %v1803, %v1840
      %v1873 = vadd.f32 %v1804, %v1841
      %v1874 = vadd.f32 %v1805, %v1842
      %v1875 = vadd.f32 %v1806, %v1843
      %v1876 = vadd.f32 %v1807, %v1844
      %v1877 = vadd.f32 %v1808, %v1845
      %v1878 = vld [vmem:[%s822 + $0x2] sm:$0x1]
      %v1879 = vlaneseq
      %v1880 = vshrl.u32 %v1879, 7
      %v1881 = vsub.s32 0, %v1880
      %v1882 = vrot.slane %v1878, %v1881
      %v1883 = vmul.f32 %v1499, %v1882
      %v1884 = vmul.f32 %v1500, %v1882
      %v1885 = vmul.f32 %v1501, %v1882
      %v1886 = vmul.f32 %v1502, %v1882
      %v1887 = vmul.f32 %v1503, %v1882
      %v1888 = vmul.f32 %v1504, %v1882
      %v1889 = vmul.f32 %v1505, %v1882
      %v1890 = vmul.f32 %v1506, %v1882
      %v1891 = vmul.f32 %v1507, %v1882
      %v1892 = vmul.f32 %v1508, %v1882
      %v1893 = vmul.f32 %v1509, %v1882
      %v1894 = vmul.f32 %v1510, %v1882
      %v1895 = vmul.f32 %v1511, %v1882
      %v1896 = vmul.f32 %v1512, %v1882
      %v1897 = vmul.f32 %v1513, %v1882
      %v1898 = vmul.f32 %v1514, %v1882
      %v1899 = vmul.f32 %v1515, %v1882
      %v1900 = vmul.f32 %v1516, %v1882
      %v1901 = vmul.f32 %v1517, %v1882
      %v1902 = vmul.f32 %v1518, %v1882
      %v1903 = vmul.f32 %v1519, %v1882
      %v1904 = vmul.f32 %v1520, %v1882
      %v1905 = vmul.f32 %v1521, %v1882
      %v1906 = vmul.f32 %v1522, %v1882
      %v1907 = vmul.f32 %v1523, %v1882
      %v1908 = vmul.f32 %v1524, %v1882
      %v1909 = vmul.f32 %v1525, %v1882
      %v1910 = vmul.f32 %v1526, %v1882
      %v1911 = vmul.f32 %v1527, %v1882
      %v1912 = vmul.f32 %v1528, %v1882
      %v1913 = vmul.f32 %v1529, %v1882
      %v1914 = vmul.f32 %v1530, %v1882
      %v1915 = vadd.f32 %v1846, %v1883
      %v1916 = vadd.f32 %v1847, %v1884
      %v1917 = vadd.f32 %v1848, %v1885
      %v1918 = vadd.f32 %v1849, %v1886
      %v1919 = vadd.f32 %v1850, %v1887
      %v1920 = vadd.f32 %v1851, %v1888
      %v1921 = vadd.f32 %v1852, %v1889
      %v1922 = vadd.f32 %v1853, %v1890
      %v1923 = vadd.f32 %v1854, %v1891
      %v1924 = vadd.f32 %v1855, %v1892
      %v1925 = vadd.f32 %v1856, %v1893
      %v1926 = vadd.f32 %v1857, %v1894
      %v1927 = vadd.f32 %v1858, %v1895
      %v1928 = vadd.f32 %v1859, %v1896
      %v1929 = vadd.f32 %v1860, %v1897
      %v1930 = vadd.f32 %v1861, %v1898
      %v1931 = vadd.f32 %v1862, %v1899
      %v1932 = vadd.f32 %v1863, %v1900
      %v1933 = vadd.f32 %v1864, %v1901
      %v1934 = vadd.f32 %v1865, %v1902
      %v1935 = vadd.f32 %v1866, %v1903
      %v1936 = vadd.f32 %v1867, %v1904
      %v1937 = vadd.f32 %v1868, %v1905
      %v1938 = vadd.f32 %v1869, %v1906
      %v1939 = vadd.f32 %v1870, %v1907
      %v1940 = vadd.f32 %v1871, %v1908
      %v1941 = vadd.f32 %v1872, %v1909
      %v1942 = vadd.f32 %v1873, %v1910
      %v1943 = vadd.f32 %v1874, %v1911
      %v1944 = vadd.f32 %v1875, %v1912
      %v1945 = vadd.f32 %v1876, %v1913
      %v1946 = vadd.f32 %v1877, %v1914
      %v1947 = vld [vmem:[%s892 + $0x2] sm:$0x1]
      %v1948 = vlaneseq
      %v1949 = vshrl.u32 %v1948, 7
      %v1950 = vsub.s32 0, %v1949
      %v1951 = vrot.slane %v1947, %v1950
      %v1952 = vmul.f32 %v1501, %v1951
      %v1953 = vmul.f32 %v1502, %v1951
      %v1954 = vmul.f32 %v1503, %v1951
      %v1955 = vmul.f32 %v1504, %v1951
      %v1956 = vmul.f32 %v1505, %v1951
      %v1957 = vmul.f32 %v1506, %v1951
      %v1958 = vmul.f32 %v1507, %v1951
      %v1959 = vmul.f32 %v1508, %v1951
      %v1960 = vmul.f32 %v1509, %v1951
      %v1961 = vmul.f32 %v1510, %v1951
      %v1962 = vmul.f32 %v1511, %v1951
      %v1963 = vmul.f32 %v1512, %v1951
      %v1964 = vmul.f32 %v1513, %v1951
      %v1965 = vmul.f32 %v1514, %v1951
      %v1966 = vmul.f32 %v1515, %v1951
      %v1967 = vmul.f32 %v1516, %v1951
      %v1968 = vmul.f32 %v1517, %v1951
      %v1969 = vmul.f32 %v1518, %v1951
      %v1970 = vmul.f32 %v1519, %v1951
      %v1971 = vmul.f32 %v1520, %v1951
      %v1972 = vmul.f32 %v1521, %v1951
      %v1973 = vmul.f32 %v1522, %v1951
      %v1974 = vmul.f32 %v1523, %v1951
      %v1975 = vmul.f32 %v1524, %v1951
      %v1976 = vmul.f32 %v1525, %v1951
      %v1977 = vmul.f32 %v1526, %v1951
      %v1978 = vmul.f32 %v1527, %v1951
      %v1979 = vmul.f32 %v1528, %v1951
      %v1980 = vmul.f32 %v1529, %v1951
      %v1981 = vmul.f32 %v1530, %v1951
      %v1982 = vmul.f32 %v1531, %v1951
      %v1983 = vmul.f32 %v1532, %v1951
      %v1984 = vadd.f32 %v1915, %v1952
      %v1985 = vadd.f32 %v1916, %v1953
      %v1986 = vadd.f32 %v1917, %v1954
      %v1987 = vadd.f32 %v1918, %v1955
      %v1988 = vadd.f32 %v1919, %v1956
      %v1989 = vadd.f32 %v1920, %v1957
      %v1990 = vadd.f32 %v1921, %v1958
      %v1991 = vadd.f32 %v1922, %v1959
      %v1992 = vadd.f32 %v1923, %v1960
      %v1993 = vadd.f32 %v1924, %v1961
      %v1994 = vadd.f32 %v1925, %v1962
      %v1995 = vadd.f32 %v1926, %v1963
      %v1996 = vadd.f32 %v1927, %v1964
      %v1997 = vadd.f32 %v1928, %v1965
      %v1998 = vadd.f32 %v1929, %v1966
      %v1999 = vadd.f32 %v1930, %v1967
      %v2000 = vadd.f32 %v1931, %v1968
      %v2001 = vadd.f32 %v1932, %v1969
      %v2002 = vadd.f32 %v1933, %v1970
      %v2003 = vadd.f32 %v1934, %v1971
      %v2004 = vadd.f32 %v1935, %v1972
      %v2005 = vadd.f32 %v1936, %v1973
      %v2006 = vadd.f32 %v1937, %v1974
      %v2007 = vadd.f32 %v1938, %v1975
      %v2008 = vadd.f32 %v1939, %v1976
      %v2009 = vadd.f32 %v1940, %v1977
      %v2010 = vadd.f32 %v1941, %v1978
      %v2011 = vadd.f32 %v1942, %v1979
      %v2012 = vadd.f32 %v1943, %v1980
      %v2013 = vadd.f32 %v1944, %v1981
      %v2014 = vadd.f32 %v1945, %v1982
      %v2015 = vadd.f32 %v1946, %v1983
      %v2016 = vld [vmem:[#allocation2 + $0x8] sm:$0xff]
      %v2017 = vld [vmem:[#allocation2 + $0x10] sm:$0xff]
      %v2018 = vld [vmem:[#allocation2 + $0x28] sm:$0xff]
      %v2019 = vld [vmem:[#allocation2 + $0x30] sm:$0xff]
      %v2020 = vld [vmem:[#allocation2 + $0x48] sm:$0xff]
      %v2021 = vld [vmem:[#allocation2 + $0x50] sm:$0xff]
      %v2022 = vld [vmem:[#allocation2 + $0x68] sm:$0xff]
      %v2023 = vld [vmem:[#allocation2 + $0x70] sm:$0xff]
      %v2024 = vld [vmem:[#allocation2 + $0x88] sm:$0xff]
      %v2025 = vld [vmem:[#allocation2 + $0x90] sm:$0xff]
      %v2026 = vld [vmem:[#allocation2 + $0xa8] sm:$0xff]
      %v2027 = vld [vmem:[#allocation2 + $0xb0] sm:$0xff]
      %v2028 = vld [vmem:[#allocation2 + $0xc8] sm:$0xff]
      %v2029 = vld [vmem:[#allocation2 + $0xd0] sm:$0xff]
      %v2030 = vld [vmem:[#allocation2 + $0xe8] sm:$0xff]
      %v2031 = vld [vmem:[#allocation2 + $0xf0] sm:$0xff]
      %v2032 = vld [vmem:[#allocation2 + $0x108] sm:$0xff]
      %v2033 = vld [vmem:[#allocation2 + $0x110] sm:$0xff]
      %v2034 = vld [vmem:[#allocation2 + $0x128] sm:$0xff]
      %v2035 = vld [vmem:[#allocation2 + $0x130] sm:$0xff]
      %v2036 = vld [vmem:[#allocation2 + $0x148] sm:$0xff]
      %v2037 = vld [vmem:[#allocation2 + $0x150] sm:$0xff]
      %v2038 = vld [vmem:[#allocation2 + $0x168] sm:$0xff]
      %v2039 = vld [vmem:[#allocation2 + $0x170] sm:$0xff]
      %v2040 = vld [vmem:[#allocation2 + $0x188] sm:$0xff]
      %v2041 = vld [vmem:[#allocation2 + $0x190] sm:$0xff]
      %v2042 = vld [vmem:[#allocation2 + $0x1a8] sm:$0xff]
      %v2043 = vld [vmem:[#allocation2 + $0x1b0] sm:$0xff]
      %v2044 = vld [vmem:[#allocation2 + $0x1c8] sm:$0xff]
      %v2045 = vld [vmem:[#allocation2 + $0x1d0] sm:$0xff]
      %v2046 = vld [vmem:[#allocation2 + $0x1e8] sm:$0xff]
      %v2047 = vld [vmem:[#allocation2 + $0x1f0] sm:$0xff]
      %v2048 = vld [vmem:[#allocation2 + $0x208] sm:$0xff]
      %v2049 = vld [vmem:[#allocation2 + $0x210] sm:$0xff]
      %v2050 = vld [vmem:[#allocation2 + $0x228] sm:$0xff]
      %v2051 = vld [vmem:[#allocation2 + $0x230] sm:$0xff]
      %v2052 = vld [vmem:[#allocation2 + $0x248] sm:$0xff]
      %v2053 = vld [vmem:[#allocation2 + $0x250] sm:$0xff]
      %v2054 = vld [vmem:[#allocation2 + $0x268] sm:$0xff]
      %v2055 = vld [vmem:[#allocation2 + $0x270] sm:$0xff]
      %v2056 = vld [vmem:[#allocation2 + $0x288] sm:$0xff]
      %v2057 = vld [vmem:[#allocation2 + $0x290] sm:$0xff]
      %v2058 = vld [vmem:[#allocation2 + $0x2a8] sm:$0xff]
      %v2059 = vld [vmem:[#allocation2 + $0x2b0] sm:$0xff]
      %v2060 = vld [vmem:[%s1 + $0x3] sm:$0x1]
      %v2061 = vlaneseq
      %v2062 = vshrl.u32 %v2061, 7
      %v2063 = vsub.s32 0, %v2062
      %v2064 = vrot.slane %v2060, %v2063
      %v2065 = vmul.f32 %v2016, %v2064
      %v2066 = vmul.f32 %v2017, %v2064
      %v2067 = vmul.f32 %v2018, %v2064
      %v2068 = vmul.f32 %v2019, %v2064
      %v2069 = vmul.f32 %v2020, %v2064
      %v2070 = vmul.f32 %v2021, %v2064
      %v2071 = vmul.f32 %v2022, %v2064
      %v2072 = vmul.f32 %v2023, %v2064
      %v2073 = vmul.f32 %v2024, %v2064
      %v2074 = vmul.f32 %v2025, %v2064
      %v2075 = vmul.f32 %v2026, %v2064
      %v2076 = vmul.f32 %v2027, %v2064
      %v2077 = vmul.f32 %v2028, %v2064
      %v2078 = vmul.f32 %v2029, %v2064
      %v2079 = vmul.f32 %v2030, %v2064
      %v2080 = vmul.f32 %v2031, %v2064
      %v2081 = vmul.f32 %v2032, %v2064
      %v2082 = vmul.f32 %v2033, %v2064
      %v2083 = vmul.f32 %v2034, %v2064
      %v2084 = vmul.f32 %v2035, %v2064
      %v2085 = vmul.f32 %v2036, %v2064
      %v2086 = vmul.f32 %v2037, %v2064
      %v2087 = vmul.f32 %v2038, %v2064
      %v2088 = vmul.f32 %v2039, %v2064
      %v2089 = vmul.f32 %v2040, %v2064
      %v2090 = vmul.f32 %v2041, %v2064
      %v2091 = vmul.f32 %v2042, %v2064
      %v2092 = vmul.f32 %v2043, %v2064
      %v2093 = vmul.f32 %v2044, %v2064
      %v2094 = vmul.f32 %v2045, %v2064
      %v2095 = vmul.f32 %v2046, %v2064
      %v2096 = vmul.f32 %v2047, %v2064
      %v2097 = vadd.f32 %v1984, %v2065
      %v2098 = vadd.f32 %v1985, %v2066
      %v2099 = vadd.f32 %v1986, %v2067
      %v2100 = vadd.f32 %v1987, %v2068
      %v2101 = vadd.f32 %v1988, %v2069
      %v2102 = vadd.f32 %v1989, %v2070
      %v2103 = vadd.f32 %v1990, %v2071
      %v2104 = vadd.f32 %v1991, %v2072
      %v2105 = vadd.f32 %v1992, %v2073
      %v2106 = vadd.f32 %v1993, %v2074
      %v2107 = vadd.f32 %v1994, %v2075
      %v2108 = vadd.f32 %v1995, %v2076
      %v2109 = vadd.f32 %v1996, %v2077
      %v2110 = vadd.f32 %v1997, %v2078
      %v2111 = vadd.f32 %v1998, %v2079
      %v2112 = vadd.f32 %v1999, %v2080
      %v2113 = vadd.f32 %v2000, %v2081
      %v2114 = vadd.f32 %v2001, %v2082
      %v2115 = vadd.f32 %v2002, %v2083
      %v2116 = vadd.f32 %v2003, %v2084
      %v2117 = vadd.f32 %v2004, %v2085
      %v2118 = vadd.f32 %v2005, %v2086
      %v2119 = vadd.f32 %v2006, %v2087
      %v2120 = vadd.f32 %v2007, %v2088
      %v2121 = vadd.f32 %v2008, %v2089
      %v2122 = vadd.f32 %v2009, %v2090
      %v2123 = vadd.f32 %v2010, %v2091
      %v2124 = vadd.f32 %v2011, %v2092
      %v2125 = vadd.f32 %v2012, %v2093
      %v2126 = vadd.f32 %v2013, %v2094
      %v2127 = vadd.f32 %v2014, %v2095
      %v2128 = vadd.f32 %v2015, %v2096
      %v2129 = vld [vmem:[%s542 + $0x3] sm:$0x1]
      %v2130 = vlaneseq
      %v2131 = vshrl.u32 %v2130, 7
      %v2132 = vsub.s32 0, %v2131
      %v2133 = vrot.slane %v2129, %v2132
      %v2134 = vmul.f32 %v2018, %v2133
      %v2135 = vmul.f32 %v2019, %v2133
      %v2136 = vmul.f32 %v2020, %v2133
      %v2137 = vmul.f32 %v2021, %v2133
      %v2138 = vmul.f32 %v2022, %v2133
      %v2139 = vmul.f32 %v2023, %v2133
      %v2140 = vmul.f32 %v2024, %v2133
      %v2141 = vmul.f32 %v2025, %v2133
      %v2142 = vmul.f32 %v2026, %v2133
      %v2143 = vmul.f32 %v2027, %v2133
      %v2144 = vmul.f32 %v2028, %v2133
      %v2145 = vmul.f32 %v2029, %v2133
      %v2146 = vmul.f32 %v2030, %v2133
      %v2147 = vmul.f32 %v2031, %v2133
      %v2148 = vmul.f32 %v2032, %v2133
      %v2149 = vmul.f32 %v2033, %v2133
      %v2150 = vmul.f32 %v2034, %v2133
      %v2151 = vmul.f32 %v2035, %v2133
      %v2152 = vmul.f32 %v2036, %v2133
      %v2153 = vmul.f32 %v2037, %v2133
      %v2154 = vmul.f32 %v2038, %v2133
      %v2155 = vmul.f32 %v2039, %v2133
      %v2156 = vmul.f32 %v2040, %v2133
      %v2157 = vmul.f32 %v2041, %v2133
      %v2158 = vmul.f32 %v2042, %v2133
      %v2159 = vmul.f32 %v2043, %v2133
      %v2160 = vmul.f32 %v2044, %v2133
      %v2161 = vmul.f32 %v2045, %v2133
      %v2162 = vmul.f32 %v2046, %v2133
      %v2163 = vmul.f32 %v2047, %v2133
      %v2164 = vmul.f32 %v2048, %v2133
      %v2165 = vmul.f32 %v2049, %v2133
      %v2166 = vadd.f32 %v2097, %v2134
      %v2167 = vadd.f32 %v2098, %v2135
      %v2168 = vadd.f32 %v2099, %v2136
      %v2169 = vadd.f32 %v2100, %v2137
      %v2170 = vadd.f32 %v2101, %v2138
      %v2171 = vadd.f32 %v2102, %v2139
      %v2172 = vadd.f32 %v2103, %v2140
      %v2173 = vadd.f32 %v2104, %v2141
      %v2174 = vadd.f32 %v2105, %v2142
      %v2175 = vadd.f32 %v2106, %v2143
      %v2176 = vadd.f32 %v2107, %v2144
      %v2177 = vadd.f32 %v2108, %v2145
      %v2178 = vadd.f32 %v2109, %v2146
      %v2179 = vadd.f32 %v2110, %v2147
      %v2180 = vadd.f32 %v2111, %v2148
      %v2181 = vadd.f32 %v2112, %v2149
      %v2182 = vadd.f32 %v2113, %v2150
      %v2183 = vadd.f32 %v2114, %v2151
      %v2184 = vadd.f32 %v2115, %v2152
      %v2185 = vadd.f32 %v2116, %v2153
      %v2186 = vadd.f32 %v2117, %v2154
      %v2187 = vadd.f32 %v2118, %v2155
      %v2188 = vadd.f32 %v2119, %v2156
      %v2189 = vadd.f32 %v2120, %v2157
      %v2190 = vadd.f32 %v2121, %v2158
      %v2191 = vadd.f32 %v2122, %v2159
      %v2192 = vadd.f32 %v2123, %v2160
      %v2193 = vadd.f32 %v2124, %v2161
      %v2194 = vadd.f32 %v2125, %v2162
      %v2195 = vadd.f32 %v2126, %v2163
      %v2196 = vadd.f32 %v2127, %v2164
      %v2197 = vadd.f32 %v2128, %v2165
      %v2198 = vld [vmem:[%s612 + $0x3] sm:$0x1]
      %v2199 = vlaneseq
      %v2200 = vshrl.u32 %v2199, 7
      %v2201 = vsub.s32 0, %v2200
      %v2202 = vrot.slane %v2198, %v2201
      %v2203 = vmul.f32 %v2020, %v2202
      %v2204 = vmul.f32 %v2021, %v2202
      %v2205 = vmul.f32 %v2022, %v2202
      %v2206 = vmul.f32 %v2023, %v2202
      %v2207 = vmul.f32 %v2024, %v2202
      %v2208 = vmul.f32 %v2025, %v2202
      %v2209 = vmul.f32 %v2026, %v2202
      %v2210 = vmul.f32 %v2027, %v2202
      %v2211 = vmul.f32 %v2028, %v2202
      %v2212 = vmul.f32 %v2029, %v2202
      %v2213 = vmul.f32 %v2030, %v2202
      %v2214 = vmul.f32 %v2031, %v2202
      %v2215 = vmul.f32 %v2032, %v2202
      %v2216 = vmul.f32 %v2033, %v2202
      %v2217 = vmul.f32 %v2034, %v2202
      %v2218 = vmul.f32 %v2035, %v2202
      %v2219 = vmul.f32 %v2036, %v2202
      %v2220 = vmul.f32 %v2037, %v2202
      %v2221 = vmul.f32 %v2038, %v2202
      %v2222 = vmul.f32 %v2039, %v2202
      %v2223 = vmul.f32 %v2040, %v2202
      %v2224 = vmul.f32 %v2041, %v2202
      %v2225 = vmul.f32 %v2042, %v2202
      %v2226 = vmul.f32 %v2043, %v2202
      %v2227 = vmul.f32 %v2044, %v2202
      %v2228 = vmul.f32 %v2045, %v2202
      %v2229 = vmul.f32 %v2046, %v2202
      %v2230 = vmul.f32 %v2047, %v2202
      %v2231 = vmul.f32 %v2048, %v2202
      %v2232 = vmul.f32 %v2049, %v2202
      %v2233 = vmul.f32 %v2050, %v2202
      %v2234 = vmul.f32 %v2051, %v2202
      %v2235 = vadd.f32 %v2166, %v2203
      %v2236 = vadd.f32 %v2167, %v2204
      %v2237 = vadd.f32 %v2168, %v2205
      %v2238 = vadd.f32 %v2169, %v2206
      %v2239 = vadd.f32 %v2170, %v2207
      %v2240 = vadd.f32 %v2171, %v2208
      %v2241 = vadd.f32 %v2172, %v2209
      %v2242 = vadd.f32 %v2173, %v2210
      %v2243 = vadd.f32 %v2174, %v2211
      %v2244 = vadd.f32 %v2175, %v2212
      %v2245 = vadd.f32 %v2176, %v2213
      %v2246 = vadd.f32 %v2177, %v2214
      %v2247 = vadd.f32 %v2178, %v2215
      %v2248 = vadd.f32 %v2179, %v2216
      %v2249 = vadd.f32 %v2180, %v2217
      %v2250 = vadd.f32 %v2181, %v2218
      %v2251 = vadd.f32 %v2182, %v2219
      %v2252 = vadd.f32 %v2183, %v2220
      %v2253 = vadd.f32 %v2184, %v2221
      %v2254 = vadd.f32 %v2185, %v2222
      %v2255 = vadd.f32 %v2186, %v2223
      %v2256 = vadd.f32 %v2187, %v2224
      %v2257 = vadd.f32 %v2188, %v2225
      %v2258 = vadd.f32 %v2189, %v2226
      %v2259 = vadd.f32 %v2190, %v2227
      %v2260 = vadd.f32 %v2191, %v2228
      %v2261 = vadd.f32 %v2192, %v2229
      %v2262 = vadd.f32 %v2193, %v2230
      %v2263 = vadd.f32 %v2194, %v2231
      %v2264 = vadd.f32 %v2195, %v2232
      %v2265 = vadd.f32 %v2196, %v2233
      %v2266 = vadd.f32 %v2197, %v2234
      %v2267 = vld [vmem:[%s682 + $0x3] sm:$0x1]
      %v2268 = vlaneseq
      %v2269 = vshrl.u32 %v2268, 7
      %v2270 = vsub.s32 0, %v2269
      %v2271 = vrot.slane %v2267, %v2270
      %v2272 = vmul.f32 %v2022, %v2271
      %v2273 = vmul.f32 %v2023, %v2271
      %v2274 = vmul.f32 %v2024, %v2271
      %v2275 = vmul.f32 %v2025, %v2271
      %v2276 = vmul.f32 %v2026, %v2271
      %v2277 = vmul.f32 %v2027, %v2271
      %v2278 = vmul.f32 %v2028, %v2271
      %v2279 = vmul.f32 %v2029, %v2271
      %v2280 = vmul.f32 %v2030, %v2271
      %v2281 = vmul.f32 %v2031, %v2271
      %v2282 = vmul.f32 %v2032, %v2271
      %v2283 = vmul.f32 %v2033, %v2271
      %v2284 = vmul.f32 %v2034, %v2271
      %v2285 = vmul.f32 %v2035, %v2271
      %v2286 = vmul.f32 %v2036, %v2271
      %v2287 = vmul.f32 %v2037, %v2271
      %v2288 = vmul.f32 %v2038, %v2271
      %v2289 = vmul.f32 %v2039, %v2271
      %v2290 = vmul.f32 %v2040, %v2271
      %v2291 = vmul.f32 %v2041, %v2271
      %v2292 = vmul.f32 %v2042, %v2271
      %v2293 = vmul.f32 %v2043, %v2271
      %v2294 = vmul.f32 %v2044, %v2271
      %v2295 = vmul.f32 %v2045, %v2271
      %v2296 = vmul.f32 %v2046, %v2271
      %v2297 = vmul.f32 %v2047, %v2271
      %v2298 = vmul.f32 %v2048, %v2271
      %v2299 = vmul.f32 %v2049, %v2271
      %v2300 = vmul.f32 %v2050, %v2271
      %v2301 = vmul.f32 %v2051, %v2271
      %v2302 = vmul.f32 %v2052, %v2271
      %v2303 = vmul.f32 %v2053, %v2271
      %v2304 = vadd.f32 %v2235, %v2272
      %v2305 = vadd.f32 %v2236, %v2273
      %v2306 = vadd.f32 %v2237, %v2274
      %v2307 = vadd.f32 %v2238, %v2275
      %v2308 = vadd.f32 %v2239, %v2276
      %v2309 = vadd.f32 %v2240, %v2277
      %v2310 = vadd.f32 %v2241, %v2278
      %v2311 = vadd.f32 %v2242, %v2279
      %v2312 = vadd.f32 %v2243, %v2280
      %v2313 = vadd.f32 %v2244, %v2281
      %v2314 = vadd.f32 %v2245, %v2282
      %v2315 = vadd.f32 %v2246, %v2283
      %v2316 = vadd.f32 %v2247, %v2284
      %v2317 = vadd.f32 %v2248, %v2285
      %v2318 = vadd.f32 %v2249, %v2286
      %v2319 = vadd.f32 %v2250, %v2287
      %v2320 = vadd.f32 %v2251, %v2288
      %v2321 = vadd.f32 %v2252, %v2289
      %v2322 = vadd.f32 %v2253, %v2290
      %v2323 = vadd.f32 %v2254, %v2291
      %v2324 = vadd.f32 %v2255, %v2292
      %v2325 = vadd.f32 %v2256, %v2293
      %v2326 = vadd.f32 %v2257, %v2294
      %v2327 = vadd.f32 %v2258, %v2295
      %v2328 = vadd.f32 %v2259, %v2296
      %v2329 = vadd.f32 %v2260, %v2297
      %v2330 = vadd.f32 %v2261, %v2298
      %v2331 = vadd.f32 %v2262, %v2299
      %v2332 = vadd.f32 %v2263, %v2300
      %v2333 = vadd.f32 %v2264, %v2301
      %v2334 = vadd.f32 %v2265, %v2302
      %v2335 = vadd.f32 %v2266, %v2303
      %v2336 = vld [vmem:[%s752 + $0x3] sm:$0x1]
      %v2337 = vlaneseq
      %v2338 = vshrl.u32 %v2337, 7
      %v2339 = vsub.s32 0, %v2338
      %v2340 = vrot.slane %v2336, %v2339
      %v2341 = vmul.f32 %v2024, %v2340
      %v2342 = vmul.f32 %v2025, %v2340
      %v2343 = vmul.f32 %v2026, %v2340
      %v2344 = vmul.f32 %v2027, %v2340
      %v2345 = vmul.f32 %v2028, %v2340
      %v2346 = vmul.f32 %v2029, %v2340
      %v2347 = vmul.f32 %v2030, %v2340
      %v2348 = vmul.f32 %v2031, %v2340
      %v2349 = vmul.f32 %v2032, %v2340
      %v2350 = vmul.f32 %v2033, %v2340
      %v2351 = vmul.f32 %v2034, %v2340
      %v2352 = vmul.f32 %v2035, %v2340
      %v2353 = vmul.f32 %v2036, %v2340
      %v2354 = vmul.f32 %v2037, %v2340
      %v2355 = vmul.f32 %v2038, %v2340
      %v2356 = vmul.f32 %v2039, %v2340
      %v2357 = vmul.f32 %v2040, %v2340
      %v2358 = vmul.f32 %v2041, %v2340
      %v2359 = vmul.f32 %v2042, %v2340
      %v2360 = vmul.f32 %v2043, %v2340
      %v2361 = vmul.f32 %v2044, %v2340
      %v2362 = vmul.f32 %v2045, %v2340
      %v2363 = vmul.f32 %v2046, %v2340
      %v2364 = vmul.f32 %v2047, %v2340
      %v2365 = vmul.f32 %v2048, %v2340
      %v2366 = vmul.f32 %v2049, %v2340
      %v2367 = vmul.f32 %v2050, %v2340
      %v2368 = vmul.f32 %v2051, %v2340
      %v2369 = vmul.f32 %v2052, %v2340
      %v2370 = vmul.f32 %v2053, %v2340
      %v2371 = vmul.f32 %v2054, %v2340
      %v2372 = vmul.f32 %v2055, %v2340
      %v2373 = vadd.f32 %v2304, %v2341
      %v2374 = vadd.f32 %v2305, %v2342
      %v2375 = vadd.f32 %v2306, %v2343
      %v2376 = vadd.f32 %v2307, %v2344
      %v2377 = vadd.f32 %v2308, %v2345
      %v2378 = vadd.f32 %v2309, %v2346
      %v2379 = vadd.f32 %v2310, %v2347
      %v2380 = vadd.f32 %v2311, %v2348
      %v2381 = vadd.f32 %v2312, %v2349
      %v2382 = vadd.f32 %v2313, %v2350
      %v2383 = vadd.f32 %v2314, %v2351
      %v2384 = vadd.f32 %v2315, %v2352
      %v2385 = vadd.f32 %v2316, %v2353
      %v2386 = vadd.f32 %v2317, %v2354
      %v2387 = vadd.f32 %v2318, %v2355
      %v2388 = vadd.f32 %v2319, %v2356
      %v2389 = vadd.f32 %v2320, %v2357
      %v2390 = vadd.f32 %v2321, %v2358
      %v2391 = vadd.f32 %v2322, %v2359
      %v2392 = vadd.f32 %v2323, %v2360
      %v2393 = vadd.f32 %v2324, %v2361
      %v2394 = vadd.f32 %v2325, %v2362
      %v2395 = vadd.f32 %v2326, %v2363
      %v2396 = vadd.f32 %v2327, %v2364
      %v2397 = vadd.f32 %v2328, %v2365
      %v2398 = vadd.f32 %v2329, %v2366
      %v2399 = vadd.f32 %v2330, %v2367
      %v2400 = vadd.f32 %v2331, %v2368
      %v2401 = vadd.f32 %v2332, %v2369
      %v2402 = vadd.f32 %v2333, %v2370
      %v2403 = vadd.f32 %v2334, %v2371
      %v2404 = vadd.f32 %v2335, %v2372
      %v2405 = vld [vmem:[%s822 + $0x3] sm:$0x1]
      %v2406 = vlaneseq
      %v2407 = vshrl.u32 %v2406, 7
      %v2408 = vsub.s32 0, %v2407
      %v2409 = vrot.slane %v2405, %v2408
      %v2410 = vmul.f32 %v2026, %v2409
      %v2411 = vmul.f32 %v2027, %v2409
      %v2412 = vmul.f32 %v2028, %v2409
      %v2413 = vmul.f32 %v2029, %v2409
      %v2414 = vmul.f32 %v2030, %v2409
      %v2415 = vmul.f32 %v2031, %v2409
      %v2416 = vmul.f32 %v2032, %v2409
      %v2417 = vmul.f32 %v2033, %v2409
      %v2418 = vmul.f32 %v2034, %v2409
      %v2419 = vmul.f32 %v2035, %v2409
      %v2420 = vmul.f32 %v2036, %v2409
      %v2421 = vmul.f32 %v2037, %v2409
      %v2422 = vmul.f32 %v2038, %v2409
      %v2423 = vmul.f32 %v2039, %v2409
      %v2424 = vmul.f32 %v2040, %v2409
      %v2425 = vmul.f32 %v2041, %v2409
      %v2426 = vmul.f32 %v2042, %v2409
      %v2427 = vmul.f32 %v2043, %v2409
      %v2428 = vmul.f32 %v2044, %v2409
      %v2429 = vmul.f32 %v2045, %v2409
      %v2430 = vmul.f32 %v2046, %v2409
      %v2431 = vmul.f32 %v2047, %v2409
      %v2432 = vmul.f32 %v2048, %v2409
      %v2433 = vmul.f32 %v2049, %v2409
      %v2434 = vmul.f32 %v2050, %v2409
      %v2435 = vmul.f32 %v2051, %v2409
      %v2436 = vmul.f32 %v2052, %v2409
      %v2437 = vmul.f32 %v2053, %v2409
      %v2438 = vmul.f32 %v2054, %v2409
      %v2439 = vmul.f32 %v2055, %v2409
      %v2440 = vmul.f32 %v2056, %v2409
      %v2441 = vmul.f32 %v2057, %v2409
      %v2442 = vadd.f32 %v2373, %v2410
      %v2443 = vadd.f32 %v2374, %v2411
      %v2444 = vadd.f32 %v2375, %v2412
      %v2445 = vadd.f32 %v2376, %v2413
      %v2446 = vadd.f32 %v2377, %v2414
      %v2447 = vadd.f32 %v2378, %v2415
      %v2448 = vadd.f32 %v2379, %v2416
      %v2449 = vadd.f32 %v2380, %v2417
      %v2450 = vadd.f32 %v2381, %v2418
      %v2451 = vadd.f32 %v2382, %v2419
      %v2452 = vadd.f32 %v2383, %v2420
      %v2453 = vadd.f32 %v2384, %v2421
      %v2454 = vadd.f32 %v2385, %v2422
      %v2455 = vadd.f32 %v2386, %v2423
      %v2456 = vadd.f32 %v2387, %v2424
      %v2457 = vadd.f32 %v2388, %v2425
      %v2458 = vadd.f32 %v2389, %v2426
      %v2459 = vadd.f32 %v2390, %v2427
      %v2460 = vadd.f32 %v2391, %v2428
      %v2461 = vadd.f32 %v2392, %v2429
      %v2462 = vadd.f32 %v2393, %v2430
      %v2463 = vadd.f32 %v2394, %v2431
      %v2464 = vadd.f32 %v2395, %v2432
      %v2465 = vadd.f32 %v2396, %v2433
      %v2466 = vadd.f32 %v2397, %v2434
      %v2467 = vadd.f32 %v2398, %v2435
      %v2468 = vadd.f32 %v2399, %v2436
      %v2469 = vadd.f32 %v2400, %v2437
      %v2470 = vadd.f32 %v2401, %v2438
      %v2471 = vadd.f32 %v2402, %v2439
      %v2472 = vadd.f32 %v2403, %v2440
      %v2473 = vadd.f32 %v2404, %v2441
      %v2474 = vld [vmem:[%s892 + $0x3] sm:$0x1]
      %v2475 = vlaneseq
      %v2476 = vshrl.u32 %v2475, 7
      %v2477 = vsub.s32 0, %v2476
      %v2478 = vrot.slane %v2474, %v2477
      %v2479 = vmul.f32 %v2028, %v2478
      %v2480 = vmul.f32 %v2029, %v2478
      %v2481 = vmul.f32 %v2030, %v2478
      %v2482 = vmul.f32 %v2031, %v2478
      %v2483 = vmul.f32 %v2032, %v2478
      %v2484 = vmul.f32 %v2033, %v2478
      %v2485 = vmul.f32 %v2034, %v2478
      %v2486 = vmul.f32 %v2035, %v2478
      %v2487 = vmul.f32 %v2036, %v2478
      %v2488 = vmul.f32 %v2037, %v2478
      %v2489 = vmul.f32 %v2038, %v2478
      %v2490 = vmul.f32 %v2039, %v2478
      %v2491 = vmul.f32 %v2040, %v2478
      %v2492 = vmul.f32 %v2041, %v2478
      %v2493 = vmul.f32 %v2042, %v2478
      %v2494 = vmul.f32 %v2043, %v2478
      %v2495 = vmul.f32 %v2044, %v2478
      %v2496 = vmul.f32 %v2045, %v2478
      %v2497 = vmul.f32 %v2046, %v2478
      %v2498 = vmul.f32 %v2047, %v2478
      %v2499 = vmul.f32 %v2048, %v2478
      %v2500 = vmul.f32 %v2049, %v2478
      %v2501 = vmul.f32 %v2050, %v2478
      %v2502 = vmul.f32 %v2051, %v2478
      %v2503 = vmul.f32 %v2052, %v2478
      %v2504 = vmul.f32 %v2053, %v2478
      %v2505 = vmul.f32 %v2054, %v2478
      %v2506 = vmul.f32 %v2055, %v2478
      %v2507 = vmul.f32 %v2056, %v2478
      %v2508 = vmul.f32 %v2057, %v2478
      %v2509 = vmul.f32 %v2058, %v2478
      %v2510 = vmul.f32 %v2059, %v2478
      %v2511 = vadd.f32 %v2442, %v2479
      %v2512 = vadd.f32 %v2443, %v2480
      %v2513 = vadd.f32 %v2444, %v2481
      %v2514 = vadd.f32 %v2445, %v2482
      %v2515 = vadd.f32 %v2446, %v2483
      %v2516 = vadd.f32 %v2447, %v2484
      %v2517 = vadd.f32 %v2448, %v2485
      %v2518 = vadd.f32 %v2449, %v2486
      %v2519 = vadd.f32 %v2450, %v2487
      %v2520 = vadd.f32 %v2451, %v2488
      %v2521 = vadd.f32 %v2452, %v2489
      %v2522 = vadd.f32 %v2453, %v2490
      %v2523 = vadd.f32 %v2454, %v2491
      %v2524 = vadd.f32 %v2455, %v2492
      %v2525 = vadd.f32 %v2456, %v2493
      %v2526 = vadd.f32 %v2457, %v2494
      %v2527 = vadd.f32 %v2458, %v2495
      %v2528 = vadd.f32 %v2459, %v2496
      %v2529 = vadd.f32 %v2460, %v2497
      %v2530 = vadd.f32 %v2461, %v2498
      %v2531 = vadd.f32 %v2462, %v2499
      %v2532 = vadd.f32 %v2463, %v2500
      %v2533 = vadd.f32 %v2464, %v2501
      %v2534 = vadd.f32 %v2465, %v2502
      %v2535 = vadd.f32 %v2466, %v2503
      %v2536 = vadd.f32 %v2467, %v2504
      %v2537 = vadd.f32 %v2468, %v2505
      %v2538 = vadd.f32 %v2469, %v2506
      %v2539 = vadd.f32 %v2470, %v2507
      %v2540 = vadd.f32 %v2471, %v2508
      %v2541 = vadd.f32 %v2472, %v2509
      %v2542 = vadd.f32 %v2473, %v2510
      %v2543 = vld [vmem:[#allocation2 + $0x9] sm:$0xff]
      %v2544 = vld [vmem:[#allocation2 + $0x11] sm:$0xff]
      %v2545 = vld [vmem:[#allocation2 + $0x29] sm:$0xff]
      %v2546 = vld [vmem:[#allocation2 + $0x31] sm:$0xff]
      %v2547 = vld [vmem:[#allocation2 + $0x49] sm:$0xff]
      %v2548 = vld [vmem:[#allocation2 + $0x51] sm:$0xff]
      %v2549 = vld [vmem:[#allocation2 + $0x69] sm:$0xff]
      %v2550 = vld [vmem:[#allocation2 + $0x71] sm:$0xff]
      %v2551 = vld [vmem:[#allocation2 + $0x89] sm:$0xff]
      %v2552 = vld [vmem:[#allocation2 + $0x91] sm:$0xff]
      %v2553 = vld [vmem:[#allocation2 + $0xa9] sm:$0xff]
      %v2554 = vld [vmem:[#allocation2 + $0xb1] sm:$0xff]
      %v2555 = vld [vmem:[#allocation2 + $0xc9] sm:$0xff]
      %v2556 = vld [vmem:[#allocation2 + $0xd1] sm:$0xff]
      %v2557 = vld [vmem:[#allocation2 + $0xe9] sm:$0xff]
      %v2558 = vld [vmem:[#allocation2 + $0xf1] sm:$0xff]
      %v2559 = vld [vmem:[#allocation2 + $0x109] sm:$0xff]
      %v2560 = vld [vmem:[#allocation2 + $0x111] sm:$0xff]
      %v2561 = vld [vmem:[#allocation2 + $0x129] sm:$0xff]
      %v2562 = vld [vmem:[#allocation2 + $0x131] sm:$0xff]
      %v2563 = vld [vmem:[#allocation2 + $0x149] sm:$0xff]
      %v2564 = vld [vmem:[#allocation2 + $0x151] sm:$0xff]
      %v2565 = vld [vmem:[#allocation2 + $0x169] sm:$0xff]
      %v2566 = vld [vmem:[#allocation2 + $0x171] sm:$0xff]
      %v2567 = vld [vmem:[#allocation2 + $0x189] sm:$0xff]
      %v2568 = vld [vmem:[#allocation2 + $0x191] sm:$0xff]
      %v2569 = vld [vmem:[#allocation2 + $0x1a9] sm:$0xff]
      %v2570 = vld [vmem:[#allocation2 + $0x1b1] sm:$0xff]
      %v2571 = vld [vmem:[#allocation2 + $0x1c9] sm:$0xff]
      %v2572 = vld [vmem:[#allocation2 + $0x1d1] sm:$0xff]
      %v2573 = vld [vmem:[#allocation2 + $0x1e9] sm:$0xff]
      %v2574 = vld [vmem:[#allocation2 + $0x1f1] sm:$0xff]
      %v2575 = vld [vmem:[#allocation2 + $0x209] sm:$0xff]
      %v2576 = vld [vmem:[#allocation2 + $0x211] sm:$0xff]
      %v2577 = vld [vmem:[#allocation2 + $0x229] sm:$0xff]
      %v2578 = vld [vmem:[#allocation2 + $0x231] sm:$0xff]
      %v2579 = vld [vmem:[#allocation2 + $0x249] sm:$0xff]
      %v2580 = vld [vmem:[#allocation2 + $0x251] sm:$0xff]
      %v2581 = vld [vmem:[#allocation2 + $0x269] sm:$0xff]
      %v2582 = vld [vmem:[#allocation2 + $0x271] sm:$0xff]
      %v2583 = vld [vmem:[#allocation2 + $0x289] sm:$0xff]
      %v2584 = vld [vmem:[#allocation2 + $0x291] sm:$0xff]
      %v2585 = vld [vmem:[#allocation2 + $0x2a9] sm:$0xff]
      %v2586 = vld [vmem:[#allocation2 + $0x2b1] sm:$0xff]
      %v2587 = vld [vmem:[%s1 + $0x4] sm:$0x1]
      %v2588 = vlaneseq
      %v2589 = vshrl.u32 %v2588, 7
      %v2590 = vsub.s32 0, %v2589
      %v2591 = vrot.slane %v2587, %v2590
      %v2592 = vmul.f32 %v2543, %v2591
      %v2593 = vmul.f32 %v2544, %v2591
      %v2594 = vmul.f32 %v2545, %v2591
      %v2595 = vmul.f32 %v2546, %v2591
      %v2596 = vmul.f32 %v2547, %v2591
      %v2597 = vmul.f32 %v2548, %v2591
      %v2598 = vmul.f32 %v2549, %v2591
      %v2599 = vmul.f32 %v2550, %v2591
      %v2600 = vmul.f32 %v2551, %v2591
      %v2601 = vmul.f32 %v2552, %v2591
      %v2602 = vmul.f32 %v2553, %v2591
      %v2603 = vmul.f32 %v2554, %v2591
      %v2604 = vmul.f32 %v2555, %v2591
      %v2605 = vmul.f32 %v2556, %v2591
      %v2606 = vmul.f32 %v2557, %v2591
      %v2607 = vmul.f32 %v2558, %v2591
      %v2608 = vmul.f32 %v2559, %v2591
      %v2609 = vmul.f32 %v2560, %v2591
      %v2610 = vmul.f32 %v2561, %v2591
      %v2611 = vmul.f32 %v2562, %v2591
      %v2612 = vmul.f32 %v2563, %v2591
      %v2613 = vmul.f32 %v2564, %v2591
      %v2614 = vmul.f32 %v2565, %v2591
      %v2615 = vmul.f32 %v2566, %v2591
      %v2616 = vmul.f32 %v2567, %v2591
      %v2617 = vmul.f32 %v2568, %v2591
      %v2618 = vmul.f32 %v2569, %v2591
      %v2619 = vmul.f32 %v2570, %v2591
      %v2620 = vmul.f32 %v2571, %v2591
      %v2621 = vmul.f32 %v2572, %v2591
      %v2622 = vmul.f32 %v2573, %v2591
      %v2623 = vmul.f32 %v2574, %v2591
      %v2624 = vadd.f32 %v2511, %v2592
      %v2625 = vadd.f32 %v2512, %v2593
      %v2626 = vadd.f32 %v2513, %v2594
      %v2627 = vadd.f32 %v2514, %v2595
      %v2628 = vadd.f32 %v2515, %v2596
      %v2629 = vadd.f32 %v2516, %v2597
      %v2630 = vadd.f32 %v2517, %v2598
      %v2631 = vadd.f32 %v2518, %v2599
      %v2632 = vadd.f32 %v2519, %v2600
      %v2633 = vadd.f32 %v2520, %v2601
      %v2634 = vadd.f32 %v2521, %v2602
      %v2635 = vadd.f32 %v2522, %v2603
      %v2636 = vadd.f32 %v2523, %v2604
      %v2637 = vadd.f32 %v2524, %v2605
      %v2638 = vadd.f32 %v2525, %v2606
      %v2639 = vadd.f32 %v2526, %v2607
      %v2640 = vadd.f32 %v2527, %v2608
      %v2641 = vadd.f32 %v2528, %v2609
      %v2642 = vadd.f32 %v2529, %v2610
      %v2643 = vadd.f32 %v2530, %v2611
      %v2644 = vadd.f32 %v2531, %v2612
      %v2645 = vadd.f32 %v2532, %v2613
      %v2646 = vadd.f32 %v2533, %v2614
      %v2647 = vadd.f32 %v2534, %v2615
      %v2648 = vadd.f32 %v2535, %v2616
      %v2649 = vadd.f32 %v2536, %v2617
      %v2650 = vadd.f32 %v2537, %v2618
      %v2651 = vadd.f32 %v2538, %v2619
      %v2652 = vadd.f32 %v2539, %v2620
      %v2653 = vadd.f32 %v2540, %v2621
      %v2654 = vadd.f32 %v2541, %v2622
      %v2655 = vadd.f32 %v2542, %v2623
      %v2656 = vld [vmem:[%s542 + $0x4] sm:$0x1]
      %v2657 = vlaneseq
      %v2658 = vshrl.u32 %v2657, 7
      %v2659 = vsub.s32 0, %v2658
      %v2660 = vrot.slane %v2656, %v2659
      %v2661 = vmul.f32 %v2545, %v2660
      %v2662 = vmul.f32 %v2546, %v2660
      %v2663 = vmul.f32 %v2547, %v2660
      %v2664 = vmul.f32 %v2548, %v2660
      %v2665 = vmul.f32 %v2549, %v2660
      %v2666 = vmul.f32 %v2550, %v2660
      %v2667 = vmul.f32 %v2551, %v2660
      %v2668 = vmul.f32 %v2552, %v2660
      %v2669 = vmul.f32 %v2553, %v2660
      %v2670 = vmul.f32 %v2554, %v2660
      %v2671 = vmul.f32 %v2555, %v2660
      %v2672 = vmul.f32 %v2556, %v2660
      %v2673 = vmul.f32 %v2557, %v2660
      %v2674 = vmul.f32 %v2558, %v2660
      %v2675 = vmul.f32 %v2559, %v2660
      %v2676 = vmul.f32 %v2560, %v2660
      %v2677 = vmul.f32 %v2561, %v2660
      %v2678 = vmul.f32 %v2562, %v2660
      %v2679 = vmul.f32 %v2563, %v2660
      %v2680 = vmul.f32 %v2564, %v2660
      %v2681 = vmul.f32 %v2565, %v2660
      %v2682 = vmul.f32 %v2566, %v2660
      %v2683 = vmul.f32 %v2567, %v2660
      %v2684 = vmul.f32 %v2568, %v2660
      %v2685 = vmul.f32 %v2569, %v2660
      %v2686 = vmul.f32 %v2570, %v2660
      %v2687 = vmul.f32 %v2571, %v2660
      %v2688 = vmul.f32 %v2572, %v2660
      %v2689 = vmul.f32 %v2573, %v2660
      %v2690 = vmul.f32 %v2574, %v2660
      %v2691 = vmul.f32 %v2575, %v2660
      %v2692 = vmul.f32 %v2576, %v2660
      %v2693 = vadd.f32 %v2624, %v2661
      %v2694 = vadd.f32 %v2625, %v2662
      %v2695 = vadd.f32 %v2626, %v2663
      %v2696 = vadd.f32 %v2627, %v2664
      %v2697 = vadd.f32 %v2628, %v2665
      %v2698 = vadd.f32 %v2629, %v2666
      %v2699 = vadd.f32 %v2630, %v2667
      %v2700 = vadd.f32 %v2631, %v2668
      %v2701 = vadd.f32 %v2632, %v2669
      %v2702 = vadd.f32 %v2633, %v2670
      %v2703 = vadd.f32 %v2634, %v2671
      %v2704 = vadd.f32 %v2635, %v2672
      %v2705 = vadd.f32 %v2636, %v2673
      %v2706 = vadd.f32 %v2637, %v2674
      %v2707 = vadd.f32 %v2638, %v2675
      %v2708 = vadd.f32 %v2639, %v2676
      %v2709 = vadd.f32 %v2640, %v2677
      %v2710 = vadd.f32 %v2641, %v2678
      %v2711 = vadd.f32 %v2642, %v2679
      %v2712 = vadd.f32 %v2643, %v2680
      %v2713 = vadd.f32 %v2644, %v2681
      %v2714 = vadd.f32 %v2645, %v2682
      %v2715 = vadd.f32 %v2646, %v2683
      %v2716 = vadd.f32 %v2647, %v2684
      %v2717 = vadd.f32 %v2648, %v2685
      %v2718 = vadd.f32 %v2649, %v2686
      %v2719 = vadd.f32 %v2650, %v2687
      %v2720 = vadd.f32 %v2651, %v2688
      %v2721 = vadd.f32 %v2652, %v2689
      %v2722 = vadd.f32 %v2653, %v2690
      %v2723 = vadd.f32 %v2654, %v2691
      %v2724 = vadd.f32 %v2655, %v2692
      %v2725 = vld [vmem:[%s612 + $0x4] sm:$0x1]
      %v2726 = vlaneseq
      %v2727 = vshrl.u32 %v2726, 7
      %v2728 = vsub.s32 0, %v2727
      %v2729 = vrot.slane %v2725, %v2728
      %v2730 = vmul.f32 %v2547, %v2729
      %v2731 = vmul.f32 %v2548, %v2729
      %v2732 = vmul.f32 %v2549, %v2729
      %v2733 = vmul.f32 %v2550, %v2729
      %v2734 = vmul.f32 %v2551, %v2729
      %v2735 = vmul.f32 %v2552, %v2729
      %v2736 = vmul.f32 %v2553, %v2729
      %v2737 = vmul.f32 %v2554, %v2729
      %v2738 = vmul.f32 %v2555, %v2729
      %v2739 = vmul.f32 %v2556, %v2729
      %v2740 = vmul.f32 %v2557, %v2729
      %v2741 = vmul.f32 %v2558, %v2729
      %v2742 = vmul.f32 %v2559, %v2729
      %v2743 = vmul.f32 %v2560, %v2729
      %v2744 = vmul.f32 %v2561, %v2729
      %v2745 = vmul.f32 %v2562, %v2729
      %v2746 = vmul.f32 %v2563, %v2729
      %v2747 = vmul.f32 %v2564, %v2729
      %v2748 = vmul.f32 %v2565, %v2729
      %v2749 = vmul.f32 %v2566, %v2729
      %v2750 = vmul.f32 %v2567, %v2729
      %v2751 = vmul.f32 %v2568, %v2729
      %v2752 = vmul.f32 %v2569, %v2729
      %v2753 = vmul.f32 %v2570, %v2729
      %v2754 = vmul.f32 %v2571, %v2729
      %v2755 = vmul.f32 %v2572, %v2729
      %v2756 = vmul.f32 %v2573, %v2729
      %v2757 = vmul.f32 %v2574, %v2729
      %v2758 = vmul.f32 %v2575, %v2729
      %v2759 = vmul.f32 %v2576, %v2729
      %v2760 = vmul.f32 %v2577, %v2729
      %v2761 = vmul.f32 %v2578, %v2729
      %v2762 = vadd.f32 %v2693, %v2730
      %v2763 = vadd.f32 %v2694, %v2731
      %v2764 = vadd.f32 %v2695, %v2732
      %v2765 = vadd.f32 %v2696, %v2733
      %v2766 = vadd.f32 %v2697, %v2734
      %v2767 = vadd.f32 %v2698, %v2735
      %v2768 = vadd.f32 %v2699, %v2736
      %v2769 = vadd.f32 %v2700, %v2737
      %v2770 = vadd.f32 %v2701, %v2738
      %v2771 = vadd.f32 %v2702, %v2739
      %v2772 = vadd.f32 %v2703, %v2740
      %v2773 = vadd.f32 %v2704, %v2741
      %v2774 = vadd.f32 %v2705, %v2742
      %v2775 = vadd.f32 %v2706, %v2743
      %v2776 = vadd.f32 %v2707, %v2744
      %v2777 = vadd.f32 %v2708, %v2745
      %v2778 = vadd.f32 %v2709, %v2746
      %v2779 = vadd.f32 %v2710, %v2747
      %v2780 = vadd.f32 %v2711, %v2748
      %v2781 = vadd.f32 %v2712, %v2749
      %v2782 = vadd.f32 %v2713, %v2750
      %v2783 = vadd.f32 %v2714, %v2751
      %v2784 = vadd.f32 %v2715, %v2752
      %v2785 = vadd.f32 %v2716, %v2753
      %v2786 = vadd.f32 %v2717, %v2754
      %v2787 = vadd.f32 %v2718, %v2755
      %v2788 = vadd.f32 %v2719, %v2756
      %v2789 = vadd.f32 %v2720, %v2757
      %v2790 = vadd.f32 %v2721, %v2758
      %v2791 = vadd.f32 %v2722, %v2759
      %v2792 = vadd.f32 %v2723, %v2760
      %v2793 = vadd.f32 %v2724, %v2761
      %v2794 = vld [vmem:[%s682 + $0x4] sm:$0x1]
      %v2795 = vlaneseq
      %v2796 = vshrl.u32 %v2795, 7
      %v2797 = vsub.s32 0, %v2796
      %v2798 = vrot.slane %v2794, %v2797
      %v2799 = vmul.f32 %v2549, %v2798
      %v2800 = vmul.f32 %v2550, %v2798
      %v2801 = vmul.f32 %v2551, %v2798
      %v2802 = vmul.f32 %v2552, %v2798
      %v2803 = vmul.f32 %v2553, %v2798
      %v2804 = vmul.f32 %v2554, %v2798
      %v2805 = vmul.f32 %v2555, %v2798
      %v2806 = vmul.f32 %v2556, %v2798
      %v2807 = vmul.f32 %v2557, %v2798
      %v2808 = vmul.f32 %v2558, %v2798
      %v2809 = vmul.f32 %v2559, %v2798
      %v2810 = vmul.f32 %v2560, %v2798
      %v2811 = vmul.f32 %v2561, %v2798
      %v2812 = vmul.f32 %v2562, %v2798
      %v2813 = vmul.f32 %v2563, %v2798
      %v2814 = vmul.f32 %v2564, %v2798
      %v2815 = vmul.f32 %v2565, %v2798
      %v2816 = vmul.f32 %v2566, %v2798
      %v2817 = vmul.f32 %v2567, %v2798
      %v2818 = vmul.f32 %v2568, %v2798
      %v2819 = vmul.f32 %v2569, %v2798
      %v2820 = vmul.f32 %v2570, %v2798
      %v2821 = vmul.f32 %v2571, %v2798
      %v2822 = vmul.f32 %v2572, %v2798
      %v2823 = vmul.f32 %v2573, %v2798
      %v2824 = vmul.f32 %v2574, %v2798
      %v2825 = vmul.f32 %v2575, %v2798
      %v2826 = vmul.f32 %v2576, %v2798
      %v2827 = vmul.f32 %v2577, %v2798
      %v2828 = vmul.f32 %v2578, %v2798
      %v2829 = vmul.f32 %v2579, %v2798
      %v2830 = vmul.f32 %v2580, %v2798
      %v2831 = vadd.f32 %v2762, %v2799
      %v2832 = vadd.f32 %v2763, %v2800
      %v2833 = vadd.f32 %v2764, %v2801
      %v2834 = vadd.f32 %v2765, %v2802
      %v2835 = vadd.f32 %v2766, %v2803
      %v2836 = vadd.f32 %v2767, %v2804
      %v2837 = vadd.f32 %v2768, %v2805
      %v2838 = vadd.f32 %v2769, %v2806
      %v2839 = vadd.f32 %v2770, %v2807
      %v2840 = vadd.f32 %v2771, %v2808
      %v2841 = vadd.f32 %v2772, %v2809
      %v2842 = vadd.f32 %v2773, %v2810
      %v2843 = vadd.f32 %v2774, %v2811
      %v2844 = vadd.f32 %v2775, %v2812
      %v2845 = vadd.f32 %v2776, %v2813
      %v2846 = vadd.f32 %v2777, %v2814
      %v2847 = vadd.f32 %v2778, %v2815
      %v2848 = vadd.f32 %v2779, %v2816
      %v2849 = vadd.f32 %v2780, %v2817
      %v2850 = vadd.f32 %v2781, %v2818
      %v2851 = vadd.f32 %v2782, %v2819
      %v2852 = vadd.f32 %v2783, %v2820
      %v2853 = vadd.f32 %v2784, %v2821
      %v2854 = vadd.f32 %v2785, %v2822
      %v2855 = vadd.f32 %v2786, %v2823
      %v2856 = vadd.f32 %v2787, %v2824
      %v2857 = vadd.f32 %v2788, %v2825
      %v2858 = vadd.f32 %v2789, %v2826
      %v2859 = vadd.f32 %v2790, %v2827
      %v2860 = vadd.f32 %v2791, %v2828
      %v2861 = vadd.f32 %v2792, %v2829
      %v2862 = vadd.f32 %v2793, %v2830
      %v2863 = vld [vmem:[%s752 + $0x4] sm:$0x1]
      %v2864 = vlaneseq
      %v2865 = vshrl.u32 %v2864, 7
      %v2866 = vsub.s32 0, %v2865
      %v2867 = vrot.slane %v2863, %v2866
      %v2868 = vmul.f32 %v2551, %v2867
      %v2869 = vmul.f32 %v2552, %v2867
      %v2870 = vmul.f32 %v2553, %v2867
      %v2871 = vmul.f32 %v2554, %v2867
      %v2872 = vmul.f32 %v2555, %v2867
      %v2873 = vmul.f32 %v2556, %v2867
      %v2874 = vmul.f32 %v2557, %v2867
      %v2875 = vmul.f32 %v2558, %v2867
      %v2876 = vmul.f32 %v2559, %v2867
      %v2877 = vmul.f32 %v2560, %v2867
      %v2878 = vmul.f32 %v2561, %v2867
      %v2879 = vmul.f32 %v2562, %v2867
      %v2880 = vmul.f32 %v2563, %v2867
      %v2881 = vmul.f32 %v2564, %v2867
      %v2882 = vmul.f32 %v2565, %v2867
      %v2883 = vmul.f32 %v2566, %v2867
      %v2884 = vmul.f32 %v2567, %v2867
      %v2885 = vmul.f32 %v2568, %v2867
      %v2886 = vmul.f32 %v2569, %v2867
      %v2887 = vmul.f32 %v2570, %v2867
      %v2888 = vmul.f32 %v2571, %v2867
      %v2889 = vmul.f32 %v2572, %v2867
      %v2890 = vmul.f32 %v2573, %v2867
      %v2891 = vmul.f32 %v2574, %v2867
      %v2892 = vmul.f32 %v2575, %v2867
      %v2893 = vmul.f32 %v2576, %v2867
      %v2894 = vmul.f32 %v2577, %v2867
      %v2895 = vmul.f32 %v2578, %v2867
      %v2896 = vmul.f32 %v2579, %v2867
      %v2897 = vmul.f32 %v2580, %v2867
      %v2898 = vmul.f32 %v2581, %v2867
      %v2899 = vmul.f32 %v2582, %v2867
      %v2900 = vadd.f32 %v2831, %v2868
      %v2901 = vadd.f32 %v2832, %v2869
      %v2902 = vadd.f32 %v2833, %v2870
      %v2903 = vadd.f32 %v2834, %v2871
      %v2904 = vadd.f32 %v2835, %v2872
      %v2905 = vadd.f32 %v2836, %v2873
      %v2906 = vadd.f32 %v2837, %v2874
      %v2907 = vadd.f32 %v2838, %v2875
      %v2908 = vadd.f32 %v2839, %v2876
      %v2909 = vadd.f32 %v2840, %v2877
      %v2910 = vadd.f32 %v2841, %v2878
      %v2911 = vadd.f32 %v2842, %v2879
      %v2912 = vadd.f32 %v2843, %v2880
      %v2913 = vadd.f32 %v2844, %v2881
      %v2914 = vadd.f32 %v2845, %v2882
      %v2915 = vadd.f32 %v2846, %v2883
      %v2916 = vadd.f32 %v2847, %v2884
      %v2917 = vadd.f32 %v2848, %v2885
      %v2918 = vadd.f32 %v2849, %v2886
      %v2919 = vadd.f32 %v2850, %v2887
      %v2920 = vadd.f32 %v2851, %v2888
      %v2921 = vadd.f32 %v2852, %v2889
      %v2922 = vadd.f32 %v2853, %v2890
      %v2923 = vadd.f32 %v2854, %v2891
      %v2924 = vadd.f32 %v2855, %v2892
      %v2925 = vadd.f32 %v2856, %v2893
      %v2926 = vadd.f32 %v2857, %v2894
      %v2927 = vadd.f32 %v2858, %v2895
      %v2928 = vadd.f32 %v2859, %v2896
      %v2929 = vadd.f32 %v2860, %v2897
      %v2930 = vadd.f32 %v2861, %v2898
      %v2931 = vadd.f32 %v2862, %v2899
      %v2932 = vld [vmem:[%s822 + $0x4] sm:$0x1]
      %v2933 = vlaneseq
      %v2934 = vshrl.u32 %v2933, 7
      %v2935 = vsub.s32 0, %v2934
      %v2936 = vrot.slane %v2932, %v2935
      %v2937 = vmul.f32 %v2553, %v2936
      %v2938 = vmul.f32 %v2554, %v2936
      %v2939 = vmul.f32 %v2555, %v2936
      %v2940 = vmul.f32 %v2556, %v2936
      %v2941 = vmul.f32 %v2557, %v2936
      %v2942 = vmul.f32 %v2558, %v2936
      %v2943 = vmul.f32 %v2559, %v2936
      %v2944 = vmul.f32 %v2560, %v2936
      %v2945 = vmul.f32 %v2561, %v2936
      %v2946 = vmul.f32 %v2562, %v2936
      %v2947 = vmul.f32 %v2563, %v2936
      %v2948 = vmul.f32 %v2564, %v2936
      %v2949 = vmul.f32 %v2565, %v2936
      %v2950 = vmul.f32 %v2566, %v2936
      %v2951 = vmul.f32 %v2567, %v2936
      %v2952 = vmul.f32 %v2568, %v2936
      %v2953 = vmul.f32 %v2569, %v2936
      %v2954 = vmul.f32 %v2570, %v2936
      %v2955 = vmul.f32 %v2571, %v2936
      %v2956 = vmul.f32 %v2572, %v2936
      %v2957 = vmul.f32 %v2573, %v2936
      %v2958 = vmul.f32 %v2574, %v2936
      %v2959 = vmul.f32 %v2575, %v2936
      %v2960 = vmul.f32 %v2576, %v2936
      %v2961 = vmul.f32 %v2577, %v2936
      %v2962 = vmul.f32 %v2578, %v2936
      %v2963 = vmul.f32 %v2579, %v2936
      %v2964 = vmul.f32 %v2580, %v2936
      %v2965 = vmul.f32 %v2581, %v2936
      %v2966 = vmul.f32 %v2582, %v2936
      %v2967 = vmul.f32 %v2583, %v2936
      %v2968 = vmul.f32 %v2584, %v2936
      %v2969 = vadd.f32 %v2900, %v2937
      %v2970 = vadd.f32 %v2901, %v2938
      %v2971 = vadd.f32 %v2902, %v2939
      %v2972 = vadd.f32 %v2903, %v2940
      %v2973 = vadd.f32 %v2904, %v2941
      %v2974 = vadd.f32 %v2905, %v2942
      %v2975 = vadd.f32 %v2906, %v2943
      %v2976 = vadd.f32 %v2907, %v2944
      %v2977 = vadd.f32 %v2908, %v2945
      %v2978 = vadd.f32 %v2909, %v2946
      %v2979 = vadd.f32 %v2910, %v2947
      %v2980 = vadd.f32 %v2911, %v2948
      %v2981 = vadd.f32 %v2912, %v2949
      %v2982 = vadd.f32 %v2913, %v2950
      %v2983 = vadd.f32 %v2914, %v2951
      %v2984 = vadd.f32 %v2915, %v2952
      %v2985 = vadd.f32 %v2916, %v2953
      %v2986 = vadd.f32 %v2917, %v2954
      %v2987 = vadd.f32 %v2918, %v2955
      %v2988 = vadd.f32 %v2919, %v2956
      %v2989 = vadd.f32 %v2920, %v2957
      %v2990 = vadd.f32 %v2921, %v2958
      %v2991 = vadd.f32 %v2922, %v2959
      %v2992 = vadd.f32 %v2923, %v2960
      %v2993 = vadd.f32 %v2924, %v2961
      %v2994 = vadd.f32 %v2925, %v2962
      %v2995 = vadd.f32 %v2926, %v2963
      %v2996 = vadd.f32 %v2927, %v2964
      %v2997 = vadd.f32 %v2928, %v2965
      %v2998 = vadd.f32 %v2929, %v2966
      %v2999 = vadd.f32 %v2930, %v2967
      %v3000 = vadd.f32 %v2931, %v2968
      %v3001 = vld [vmem:[%s892 + $0x4] sm:$0x1]
      %v3002 = vlaneseq
      %v3003 = vshrl.u32 %v3002, 7
      %v3004 = vsub.s32 0, %v3003
      %v3005 = vrot.slane %v3001, %v3004
      %v3006 = vmul.f32 %v2555, %v3005
      %v3007 = vmul.f32 %v2556, %v3005
      %v3008 = vmul.f32 %v2557, %v3005
      %v3009 = vmul.f32 %v2558, %v3005
      %v3010 = vmul.f32 %v2559, %v3005
      %v3011 = vmul.f32 %v2560, %v3005
      %v3012 = vmul.f32 %v2561, %v3005
      %v3013 = vmul.f32 %v2562, %v3005
      %v3014 = vmul.f32 %v2563, %v3005
      %v3015 = vmul.f32 %v2564, %v3005
      %v3016 = vmul.f32 %v2565, %v3005
      %v3017 = vmul.f32 %v2566, %v3005
      %v3018 = vmul.f32 %v2567, %v3005
      %v3019 = vmul.f32 %v2568, %v3005
      %v3020 = vmul.f32 %v2569, %v3005
      %v3021 = vmul.f32 %v2570, %v3005
      %v3022 = vmul.f32 %v2571, %v3005
      %v3023 = vmul.f32 %v2572, %v3005
      %v3024 = vmul.f32 %v2573, %v3005
      %v3025 = vmul.f32 %v2574, %v3005
      %v3026 = vmul.f32 %v2575, %v3005
      %v3027 = vmul.f32 %v2576, %v3005
      %v3028 = vmul.f32 %v2577, %v3005
      %v3029 = vmul.f32 %v2578, %v3005
      %v3030 = vmul.f32 %v2579, %v3005
      %v3031 = vmul.f32 %v2580, %v3005
      %v3032 = vmul.f32 %v2581, %v3005
      %v3033 = vmul.f32 %v2582, %v3005
      %v3034 = vmul.f32 %v2583, %v3005
      %v3035 = vmul.f32 %v2584, %v3005
      %v3036 = vmul.f32 %v2585, %v3005
      %v3037 = vmul.f32 %v2586, %v3005
      %v3038 = vadd.f32 %v2969, %v3006
      %v3039 = vadd.f32 %v2970, %v3007
      %v3040 = vadd.f32 %v2971, %v3008
      %v3041 = vadd.f32 %v2972, %v3009
      %v3042 = vadd.f32 %v2973, %v3010
      %v3043 = vadd.f32 %v2974, %v3011
      %v3044 = vadd.f32 %v2975, %v3012
      %v3045 = vadd.f32 %v2976, %v3013
      %v3046 = vadd.f32 %v2977, %v3014
      %v3047 = vadd.f32 %v2978, %v3015
      %v3048 = vadd.f32 %v2979, %v3016
      %v3049 = vadd.f32 %v2980, %v3017
      %v3050 = vadd.f32 %v2981, %v3018
      %v3051 = vadd.f32 %v2982, %v3019
      %v3052 = vadd.f32 %v2983, %v3020
      %v3053 = vadd.f32 %v2984, %v3021
      %v3054 = vadd.f32 %v2985, %v3022
      %v3055 = vadd.f32 %v2986, %v3023
      %v3056 = vadd.f32 %v2987, %v3024
      %v3057 = vadd.f32 %v2988, %v3025
      %v3058 = vadd.f32 %v2989, %v3026
      %v3059 = vadd.f32 %v2990, %v3027
      %v3060 = vadd.f32 %v2991, %v3028
      %v3061 = vadd.f32 %v2992, %v3029
      %v3062 = vadd.f32 %v2993, %v3030
      %v3063 = vadd.f32 %v2994, %v3031
      %v3064 = vadd.f32 %v2995, %v3032
      %v3065 = vadd.f32 %v2996, %v3033
      %v3066 = vadd.f32 %v2997, %v3034
      %v3067 = vadd.f32 %v2998, %v3035
      %v3068 = vadd.f32 %v2999, %v3036
      %v3069 = vadd.f32 %v3000, %v3037
      %v3070 = vld [vmem:[#allocation2 + $0xa] sm:$0xff]
      %v3071 = vld [vmem:[#allocation2 + $0x12] sm:$0xff]
      %v3072 = vld [vmem:[#allocation2 + $0x2a] sm:$0xff]
      %v3073 = vld [vmem:[#allocation2 + $0x32] sm:$0xff]
      %v3074 = vld [vmem:[#allocation2 + $0x4a] sm:$0xff]
      %v3075 = vld [vmem:[#allocation2 + $0x52] sm:$0xff]
      %v3076 = vld [vmem:[#allocation2 + $0x6a] sm:$0xff]
      %v3077 = vld [vmem:[#allocation2 + $0x72] sm:$0xff]
      %v3078 = vld [vmem:[#allocation2 + $0x8a] sm:$0xff]
      %v3079 = vld [vmem:[#allocation2 + $0x92] sm:$0xff]
      %v3080 = vld [vmem:[#allocation2 + $0xaa] sm:$0xff]
      %v3081 = vld [vmem:[#allocation2 + $0xb2] sm:$0xff]
      %v3082 = vld [vmem:[#allocation2 + $0xca] sm:$0xff]
      %v3083 = vld [vmem:[#allocation2 + $0xd2] sm:$0xff]
      %v3084 = vld [vmem:[#allocation2 + $0xea] sm:$0xff]
      %v3085 = vld [vmem:[#allocation2 + $0xf2] sm:$0xff]
      %v3086 = vld [vmem:[#allocation2 + $0x10a] sm:$0xff]
      %v3087 = vld [vmem:[#allocation2 + $0x112] sm:$0xff]
      %v3088 = vld [vmem:[#allocation2 + $0x12a] sm:$0xff]
      %v3089 = vld [vmem:[#allocation2 + $0x132] sm:$0xff]
      %v3090 = vld [vmem:[#allocation2 + $0x14a] sm:$0xff]
      %v3091 = vld [vmem:[#allocation2 + $0x152] sm:$0xff]
      %v3092 = vld [vmem:[#allocation2 + $0x16a] sm:$0xff]
      %v3093 = vld [vmem:[#allocation2 + $0x172] sm:$0xff]
      %v3094 = vld [vmem:[#allocation2 + $0x18a] sm:$0xff]
      %v3095 = vld [vmem:[#allocation2 + $0x192] sm:$0xff]
      %v3096 = vld [vmem:[#allocation2 + $0x1aa] sm:$0xff]
      %v3097 = vld [vmem:[#allocation2 + $0x1b2] sm:$0xff]
      %v3098 = vld [vmem:[#allocation2 + $0x1ca] sm:$0xff]
      %v3099 = vld [vmem:[#allocation2 + $0x1d2] sm:$0xff]
      %v3100 = vld [vmem:[#allocation2 + $0x1ea] sm:$0xff]
      %v3101 = vld [vmem:[#allocation2 + $0x1f2] sm:$0xff]
      %v3102 = vld [vmem:[#allocation2 + $0x20a] sm:$0xff]
      %v3103 = vld [vmem:[#allocation2 + $0x212] sm:$0xff]
      %v3104 = vld [vmem:[#allocation2 + $0x22a] sm:$0xff]
      %v3105 = vld [vmem:[#allocation2 + $0x232] sm:$0xff]
      %v3106 = vld [vmem:[#allocation2 + $0x24a] sm:$0xff]
      %v3107 = vld [vmem:[#allocation2 + $0x252] sm:$0xff]
      %v3108 = vld [vmem:[#allocation2 + $0x26a] sm:$0xff]
      %v3109 = vld [vmem:[#allocation2 + $0x272] sm:$0xff]
      %v3110 = vld [vmem:[#allocation2 + $0x28a] sm:$0xff]
      %v3111 = vld [vmem:[#allocation2 + $0x292] sm:$0xff]
      %v3112 = vld [vmem:[#allocation2 + $0x2aa] sm:$0xff]
      %v3113 = vld [vmem:[#allocation2 + $0x2b2] sm:$0xff]
      %v3114 = vld [vmem:[%s1 + $0x5] sm:$0x1]
      %v3115 = vlaneseq
      %v3116 = vshrl.u32 %v3115, 7
      %v3117 = vsub.s32 0, %v3116
      %v3118 = vrot.slane %v3114, %v3117
      %v3119 = vmul.f32 %v3070, %v3118
      %v3120 = vmul.f32 %v3071, %v3118
      %v3121 = vmul.f32 %v3072, %v3118
      %v3122 = vmul.f32 %v3073, %v3118
      %v3123 = vmul.f32 %v3074, %v3118
      %v3124 = vmul.f32 %v3075, %v3118
      %v3125 = vmul.f32 %v3076, %v3118
      %v3126 = vmul.f32 %v3077, %v3118
      %v3127 = vmul.f32 %v3078, %v3118
      %v3128 = vmul.f32 %v3079, %v3118
      %v3129 = vmul.f32 %v3080, %v3118
      %v3130 = vmul.f32 %v3081, %v3118
      %v3131 = vmul.f32 %v3082, %v3118
      %v3132 = vmul.f32 %v3083, %v3118
      %v3133 = vmul.f32 %v3084, %v3118
      %v3134 = vmul.f32 %v3085, %v3118
      %v3135 = vmul.f32 %v3086, %v3118
      %v3136 = vmul.f32 %v3087, %v3118
      %v3137 = vmul.f32 %v3088, %v3118
      %v3138 = vmul.f32 %v3089, %v3118
      %v3139 = vmul.f32 %v3090, %v3118
      %v3140 = vmul.f32 %v3091, %v3118
      %v3141 = vmul.f32 %v3092, %v3118
      %v3142 = vmul.f32 %v3093, %v3118
      %v3143 = vmul.f32 %v3094, %v3118
      %v3144 = vmul.f32 %v3095, %v3118
      %v3145 = vmul.f32 %v3096, %v3118
      %v3146 = vmul.f32 %v3097, %v3118
      %v3147 = vmul.f32 %v3098, %v3118
      %v3148 = vmul.f32 %v3099, %v3118
      %v3149 = vmul.f32 %v3100, %v3118
      %v3150 = vmul.f32 %v3101, %v3118
      %v3151 = vadd.f32 %v3038, %v3119
      %v3152 = vadd.f32 %v3039, %v3120
      %v3153 = vadd.f32 %v3040, %v3121
      %v3154 = vadd.f32 %v3041, %v3122
      %v3155 = vadd.f32 %v3042, %v3123
      %v3156 = vadd.f32 %v3043, %v3124
      %v3157 = vadd.f32 %v3044, %v3125
      %v3158 = vadd.f32 %v3045, %v3126
      %v3159 = vadd.f32 %v3046, %v3127
      %v3160 = vadd.f32 %v3047, %v3128
      %v3161 = vadd.f32 %v3048, %v3129
      %v3162 = vadd.f32 %v3049, %v3130
      %v3163 = vadd.f32 %v3050, %v3131
      %v3164 = vadd.f32 %v3051, %v3132
      %v3165 = vadd.f32 %v3052, %v3133
      %v3166 = vadd.f32 %v3053, %v3134
      %v3167 = vadd.f32 %v3054, %v3135
      %v3168 = vadd.f32 %v3055, %v3136
      %v3169 = vadd.f32 %v3056, %v3137
      %v3170 = vadd.f32 %v3057, %v3138
      %v3171 = vadd.f32 %v3058, %v3139
      %v3172 = vadd.f32 %v3059, %v3140
      %v3173 = vadd.f32 %v3060, %v3141
      %v3174 = vadd.f32 %v3061, %v3142
      %v3175 = vadd.f32 %v3062, %v3143
      %v3176 = vadd.f32 %v3063, %v3144
      %v3177 = vadd.f32 %v3064, %v3145
      %v3178 = vadd.f32 %v3065, %v3146
      %v3179 = vadd.f32 %v3066, %v3147
      %v3180 = vadd.f32 %v3067, %v3148
      %v3181 = vadd.f32 %v3068, %v3149
      %v3182 = vadd.f32 %v3069, %v3150
      %v3183 = vld [vmem:[%s542 + $0x5] sm:$0x1]
      %v3184 = vlaneseq
      %v3185 = vshrl.u32 %v3184, 7
      %v3186 = vsub.s32 0, %v3185
      %v3187 = vrot.slane %v3183, %v3186
      %v3188 = vmul.f32 %v3072, %v3187
      %v3189 = vmul.f32 %v3073, %v3187
      %v3190 = vmul.f32 %v3074, %v3187
      %v3191 = vmul.f32 %v3075, %v3187
      %v3192 = vmul.f32 %v3076, %v3187
      %v3193 = vmul.f32 %v3077, %v3187
      %v3194 = vmul.f32 %v3078, %v3187
      %v3195 = vmul.f32 %v3079, %v3187
      %v3196 = vmul.f32 %v3080, %v3187
      %v3197 = vmul.f32 %v3081, %v3187
      %v3198 = vmul.f32 %v3082, %v3187
      %v3199 = vmul.f32 %v3083, %v3187
      %v3200 = vmul.f32 %v3084, %v3187
      %v3201 = vmul.f32 %v3085, %v3187
      %v3202 = vmul.f32 %v3086, %v3187
      %v3203 = vmul.f32 %v3087, %v3187
      %v3204 = vmul.f32 %v3088, %v3187
      %v3205 = vmul.f32 %v3089, %v3187
      %v3206 = vmul.f32 %v3090, %v3187
      %v3207 = vmul.f32 %v3091, %v3187
      %v3208 = vmul.f32 %v3092, %v3187
      %v3209 = vmul.f32 %v3093, %v3187
      %v3210 = vmul.f32 %v3094, %v3187
      %v3211 = vmul.f32 %v3095, %v3187
      %v3212 = vmul.f32 %v3096, %v3187
      %v3213 = vmul.f32 %v3097, %v3187
      %v3214 = vmul.f32 %v3098, %v3187
      %v3215 = vmul.f32 %v3099, %v3187
      %v3216 = vmul.f32 %v3100, %v3187
      %v3217 = vmul.f32 %v3101, %v3187
      %v3218 = vmul.f32 %v3102, %v3187
      %v3219 = vmul.f32 %v3103, %v3187
      %v3220 = vadd.f32 %v3151, %v3188
      %v3221 = vadd.f32 %v3152, %v3189
      %v3222 = vadd.f32 %v3153, %v3190
      %v3223 = vadd.f32 %v3154, %v3191
      %v3224 = vadd.f32 %v3155, %v3192
      %v3225 = vadd.f32 %v3156, %v3193
      %v3226 = vadd.f32 %v3157, %v3194
      %v3227 = vadd.f32 %v3158, %v3195
      %v3228 = vadd.f32 %v3159, %v3196
      %v3229 = vadd.f32 %v3160, %v3197
      %v3230 = vadd.f32 %v3161, %v3198
      %v3231 = vadd.f32 %v3162, %v3199
      %v3232 = vadd.f32 %v3163, %v3200
      %v3233 = vadd.f32 %v3164, %v3201
      %v3234 = vadd.f32 %v3165, %v3202
      %v3235 = vadd.f32 %v3166, %v3203
      %v3236 = vadd.f32 %v3167, %v3204
      %v3237 = vadd.f32 %v3168, %v3205
      %v3238 = vadd.f32 %v3169, %v3206
      %v3239 = vadd.f32 %v3170, %v3207
      %v3240 = vadd.f32 %v3171, %v3208
      %v3241 = vadd.f32 %v3172, %v3209
      %v3242 = vadd.f32 %v3173, %v3210
      %v3243 = vadd.f32 %v3174, %v3211
      %v3244 = vadd.f32 %v3175, %v3212
      %v3245 = vadd.f32 %v3176, %v3213
      %v3246 = vadd.f32 %v3177, %v3214
      %v3247 = vadd.f32 %v3178, %v3215
      %v3248 = vadd.f32 %v3179, %v3216
      %v3249 = vadd.f32 %v3180, %v3217
      %v3250 = vadd.f32 %v3181, %v3218
      %v3251 = vadd.f32 %v3182, %v3219
      %v3252 = vld [vmem:[%s612 + $0x5] sm:$0x1]
      %v3253 = vlaneseq
      %v3254 = vshrl.u32 %v3253, 7
      %v3255 = vsub.s32 0, %v3254
      %v3256 = vrot.slane %v3252, %v3255
      %v3257 = vmul.f32 %v3074, %v3256
      %v3258 = vmul.f32 %v3075, %v3256
      %v3259 = vmul.f32 %v3076, %v3256
      %v3260 = vmul.f32 %v3077, %v3256
      %v3261 = vmul.f32 %v3078, %v3256
      %v3262 = vmul.f32 %v3079, %v3256
      %v3263 = vmul.f32 %v3080, %v3256
      %v3264 = vmul.f32 %v3081, %v3256
      %v3265 = vmul.f32 %v3082, %v3256
      %v3266 = vmul.f32 %v3083, %v3256
      %v3267 = vmul.f32 %v3084, %v3256
      %v3268 = vmul.f32 %v3085, %v3256
      %v3269 = vmul.f32 %v3086, %v3256
      %v3270 = vmul.f32 %v3087, %v3256
      %v3271 = vmul.f32 %v3088, %v3256
      %v3272 = vmul.f32 %v3089, %v3256
      %v3273 = vmul.f32 %v3090, %v3256
      %v3274 = vmul.f32 %v3091, %v3256
      %v3275 = vmul.f32 %v3092, %v3256
      %v3276 = vmul.f32 %v3093, %v3256
      %v3277 = vmul.f32 %v3094, %v3256
      %v3278 = vmul.f32 %v3095, %v3256
      %v3279 = vmul.f32 %v3096, %v3256
      %v3280 = vmul.f32 %v3097, %v3256
      %v3281 = vmul.f32 %v3098, %v3256
      %v3282 = vmul.f32 %v3099, %v3256
      %v3283 = vmul.f32 %v3100, %v3256
      %v3284 = vmul.f32 %v3101, %v3256
      %v3285 = vmul.f32 %v3102, %v3256
      %v3286 = vmul.f32 %v3103, %v3256
      %v3287 = vmul.f32 %v3104, %v3256
      %v3288 = vmul.f32 %v3105, %v3256
      %v3289 = vadd.f32 %v3220, %v3257
      %v3290 = vadd.f32 %v3221, %v3258
      %v3291 = vadd.f32 %v3222, %v3259
      %v3292 = vadd.f32 %v3223, %v3260
      %v3293 = vadd.f32 %v3224, %v3261
      %v3294 = vadd.f32 %v3225, %v3262
      %v3295 = vadd.f32 %v3226, %v3263
      %v3296 = vadd.f32 %v3227, %v3264
      %v3297 = vadd.f32 %v3228, %v3265
      %v3298 = vadd.f32 %v3229, %v3266
      %v3299 = vadd.f32 %v3230, %v3267
      %v3300 = vadd.f32 %v3231, %v3268
      %v3301 = vadd.f32 %v3232, %v3269
      %v3302 = vadd.f32 %v3233, %v3270
      %v3303 = vadd.f32 %v3234, %v3271
      %v3304 = vadd.f32 %v3235, %v3272
      %v3305 = vadd.f32 %v3236, %v3273
      %v3306 = vadd.f32 %v3237, %v3274
      %v3307 = vadd.f32 %v3238, %v3275
      %v3308 = vadd.f32 %v3239, %v3276
      %v3309 = vadd.f32 %v3240, %v3277
      %v3310 = vadd.f32 %v3241, %v3278
      %v3311 = vadd.f32 %v3242, %v3279
      %v3312 = vadd.f32 %v3243, %v3280
      %v3313 = vadd.f32 %v3244, %v3281
      %v3314 = vadd.f32 %v3245, %v3282
      %v3315 = vadd.f32 %v3246, %v3283
      %v3316 = vadd.f32 %v3247, %v3284
      %v3317 = vadd.f32 %v3248, %v3285
      %v3318 = vadd.f32 %v3249, %v3286
      %v3319 = vadd.f32 %v3250, %v3287
      %v3320 = vadd.f32 %v3251, %v3288
      %v3321 = vld [vmem:[%s682 + $0x5] sm:$0x1]
      %v3322 = vlaneseq
      %v3323 = vshrl.u32 %v3322, 7
      %v3324 = vsub.s32 0, %v3323
      %v3325 = vrot.slane %v3321, %v3324
      %v3326 = vmul.f32 %v3076, %v3325
      %v3327 = vmul.f32 %v3077, %v3325
      %v3328 = vmul.f32 %v3078, %v3325
      %v3329 = vmul.f32 %v3079, %v3325
      %v3330 = vmul.f32 %v3080, %v3325
      %v3331 = vmul.f32 %v3081, %v3325
      %v3332 = vmul.f32 %v3082, %v3325
      %v3333 = vmul.f32 %v3083, %v3325
      %v3334 = vmul.f32 %v3084, %v3325
      %v3335 = vmul.f32 %v3085, %v3325
      %v3336 = vmul.f32 %v3086, %v3325
      %v3337 = vmul.f32 %v3087, %v3325
      %v3338 = vmul.f32 %v3088, %v3325
      %v3339 = vmul.f32 %v3089, %v3325
      %v3340 = vmul.f32 %v3090, %v3325
      %v3341 = vmul.f32 %v3091, %v3325
      %v3342 = vmul.f32 %v3092, %v3325
      %v3343 = vmul.f32 %v3093, %v3325
      %v3344 = vmul.f32 %v3094, %v3325
      %v3345 = vmul.f32 %v3095, %v3325
      %v3346 = vmul.f32 %v3096, %v3325
      %v3347 = vmul.f32 %v3097, %v3325
      %v3348 = vmul.f32 %v3098, %v3325
      %v3349 = vmul.f32 %v3099, %v3325
      %v3350 = vmul.f32 %v3100, %v3325
      %v3351 = vmul.f32 %v3101, %v3325
      %v3352 = vmul.f32 %v3102, %v3325
      %v3353 = vmul.f32 %v3103, %v3325
      %v3354 = vmul.f32 %v3104, %v3325
      %v3355 = vmul.f32 %v3105, %v3325
      %v3356 = vmul.f32 %v3106, %v3325
      %v3357 = vmul.f32 %v3107, %v3325
      %v3358 = vadd.f32 %v3289, %v3326
      %v3359 = vadd.f32 %v3290, %v3327
      %v3360 = vadd.f32 %v3291, %v3328
      %v3361 = vadd.f32 %v3292, %v3329
      %v3362 = vadd.f32 %v3293, %v3330
      %v3363 = vadd.f32 %v3294, %v3331
      %v3364 = vadd.f32 %v3295, %v3332
      %v3365 = vadd.f32 %v3296, %v3333
      %v3366 = vadd.f32 %v3297, %v3334
      %v3367 = vadd.f32 %v3298, %v3335
      %v3368 = vadd.f32 %v3299, %v3336
      %v3369 = vadd.f32 %v3300, %v3337
      %v3370 = vadd.f32 %v3301, %v3338
      %v3371 = vadd.f32 %v3302, %v3339
      %v3372 = vadd.f32 %v3303, %v3340
      %v3373 = vadd.f32 %v3304, %v3341
      %v3374 = vadd.f32 %v3305, %v3342
      %v3375 = vadd.f32 %v3306, %v3343
      %v3376 = vadd.f32 %v3307, %v3344
      %v3377 = vadd.f32 %v3308, %v3345
      %v3378 = vadd.f32 %v3309, %v3346
      %v3379 = vadd.f32 %v3310, %v3347
      %v3380 = vadd.f32 %v3311, %v3348
      %v3381 = vadd.f32 %v3312, %v3349
      %v3382 = vadd.f32 %v3313, %v3350
      %v3383 = vadd.f32 %v3314, %v3351
      %v3384 = vadd.f32 %v3315, %v3352
      %v3385 = vadd.f32 %v3316, %v3353
      %v3386 = vadd.f32 %v3317, %v3354
      %v3387 = vadd.f32 %v3318, %v3355
      %v3388 = vadd.f32 %v3319, %v3356
      %v3389 = vadd.f32 %v3320, %v3357
      %v3390 = vld [vmem:[%s752 + $0x5] sm:$0x1]
      %v3391 = vlaneseq
      %v3392 = vshrl.u32 %v3391, 7
      %v3393 = vsub.s32 0, %v3392
      %v3394 = vrot.slane %v3390, %v3393
      %v3395 = vmul.f32 %v3078, %v3394
      %v3396 = vmul.f32 %v3079, %v3394
      %v3397 = vmul.f32 %v3080, %v3394
      %v3398 = vmul.f32 %v3081, %v3394
      %v3399 = vmul.f32 %v3082, %v3394
      %v3400 = vmul.f32 %v3083, %v3394
      %v3401 = vmul.f32 %v3084, %v3394
      %v3402 = vmul.f32 %v3085, %v3394
      %v3403 = vmul.f32 %v3086, %v3394
      %v3404 = vmul.f32 %v3087, %v3394
      %v3405 = vmul.f32 %v3088, %v3394
      %v3406 = vmul.f32 %v3089, %v3394
      %v3407 = vmul.f32 %v3090, %v3394
      %v3408 = vmul.f32 %v3091, %v3394
      %v3409 = vmul.f32 %v3092, %v3394
      %v3410 = vmul.f32 %v3093, %v3394
      %v3411 = vmul.f32 %v3094, %v3394
      %v3412 = vmul.f32 %v3095, %v3394
      %v3413 = vmul.f32 %v3096, %v3394
      %v3414 = vmul.f32 %v3097, %v3394
      %v3415 = vmul.f32 %v3098, %v3394
      %v3416 = vmul.f32 %v3099, %v3394
      %v3417 = vmul.f32 %v3100, %v3394
      %v3418 = vmul.f32 %v3101, %v3394
      %v3419 = vmul.f32 %v3102, %v3394
      %v3420 = vmul.f32 %v3103, %v3394
      %v3421 = vmul.f32 %v3104, %v3394
      %v3422 = vmul.f32 %v3105, %v3394
      %v3423 = vmul.f32 %v3106, %v3394
      %v3424 = vmul.f32 %v3107, %v3394
      %v3425 = vmul.f32 %v3108, %v3394
      %v3426 = vmul.f32 %v3109, %v3394
      %v3427 = vadd.f32 %v3358, %v3395
      %v3428 = vadd.f32 %v3359, %v3396
      %v3429 = vadd.f32 %v3360, %v3397
      %v3430 = vadd.f32 %v3361, %v3398
      %v3431 = vadd.f32 %v3362, %v3399
      %v3432 = vadd.f32 %v3363, %v3400
      %v3433 = vadd.f32 %v3364, %v3401
      %v3434 = vadd.f32 %v3365, %v3402
      %v3435 = vadd.f32 %v3366, %v3403
      %v3436 = vadd.f32 %v3367, %v3404
      %v3437 = vadd.f32 %v3368, %v3405
      %v3438 = vadd.f32 %v3369, %v3406
      %v3439 = vadd.f32 %v3370, %v3407
      %v3440 = vadd.f32 %v3371, %v3408
      %v3441 = vadd.f32 %v3372, %v3409
      %v3442 = vadd.f32 %v3373, %v3410
      %v3443 = vadd.f32 %v3374, %v3411
      %v3444 = vadd.f32 %v3375, %v3412
      %v3445 = vadd.f32 %v3376, %v3413
      %v3446 = vadd.f32 %v3377, %v3414
      %v3447 = vadd.f32 %v3378, %v3415
      %v3448 = vadd.f32 %v3379, %v3416
      %v3449 = vadd.f32 %v3380, %v3417
      %v3450 = vadd.f32 %v3381, %v3418
      %v3451 = vadd.f32 %v3382, %v3419
      %v3452 = vadd.f32 %v3383, %v3420
      %v3453 = vadd.f32 %v3384, %v3421
      %v3454 = vadd.f32 %v3385, %v3422
      %v3455 = vadd.f32 %v3386, %v3423
      %v3456 = vadd.f32 %v3387, %v3424
      %v3457 = vadd.f32 %v3388, %v3425
      %v3458 = vadd.f32 %v3389, %v3426
      %v3459 = vld [vmem:[%s822 + $0x5] sm:$0x1]
      %v3460 = vlaneseq
      %v3461 = vshrl.u32 %v3460, 7
      %v3462 = vsub.s32 0, %v3461
      %v3463 = vrot.slane %v3459, %v3462
      %v3464 = vmul.f32 %v3080, %v3463
      %v3465 = vmul.f32 %v3081, %v3463
      %v3466 = vmul.f32 %v3082, %v3463
      %v3467 = vmul.f32 %v3083, %v3463
      %v3468 = vmul.f32 %v3084, %v3463
      %v3469 = vmul.f32 %v3085, %v3463
      %v3470 = vmul.f32 %v3086, %v3463
      %v3471 = vmul.f32 %v3087, %v3463
      %v3472 = vmul.f32 %v3088, %v3463
      %v3473 = vmul.f32 %v3089, %v3463
      %v3474 = vmul.f32 %v3090, %v3463
      %v3475 = vmul.f32 %v3091, %v3463
      %v3476 = vmul.f32 %v3092, %v3463
      %v3477 = vmul.f32 %v3093, %v3463
      %v3478 = vmul.f32 %v3094, %v3463
      %v3479 = vmul.f32 %v3095, %v3463
      %v3480 = vmul.f32 %v3096, %v3463
      %v3481 = vmul.f32 %v3097, %v3463
      %v3482 = vmul.f32 %v3098, %v3463
      %v3483 = vmul.f32 %v3099, %v3463
      %v3484 = vmul.f32 %v3100, %v3463
      %v3485 = vmul.f32 %v3101, %v3463
      %v3486 = vmul.f32 %v3102, %v3463
      %v3487 = vmul.f32 %v3103, %v3463
      %v3488 = vmul.f32 %v3104, %v3463
      %v3489 = vmul.f32 %v3105, %v3463
      %v3490 = vmul.f32 %v3106, %v3463
      %v3491 = vmul.f32 %v3107, %v3463
      %v3492 = vmul.f32 %v3108, %v3463
      %v3493 = vmul.f32 %v3109, %v3463
      %v3494 = vmul.f32 %v3110, %v3463
      %v3495 = vmul.f32 %v3111, %v3463
      %v3496 = vadd.f32 %v3427, %v3464
      %v3497 = vadd.f32 %v3428, %v3465
      %v3498 = vadd.f32 %v3429, %v3466
      %v3499 = vadd.f32 %v3430, %v3467
      %v3500 = vadd.f32 %v3431, %v3468
      %v3501 = vadd.f32 %v3432, %v3469
      %v3502 = vadd.f32 %v3433, %v3470
      %v3503 = vadd.f32 %v3434, %v3471
      %v3504 = vadd.f32 %v3435, %v3472
      %v3505 = vadd.f32 %v3436, %v3473
      %v3506 = vadd.f32 %v3437, %v3474
      %v3507 = vadd.f32 %v3438, %v3475
      %v3508 = vadd.f32 %v3439, %v3476
      %v3509 = vadd.f32 %v3440, %v3477
      %v3510 = vadd.f32 %v3441, %v3478
      %v3511 = vadd.f32 %v3442, %v3479
      %v3512 = vadd.f32 %v3443, %v3480
      %v3513 = vadd.f32 %v3444, %v3481
      %v3514 = vadd.f32 %v3445, %v3482
      %v3515 = vadd.f32 %v3446, %v3483
      %v3516 = vadd.f32 %v3447, %v3484
      %v3517 = vadd.f32 %v3448, %v3485
      %v3518 = vadd.f32 %v3449, %v3486
      %v3519 = vadd.f32 %v3450, %v3487
      %v3520 = vadd.f32 %v3451, %v3488
      %v3521 = vadd.f32 %v3452, %v3489
      %v3522 = vadd.f32 %v3453, %v3490
      %v3523 = vadd.f32 %v3454, %v3491
      %v3524 = vadd.f32 %v3455, %v3492
      %v3525 = vadd.f32 %v3456, %v3493
      %v3526 = vadd.f32 %v3457, %v3494
      %v3527 = vadd.f32 %v3458, %v3495
      %v3528 = vld [vmem:[%s892 + $0x5] sm:$0x1]
      %v3529 = vlaneseq
      %v3530 = vshrl.u32 %v3529, 7
      %v3531 = vsub.s32 0, %v3530
      %v3532 = vrot.slane %v3528, %v3531
      %v3533 = vmul.f32 %v3082, %v3532
      %v3534 = vmul.f32 %v3083, %v3532
      %v3535 = vmul.f32 %v3084, %v3532
      %v3536 = vmul.f32 %v3085, %v3532
      %v3537 = vmul.f32 %v3086, %v3532
      %v3538 = vmul.f32 %v3087, %v3532
      %v3539 = vmul.f32 %v3088, %v3532
      %v3540 = vmul.f32 %v3089, %v3532
      %v3541 = vmul.f32 %v3090, %v3532
      %v3542 = vmul.f32 %v3091, %v3532
      %v3543 = vmul.f32 %v3092, %v3532
      %v3544 = vmul.f32 %v3093, %v3532
      %v3545 = vmul.f32 %v3094, %v3532
      %v3546 = vmul.f32 %v3095, %v3532
      %v3547 = vmul.f32 %v3096, %v3532
      %v3548 = vmul.f32 %v3097, %v3532
      %v3549 = vmul.f32 %v3098, %v3532
      %v3550 = vmul.f32 %v3099, %v3532
      %v3551 = vmul.f32 %v3100, %v3532
      %v3552 = vmul.f32 %v3101, %v3532
      %v3553 = vmul.f32 %v3102, %v3532
      %v3554 = vmul.f32 %v3103, %v3532
      %v3555 = vmul.f32 %v3104, %v3532
      %v3556 = vmul.f32 %v3105, %v3532
      %v3557 = vmul.f32 %v3106, %v3532
      %v3558 = vmul.f32 %v3107, %v3532
      %v3559 = vmul.f32 %v3108, %v3532
      %v3560 = vmul.f32 %v3109, %v3532
      %v3561 = vmul.f32 %v3110, %v3532
      %v3562 = vmul.f32 %v3111, %v3532
      %v3563 = vmul.f32 %v3112, %v3532
      %v3564 = vmul.f32 %v3113, %v3532
      %v3565 = vadd.f32 %v3496, %v3533
      %v3566 = vadd.f32 %v3497, %v3534
      %v3567 = vadd.f32 %v3498, %v3535
      %v3568 = vadd.f32 %v3499, %v3536
      %v3569 = vadd.f32 %v3500, %v3537
      %v3570 = vadd.f32 %v3501, %v3538
      %v3571 = vadd.f32 %v3502, %v3539
      %v3572 = vadd.f32 %v3503, %v3540
      %v3573 = vadd.f32 %v3504, %v3541
      %v3574 = vadd.f32 %v3505, %v3542
      %v3575 = vadd.f32 %v3506, %v3543
      %v3576 = vadd.f32 %v3507, %v3544
      %v3577 = vadd.f32 %v3508, %v3545
      %v3578 = vadd.f32 %v3509, %v3546
      %v3579 = vadd.f32 %v3510, %v3547
      %v3580 = vadd.f32 %v3511, %v3548
      %v3581 = vadd.f32 %v3512, %v3549
      %v3582 = vadd.f32 %v3513, %v3550
      %v3583 = vadd.f32 %v3514, %v3551
      %v3584 = vadd.f32 %v3515, %v3552
      %v3585 = vadd.f32 %v3516, %v3553
      %v3586 = vadd.f32 %v3517, %v3554
      %v3587 = vadd.f32 %v3518, %v3555
      %v3588 = vadd.f32 %v3519, %v3556
      %v3589 = vadd.f32 %v3520, %v3557
      %v3590 = vadd.f32 %v3521, %v3558
      %v3591 = vadd.f32 %v3522, %v3559
      %v3592 = vadd.f32 %v3523, %v3560
      %v3593 = vadd.f32 %v3524, %v3561
      %v3594 = vadd.f32 %v3525, %v3562
      %v3595 = vadd.f32 %v3526, %v3563
      %v3596 = vadd.f32 %v3527, %v3564
      %v3597 = vld [vmem:[#allocation2 + $0xb] sm:$0xff]
      %v3598 = vld [vmem:[#allocation2 + $0x13] sm:$0xff]
      %v3599 = vld [vmem:[#allocation2 + $0x2b] sm:$0xff]
      %v3600 = vld [vmem:[#allocation2 + $0x33] sm:$0xff]
      %v3601 = vld [vmem:[#allocation2 + $0x4b] sm:$0xff]
      %v3602 = vld [vmem:[#allocation2 + $0x53] sm:$0xff]
      %v3603 = vld [vmem:[#allocation2 + $0x6b] sm:$0xff]
      %v3604 = vld [vmem:[#allocation2 + $0x73] sm:$0xff]
      %v3605 = vld [vmem:[#allocation2 + $0x8b] sm:$0xff]
      %v3606 = vld [vmem:[#allocation2 + $0x93] sm:$0xff]
      %v3607 = vld [vmem:[#allocation2 + $0xab] sm:$0xff]
      %v3608 = vld [vmem:[#allocation2 + $0xb3] sm:$0xff]
      %v3609 = vld [vmem:[#allocation2 + $0xcb] sm:$0xff]
      %v3610 = vld [vmem:[#allocation2 + $0xd3] sm:$0xff]
      %v3611 = vld [vmem:[#allocation2 + $0xeb] sm:$0xff]
      %v3612 = vld [vmem:[#allocation2 + $0xf3] sm:$0xff]
      %v3613 = vld [vmem:[#allocation2 + $0x10b] sm:$0xff]
      %v3614 = vld [vmem:[#allocation2 + $0x113] sm:$0xff]
      %v3615 = vld [vmem:[#allocation2 + $0x12b] sm:$0xff]
      %v3616 = vld [vmem:[#allocation2 + $0x133] sm:$0xff]
      %v3617 = vld [vmem:[#allocation2 + $0x14b] sm:$0xff]
      %v3618 = vld [vmem:[#allocation2 + $0x153] sm:$0xff]
      %v3619 = vld [vmem:[#allocation2 + $0x16b] sm:$0xff]
      %v3620 = vld [vmem:[#allocation2 + $0x173] sm:$0xff]
      %v3621 = vld [vmem:[#allocation2 + $0x18b] sm:$0xff]
      %v3622 = vld [vmem:[#allocation2 + $0x193] sm:$0xff]
      %v3623 = vld [vmem:[#allocation2 + $0x1ab] sm:$0xff]
      %v3624 = vld [vmem:[#allocation2 + $0x1b3] sm:$0xff]
      %v3625 = vld [vmem:[#allocation2 + $0x1cb] sm:$0xff]
      %v3626 = vld [vmem:[#allocation2 + $0x1d3] sm:$0xff]
      %v3627 = vld [vmem:[#allocation2 + $0x1eb] sm:$0xff]
      %v3628 = vld [vmem:[#allocation2 + $0x1f3] sm:$0xff]
      %v3629 = vld [vmem:[#allocation2 + $0x20b] sm:$0xff]
      %v3630 = vld [vmem:[#allocation2 + $0x213] sm:$0xff]
      %v3631 = vld [vmem:[#allocation2 + $0x22b] sm:$0xff]
      %v3632 = vld [vmem:[#allocation2 + $0x233] sm:$0xff]
      %v3633 = vld [vmem:[#allocation2 + $0x24b] sm:$0xff]
      %v3634 = vld [vmem:[#allocation2 + $0x253] sm:$0xff]
      %v3635 = vld [vmem:[#allocation2 + $0x26b] sm:$0xff]
      %v3636 = vld [vmem:[#allocation2 + $0x273] sm:$0xff]
      %v3637 = vld [vmem:[#allocation2 + $0x28b] sm:$0xff]
      %v3638 = vld [vmem:[#allocation2 + $0x293] sm:$0xff]
      %v3639 = vld [vmem:[#allocation2 + $0x2ab] sm:$0xff]
      %v3640 = vld [vmem:[#allocation2 + $0x2b3] sm:$0xff]
      %v3641 = vld [vmem:[%s1 + $0x6] sm:$0x1]
      %v3642 = vlaneseq
      %v3643 = vshrl.u32 %v3642, 7
      %v3644 = vsub.s32 0, %v3643
      %v3645 = vrot.slane %v3641, %v3644
      %v3646 = vmul.f32 %v3597, %v3645
      %v3647 = vmul.f32 %v3598, %v3645
      %v3648 = vmul.f32 %v3599, %v3645
      %v3649 = vmul.f32 %v3600, %v3645
      %v3650 = vmul.f32 %v3601, %v3645
      %v3651 = vmul.f32 %v3602, %v3645
      %v3652 = vmul.f32 %v3603, %v3645
      %v3653 = vmul.f32 %v3604, %v3645
      %v3654 = vmul.f32 %v3605, %v3645
      %v3655 = vmul.f32 %v3606, %v3645
      %v3656 = vmul.f32 %v3607, %v3645
      %v3657 = vmul.f32 %v3608, %v3645
      %v3658 = vmul.f32 %v3609, %v3645
      %v3659 = vmul.f32 %v3610, %v3645
      %v3660 = vmul.f32 %v3611, %v3645
      %v3661 = vmul.f32 %v3612, %v3645
      %v3662 = vmul.f32 %v3613, %v3645
      %v3663 = vmul.f32 %v3614, %v3645
      %v3664 = vmul.f32 %v3615, %v3645
      %v3665 = vmul.f32 %v3616, %v3645
      %v3666 = vmul.f32 %v3617, %v3645
      %v3667 = vmul.f32 %v3618, %v3645
      %v3668 = vmul.f32 %v3619, %v3645
      %v3669 = vmul.f32 %v3620, %v3645
      %v3670 = vmul.f32 %v3621, %v3645
      %v3671 = vmul.f32 %v3622, %v3645
      %v3672 = vmul.f32 %v3623, %v3645
      %v3673 = vmul.f32 %v3624, %v3645
      %v3674 = vmul.f32 %v3625, %v3645
      %v3675 = vmul.f32 %v3626, %v3645
      %v3676 = vmul.f32 %v3627, %v3645
      %v3677 = vmul.f32 %v3628, %v3645
      %v3678 = vadd.f32 %v3565, %v3646
      %v3679 = vadd.f32 %v3566, %v3647
      %v3680 = vadd.f32 %v3567, %v3648
      %v3681 = vadd.f32 %v3568, %v3649
      %v3682 = vadd.f32 %v3569, %v3650
      %v3683 = vadd.f32 %v3570, %v3651
      %v3684 = vadd.f32 %v3571, %v3652
      %v3685 = vadd.f32 %v3572, %v3653
      %v3686 = vadd.f32 %v3573, %v3654
      %v3687 = vadd.f32 %v3574, %v3655
      %v3688 = vadd.f32 %v3575, %v3656
      %v3689 = vadd.f32 %v3576, %v3657
      %v3690 = vadd.f32 %v3577, %v3658
      %v3691 = vadd.f32 %v3578, %v3659
      %v3692 = vadd.f32 %v3579, %v3660
      %v3693 = vadd.f32 %v3580, %v3661
      %v3694 = vadd.f32 %v3581, %v3662
      %v3695 = vadd.f32 %v3582, %v3663
      %v3696 = vadd.f32 %v3583, %v3664
      %v3697 = vadd.f32 %v3584, %v3665
      %v3698 = vadd.f32 %v3585, %v3666
      %v3699 = vadd.f32 %v3586, %v3667
      %v3700 = vadd.f32 %v3587, %v3668
      %v3701 = vadd.f32 %v3588, %v3669
      %v3702 = vadd.f32 %v3589, %v3670
      %v3703 = vadd.f32 %v3590, %v3671
      %v3704 = vadd.f32 %v3591, %v3672
      %v3705 = vadd.f32 %v3592, %v3673
      %v3706 = vadd.f32 %v3593, %v3674
      %v3707 = vadd.f32 %v3594, %v3675
      %v3708 = vadd.f32 %v3595, %v3676
      %v3709 = vadd.f32 %v3596, %v3677
      %v3710 = vld [vmem:[%s542 + $0x6] sm:$0x1]
      %v3711 = vlaneseq
      %v3712 = vshrl.u32 %v3711, 7
      %v3713 = vsub.s32 0, %v3712
      %v3714 = vrot.slane %v3710, %v3713
      %v3715 = vmul.f32 %v3599, %v3714
      %v3716 = vmul.f32 %v3600, %v3714
      %v3717 = vmul.f32 %v3601, %v3714
      %v3718 = vmul.f32 %v3602, %v3714
      %v3719 = vmul.f32 %v3603, %v3714
      %v3720 = vmul.f32 %v3604, %v3714
      %v3721 = vmul.f32 %v3605, %v3714
      %v3722 = vmul.f32 %v3606, %v3714
      %v3723 = vmul.f32 %v3607, %v3714
      %v3724 = vmul.f32 %v3608, %v3714
      %v3725 = vmul.f32 %v3609, %v3714
      %v3726 = vmul.f32 %v3610, %v3714
      %v3727 = vmul.f32 %v3611, %v3714
      %v3728 = vmul.f32 %v3612, %v3714
      %v3729 = vmul.f32 %v3613, %v3714
      %v3730 = vmul.f32 %v3614, %v3714
      %v3731 = vmul.f32 %v3615, %v3714
      %v3732 = vmul.f32 %v3616, %v3714
      %v3733 = vmul.f32 %v3617, %v3714
      %v3734 = vmul.f32 %v3618, %v3714
      %v3735 = vmul.f32 %v3619, %v3714
      %v3736 = vmul.f32 %v3620, %v3714
      %v3737 = vmul.f32 %v3621, %v3714
      %v3738 = vmul.f32 %v3622, %v3714
      %v3739 = vmul.f32 %v3623, %v3714
      %v3740 = vmul.f32 %v3624, %v3714
      %v3741 = vmul.f32 %v3625, %v3714
      %v3742 = vmul.f32 %v3626, %v3714
      %v3743 = vmul.f32 %v3627, %v3714
      %v3744 = vmul.f32 %v3628, %v3714
      %v3745 = vmul.f32 %v3629, %v3714
      %v3746 = vmul.f32 %v3630, %v3714
      %v3747 = vadd.f32 %v3678, %v3715
      %v3748 = vadd.f32 %v3679, %v3716
      %v3749 = vadd.f32 %v3680, %v3717
      %v3750 = vadd.f32 %v3681, %v3718
      %v3751 = vadd.f32 %v3682, %v3719
      %v3752 = vadd.f32 %v3683, %v3720
      %v3753 = vadd.f32 %v3684, %v3721
      %v3754 = vadd.f32 %v3685, %v3722
      %v3755 = vadd.f32 %v3686, %v3723
      %v3756 = vadd.f32 %v3687, %v3724
      %v3757 = vadd.f32 %v3688, %v3725
      %v3758 = vadd.f32 %v3689, %v3726
      %v3759 = vadd.f32 %v3690, %v3727
      %v3760 = vadd.f32 %v3691, %v3728
      %v3761 = vadd.f32 %v3692, %v3729
      %v3762 = vadd.f32 %v3693, %v3730
      %v3763 = vadd.f32 %v3694, %v3731
      %v3764 = vadd.f32 %v3695, %v3732
      %v3765 = vadd.f32 %v3696, %v3733
      %v3766 = vadd.f32 %v3697, %v3734
      %v3767 = vadd.f32 %v3698, %v3735
      %v3768 = vadd.f32 %v3699, %v3736
      %v3769 = vadd.f32 %v3700, %v3737
      %v3770 = vadd.f32 %v3701, %v3738
      %v3771 = vadd.f32 %v3702, %v3739
      %v3772 = vadd.f32 %v3703, %v3740
      %v3773 = vadd.f32 %v3704, %v3741
      %v3774 = vadd.f32 %v3705, %v3742
      %v3775 = vadd.f32 %v3706, %v3743
      %v3776 = vadd.f32 %v3707, %v3744
      %v3777 = vadd.f32 %v3708, %v3745
      %v3778 = vadd.f32 %v3709, %v3746
      %v3779 = vld [vmem:[%s612 + $0x6] sm:$0x1]
      %v3780 = vlaneseq
      %v3781 = vshrl.u32 %v3780, 7
      %v3782 = vsub.s32 0, %v3781
      %v3783 = vrot.slane %v3779, %v3782
      %v3784 = vmul.f32 %v3601, %v3783
      %v3785 = vmul.f32 %v3602, %v3783
      %v3786 = vmul.f32 %v3603, %v3783
      %v3787 = vmul.f32 %v3604, %v3783
      %v3788 = vmul.f32 %v3605, %v3783
      %v3789 = vmul.f32 %v3606, %v3783
      %v3790 = vmul.f32 %v3607, %v3783
      %v3791 = vmul.f32 %v3608, %v3783
      %v3792 = vmul.f32 %v3609, %v3783
      %v3793 = vmul.f32 %v3610, %v3783
      %v3794 = vmul.f32 %v3611, %v3783
      %v3795 = vmul.f32 %v3612, %v3783
      %v3796 = vmul.f32 %v3613, %v3783
      %v3797 = vmul.f32 %v3614, %v3783
      %v3798 = vmul.f32 %v3615, %v3783
      %v3799 = vmul.f32 %v3616, %v3783
      %v3800 = vmul.f32 %v3617, %v3783
      %v3801 = vmul.f32 %v3618, %v3783
      %v3802 = vmul.f32 %v3619, %v3783
      %v3803 = vmul.f32 %v3620, %v3783
      %v3804 = vmul.f32 %v3621, %v3783
      %v3805 = vmul.f32 %v3622, %v3783
      %v3806 = vmul.f32 %v3623, %v3783
      %v3807 = vmul.f32 %v3624, %v3783
      %v3808 = vmul.f32 %v3625, %v3783
      %v3809 = vmul.f32 %v3626, %v3783
      %v3810 = vmul.f32 %v3627, %v3783
      %v3811 = vmul.f32 %v3628, %v3783
      %v3812 = vmul.f32 %v3629, %v3783
      %v3813 = vmul.f32 %v3630, %v3783
      %v3814 = vmul.f32 %v3631, %v3783
      %v3815 = vmul.f32 %v3632, %v3783
      %v3816 = vadd.f32 %v3747, %v3784
      %v3817 = vadd.f32 %v3748, %v3785
      %v3818 = vadd.f32 %v3749, %v3786
      %v3819 = vadd.f32 %v3750, %v3787
      %v3820 = vadd.f32 %v3751, %v3788
      %v3821 = vadd.f32 %v3752, %v3789
      %v3822 = vadd.f32 %v3753, %v3790
      %v3823 = vadd.f32 %v3754, %v3791
      %v3824 = vadd.f32 %v3755, %v3792
      %v3825 = vadd.f32 %v3756, %v3793
      %v3826 = vadd.f32 %v3757, %v3794
      %v3827 = vadd.f32 %v3758, %v3795
      %v3828 = vadd.f32 %v3759, %v3796
      %v3829 = vadd.f32 %v3760, %v3797
      %v3830 = vadd.f32 %v3761, %v3798
      %v3831 = vadd.f32 %v3762, %v3799
      %v3832 = vadd.f32 %v3763, %v3800
      %v3833 = vadd.f32 %v3764, %v3801
      %v3834 = vadd.f32 %v3765, %v3802
      %v3835 = vadd.f32 %v3766, %v3803
      %v3836 = vadd.f32 %v3767, %v3804
      %v3837 = vadd.f32 %v3768, %v3805
      %v3838 = vadd.f32 %v3769, %v3806
      %v3839 = vadd.f32 %v3770, %v3807
      %v3840 = vadd.f32 %v3771, %v3808
      %v3841 = vadd.f32 %v3772, %v3809
      %v3842 = vadd.f32 %v3773, %v3810
      %v3843 = vadd.f32 %v3774, %v3811
      %v3844 = vadd.f32 %v3775, %v3812
      %v3845 = vadd.f32 %v3776, %v3813
      %v3846 = vadd.f32 %v3777, %v3814
      %v3847 = vadd.f32 %v3778, %v3815
      %v3848 = vld [vmem:[%s682 + $0x6] sm:$0x1]
      %v3849 = vlaneseq
      %v3850 = vshrl.u32 %v3849, 7
      %v3851 = vsub.s32 0, %v3850
      %v3852 = vrot.slane %v3848, %v3851
      %v3853 = vmul.f32 %v3603, %v3852
      %v3854 = vmul.f32 %v3604, %v3852
      %v3855 = vmul.f32 %v3605, %v3852
      %v3856 = vmul.f32 %v3606, %v3852
      %v3857 = vmul.f32 %v3607, %v3852
      %v3858 = vmul.f32 %v3608, %v3852
      %v3859 = vmul.f32 %v3609, %v3852
      %v3860 = vmul.f32 %v3610, %v3852
      %v3861 = vmul.f32 %v3611, %v3852
      %v3862 = vmul.f32 %v3612, %v3852
      %v3863 = vmul.f32 %v3613, %v3852
      %v3864 = vmul.f32 %v3614, %v3852
      %v3865 = vmul.f32 %v3615, %v3852
      %v3866 = vmul.f32 %v3616, %v3852
      %v3867 = vmul.f32 %v3617, %v3852
      %v3868 = vmul.f32 %v3618, %v3852
      %v3869 = vmul.f32 %v3619, %v3852
      %v3870 = vmul.f32 %v3620, %v3852
      %v3871 = vmul.f32 %v3621, %v3852
      %v3872 = vmul.f32 %v3622, %v3852
      %v3873 = vmul.f32 %v3623, %v3852
      %v3874 = vmul.f32 %v3624, %v3852
      %v3875 = vmul.f32 %v3625, %v3852
      %v3876 = vmul.f32 %v3626, %v3852
      %v3877 = vmul.f32 %v3627, %v3852
      %v3878 = vmul.f32 %v3628, %v3852
      %v3879 = vmul.f32 %v3629, %v3852
      %v3880 = vmul.f32 %v3630, %v3852
      %v3881 = vmul.f32 %v3631, %v3852
      %v3882 = vmul.f32 %v3632, %v3852
      %v3883 = vmul.f32 %v3633, %v3852
      %v3884 = vmul.f32 %v3634, %v3852
      %v3885 = vadd.f32 %v3816, %v3853
      %v3886 = vadd.f32 %v3817, %v3854
      %v3887 = vadd.f32 %v3818, %v3855
      %v3888 = vadd.f32 %v3819, %v3856
      %v3889 = vadd.f32 %v3820, %v3857
      %v3890 = vadd.f32 %v3821, %v3858
      %v3891 = vadd.f32 %v3822, %v3859
      %v3892 = vadd.f32 %v3823, %v3860
      %v3893 = vadd.f32 %v3824, %v3861
      %v3894 = vadd.f32 %v3825, %v3862
      %v3895 = vadd.f32 %v3826, %v3863
      %v3896 = vadd.f32 %v3827, %v3864
      %v3897 = vadd.f32 %v3828, %v3865
      %v3898 = vadd.f32 %v3829, %v3866
      %v3899 = vadd.f32 %v3830, %v3867
      %v3900 = vadd.f32 %v3831, %v3868
      %v3901 = vadd.f32 %v3832, %v3869
      %v3902 = vadd.f32 %v3833, %v3870
      %v3903 = vadd.f32 %v3834, %v3871
      %v3904 = vadd.f32 %v3835, %v3872
      %v3905 = vadd.f32 %v3836, %v3873
      %v3906 = vadd.f32 %v3837, %v3874
      %v3907 = vadd.f32 %v3838, %v3875
      %v3908 = vadd.f32 %v3839, %v3876
      %v3909 = vadd.f32 %v3840, %v3877
      %v3910 = vadd.f32 %v3841, %v3878
      %v3911 = vadd.f32 %v3842, %v3879
      %v3912 = vadd.f32 %v3843, %v3880
      %v3913 = vadd.f32 %v3844, %v3881
      %v3914 = vadd.f32 %v3845, %v3882
      %v3915 = vadd.f32 %v3846, %v3883
      %v3916 = vadd.f32 %v3847, %v3884
      %v3917 = vld [vmem:[%s752 + $0x6] sm:$0x1]
      %v3918 = vlaneseq
      %v3919 = vshrl.u32 %v3918, 7
      %v3920 = vsub.s32 0, %v3919
      %v3921 = vrot.slane %v3917, %v3920
      %v3922 = vmul.f32 %v3605, %v3921
      %v3923 = vmul.f32 %v3606, %v3921
      %v3924 = vmul.f32 %v3607, %v3921
      %v3925 = vmul.f32 %v3608, %v3921
      %v3926 = vmul.f32 %v3609, %v3921
      %v3927 = vmul.f32 %v3610, %v3921
      %v3928 = vmul.f32 %v3611, %v3921
      %v3929 = vmul.f32 %v3612, %v3921
      %v3930 = vmul.f32 %v3613, %v3921
      %v3931 = vmul.f32 %v3614, %v3921
      %v3932 = vmul.f32 %v3615, %v3921
      %v3933 = vmul.f32 %v3616, %v3921
      %v3934 = vmul.f32 %v3617, %v3921
      %v3935 = vmul.f32 %v3618, %v3921
      %v3936 = vmul.f32 %v3619, %v3921
      %v3937 = vmul.f32 %v3620, %v3921
      %v3938 = vmul.f32 %v3621, %v3921
      %v3939 = vmul.f32 %v3622, %v3921
      %v3940 = vmul.f32 %v3623, %v3921
      %v3941 = vmul.f32 %v3624, %v3921
      %v3942 = vmul.f32 %v3625, %v3921
      %v3943 = vmul.f32 %v3626, %v3921
      %v3944 = vmul.f32 %v3627, %v3921
      %v3945 = vmul.f32 %v3628, %v3921
      %v3946 = vmul.f32 %v3629, %v3921
      %v3947 = vmul.f32 %v3630, %v3921
      %v3948 = vmul.f32 %v3631, %v3921
      %v3949 = vmul.f32 %v3632, %v3921
      %v3950 = vmul.f32 %v3633, %v3921
      %v3951 = vmul.f32 %v3634, %v3921
      %v3952 = vmul.f32 %v3635, %v3921
      %v3953 = vmul.f32 %v3636, %v3921
      %v3954 = vadd.f32 %v3885, %v3922
      %v3955 = vadd.f32 %v3886, %v3923
      %v3956 = vadd.f32 %v3887, %v3924
      %v3957 = vadd.f32 %v3888, %v3925
      %v3958 = vadd.f32 %v3889, %v3926
      %v3959 = vadd.f32 %v3890, %v3927
      %v3960 = vadd.f32 %v3891, %v3928
      %v3961 = vadd.f32 %v3892, %v3929
      %v3962 = vadd.f32 %v3893, %v3930
      %v3963 = vadd.f32 %v3894, %v3931
      %v3964 = vadd.f32 %v3895, %v3932
      %v3965 = vadd.f32 %v3896, %v3933
      %v3966 = vadd.f32 %v3897, %v3934
      %v3967 = vadd.f32 %v3898, %v3935
      %v3968 = vadd.f32 %v3899, %v3936
      %v3969 = vadd.f32 %v3900, %v3937
      %v3970 = vadd.f32 %v3901, %v3938
      %v3971 = vadd.f32 %v3902, %v3939
      %v3972 = vadd.f32 %v3903, %v3940
      %v3973 = vadd.f32 %v3904, %v3941
      %v3974 = vadd.f32 %v3905, %v3942
      %v3975 = vadd.f32 %v3906, %v3943
      %v3976 = vadd.f32 %v3907, %v3944
      %v3977 = vadd.f32 %v3908, %v3945
      %v3978 = vadd.f32 %v3909, %v3946
      %v3979 = vadd.f32 %v3910, %v3947
      %v3980 = vadd.f32 %v3911, %v3948
      %v3981 = vadd.f32 %v3912, %v3949
      %v3982 = vadd.f32 %v3913, %v3950
      %v3983 = vadd.f32 %v3914, %v3951
      %v3984 = vadd.f32 %v3915, %v3952
      %v3985 = vadd.f32 %v3916, %v3953
      %v3986 = vld [vmem:[%s822 + $0x6] sm:$0x1]
      %v3987 = vlaneseq
      %v3988 = vshrl.u32 %v3987, 7
      %v3989 = vsub.s32 0, %v3988
      %v3990 = vrot.slane %v3986, %v3989
      %v3991 = vmul.f32 %v3607, %v3990
      %v3992 = vmul.f32 %v3608, %v3990
      %v3993 = vmul.f32 %v3609, %v3990
      %v3994 = vmul.f32 %v3610, %v3990
      %v3995 = vmul.f32 %v3611, %v3990
      %v3996 = vmul.f32 %v3612, %v3990
      %v3997 = vmul.f32 %v3613, %v3990
      %v3998 = vmul.f32 %v3614, %v3990
      %v3999 = vmul.f32 %v3615, %v3990
      %v4000 = vmul.f32 %v3616, %v3990
      %v4001 = vmul.f32 %v3617, %v3990
      %v4002 = vmul.f32 %v3618, %v3990
      %v4003 = vmul.f32 %v3619, %v3990
      %v4004 = vmul.f32 %v3620, %v3990
      %v4005 = vmul.f32 %v3621, %v3990
      %v4006 = vmul.f32 %v3622, %v3990
      %v4007 = vmul.f32 %v3623, %v3990
      %v4008 = vmul.f32 %v3624, %v3990
      %v4009 = vmul.f32 %v3625, %v3990
      %v4010 = vmul.f32 %v3626, %v3990
      %v4011 = vmul.f32 %v3627, %v3990
      %v4012 = vmul.f32 %v3628, %v3990
      %v4013 = vmul.f32 %v3629, %v3990
      %v4014 = vmul.f32 %v3630, %v3990
      %v4015 = vmul.f32 %v3631, %v3990
      %v4016 = vmul.f32 %v3632, %v3990
      %v4017 = vmul.f32 %v3633, %v3990
      %v4018 = vmul.f32 %v3634, %v3990
      %v4019 = vmul.f32 %v3635, %v3990
      %v4020 = vmul.f32 %v3636, %v3990
      %v4021 = vmul.f32 %v3637, %v3990
      %v4022 = vmul.f32 %v3638, %v3990
      %v4023 = vadd.f32 %v3954, %v3991
      %v4024 = vadd.f32 %v3955, %v3992
      %v4025 = vadd.f32 %v3956, %v3993
      %v4026 = vadd.f32 %v3957, %v3994
      %v4027 = vadd.f32 %v3958, %v3995
      %v4028 = vadd.f32 %v3959, %v3996
      %v4029 = vadd.f32 %v3960, %v3997
      %v4030 = vadd.f32 %v3961, %v3998
      %v4031 = vadd.f32 %v3962, %v3999
      %v4032 = vadd.f32 %v3963, %v4000
      %v4033 = vadd.f32 %v3964, %v4001
      %v4034 = vadd.f32 %v3965, %v4002
      %v4035 = vadd.f32 %v3966, %v4003
      %v4036 = vadd.f32 %v3967, %v4004
      %v4037 = vadd.f32 %v3968, %v4005
      %v4038 = vadd.f32 %v3969, %v4006
      %v4039 = vadd.f32 %v3970, %v4007
      %v4040 = vadd.f32 %v3971, %v4008
      %v4041 = vadd.f32 %v3972, %v4009
      %v4042 = vadd.f32 %v3973, %v4010
      %v4043 = vadd.f32 %v3974, %v4011
      %v4044 = vadd.f32 %v3975, %v4012
      %v4045 = vadd.f32 %v3976, %v4013
      %v4046 = vadd.f32 %v3977, %v4014
      %v4047 = vadd.f32 %v3978, %v4015
      %v4048 = vadd.f32 %v3979, %v4016
      %v4049 = vadd.f32 %v3980, %v4017
      %v4050 = vadd.f32 %v3981, %v4018
      %v4051 = vadd.f32 %v3982, %v4019
      %v4052 = vadd.f32 %v3983, %v4020
      %v4053 = vadd.f32 %v3984, %v4021
      %v4054 = vadd.f32 %v3985, %v4022
      %v4055 = vld [vmem:[%s892 + $0x6] sm:$0x1]
      %v4056 = vlaneseq
      %v4057 = vshrl.u32 %v4056, 7
      %v4058 = vsub.s32 0, %v4057
      %v4059 = vrot.slane %v4055, %v4058
      %v4060 = vmul.f32 %v3609, %v4059
      %v4061 = vmul.f32 %v3610, %v4059
      %v4062 = vmul.f32 %v3611, %v4059
      %v4063 = vmul.f32 %v3612, %v4059
      %v4064 = vmul.f32 %v3613, %v4059
      %v4065 = vmul.f32 %v3614, %v4059
      %v4066 = vmul.f32 %v3615, %v4059
      %v4067 = vmul.f32 %v3616, %v4059
      %v4068 = vmul.f32 %v3617, %v4059
      %v4069 = vmul.f32 %v3618, %v4059
      %v4070 = vmul.f32 %v3619, %v4059
      %v4071 = vmul.f32 %v3620, %v4059
      %v4072 = vmul.f32 %v3621, %v4059
      %v4073 = vmul.f32 %v3622, %v4059
      %v4074 = vmul.f32 %v3623, %v4059
      %v4075 = vmul.f32 %v3624, %v4059
      %v4076 = vmul.f32 %v3625, %v4059
      %v4077 = vmul.f32 %v3626, %v4059
      %v4078 = vmul.f32 %v3627, %v4059
      %v4079 = vmul.f32 %v3628, %v4059
      %v4080 = vmul.f32 %v3629, %v4059
      %v4081 = vmul.f32 %v3630, %v4059
      %v4082 = vmul.f32 %v3631, %v4059
      %v4083 = vmul.f32 %v3632, %v4059
      %v4084 = vmul.f32 %v3633, %v4059
      %v4085 = vmul.f32 %v3634, %v4059
      %v4086 = vmul.f32 %v3635, %v4059
      %v4087 = vmul.f32 %v3636, %v4059
      %v4088 = vmul.f32 %v3637, %v4059
      %v4089 = vmul.f32 %v3638, %v4059
      %v4090 = vmul.f32 %v3639, %v4059
      %v4091 = vmul.f32 %v3640, %v4059
      %v4092 = vadd.f32 %v4023, %v4060
      %v4093 = vadd.f32 %v4024, %v4061
      %v4094 = vadd.f32 %v4025, %v4062
      %v4095 = vadd.f32 %v4026, %v4063
      %v4096 = vadd.f32 %v4027, %v4064
      %v4097 = vadd.f32 %v4028, %v4065
      %v4098 = vadd.f32 %v4029, %v4066
      %v4099 = vadd.f32 %v4030, %v4067
      %v4100 = vadd.f32 %v4031, %v4068
      %v4101 = vadd.f32 %v4032, %v4069
      %v4102 = vadd.f32 %v4033, %v4070
      %v4103 = vadd.f32 %v4034, %v4071
      %v4104 = vadd.f32 %v4035, %v4072
      %v4105 = vadd.f32 %v4036, %v4073
      %v4106 = vadd.f32 %v4037, %v4074
      %v4107 = vadd.f32 %v4038, %v4075
      %v4108 = vadd.f32 %v4039, %v4076
      %v4109 = vadd.f32 %v4040, %v4077
      %v4110 = vadd.f32 %v4041, %v4078
      %v4111 = vadd.f32 %v4042, %v4079
      %v4112 = vadd.f32 %v4043, %v4080
      %v4113 = vadd.f32 %v4044, %v4081
      %v4114 = vadd.f32 %v4045, %v4082
      %v4115 = vadd.f32 %v4046, %v4083
      %v4116 = vadd.f32 %v4047, %v4084
      %v4117 = vadd.f32 %v4048, %v4085
      %v4118 = vadd.f32 %v4049, %v4086
      %v4119 = vadd.f32 %v4050, %v4087
      %v4120 = vadd.f32 %v4051, %v4088
      %v4121 = vadd.f32 %v4052, %v4089
      %v4122 = vadd.f32 %v4053, %v4090
      %v4123 = vadd.f32 %v4054, %v4091
      %v4125 = vlaneseq
      %v4126 = vshrl.u32 %v4125, 7
      %v4127 = vsub.s32 0, %v4126
      %v4128 = vrot.slane %v426, %v4127
      %v4130 = vadd.f32 %v4092, %v4128
      %v4131 = vadd.f32 %v4093, %v4128
      %v4132 = vadd.f32 %v4094, %v4128
      %v4133 = vadd.f32 %v4095, %v4128
      %v4134 = vadd.f32 %v4096, %v4128
      %v4135 = vadd.f32 %v4097, %v4128
      %v4136 = vadd.f32 %v4098, %v4128
      %v4137 = vadd.f32 %v4099, %v4128
      %v4138 = vadd.f32 %v4100, %v4128
      %v4139 = vadd.f32 %v4101, %v4128
      %v4140 = vadd.f32 %v4102, %v4128
      %v4141 = vadd.f32 %v4103, %v4128
      %v4142 = vadd.f32 %v4104, %v4128
      %v4143 = vadd.f32 %v4105, %v4128
      %v4144 = vadd.f32 %v4106, %v4128
      %v4145 = vadd.f32 %v4107, %v4128
      %v4146 = vadd.f32 %v4108, %v4128
      %v4147 = vadd.f32 %v4109, %v4128
      %v4148 = vadd.f32 %v4110, %v4128
      %v4149 = vadd.f32 %v4111, %v4128
      %v4150 = vadd.f32 %v4112, %v4128
      %v4151 = vadd.f32 %v4113, %v4128
      %v4152 = vadd.f32 %v4114, %v4128
      %v4153 = vadd.f32 %v4115, %v4128
      %v4154 = vadd.f32 %v4116, %v4128
      %v4155 = vadd.f32 %v4117, %v4128
      %v4156 = vadd.f32 %v4118, %v4128
      %v4157 = vadd.f32 %v4119, %v4128
      %v4158 = vadd.f32 %v4120, %v4128
      %v4159 = vadd.f32 %v4121, %v4128
      %v4160 = vadd.f32 %v4122, %v4128
      %v4161 = vadd.f32 %v4123, %v4128
      %v4162 = vsel %vm307, %v4130, 0.0
      %4163 = vadd.xlane.f32.xlu0 %v4162
      %v4164 = vpop.xlane.xlu0 %4163
      %v4165 = vsel %vm307, %v4131, 0.0
      %4166 = vadd.xlane.f32.xlu0 %v4165
      %v4167 = vpop.xlane.xlu0 %4166
      %v4168 = vsel %vm307, %v4132, 0.0
      %4169 = vadd.xlane.f32.xlu0 %v4168
      %v4170 = vpop.xlane.xlu0 %4169
      %v4171 = vsel %vm307, %v4133, 0.0
      %4172 = vadd.xlane.f32.xlu0 %v4171
      %v4173 = vpop.xlane.xlu0 %4172
      %v4174 = vsel %vm307, %v4134, 0.0
      %4175 = vadd.xlane.f32.xlu0 %v4174
      %v4176 = vpop.xlane.xlu0 %4175
      %v4177 = vsel %vm307, %v4135, 0.0
      %4178 = vadd.xlane.f32.xlu0 %v4177
      %v4179 = vpop.xlane.xlu0 %4178
      %v4180 = vsel %vm307, %v4136, 0.0
      %4181 = vadd.xlane.f32.xlu0 %v4180
      %v4182 = vpop.xlane.xlu0 %4181
      %v4183 = vsel %vm307, %v4137, 0.0
      %4184 = vadd.xlane.f32.xlu0 %v4183
      %v4185 = vpop.xlane.xlu0 %4184
      %v4186 = vsel %vm307, %v4138, 0.0
      %4187 = vadd.xlane.f32.xlu0 %v4186
      %v4188 = vpop.xlane.xlu0 %4187
      %v4189 = vsel %vm307, %v4139, 0.0
      %4190 = vadd.xlane.f32.xlu0 %v4189
      %v4191 = vpop.xlane.xlu0 %4190
      %v4192 = vsel %vm307, %v4140, 0.0
      %4193 = vadd.xlane.f32.xlu0 %v4192
      %v4194 = vpop.xlane.xlu0 %4193
      %v4195 = vsel %vm307, %v4141, 0.0
      %4196 = vadd.xlane.f32.xlu0 %v4195
      %v4197 = vpop.xlane.xlu0 %4196
      %v4198 = vsel %vm307, %v4142, 0.0
      %4199 = vadd.xlane.f32.xlu0 %v4198
      %v4200 = vpop.xlane.xlu0 %4199
      %v4201 = vsel %vm307, %v4143, 0.0
      %4202 = vadd.xlane.f32.xlu0 %v4201
      %v4203 = vpop.xlane.xlu0 %4202
      %v4204 = vsel %vm307, %v4144, 0.0
      %4205 = vadd.xlane.f32.xlu0 %v4204
      %v4206 = vpop.xlane.xlu0 %4205
      %v4207 = vsel %vm307, %v4145, 0.0
      %4208 = vadd.xlane.f32.xlu0 %v4207
      %v4209 = vpop.xlane.xlu0 %4208
      %v4210 = vsel %vm307, %v4146, 0.0
      %4211 = vadd.xlane.f32.xlu0 %v4210
      %v4212 = vpop.xlane.xlu0 %4211
      %v4213 = vsel %vm307, %v4147, 0.0
      %4214 = vadd.xlane.f32.xlu0 %v4213
      %v4215 = vpop.xlane.xlu0 %4214
      %v4216 = vsel %vm307, %v4148, 0.0
      %4217 = vadd.xlane.f32.xlu0 %v4216
      %v4218 = vpop.xlane.xlu0 %4217
      %v4219 = vsel %vm307, %v4149, 0.0
      %4220 = vadd.xlane.f32.xlu0 %v4219
      %v4221 = vpop.xlane.xlu0 %4220
      %v4222 = vsel %vm307, %v4150, 0.0
      %4223 = vadd.xlane.f32.xlu0 %v4222
      %v4224 = vpop.xlane.xlu0 %4223
      %v4225 = vsel %vm307, %v4151, 0.0
      %4226 = vadd.xlane.f32.xlu0 %v4225
      %v4227 = vpop.xlane.xlu0 %4226
      %v4228 = vsel %vm307, %v4152, 0.0
      %4229 = vadd.xlane.f32.xlu0 %v4228
      %v4230 = vpop.xlane.xlu0 %4229
      %v4231 = vsel %vm307, %v4153, 0.0
      %4232 = vadd.xlane.f32.xlu0 %v4231
      %v4233 = vpop.xlane.xlu0 %4232
      %v4234 = vsel %vm307, %v4154, 0.0
      %4235 = vadd.xlane.f32.xlu0 %v4234
      %v4236 = vpop.xlane.xlu0 %4235
      %v4237 = vsel %vm307, %v4155, 0.0
      %4238 = vadd.xlane.f32.xlu0 %v4237
      %v4239 = vpop.xlane.xlu0 %4238
      %v4240 = vsel %vm307, %v4156, 0.0
      %4241 = vadd.xlane.f32.xlu0 %v4240
      %v4242 = vpop.xlane.xlu0 %4241
      %v4243 = vsel %vm307, %v4157, 0.0
      %4244 = vadd.xlane.f32.xlu0 %v4243
      %v4245 = vpop.xlane.xlu0 %4244
      %v4246 = vsel %vm307, %v4158, 0.0
      %4247 = vadd.xlane.f32.xlu0 %v4246
      %v4248 = vpop.xlane.xlu0 %4247
      %v4249 = vsel %vm307, %v4159, 0.0
      %4250 = vadd.xlane.f32.xlu0 %v4249
      %v4251 = vpop.xlane.xlu0 %4250
      %v4252 = vsel %vm307, %v4160, 0.0
      %4253 = vadd.xlane.f32.xlu0 %v4252
      %v4254 = vpop.xlane.xlu0 %4253
      %v4255 = vsel %vm307, %v4161, 0.0
      %4256 = vadd.xlane.f32.xlu0 %v4255
      %v4257 = vpop.xlane.xlu0 %4256
      %v4258 = vrcp.pop 4.0
      %v4259 = vmul.f32 %v4164, %v4258
      %v4260 = vmul.f32 %v4167, %v4258
      %v4261 = vmul.f32 %v4170, %v4258
      %v4262 = vmul.f32 %v4173, %v4258
      %v4263 = vmul.f32 %v4176, %v4258
      %v4264 = vmul.f32 %v4179, %v4258
      %v4265 = vmul.f32 %v4182, %v4258
      %v4266 = vmul.f32 %v4185, %v4258
      %v4267 = vmul.f32 %v4188, %v4258
      %v4268 = vmul.f32 %v4191, %v4258
      %v4269 = vmul.f32 %v4194, %v4258
      %v4270 = vmul.f32 %v4197, %v4258
      %v4271 = vmul.f32 %v4200, %v4258
      %v4272 = vmul.f32 %v4203, %v4258
      %v4273 = vmul.f32 %v4206, %v4258
      %v4274 = vmul.f32 %v4209, %v4258
      %v4275 = vmul.f32 %v4212, %v4258
      %v4276 = vmul.f32 %v4215, %v4258
      %v4277 = vmul.f32 %v4218, %v4258
      %v4278 = vmul.f32 %v4221, %v4258
      %v4279 = vmul.f32 %v4224, %v4258
      %v4280 = vmul.f32 %v4227, %v4258
      %v4281 = vmul.f32 %v4230, %v4258
      %v4282 = vmul.f32 %v4233, %v4258
      %v4283 = vmul.f32 %v4236, %v4258
      %v4284 = vmul.f32 %v4239, %v4258
      %v4285 = vmul.f32 %v4242, %v4258
      %v4286 = vmul.f32 %v4245, %v4258
      %v4287 = vmul.f32 %v4248, %v4258
      %v4288 = vmul.f32 %v4251, %v4258
      %v4289 = vmul.f32 %v4254, %v4258
      %v4290 = vmul.f32 %v4257, %v4258
      %v4291 = vsub.f32 %v4130, %v4259
      %v4292 = vsub.f32 %v4131, %v4260
      %v4293 = vsub.f32 %v4132, %v4261
      %v4294 = vsub.f32 %v4133, %v4262
      %v4295 = vsub.f32 %v4134, %v4263
      %v4296 = vsub.f32 %v4135, %v4264
      %v4297 = vsub.f32 %v4136, %v4265
      %v4298 = vsub.f32 %v4137, %v4266
      %v4299 = vsub.f32 %v4138, %v4267
      %v4300 = vsub.f32 %v4139, %v4268
      %v4301 = vsub.f32 %v4140, %v4269
      %v4302 = vsub.f32 %v4141, %v4270
      %v4303 = vsub.f32 %v4142, %v4271
      %v4304 = vsub.f32 %v4143, %v4272
      %v4305 = vsub.f32 %v4144, %v4273
      %v4306 = vsub.f32 %v4145, %v4274
      %v4307 = vsub.f32 %v4146, %v4275
      %v4308 = vsub.f32 %v4147, %v4276
      %v4309 = vsub.f32 %v4148, %v4277
      %v4310 = vsub.f32 %v4149, %v4278
      %v4311 = vsub.f32 %v4150, %v4279
      %v4312 = vsub.f32 %v4151, %v4280
      %v4313 = vsub.f32 %v4152, %v4281
      %v4314 = vsub.f32 %v4153, %v4282
      %v4315 = vsub.f32 %v4154, %v4283
      %v4316 = vsub.f32 %v4155, %v4284
      %v4317 = vsub.f32 %v4156, %v4285
      %v4318 = vsub.f32 %v4157, %v4286
      %v4319 = vsub.f32 %v4158, %v4287
      %v4320 = vsub.f32 %v4159, %v4288
      %v4321 = vsub.f32 %v4160, %v4289
      %v4322 = vsub.f32 %v4161, %v4290
      %v4323 = vmul.f32 %v4291, %v4291
      %v4324 = vmul.f32 %v4292, %v4292
      %v4325 = vmul.f32 %v4293, %v4293
      %v4326 = vmul.f32 %v4294, %v4294
      %v4327 = vmul.f32 %v4295, %v4295
      %v4328 = vmul.f32 %v4296, %v4296
      %v4329 = vmul.f32 %v4297, %v4297
      %v4330 = vmul.f32 %v4298, %v4298
      %v4331 = vmul.f32 %v4299, %v4299
      %v4332 = vmul.f32 %v4300, %v4300
      %v4333 = vmul.f32 %v4301, %v4301
      %v4334 = vmul.f32 %v4302, %v4302
      %v4335 = vmul.f32 %v4303, %v4303
      %v4336 = vmul.f32 %v4304, %v4304
      %v4337 = vmul.f32 %v4305, %v4305
      %v4338 = vmul.f32 %v4306, %v4306
      %v4339 = vmul.f32 %v4307, %v4307
      %v4340 = vmul.f32 %v4308, %v4308
      %v4341 = vmul.f32 %v4309, %v4309
      %v4342 = vmul.f32 %v4310, %v4310
      %v4343 = vmul.f32 %v4311, %v4311
      %v4344 = vmul.f32 %v4312, %v4312
      %v4345 = vmul.f32 %v4313, %v4313
      %v4346 = vmul.f32 %v4314, %v4314
      %v4347 = vmul.f32 %v4315, %v4315
      %v4348 = vmul.f32 %v4316, %v4316
      %v4349 = vmul.f32 %v4317, %v4317
      %v4350 = vmul.f32 %v4318, %v4318
      %v4351 = vmul.f32 %v4319, %v4319
      %v4352 = vmul.f32 %v4320, %v4320
      %v4353 = vmul.f32 %v4321, %v4321
      %v4354 = vmul.f32 %v4322, %v4322
      %v4355 = vsel %vm307, %v4323, 0.0
      %4356 = vadd.xlane.f32.xlu0 %v4355
      %v4357 = vpop.xlane.xlu0 %4356
      %v4358 = vsel %vm307, %v4324, 0.0
      %4359 = vadd.xlane.f32.xlu0 %v4358
      %v4360 = vpop.xlane.xlu0 %4359
      %v4361 = vsel %vm307, %v4325, 0.0
      %4362 = vadd.xlane.f32.xlu0 %v4361
      %v4363 = vpop.xlane.xlu0 %4362
      %v4364 = vsel %vm307, %v4326, 0.0
      %4365 = vadd.xlane.f32.xlu0 %v4364
      %v4366 = vpop.xlane.xlu0 %4365
      %v4367 = vsel %vm307, %v4327, 0.0
      %4368 = vadd.xlane.f32.xlu0 %v4367
      %v4369 = vpop.xlane.xlu0 %4368
      %v4370 = vsel %vm307, %v4328, 0.0
      %4371 = vadd.xlane.f32.xlu0 %v4370
      %v4372 = vpop.xlane.xlu0 %4371
      %v4373 = vsel %vm307, %v4329, 0.0
      %4374 = vadd.xlane.f32.xlu0 %v4373
      %v4375 = vpop.xlane.xlu0 %4374
      %v4376 = vsel %vm307, %v4330, 0.0
      %4377 = vadd.xlane.f32.xlu0 %v4376
      %v4378 = vpop.xlane.xlu0 %4377
      %v4379 = vsel %vm307, %v4331, 0.0
      %4380 = vadd.xlane.f32.xlu0 %v4379
      %v4381 = vpop.xlane.xlu0 %4380
      %v4382 = vsel %vm307, %v4332, 0.0
      %4383 = vadd.xlane.f32.xlu0 %v4382
      %v4384 = vpop.xlane.xlu0 %4383
      %v4385 = vsel %vm307, %v4333, 0.0
      %4386 = vadd.xlane.f32.xlu0 %v4385
      %v4387 = vpop.xlane.xlu0 %4386
      %v4388 = vsel %vm307, %v4334, 0.0
      %4389 = vadd.xlane.f32.xlu0 %v4388
      %v4390 = vpop.xlane.xlu0 %4389
      %v4391 = vsel %vm307, %v4335, 0.0
      %4392 = vadd.xlane.f32.xlu0 %v4391
      %v4393 = vpop.xlane.xlu0 %4392
      %v4394 = vsel %vm307, %v4336, 0.0
      %4395 = vadd.xlane.f32.xlu0 %v4394
      %v4396 = vpop.xlane.xlu0 %4395
      %v4397 = vsel %vm307, %v4337, 0.0
      %4398 = vadd.xlane.f32.xlu0 %v4397
      %v4399 = vpop.xlane.xlu0 %4398
      %v4400 = vsel %vm307, %v4338, 0.0
      %4401 = vadd.xlane.f32.xlu0 %v4400
      %v4402 = vpop.xlane.xlu0 %4401
      %v4403 = vsel %vm307, %v4339, 0.0
      %4404 = vadd.xlane.f32.xlu0 %v4403
      %v4405 = vpop.xlane.xlu0 %4404
      %v4406 = vsel %vm307, %v4340, 0.0
      %4407 = vadd.xlane.f32.xlu0 %v4406
      %v4408 = vpop.xlane.xlu0 %4407
      %v4409 = vsel %vm307, %v4341, 0.0
      %4410 = vadd.xlane.f32.xlu0 %v4409
      %v4411 = vpop.xlane.xlu0 %4410
      %v4412 = vsel %vm307, %v4342, 0.0
      %4413 = vadd.xlane.f32.xlu0 %v4412
      %v4414 = vpop.xlane.xlu0 %4413
      %v4415 = vsel %vm307, %v4343, 0.0
      %4416 = vadd.xlane.f32.xlu0 %v4415
      %v4417 = vpop.xlane.xlu0 %4416
      %v4418 = vsel %vm307, %v4344, 0.0
      %4419 = vadd.xlane.f32.xlu0 %v4418
      %v4420 = vpop.xlane.xlu0 %4419
      %v4421 = vsel %vm307, %v4345, 0.0
      %4422 = vadd.xlane.f32.xlu0 %v4421
      %v4423 = vpop.xlane.xlu0 %4422
      %v4424 = vsel %vm307, %v4346, 0.0
      %4425 = vadd.xlane.f32.xlu0 %v4424
      %v4426 = vpop.xlane.xlu0 %4425
      %v4427 = vsel %vm307, %v4347, 0.0
      %4428 = vadd.xlane.f32.xlu0 %v4427
      %v4429 = vpop.xlane.xlu0 %4428
      %v4430 = vsel %vm307, %v4348, 0.0
      %4431 = vadd.xlane.f32.xlu0 %v4430
      %v4432 = vpop.xlane.xlu0 %4431
      %v4433 = vsel %vm307, %v4349, 0.0
      %4434 = vadd.xlane.f32.xlu0 %v4433
      %v4435 = vpop.xlane.xlu0 %4434
      %v4436 = vsel %vm307, %v4350, 0.0
      %4437 = vadd.xlane.f32.xlu0 %v4436
      %v4438 = vpop.xlane.xlu0 %4437
      %v4439 = vsel %vm307, %v4351, 0.0
      %4440 = vadd.xlane.f32.xlu0 %v4439
      %v4441 = vpop.xlane.xlu0 %4440
      %v4442 = vsel %vm307, %v4352, 0.0
      %4443 = vadd.xlane.f32.xlu0 %v4442
      %v4444 = vpop.xlane.xlu0 %4443
      %v4445 = vsel %vm307, %v4353, 0.0
      %4446 = vadd.xlane.f32.xlu0 %v4445
      %v4447 = vpop.xlane.xlu0 %4446
      %v4448 = vsel %vm307, %v4354, 0.0
      %4449 = vadd.xlane.f32.xlu0 %v4448
      %v4450 = vpop.xlane.xlu0 %4449
      %v4451 = vmul.f32 %v4357, %v4258
      %v4452 = vmul.f32 %v4360, %v4258
      %v4453 = vmul.f32 %v4363, %v4258
      %v4454 = vmul.f32 %v4366, %v4258
      %v4455 = vmul.f32 %v4369, %v4258
      %v4456 = vmul.f32 %v4372, %v4258
      %v4457 = vmul.f32 %v4375, %v4258
      %v4458 = vmul.f32 %v4378, %v4258
      %v4459 = vmul.f32 %v4381, %v4258
      %v4460 = vmul.f32 %v4384, %v4258
      %v4461 = vmul.f32 %v4387, %v4258
      %v4462 = vmul.f32 %v4390, %v4258
      %v4463 = vmul.f32 %v4393, %v4258
      %v4464 = vmul.f32 %v4396, %v4258
      %v4465 = vmul.f32 %v4399, %v4258
      %v4466 = vmul.f32 %v4402, %v4258
      %v4467 = vmul.f32 %v4405, %v4258
      %v4468 = vmul.f32 %v4408, %v4258
      %v4469 = vmul.f32 %v4411, %v4258
      %v4470 = vmul.f32 %v4414, %v4258
      %v4471 = vmul.f32 %v4417, %v4258
      %v4472 = vmul.f32 %v4420, %v4258
      %v4473 = vmul.f32 %v4423, %v4258
      %v4474 = vmul.f32 %v4426, %v4258
      %v4475 = vmul.f32 %v4429, %v4258
      %v4476 = vmul.f32 %v4432, %v4258
      %v4477 = vmul.f32 %v4435, %v4258
      %v4478 = vmul.f32 %v4438, %v4258
      %v4479 = vmul.f32 %v4441, %v4258
      %v4480 = vmul.f32 %v4444, %v4258
      %v4481 = vmul.f32 %v4447, %v4258
      %v4482 = vmul.f32 %v4450, %v4258
      %v4483 = vadd.f32 %v4451, 1e-06
      %v4484 = vadd.f32 %v4452, 1e-06
      %v4485 = vadd.f32 %v4453, 1e-06
      %v4486 = vadd.f32 %v4454, 1e-06
      %v4487 = vadd.f32 %v4455, 1e-06
      %v4488 = vadd.f32 %v4456, 1e-06
      %v4489 = vadd.f32 %v4457, 1e-06
      %v4490 = vadd.f32 %v4458, 1e-06
      %v4491 = vadd.f32 %v4459, 1e-06
      %v4492 = vadd.f32 %v4460, 1e-06
      %v4493 = vadd.f32 %v4461, 1e-06
      %v4494 = vadd.f32 %v4462, 1e-06
      %v4495 = vadd.f32 %v4463, 1e-06
      %v4496 = vadd.f32 %v4464, 1e-06
      %v4497 = vadd.f32 %v4465, 1e-06
      %v4498 = vadd.f32 %v4466, 1e-06
      %v4499 = vadd.f32 %v4467, 1e-06
      %v4500 = vadd.f32 %v4468, 1e-06
      %v4501 = vadd.f32 %v4469, 1e-06
      %v4502 = vadd.f32 %v4470, 1e-06
      %v4503 = vadd.f32 %v4471, 1e-06
      %v4504 = vadd.f32 %v4472, 1e-06
      %v4505 = vadd.f32 %v4473, 1e-06
      %v4506 = vadd.f32 %v4474, 1e-06
      %v4507 = vadd.f32 %v4475, 1e-06
      %v4508 = vadd.f32 %v4476, 1e-06
      %v4509 = vadd.f32 %v4477, 1e-06
      %v4510 = vadd.f32 %v4478, 1e-06
      %v4511 = vadd.f32 %v4479, 1e-06
      %v4512 = vadd.f32 %v4480, 1e-06
      %v4513 = vadd.f32 %v4481, 1e-06
      %v4514 = vadd.f32 %v4482, 1e-06
      %v4515 = vrsqrt.pop %v4483
      %v4516 = vrsqrt.pop %v4484
      %v4517 = vrsqrt.pop %v4485
      %v4518 = vrsqrt.pop %v4486
      %v4519 = vrsqrt.pop %v4487
      %v4520 = vrsqrt.pop %v4488
      %v4521 = vrsqrt.pop %v4489
      %v4522 = vrsqrt.pop %v4490
      %v4523 = vrsqrt.pop %v4491
      %v4524 = vrsqrt.pop %v4492
      %v4525 = vrsqrt.pop %v4493
      %v4526 = vrsqrt.pop %v4494
      %v4527 = vrsqrt.pop %v4495
      %v4528 = vrsqrt.pop %v4496
      %v4529 = vrsqrt.pop %v4497
      %v4530 = vrsqrt.pop %v4498
      %v4531 = vrsqrt.pop %v4499
      %v4532 = vrsqrt.pop %v4500
      %v4533 = vrsqrt.pop %v4501
      %v4534 = vrsqrt.pop %v4502
      %v4535 = vrsqrt.pop %v4503
      %v4536 = vrsqrt.pop %v4504
      %v4537 = vrsqrt.pop %v4505
      %v4538 = vrsqrt.pop %v4506
      %v4539 = vrsqrt.pop %v4507
      %v4540 = vrsqrt.pop %v4508
      %v4541 = vrsqrt.pop %v4509
      %v4542 = vrsqrt.pop %v4510
      %v4543 = vrsqrt.pop %v4511
      %v4544 = vrsqrt.pop %v4512
      %v4545 = vrsqrt.pop %v4513
      %v4546 = vrsqrt.pop %v4514
      %v4547 = vmul.f32 %v4291, %v4515
      %v4548 = vmul.f32 %v4292, %v4516
      %v4549 = vmul.f32 %v4293, %v4517
      %v4550 = vmul.f32 %v4294, %v4518
      %v4551 = vmul.f32 %v4295, %v4519
      %v4552 = vmul.f32 %v4296, %v4520
      %v4553 = vmul.f32 %v4297, %v4521
      %v4554 = vmul.f32 %v4298, %v4522
      %v4555 = vmul.f32 %v4299, %v4523
      %v4556 = vmul.f32 %v4300, %v4524
      %v4557 = vmul.f32 %v4301, %v4525
      %v4558 = vmul.f32 %v4302, %v4526
      %v4559 = vmul.f32 %v4303, %v4527
      %v4560 = vmul.f32 %v4304, %v4528
      %v4561 = vmul.f32 %v4305, %v4529
      %v4562 = vmul.f32 %v4306, %v4530
      %v4563 = vmul.f32 %v4307, %v4531
      %v4564 = vmul.f32 %v4308, %v4532
      %v4565 = vmul.f32 %v4309, %v4533
      %v4566 = vmul.f32 %v4310, %v4534
      %v4567 = vmul.f32 %v4311, %v4535
      %v4568 = vmul.f32 %v4312, %v4536
      %v4569 = vmul.f32 %v4313, %v4537
      %v4570 = vmul.f32 %v4314, %v4538
      %v4571 = vmul.f32 %v4315, %v4539
      %v4572 = vmul.f32 %v4316, %v4540
      %v4573 = vmul.f32 %v4317, %v4541
      %v4574 = vmul.f32 %v4318, %v4542
      %v4575 = vmul.f32 %v4319, %v4543
      %v4576 = vmul.f32 %v4320, %v4544
      %v4577 = vmul.f32 %v4321, %v4545
      %v4578 = vmul.f32 %v4322, %v4546
      %v4579 = vpack.c.bf16 %v4548, %v4547
      %v4580 = vpack.c.bf16 %v4550, %v4549
      %v4581 = vpack.c.bf16 %v4552, %v4551
      %v4582 = vpack.c.bf16 %v4554, %v4553
      %v4583 = vpack.c.bf16 %v4556, %v4555
      %v4584 = vpack.c.bf16 %v4558, %v4557
      %v4585 = vpack.c.bf16 %v4560, %v4559
      %v4586 = vpack.c.bf16 %v4562, %v4561
      %v4587 = vpack.c.bf16 %v4564, %v4563
      %v4588 = vpack.c.bf16 %v4566, %v4565
      %v4589 = vpack.c.bf16 %v4568, %v4567
      %v4590 = vpack.c.bf16 %v4570, %v4569
      %v4591 = vpack.c.bf16 %v4572, %v4571
      %v4592 = vpack.c.bf16 %v4574, %v4573
      %v4593 = vpack.c.bf16 %v4576, %v4575
      %v4594 = vpack.c.bf16 %v4578, %v4577
      %v4596 = vlaneseq
      %v4597 = vshrl.u32 %v4596, 7
      %v4598 = vsub.s32 0, %v4597
      %v4599 = vrot.slane %v428, %v4598
      %v4602 = vsel %vm307, %v4579, 0
      %v4605 = vsel %vm307, %v4580, 0
      %v4608 = vsel %vm307, %v4581, 0
      %v4611 = vsel %vm307, %v4582, 0
      %v4614 = vsel %vm307, %v4583, 0
      %v4617 = vsel %vm307, %v4584, 0
      %v4620 = vsel %vm307, %v4585, 0
      %v4623 = vsel %vm307, %v4586, 0
      %v4626 = vsel %vm307, %v4587, 0
      %v4629 = vsel %vm307, %v4588, 0
      %v4632 = vsel %vm307, %v4589, 0
      %v4635 = vsel %vm307, %v4590, 0
      %v4638 = vsel %vm307, %v4591, 0
      %v4641 = vsel %vm307, %v4592, 0
      %v4644 = vsel %vm307, %v4593, 0
      %v4647 = vsel %vm307, %v4594, 0
      %vm4649 = vcmask 1041408
      %v4651 = vsel %vm4649, %v427, 0
      %4653 = vmatprep.subr.bf16.mxu0 0
      %4654 = vmatpush1.bf16.msra.mxu0 %v4651
      %4655 = vmatprep.subr.bf16.mxu0 0
      %4656 = vmatpush1.bf16.msra.mxu0 0
      %4657 = vmatprep.subr.bf16.mxu0 0
      %4658 = vmatpush1.bf16.msra.mxu0 0
      %4659 = vmatprep.subr.bf16.mxu0 0
      %4660 = vmatpush1.bf16.msra.mxu0 0
      %4661 = vmatprep.subr.bf16.mxu0 0
      %4662 = vmatpush1.bf16.msra.mxu0 0
      %4663 = vmatprep.subr.bf16.mxu0 0
      %4664 = vmatpush1.bf16.msra.mxu0 0
      %4665 = vmatprep.subr.bf16.mxu0 0
      %4666 = vmatpush1.bf16.msra.mxu0 0
      %4667 = vmatprep.subr.bf16.mxu0 0
      %4668 = vmatpush1.bf16.msra.mxu0 0
      %4669 = vmatprep.subr.bf16.mxu0 0
      %4670 = vmatpush1.bf16.msra.mxu0 0
      %4671 = vmatprep.subr.bf16.mxu0 0
      %4672 = vmatpush1.bf16.msra.mxu0 0
      %4673 = vmatprep.subr.bf16.mxu0 0
      %4674 = vmatpush1.bf16.msra.mxu0 0
      %4675 = vmatprep.subr.bf16.mxu0 0
      %4676 = vmatpush1.bf16.msra.mxu0 0
      %4677 = vmatprep.subr.bf16.mxu0 0
      %4678 = vmatpush1.bf16.msra.mxu0 0
      %4679 = vmatprep.subr.bf16.mxu0 0
      %4680 = vmatpush1.bf16.msra.mxu0 0
      %4681 = vmatprep.subr.bf16.mxu0 0
      %4682 = vmatpush1.bf16.msra.mxu0 0
      %4683 = vmatprep.subr.bf16.mxu0 0
      %4684 = vmatpush1.bf16.msra.mxu0 0
      %4685 = vmatprep.mubr.bf16.mxu0 0
      %4686 = vmatmul.mubr.bf16.gmra.mrb[0].mxu0 %v4602
      %v4687 = vpop.f32.mrb[0].mxu0
      %v4688 = vadd.f32 %v4599, %v4687
      %v4689 = vpop.f32.mrb[0].mxu0
      %v4690 = vpop.f32.mrb[0].mxu0
      %v4691 = vadd.f32 %v4599, %v4690
      %v4692 = vpop.f32.mrb[0].mxu0
      %4693 = vmatprep.mubr.bf16.mxu0 0
      %4694 = vmatmul.mubr.bf16.gmra.mrb[0].mxu0 %v4605
      %v4695 = vpop.f32.mrb[0].mxu0
      %v4696 = vadd.f32 %v4599, %v4695
      %v4697 = vpop.f32.mrb[0].mxu0
      %v4698 = vpop.f32.mrb[0].mxu0
      %v4699 = vadd.f32 %v4599, %v4698
      %v4700 = vpop.f32.mrb[0].mxu0
      %4701 = vmatprep.mubr.bf16.mxu0 0
      %4702 = vmatmul.mubr.bf16.gmra.mrb[0].mxu0 %v4608
      %v4703 = vpop.f32.mrb[0].mxu0
      %v4704 = vadd.f32 %v4599, %v4703
      %v4705 = vpop.f32.mrb[0].mxu0
      %v4706 = vpop.f32.mrb[0].mxu0
      %v4707 = vadd.f32 %v4599, %v4706
      %v4708 = vpop.f32.mrb[0].mxu0
      %4709 = vmatprep.mubr.bf16.mxu0 0
      %4710 = vmatmul.mubr.bf16.gmra.mrb[0].mxu0 %v4611
      %v4711 = vpop.f32.mrb[0].mxu0
      %v4712 = vadd.f32 %v4599, %v4711
      %v4713 = vpop.f32.mrb[0].mxu0
      %v4714 = vpop.f32.mrb[0].mxu0
      %v4715 = vadd.f32 %v4599, %v4714
      %v4716 = vpop.f32.mrb[0].mxu0
      %4717 = vmatprep.mubr.bf16.mxu0 0
      %4718 = vmatmul.mubr.bf16.gmra.mrb[0].mxu0 %v4614
      %v4719 = vpop.f32.mrb[0].mxu0
      %v4720 = vadd.f32 %v4599, %v4719
      %v4721 = vpop.f32.mrb[0].mxu0
      %v4722 = vpop.f32.mrb[0].mxu0
      %v4723 = vadd.f32 %v4599, %v4722
      %v4724 = vpop.f32.mrb[0].mxu0
      %4725 = vmatprep.mubr.bf16.mxu0 0
      %4726 = vmatmul.mubr.bf16.gmra.mrb[0].mxu0 %v4617
      %v4727 = vpop.f32.mrb[0].mxu0
      %v4728 = vadd.f32 %v4599, %v4727
      %v4729 = vpop.f32.mrb[0].mxu0
      %v4730 = vpop.f32.mrb[0].mxu0
      %v4731 = vadd.f32 %v4599, %v4730
      %v4732 = vpop.f32.mrb[0].mxu0
      %4733 = vmatprep.mubr.bf16.mxu0 0
      %4734 = vmatmul.mubr.bf16.gmra.mrb[0].mxu0 %v4620
      %v4735 = vpop.f32.mrb[0].mxu0
      %v4736 = vadd.f32 %v4599, %v4735
      %v4737 = vpop.f32.mrb[0].mxu0
      %v4738 = vpop.f32.mrb[0].mxu0
      %v4739 = vadd.f32 %v4599, %v4738
      %v4740 = vpop.f32.mrb[0].mxu0
      %4741 = vmatprep.mubr.bf16.mxu0 0
      %4742 = vmatmul.mubr.bf16.gmra.mrb[0].mxu0 %v4623
      %v4743 = vpop.f32.mrb[0].mxu0
      %v4744 = vadd.f32 %v4599, %v4743
      %v4745 = vpop.f32.mrb[0].mxu0
      %v4746 = vpop.f32.mrb[0].mxu0
      %v4747 = vadd.f32 %v4599, %v4746
      %v4748 = vpop.f32.mrb[0].mxu0
      %4749 = vmatprep.mubr.bf16.mxu0 0
      %4750 = vmatmul.mubr.bf16.gmra.mrb[0].mxu0 %v4626
      %v4751 = vpop.f32.mrb[0].mxu0
      %v4752 = vadd.f32 %v4599, %v4751
      %v4753 = vpop.f32.mrb[0].mxu0
      %v4754 = vpop.f32.mrb[0].mxu0
      %v4755 = vadd.f32 %v4599, %v4754
      %v4756 = vpop.f32.mrb[0].mxu0
      %4757 = vmatprep.mubr.bf16.mxu0 0
      %4758 = vmatmul.mubr.bf16.gmra.mrb[0].mxu0 %v4629
      %v4759 = vpop.f32.mrb[0].mxu0
      %v4760 = vadd.f32 %v4599, %v4759
      %v4761 = vpop.f32.mrb[0].mxu0
      %v4762 = vpop.f32.mrb[0].mxu0
      %v4763 = vadd.f32 %v4599, %v4762
      %v4764 = vpop.f32.mrb[0].mxu0
      %4765 = vmatprep.mubr.bf16.mxu0 0
      %4766 = vmatmul.mubr.bf16.gmra.mrb[0].mxu0 %v4632
      %v4767 = vpop.f32.mrb[0].mxu0
      %v4768 = vadd.f32 %v4599, %v4767
      %v4769 = vpop.f32.mrb[0].mxu0
      %v4770 = vpop.f32.mrb[0].mxu0
      %v4771 = vadd.f32 %v4599, %v4770
      %v4772 = vpop.f32.mrb[0].mxu0
      %4773 = vmatprep.mubr.bf16.mxu0 0
      %4774 = vmatmul.mubr.bf16.gmra.mrb[0].mxu0 %v4635
      %v4775 = vpop.f32.mrb[0].mxu0
      %v4776 = vadd.f32 %v4599, %v4775
      %v4777 = vpop.f32.mrb[0].mxu0
      %v4778 = vpop.f32.mrb[0].mxu0
      %v4779 = vadd.f32 %v4599, %v4778
      %v4780 = vpop.f32.mrb[0].mxu0
      %4781 = vmatprep.mubr.bf16.mxu0 0
      %4782 = vmatmul.mubr.bf16.gmra.mrb[0].mxu0 %v4638
      %v4783 = vpop.f32.mrb[0].mxu0
      %v4784 = vadd.f32 %v4599, %v4783
      %v4785 = vpop.f32.mrb[0].mxu0
      %v4786 = vpop.f32.mrb[0].mxu0
      %v4787 = vadd.f32 %v4599, %v4786
      %v4788 = vpop.f32.mrb[0].mxu0
      %4789 = vmatprep.mubr.bf16.mxu0 0
      %4790 = vmatmul.mubr.bf16.gmra.mrb[0].mxu0 %v4641
      %v4791 = vpop.f32.mrb[0].mxu0
      %v4792 = vadd.f32 %v4599, %v4791
      %v4793 = vpop.f32.mrb[0].mxu0
      %v4794 = vpop.f32.mrb[0].mxu0
      %v4795 = vadd.f32 %v4599, %v4794
      %v4796 = vpop.f32.mrb[0].mxu0
      %4797 = vmatprep.mubr.bf16.mxu0 0
      %4798 = vmatmul.mubr.bf16.gmra.mrb[0].mxu0 %v4644
      %v4799 = vpop.f32.mrb[0].mxu0
      %v4800 = vadd.f32 %v4599, %v4799
      %v4801 = vpop.f32.mrb[0].mxu0
      %v4802 = vpop.f32.mrb[0].mxu0
      %v4803 = vadd.f32 %v4599, %v4802
      %v4804 = vpop.f32.mrb[0].mxu0
      %4805 = vmatprep.mubr.bf16.mxu0 0
      %4806 = vmatmul.mubr.bf16.gmra.mrb[0].mxu0 %v4647
      %v4807 = vpop.f32.mrb[0].mxu0
      %v4808 = vadd.f32 %v4599, %v4807
      %v4809 = vpop.f32.mrb[0].mxu0
      %v4810 = vpop.f32.mrb[0].mxu0
      %v4811 = vadd.f32 %v4599, %v4810
      %v4812 = vpop.f32.mrb[0].mxu0
      %4813 = vdwg.mxu0
      %v4814 = vmul.f32 %v4688, 0.5
      %v4815 = vmul.f32 %v4691, 0.5
      %v4816 = vmul.f32 %v4696, 0.5
      %v4817 = vmul.f32 %v4699, 0.5
      %v4818 = vmul.f32 %v4704, 0.5
      %v4819 = vmul.f32 %v4707, 0.5
      %v4820 = vmul.f32 %v4712, 0.5
      %v4821 = vmul.f32 %v4715, 0.5
      %v4822 = vmul.f32 %v4720, 0.5
      %v4823 = vmul.f32 %v4723, 0.5
      %v4824 = vmul.f32 %v4728, 0.5
      %v4825 = vmul.f32 %v4731, 0.5
      %v4826 = vmul.f32 %v4736, 0.5
      %v4827 = vmul.f32 %v4739, 0.5
      %v4828 = vmul.f32 %v4744, 0.5
      %v4829 = vmul.f32 %v4747, 0.5
      %v4830 = vmul.f32 %v4752, 0.5
      %v4831 = vmul.f32 %v4755, 0.5
      %v4832 = vmul.f32 %v4760, 0.5
      %v4833 = vmul.f32 %v4763, 0.5
      %v4834 = vmul.f32 %v4768, 0.5
      %v4835 = vmul.f32 %v4771, 0.5
      %v4836 = vmul.f32 %v4776, 0.5
      %v4837 = vmul.f32 %v4779, 0.5
      %v4838 = vmul.f32 %v4784, 0.5
      %v4839 = vmul.f32 %v4787, 0.5
      %v4840 = vmul.f32 %v4792, 0.5
      %v4841 = vmul.f32 %v4795, 0.5
      %v4842 = vmul.f32 %v4800, 0.5
      %v4843 = vmul.f32 %v4803, 0.5
      %v4844 = vmul.f32 %v4808, 0.5
      %v4845 = vmul.f32 %v4811, 0.5
      %v4846 = vmul.f32 %v4688, 0.70710677
      %v4847 = vmul.f32 %v4691, 0.70710677
      %v4848 = vmul.f32 %v4696, 0.70710677
      %v4849 = vmul.f32 %v4699, 0.70710677
      %v4850 = vmul.f32 %v4704, 0.70710677
      %v4851 = vmul.f32 %v4707, 0.70710677
      %v4852 = vmul.f32 %v4712, 0.70710677
      %v4853 = vmul.f32 %v4715, 0.70710677
      %v4854 = vmul.f32 %v4720, 0.70710677
      %v4855 = vmul.f32 %v4723, 0.70710677
      %v4856 = vmul.f32 %v4728, 0.70710677
      %v4857 = vmul.f32 %v4731, 0.70710677
      %v4858 = vmul.f32 %v4736, 0.70710677
      %v4859 = vmul.f32 %v4739, 0.70710677
      %v4860 = vmul.f32 %v4744, 0.70710677
      %v4861 = vmul.f32 %v4747, 0.70710677
      %v4862 = vmul.f32 %v4752, 0.70710677
      %v4863 = vmul.f32 %v4755, 0.70710677
      %v4864 = vmul.f32 %v4760, 0.70710677
      %v4865 = vmul.f32 %v4763, 0.70710677
      %v4866 = vmul.f32 %v4768, 0.70710677
      %v4867 = vmul.f32 %v4771, 0.70710677
      %v4868 = vmul.f32 %v4776, 0.70710677
      %v4869 = vmul.f32 %v4779, 0.70710677
      %v4870 = vmul.f32 %v4784, 0.70710677
      %v4871 = vmul.f32 %v4787, 0.70710677
      %v4872 = vmul.f32 %v4792, 0.70710677
      %v4873 = vmul.f32 %v4795, 0.70710677
      %v4874 = vmul.f32 %v4800, 0.70710677
      %v4875 = vmul.f32 %v4803, 0.70710677
      %v4876 = vmul.f32 %v4808, 0.70710677
      %v4877 = vmul.f32 %v4811, 0.70710677
      %v4878 = verf.f32.pop %v4846
      %v4879 = verf.f32.pop %v4847
      %v4880 = verf.f32.pop %v4848
      %v4881 = verf.f32.pop %v4849
      %v4882 = verf.f32.pop %v4850
      %v4883 = verf.f32.pop %v4851
      %v4884 = verf.f32.pop %v4852
      %v4885 = verf.f32.pop %v4853
      %v4886 = verf.f32.pop %v4854
      %v4887 = verf.f32.pop %v4855
      %v4888 = verf.f32.pop %v4856
      %v4889 = verf.f32.pop %v4857
      %v4890 = verf.f32.pop %v4858
      %v4891 = verf.f32.pop %v4859
      %v4892 = verf.f32.pop %v4860
      %v4893 = verf.f32.pop %v4861
      %v4894 = verf.f32.pop %v4862
      %v4895 = verf.f32.pop %v4863
      %v4896 = verf.f32.pop %v4864
      %v4897 = verf.f32.pop %v4865
      %v4898 = verf.f32.pop %v4866
      %v4899 = verf.f32.pop %v4867
      %v4900 = verf.f32.pop %v4868
      %v4901 = verf.f32.pop %v4869
      %v4902 = verf.f32.pop %v4870
      %v4903 = verf.f32.pop %v4871
      %v4904 = verf.f32.pop %v4872
      %v4905 = verf.f32.pop %v4873
      %v4906 = verf.f32.pop %v4874
      %v4907 = verf.f32.pop %v4875
      %v4908 = verf.f32.pop %v4876
      %v4909 = verf.f32.pop %v4877
      %v4910 = vadd.f32 %v4878, 1.0
      %v4911 = vadd.f32 %v4879, 1.0
      %v4912 = vadd.f32 %v4880, 1.0
      %v4913 = vadd.f32 %v4881, 1.0
      %v4914 = vadd.f32 %v4882, 1.0
      %v4915 = vadd.f32 %v4883, 1.0
      %v4916 = vadd.f32 %v4884, 1.0
      %v4917 = vadd.f32 %v4885, 1.0
      %v4918 = vadd.f32 %v4886, 1.0
      %v4919 = vadd.f32 %v4887, 1.0
      %v4920 = vadd.f32 %v4888, 1.0
      %v4921 = vadd.f32 %v4889, 1.0
      %v4922 = vadd.f32 %v4890, 1.0
      %v4923 = vadd.f32 %v4891, 1.0
      %v4924 = vadd.f32 %v4892, 1.0
      %v4925 = vadd.f32 %v4893, 1.0
      %v4926 = vadd.f32 %v4894, 1.0
      %v4927 = vadd.f32 %v4895, 1.0
      %v4928 = vadd.f32 %v4896, 1.0
      %v4929 = vadd.f32 %v4897, 1.0
      %v4930 = vadd.f32 %v4898, 1.0
      %v4931 = vadd.f32 %v4899, 1.0
      %v4932 = vadd.f32 %v4900, 1.0
      %v4933 = vadd.f32 %v4901, 1.0
      %v4934 = vadd.f32 %v4902, 1.0
      %v4935 = vadd.f32 %v4903, 1.0
      %v4936 = vadd.f32 %v4904, 1.0
      %v4937 = vadd.f32 %v4905, 1.0
      %v4938 = vadd.f32 %v4906, 1.0
      %v4939 = vadd.f32 %v4907, 1.0
      %v4940 = vadd.f32 %v4908, 1.0
      %v4941 = vadd.f32 %v4909, 1.0
      %v4942 = vmul.f32 %v4814, %v4910
      %v4943 = vmul.f32 %v4815, %v4911
      %v4944 = vmul.f32 %v4816, %v4912
      %v4945 = vmul.f32 %v4817, %v4913
      %v4946 = vmul.f32 %v4818, %v4914
      %v4947 = vmul.f32 %v4819, %v4915
      %v4948 = vmul.f32 %v4820, %v4916
      %v4949 = vmul.f32 %v4821, %v4917
      %v4950 = vmul.f32 %v4822, %v4918
      %v4951 = vmul.f32 %v4823, %v4919
      %v4952 = vmul.f32 %v4824, %v4920
      %v4953 = vmul.f32 %v4825, %v4921
      %v4954 = vmul.f32 %v4826, %v4922
      %v4955 = vmul.f32 %v4827, %v4923
      %v4956 = vmul.f32 %v4828, %v4924
      %v4957 = vmul.f32 %v4829, %v4925
      %v4958 = vmul.f32 %v4830, %v4926
      %v4959 = vmul.f32 %v4831, %v4927
      %v4960 = vmul.f32 %v4832, %v4928
      %v4961 = vmul.f32 %v4833, %v4929
      %v4962 = vmul.f32 %v4834, %v4930
      %v4963 = vmul.f32 %v4835, %v4931
      %v4964 = vmul.f32 %v4836, %v4932
      %v4965 = vmul.f32 %v4837, %v4933
      %v4966 = vmul.f32 %v4838, %v4934
      %v4967 = vmul.f32 %v4839, %v4935
      %v4968 = vmul.f32 %v4840, %v4936
      %v4969 = vmul.f32 %v4841, %v4937
      %v4970 = vmul.f32 %v4842, %v4938
      %v4971 = vmul.f32 %v4843, %v4939
      %v4972 = vmul.f32 %v4844, %v4940
      %v4973 = vmul.f32 %v4845, %v4941
      %v4974 = vmul.f32 %v4942, %v4942
      %v4975 = vmul.f32 %v4943, %v4943
      %v4976 = vmul.f32 %v4944, %v4944
      %v4977 = vmul.f32 %v4945, %v4945
      %v4978 = vmul.f32 %v4946, %v4946
      %v4979 = vmul.f32 %v4947, %v4947
      %v4980 = vmul.f32 %v4948, %v4948
      %v4981 = vmul.f32 %v4949, %v4949
      %v4982 = vmul.f32 %v4950, %v4950
      %v4983 = vmul.f32 %v4951, %v4951
      %v4984 = vmul.f32 %v4952, %v4952
      %v4985 = vmul.f32 %v4953, %v4953
      %v4986 = vmul.f32 %v4954, %v4954
      %v4987 = vmul.f32 %v4955, %v4955
      %v4988 = vmul.f32 %v4956, %v4956
      %v4989 = vmul.f32 %v4957, %v4957
      %v4990 = vmul.f32 %v4958, %v4958
      %v4991 = vmul.f32 %v4959, %v4959
      %v4992 = vmul.f32 %v4960, %v4960
      %v4993 = vmul.f32 %v4961, %v4961
      %v4994 = vmul.f32 %v4962, %v4962
      %v4995 = vmul.f32 %v4963, %v4963
      %v4996 = vmul.f32 %v4964, %v4964
      %v4997 = vmul.f32 %v4965, %v4965
      %v4998 = vmul.f32 %v4966, %v4966
      %v4999 = vmul.f32 %v4967, %v4967
      %v5000 = vmul.f32 %v4968, %v4968
      %v5001 = vmul.f32 %v4969, %v4969
      %v5002 = vmul.f32 %v4970, %v4970
      %v5003 = vmul.f32 %v4971, %v4971
      %v5004 = vmul.f32 %v4972, %v4972
      %v5005 = vmul.f32 %v4973, %v4973
      %vm5006 = vcmask 130048
      %v5007 = vsel %vm5006, %v4974, 0.0
      %v5008 = vsel %vm5006, %v4975, 0.0
      %v5009 = vadd.f32 %v5007, %v5008
      %v5010 = vsel %vm5006, %v4976, 0.0
      %v5011 = vadd.f32 %v5009, %v5010
      %v5012 = vsel %vm5006, %v4977, 0.0
      %v5013 = vadd.f32 %v5011, %v5012
      %v5014 = vsel %vm5006, %v4978, 0.0
      %v5015 = vadd.f32 %v5013, %v5014
      %v5016 = vsel %vm5006, %v4979, 0.0
      %v5017 = vadd.f32 %v5015, %v5016
      %v5018 = vsel %vm5006, %v4980, 0.0
      %v5019 = vadd.f32 %v5017, %v5018
      %v5020 = vsel %vm5006, %v4981, 0.0
      %v5021 = vadd.f32 %v5019, %v5020
      %v5022 = vsel %vm5006, %v4982, 0.0
      %v5023 = vadd.f32 %v5021, %v5022
      %v5024 = vsel %vm5006, %v4983, 0.0
      %v5025 = vadd.f32 %v5023, %v5024
      %v5026 = vsel %vm5006, %v4984, 0.0
      %v5027 = vadd.f32 %v5025, %v5026
      %v5028 = vsel %vm5006, %v4985, 0.0
      %v5029 = vadd.f32 %v5027, %v5028
      %v5030 = vsel %vm5006, %v4986, 0.0
      %v5031 = vadd.f32 %v5029, %v5030
      %v5032 = vsel %vm5006, %v4987, 0.0
      %v5033 = vadd.f32 %v5031, %v5032
      %v5034 = vsel %vm5006, %v4988, 0.0
      %v5035 = vadd.f32 %v5033, %v5034
      %v5036 = vsel %vm5006, %v4989, 0.0
      %v5037 = vadd.f32 %v5035, %v5036
      %v5038 = vsel %vm5006, %v4990, 0.0
      %v5039 = vadd.f32 %v5037, %v5038
      %v5040 = vsel %vm5006, %v4991, 0.0
      %v5041 = vadd.f32 %v5039, %v5040
      %v5042 = vsel %vm5006, %v4992, 0.0
      %v5043 = vadd.f32 %v5041, %v5042
      %v5044 = vsel %vm5006, %v4993, 0.0
      %v5045 = vadd.f32 %v5043, %v5044
      %v5046 = vsel %vm5006, %v4994, 0.0
      %v5047 = vadd.f32 %v5045, %v5046
      %v5048 = vsel %vm5006, %v4995, 0.0
      %v5049 = vadd.f32 %v5047, %v5048
      %v5050 = vsel %vm5006, %v4996, 0.0
      %v5051 = vadd.f32 %v5049, %v5050
      %v5052 = vsel %vm5006, %v4997, 0.0
      %v5053 = vadd.f32 %v5051, %v5052
      %v5054 = vsel %vm5006, %v4998, 0.0
      %v5055 = vadd.f32 %v5053, %v5054
      %v5056 = vsel %vm5006, %v4999, 0.0
      %v5057 = vadd.f32 %v5055, %v5056
      %v5058 = vsel %vm5006, %v5000, 0.0
      %v5059 = vadd.f32 %v5057, %v5058
      %v5060 = vsel %vm5006, %v5001, 0.0
      %v5061 = vadd.f32 %v5059, %v5060
      %v5062 = vsel %vm5006, %v5002, 0.0
      %v5063 = vadd.f32 %v5061, %v5062
      %v5064 = vsel %vm5006, %v5003, 0.0
      %v5065 = vadd.f32 %v5063, %v5064
      %v5066 = vsel %vm5006, %v5004, 0.0
      %v5067 = vadd.f32 %v5065, %v5066
      %v5068 = vsel %vm5006, %v5005, 0.0
      %v5069 = vadd.f32 %v5067, %v5068
      %v5070 = vrot.slane %v5069, 4
      %v5071 = vadd.f32 %v5069, %v5070
      %v5072 = vrot.slane %v5071, 2
      %v5073 = vadd.f32 %v5071, %v5072
      %v5074 = vrot.slane %v5073, 1
      %v5075 = vadd.f32 %v5073, %v5074
      %v5076 = vadd.f32 %v5075, 0.0
      %v5077 = vpack.c.bf16 %v4943, %v4942
      %v5078 = vpack.c.bf16 %v4945, %v4944
      %v5079 = vpack.c.bf16 %v4947, %v4946
      %v5080 = vpack.c.bf16 %v4949, %v4948
      %v5081 = vpack.c.bf16 %v4951, %v4950
      %v5082 = vpack.c.bf16 %v4953, %v4952
      %v5083 = vpack.c.bf16 %v4955, %v4954
      %v5084 = vpack.c.bf16 %v4957, %v4956
      %v5085 = vpack.c.bf16 %v4959, %v4958
      %v5086 = vpack.c.bf16 %v4961, %v4960
      %v5087 = vpack.c.bf16 %v4963, %v4962
      %v5088 = vpack.c.bf16 %v4965, %v4964
      %v5089 = vpack.c.bf16 %v4967, %v4966
      %v5090 = vpack.c.bf16 %v4969, %v4968
      %v5091 = vpack.c.bf16 %v4971, %v4970
      %v5092 = vpack.c.bf16 %v4973, %v4972
      %5093 = vst.msk [vmem:[#allocation3] sm:$0xff] %vm5006, %v5077
      %5094 = vst.msk [vmem:[#allocation3 + $0x8] sm:$0xff] %vm5006, %v5078
      %5095 = vst.msk [vmem:[#allocation3 + $0x10] sm:$0xff] %vm5006, %v5079
      %5096 = vst.msk [vmem:[#allocation3 + $0x18] sm:$0xff] %vm5006, %v5080
      %5097 = vst.msk [vmem:[#allocation3 + $0x20] sm:$0xff] %vm5006, %v5081
      %5098 = vst.msk [vmem:[#allocation3 + $0x28] sm:$0xff] %vm5006, %v5082
      %5099 = vst.msk [vmem:[#allocation3 + $0x30] sm:$0xff] %vm5006, %v5083
      %5100 = vst.msk [vmem:[#allocation3 + $0x38] sm:$0xff] %vm5006, %v5084
      %5101 = vst.msk [vmem:[#allocation3 + $0x40] sm:$0xff] %vm5006, %v5085
      %5102 = vst.msk [vmem:[#allocation3 + $0x48] sm:$0xff] %vm5006, %v5086
      %5103 = vst.msk [vmem:[#allocation3 + $0x50] sm:$0xff] %vm5006, %v5087
      %5104 = vst.msk [vmem:[#allocation3 + $0x58] sm:$0xff] %vm5006, %v5088
      %5105 = vst.msk [vmem:[#allocation3 + $0x60] sm:$0xff] %vm5006, %v5089
      %5106 = vst.msk [vmem:[#allocation3 + $0x68] sm:$0xff] %vm5006, %v5090
      %5107 = vst.msk [vmem:[#allocation3 + $0x70] sm:$0xff] %vm5006, %v5091
      %5108 = vst.msk [vmem:[#allocation3 + $0x78] sm:$0xff] %vm5006, %v5092
      %v5109 = vrsqrt.pop %v5076
      %v5110 = vmul.f32 %v5076, %v5109
      %vm5111 = vcmp.eq.f32.partialorder %v5076, inf
      %v5112 = vsel %vm5111, %v5076, %v5110
      %vm5113 = vcmp.eq.f32.partialorder %v5076, 0.0
      %v5114 = vand.u32 %v5076, 2147483648
      %v5115 = vsel %vm5113, %v5114, %v5112
      %v5116 = vsel %vm5006, %v5115, 0.0
      %5117 = vadd.xlane.f32.xlu0 %v5116
      %v5118 = vpop.xlane.xlu0 %5117
      %v5119 = vrcp.pop 16.0
      %v5120 = vmul.f32 %v5118, %v5119
      %v5121 = vadd.f32 %v5120, 1e-06
      %v5122 = vrcp.pop %v5121
      %v5123 = vmul.f32 %v5115, %v5122
      %v5124 = vld [vmem:[%s5] sm:$0x1]
      %v5125 = vmul.f32 %v5124, %v5123
      %v5126 = vadd.f32 %v5125, 1.0
      %5127 = vxpose.xlu0.b32.start [1/16] %v5126, 128
      %5128 = vxpose.xlu0.b32.cont [2/16] 0.0, 128
      %5129 = vxpose.xlu0.b32.cont [3/16] 0.0, 128
      %5130 = vxpose.xlu0.b32.cont [4/16] 0.0, 128
      %5131 = vxpose.xlu0.b32.cont [5/16] 0.0, 128
      %5132 = vxpose.xlu0.b32.cont [6/16] 0.0, 128
      %5133 = vxpose.xlu0.b32.cont [7/16] 0.0, 128
      %5134 = vxpose.xlu0.b32.cont [8/16] 0.0, 128
      %5135 = vxpose.xlu0.b32.cont [9/16] 0.0, 128
      %5136 = vxpose.xlu0.b32.cont [10/16] 0.0, 128
      %5137 = vxpose.xlu0.b32.cont [11/16] 0.0, 128
      %5138 = vxpose.xlu0.b32.cont [12/16] 0.0, 128
      %5139 = vxpose.xlu0.b32.cont [13/16] 0.0, 128
      %5140 = vxpose.xlu0.b32.cont [14/16] 0.0, 128
      %5141 = vxpose.xlu0.b32.cont [15/16] 0.0, 128
      %5142 = vxpose.xlu0.b32.end [16/16] 0.0, 128
      %v5143 = vpop.trf.xlu0
      %v5144 = vpop.trf.xlu0
      %v5145 = vpop.trf.xlu0
      %v5146 = vpop.trf.xlu0
      %v5147 = vpop.trf.xlu0
      %v5148 = vpop.trf.xlu0
      %v5149 = vpop.trf.xlu0
      %v5150 = vpop.trf.xlu0
      %v5151 = vpop.trf.xlu0
      %v5152 = vpop.trf.xlu0
      %v5153 = vpop.trf.xlu0
      %v5154 = vpop.trf.xlu0
      %v5155 = vpop.trf.xlu0
      %v5156 = vpop.trf.xlu0
      %v5157 = vpop.trf.xlu0
      %v5158 = vpop.trf.xlu0
      %v5159 = vld [vmem:[%s6] sm:$0xf]
      %v5160 = vld [vmem:[%s6 + $0x4] sm:$0xf]
      %v5161 = vunpack.c.l.bf16 %v5159
      %v5162 = vunpack.c.l.bf16 %v5160
      %5164 = vset.pattern.permute.xlu0 0
      %5165 = vperm.xlu0 %5164, %v5143
      %v5166 = vpop.permute.xlu0 %5165
      %5169 = vset.pattern.permute.xlu0 0
      %5170 = vperm.xlu0 %5169, %v5144
      %v5171 = vpop.permute.xlu0 %5170
      %v5173 = vmul.f32 %v5166, %v5161
      %v5174 = vmul.f32 %v5171, %v5162
      %v5175 = vpack.c.bf16 %v5174, %v5173
      %v5176 = vld [vmem:[%s7] sm:$0x1]
      %v5177 = vld [vmem:[#allocation3] sm:$0xff]
      %v5178 = vld [vmem:[#allocation3 + $0x8] sm:$0xff]
      %v5179 = vld [vmem:[#allocation3 + $0x10] sm:$0xff]
      %v5180 = vld [vmem:[#allocation3 + $0x18] sm:$0xff]
      %v5181 = vld [vmem:[#allocation3 + $0x20] sm:$0xff]
      %v5182 = vld [vmem:[#allocation3 + $0x28] sm:$0xff]
      %v5183 = vld [vmem:[#allocation3 + $0x30] sm:$0xff]
      %v5184 = vld [vmem:[#allocation3 + $0x38] sm:$0xff]
      %v5185 = vld [vmem:[#allocation3 + $0x40] sm:$0xff]
      %v5186 = vld [vmem:[#allocation3 + $0x48] sm:$0xff]
      %v5187 = vld [vmem:[#allocation3 + $0x50] sm:$0xff]
      %v5188 = vld [vmem:[#allocation3 + $0x58] sm:$0xff]
      %v5189 = vld [vmem:[#allocation3 + $0x60] sm:$0xff]
      %v5190 = vld [vmem:[#allocation3 + $0x68] sm:$0xff]
      %v5191 = vld [vmem:[#allocation3 + $0x70] sm:$0xff]
      %v5192 = vld [vmem:[#allocation3 + $0x78] sm:$0xff]
      %v5194 = vlaneseq
      %v5195 = vshrl.u32 %v5194, 7
      %v5196 = vsub.s32 0, %v5195
      %v5197 = vrot.slane %v5176, %v5196
      %v5200 = vsel %vm5006, %v5177, 0
      %v5203 = vsel %vm5006, %v5178, 0
      %v5206 = vsel %vm5006, %v5179, 0
      %v5209 = vsel %vm5006, %v5180, 0
      %v5212 = vsel %vm5006, %v5181, 0
      %v5215 = vsel %vm5006, %v5182, 0
      %v5218 = vsel %vm5006, %v5183, 0
      %v5221 = vsel %vm5006, %v5184, 0
      %v5224 = vsel %vm5006, %v5185, 0
      %v5227 = vsel %vm5006, %v5186, 0
      %v5230 = vsel %vm5006, %v5187, 0
      %v5233 = vsel %vm5006, %v5188, 0
      %v5236 = vsel %vm5006, %v5189, 0
      %v5239 = vsel %vm5006, %v5190, 0
      %v5242 = vsel %vm5006, %v5191, 0
      %v5245 = vsel %vm5006, %v5192, 0
      %5247 = vmatprep.subr.bf16.mxu0 0
      %5248 = vmatpush1.bf16.msra.mxu0 %v5175
      %5249 = vmatprep.subr.bf16.mxu0 0
      %5250 = vmatpush1.bf16.msra.mxu0 0
      %5251 = vmatprep.subr.bf16.mxu0 0
      %5252 = vmatpush1.bf16.msra.mxu0 0
      %5253 = vmatprep.subr.bf16.mxu0 0
      %5254 = vmatpush1.bf16.msra.mxu0 0
      %5255 = vmatprep.subr.bf16.mxu0 0
      %5256 = vmatpush1.bf16.msra.mxu0 0
      %5257 = vmatprep.subr.bf16.mxu0 0
      %5258 = vmatpush1.bf16.msra.mxu0 0
      %5259 = vmatprep.subr.bf16.mxu0 0
      %5260 = vmatpush1.bf16.msra.mxu0 0
      %5261 = vmatprep.subr.bf16.mxu0 0
      %5262 = vmatpush1.bf16.msra.mxu0 0
      %5263 = vmatprep.subr.bf16.mxu0 0
      %5264 = vmatpush1.bf16.msra.mxu0 0
      %5265 = vmatprep.subr.bf16.mxu0 0
      %5266 = vmatpush1.bf16.msra.mxu0 0
      %5267 = vmatprep.subr.bf16.mxu0 0
      %5268 = vmatpush1.bf16.msra.mxu0 0
      %5269 = vmatprep.subr.bf16.mxu0 0
      %5270 = vmatpush1.bf16.msra.mxu0 0
      %5271 = vmatprep.subr.bf16.mxu0 0
      %5272 = vmatpush1.bf16.msra.mxu0 0
      %5273 = vmatprep.subr.bf16.mxu0 0
      %5274 = vmatpush1.bf16.msra.mxu0 0
      %5275 = vmatprep.subr.bf16.mxu0 0
      %5276 = vmatpush1.bf16.msra.mxu0 0
      %5277 = vmatprep.subr.bf16.mxu0 0
      %5278 = vmatpush1.bf16.msra.mxu0 0
      %5279 = vmatprep.mubr.bf16.mxu0 0
      %5280 = vmatmul.mubr.bf16.gmra.mrb[0].mxu0 %v5200
      %v5281 = vpop.f32.mrb[0].mxu0
      %v5282 = vadd.f32 %v5197, %v5281
      %v5283 = vpop.f32.mrb[0].mxu0
      %v5284 = vpop.f32.mrb[0].mxu0
      %v5285 = vadd.f32 %v5197, %v5284
      %v5286 = vpop.f32.mrb[0].mxu0
      %5287 = vmatprep.mubr.bf16.mxu0 0
      %5288 = vmatmul.mubr.bf16.gmra.mrb[0].mxu0 %v5203
      %v5289 = vpop.f32.mrb[0].mxu0
      %v5290 = vadd.f32 %v5197, %v5289
      %v5291 = vpop.f32.mrb[0].mxu0
      %v5292 = vpop.f32.mrb[0].mxu0
      %v5293 = vadd.f32 %v5197, %v5292
      %v5294 = vpop.f32.mrb[0].mxu0
      %5295 = vmatprep.mubr.bf16.mxu0 0
      %5296 = vmatmul.mubr.bf16.gmra.mrb[0].mxu0 %v5206
      %v5297 = vpop.f32.mrb[0].mxu0
      %v5298 = vadd.f32 %v5197, %v5297
      %v5299 = vpop.f32.mrb[0].mxu0
      %v5300 = vpop.f32.mrb[0].mxu0
      %v5301 = vadd.f32 %v5197, %v5300
      %v5302 = vpop.f32.mrb[0].mxu0
      %5303 = vmatprep.mubr.bf16.mxu0 0
      %5304 = vmatmul.mubr.bf16.gmra.mrb[0].mxu0 %v5209
      %v5305 = vpop.f32.mrb[0].mxu0
      %v5306 = vadd.f32 %v5197, %v5305
      %v5307 = vpop.f32.mrb[0].mxu0
      %v5308 = vpop.f32.mrb[0].mxu0
      %v5309 = vadd.f32 %v5197, %v5308
      %v5310 = vpop.f32.mrb[0].mxu0
      %5311 = vmatprep.mubr.bf16.mxu0 0
      %5312 = vmatmul.mubr.bf16.gmra.mrb[0].mxu0 %v5212
      %v5313 = vpop.f32.mrb[0].mxu0
      %v5314 = vadd.f32 %v5197, %v5313
      %v5315 = vpop.f32.mrb[0].mxu0
      %v5316 = vpop.f32.mrb[0].mxu0
      %v5317 = vadd.f32 %v5197, %v5316
      %v5318 = vpop.f32.mrb[0].mxu0
      %5319 = vmatprep.mubr.bf16.mxu0 0
      %5320 = vmatmul.mubr.bf16.gmra.mrb[0].mxu0 %v5215
      %v5321 = vpop.f32.mrb[0].mxu0
      %v5322 = vadd.f32 %v5197, %v5321
      %v5323 = vpop.f32.mrb[0].mxu0
      %v5324 = vpop.f32.mrb[0].mxu0
      %v5325 = vadd.f32 %v5197, %v5324
      %v5326 = vpop.f32.mrb[0].mxu0
      %5327 = vmatprep.mubr.bf16.mxu0 0
      %5328 = vmatmul.mubr.bf16.gmra.mrb[0].mxu0 %v5218
      %v5329 = vpop.f32.mrb[0].mxu0
      %v5330 = vadd.f32 %v5197, %v5329
      %v5331 = vpop.f32.mrb[0].mxu0
      %v5332 = vpop.f32.mrb[0].mxu0
      %v5333 = vadd.f32 %v5197, %v5332
      %v5334 = vpop.f32.mrb[0].mxu0
      %5335 = vmatprep.mubr.bf16.mxu0 0
      %5336 = vmatmul.mubr.bf16.gmra.mrb[0].mxu0 %v5221
      %v5337 = vpop.f32.mrb[0].mxu0
      %v5338 = vadd.f32 %v5197, %v5337
      %v5339 = vpop.f32.mrb[0].mxu0
      %v5340 = vpop.f32.mrb[0].mxu0
      %v5341 = vadd.f32 %v5197, %v5340
      %v5342 = vpop.f32.mrb[0].mxu0
      %5343 = vmatprep.mubr.bf16.mxu0 0
      %5344 = vmatmul.mubr.bf16.gmra.mrb[0].mxu0 %v5224
      %v5345 = vpop.f32.mrb[0].mxu0
      %v5346 = vadd.f32 %v5197, %v5345
      %v5347 = vpop.f32.mrb[0].mxu0
      %v5348 = vpop.f32.mrb[0].mxu0
      %v5349 = vadd.f32 %v5197, %v5348
      %v5350 = vpop.f32.mrb[0].mxu0
      %5351 = vmatprep.mubr.bf16.mxu0 0
      %5352 = vmatmul.mubr.bf16.gmra.mrb[0].mxu0 %v5227
      %v5353 = vpop.f32.mrb[0].mxu0
      %v5354 = vadd.f32 %v5197, %v5353
      %v5355 = vpop.f32.mrb[0].mxu0
      %v5356 = vpop.f32.mrb[0].mxu0
      %v5357 = vadd.f32 %v5197, %v5356
      %v5358 = vpop.f32.mrb[0].mxu0
      %5359 = vmatprep.mubr.bf16.mxu0 0
      %5360 = vmatmul.mubr.bf16.gmra.mrb[0].mxu0 %v5230
      %v5361 = vpop.f32.mrb[0].mxu0
      %v5362 = vadd.f32 %v5197, %v5361
      %v5363 = vpop.f32.mrb[0].mxu0
      %v5364 = vpop.f32.mrb[0].mxu0
      %v5365 = vadd.f32 %v5197, %v5364
      %v5366 = vpop.f32.mrb[0].mxu0
      %5367 = vmatprep.mubr.bf16.mxu0 0
      %5368 = vmatmul.mubr.bf16.gmra.mrb[0].mxu0 %v5233
      %v5369 = vpop.f32.mrb[0].mxu0
      %v5370 = vadd.f32 %v5197, %v5369
      %v5371 = vpop.f32.mrb[0].mxu0
      %v5372 = vpop.f32.mrb[0].mxu0
      %v5373 = vadd.f32 %v5197, %v5372
      %v5374 = vpop.f32.mrb[0].mxu0
      %5375 = vmatprep.mubr.bf16.mxu0 0
      %5376 = vmatmul.mubr.bf16.gmra.mrb[0].mxu0 %v5236
      %v5377 = vpop.f32.mrb[0].mxu0
      %v5378 = vadd.f32 %v5197, %v5377
      %v5379 = vpop.f32.mrb[0].mxu0
      %v5380 = vpop.f32.mrb[0].mxu0
      %v5381 = vadd.f32 %v5197, %v5380
      %v5382 = vpop.f32.mrb[0].mxu0
      %5383 = vmatprep.mubr.bf16.mxu0 0
      %5384 = vmatmul.mubr.bf16.gmra.mrb[0].mxu0 %v5239
      %v5385 = vpop.f32.mrb[0].mxu0
      %v5386 = vadd.f32 %v5197, %v5385
      %v5387 = vpop.f32.mrb[0].mxu0
      %v5388 = vpop.f32.mrb[0].mxu0
      %v5389 = vadd.f32 %v5197, %v5388
      %v5390 = vpop.f32.mrb[0].mxu0
      %5391 = vmatprep.mubr.bf16.mxu0 0
      %5392 = vmatmul.mubr.bf16.gmra.mrb[0].mxu0 %v5242
      %v5393 = vpop.f32.mrb[0].mxu0
      %v5394 = vadd.f32 %v5197, %v5393
      %v5395 = vpop.f32.mrb[0].mxu0
      %v5396 = vpop.f32.mrb[0].mxu0
      %v5397 = vadd.f32 %v5197, %v5396
      %v5398 = vpop.f32.mrb[0].mxu0
      %5399 = vmatprep.mubr.bf16.mxu0 0
      %5400 = vmatmul.mubr.bf16.gmra.mrb[0].mxu0 %v5245
      %v5401 = vpop.f32.mrb[0].mxu0
      %v5402 = vadd.f32 %v5197, %v5401
      %v5403 = vpop.f32.mrb[0].mxu0
      %v5404 = vpop.f32.mrb[0].mxu0
      %v5405 = vadd.f32 %v5197, %v5404
      %v5406 = vpop.f32.mrb[0].mxu0
      %5407 = vdwg.mxu0
      %v5408 = vld [vmem:[%s300] sm:$0xff]
      %v5409 = vld [vmem:[%s300 + $0x8] sm:$0xff]
      %v5410 = vld [vmem:[%s300 + $0x10] sm:$0xff]
      %v5411 = vld [vmem:[%s300 + $0x18] sm:$0xff]
      %v5412 = vld [vmem:[%s300 + $0x20] sm:$0xff]
      %v5413 = vld [vmem:[%s300 + $0x28] sm:$0xff]
      %v5414 = vld [vmem:[%s300 + $0x30] sm:$0xff]
      %v5415 = vld [vmem:[%s300 + $0x38] sm:$0xff]
      %v5416 = vld [vmem:[%s300 + $0x40] sm:$0xff]
      %v5417 = vld [vmem:[%s300 + $0x48] sm:$0xff]
      %v5418 = vld [vmem:[%s300 + $0x50] sm:$0xff]
      %v5419 = vld [vmem:[%s300 + $0x58] sm:$0xff]
      %v5420 = vld [vmem:[%s300 + $0x60] sm:$0xff]
      %v5421 = vld [vmem:[%s300 + $0x68] sm:$0xff]
      %v5422 = vld [vmem:[%s300 + $0x70] sm:$0xff]
      %v5423 = vld [vmem:[%s300 + $0x78] sm:$0xff]
      %v5424 = vld [vmem:[%s300 + $0x80] sm:$0xff]
      %v5425 = vld [vmem:[%s300 + $0x88] sm:$0xff]
      %v5426 = vld [vmem:[%s300 + $0x90] sm:$0xff]
      %v5427 = vld [vmem:[%s300 + $0x98] sm:$0xff]
      %v5428 = vld [vmem:[%s300 + $0xa0] sm:$0xff]
      %v5429 = vld [vmem:[%s300 + $0xa8] sm:$0xff]
      %v5430 = vld [vmem:[%s300 + $0xb0] sm:$0xff]
      %v5431 = vld [vmem:[%s300 + $0xb8] sm:$0xff]
      %v5432 = vld [vmem:[%s300 + $0xc0] sm:$0xff]
      %v5433 = vld [vmem:[%s300 + $0xc8] sm:$0xff]
      %v5434 = vld [vmem:[%s300 + $0xd0] sm:$0xff]
      %v5435 = vld [vmem:[%s300 + $0xd8] sm:$0xff]
      %v5436 = vld [vmem:[%s300 + $0xe0] sm:$0xff]
      %v5437 = vld [vmem:[%s300 + $0xe8] sm:$0xff]
      %v5438 = vld [vmem:[%s300 + $0xf0] sm:$0xff]
      %v5439 = vld [vmem:[%s300 + $0xf8] sm:$0xff]
      %v5440 = vadd.f32 %v5282, %v5408
      %v5441 = vadd.f32 %v5285, %v5409
      %v5442 = vadd.f32 %v5290, %v5410
      %v5443 = vadd.f32 %v5293, %v5411
      %v5444 = vadd.f32 %v5298, %v5412
      %v5445 = vadd.f32 %v5301, %v5413
      %v5446 = vadd.f32 %v5306, %v5414
      %v5447 = vadd.f32 %v5309, %v5415
      %v5448 = vadd.f32 %v5314, %v5416
      %v5449 = vadd.f32 %v5317, %v5417
      %v5450 = vadd.f32 %v5322, %v5418
      %v5451 = vadd.f32 %v5325, %v5419
      %v5452 = vadd.f32 %v5330, %v5420
      %v5453 = vadd.f32 %v5333, %v5421
      %v5454 = vadd.f32 %v5338, %v5422
      %v5455 = vadd.f32 %v5341, %v5423
      %v5456 = vadd.f32 %v5346, %v5424
      %v5457 = vadd.f32 %v5349, %v5425
      %v5458 = vadd.f32 %v5354, %v5426
      %v5459 = vadd.f32 %v5357, %v5427
      %v5460 = vadd.f32 %v5362, %v5428
      %v5461 = vadd.f32 %v5365, %v5429
      %v5462 = vadd.f32 %v5370, %v5430
      %v5463 = vadd.f32 %v5373, %v5431
      %v5464 = vadd.f32 %v5378, %v5432
      %v5465 = vadd.f32 %v5381, %v5433
      %v5466 = vadd.f32 %v5386, %v5434
      %v5467 = vadd.f32 %v5389, %v5435
      %v5468 = vadd.f32 %v5394, %v5436
      %v5469 = vadd.f32 %v5397, %v5437
      %v5470 = vadd.f32 %v5402, %v5438
      %v5471 = vadd.f32 %v5405, %v5439
      %5472 = vst.msk [vmem:[%s305] sm:$0xff] %vm307, %v5440
      %5473 = vst.msk [vmem:[%s305 + $0x8] sm:$0xff] %vm307, %v5441
      %5474 = vst.msk [vmem:[%s305 + $0x10] sm:$0xff] %vm307, %v5442
      %5475 = vst.msk [vmem:[%s305 + $0x18] sm:$0xff] %vm307, %v5443
      %5476 = vst.msk [vmem:[%s305 + $0x20] sm:$0xff] %vm307, %v5444
      %5477 = vst.msk [vmem:[%s305 + $0x28] sm:$0xff] %vm307, %v5445
      %5478 = vst.msk [vmem:[%s305 + $0x30] sm:$0xff] %vm307, %v5446
      %5479 = vst.msk [vmem:[%s305 + $0x38] sm:$0xff] %vm307, %v5447
      %5480 = vst.msk [vmem:[%s305 + $0x40] sm:$0xff] %vm307, %v5448
      %5481 = vst.msk [vmem:[%s305 + $0x48] sm:$0xff] %vm307, %v5449
      %5482 = vst.msk [vmem:[%s305 + $0x50] sm:$0xff] %vm307, %v5450
      %5483 = vst.msk [vmem:[%s305 + $0x58] sm:$0xff] %vm307, %v5451
      %5484 = vst.msk [vmem:[%s305 + $0x60] sm:$0xff] %vm307, %v5452
      %5485 = vst.msk [vmem:[%s305 + $0x68] sm:$0xff] %vm307, %v5453
      %5486 = vst.msk [vmem:[%s305 + $0x70] sm:$0xff] %vm307, %v5454
      %5487 = vst.msk [vmem:[%s305 + $0x78] sm:$0xff] %vm307, %v5455
      %5488 = vst.msk [vmem:[%s305 + $0x80] sm:$0xff] %vm307, %v5456
      %5489 = vst.msk [vmem:[%s305 + $0x88] sm:$0xff] %vm307, %v5457
      %5490 = vst.msk [vmem:[%s305 + $0x90] sm:$0xff] %vm307, %v5458
      %5491 = vst.msk [vmem:[%s305 + $0x98] sm:$0xff] %vm307, %v5459
      %5492 = vst.msk [vmem:[%s305 + $0xa0] sm:$0xff] %vm307, %v5460
      %5493 = vst.msk [vmem:[%s305 + $0xa8] sm:$0xff] %vm307, %v5461
      %5494 = vst.msk [vmem:[%s305 + $0xb0] sm:$0xff] %vm307, %v5462
      %5495 = vst.msk [vmem:[%s305 + $0xb8] sm:$0xff] %vm307, %v5463
      %5496 = vst.msk [vmem:[%s305 + $0xc0] sm:$0xff] %vm307, %v5464
      %5497 = vst.msk [vmem:[%s305 + $0xc8] sm:$0xff] %vm307, %v5465
      %5498 = vst.msk [vmem:[%s305 + $0xd0] sm:$0xff] %vm307, %v5466
      %5499 = vst.msk [vmem:[%s305 + $0xd8] sm:$0xff] %vm307, %v5467
      %5500 = vst.msk [vmem:[%s305 + $0xe0] sm:$0xff] %vm307, %v5468
      %5501 = vst.msk [vmem:[%s305 + $0xe8] sm:$0xff] %vm307, %v5469
      %5502 = vst.msk [vmem:[%s305 + $0xf0] sm:$0xff] %vm307, %v5470
      %5503 = vst.msk [vmem:[%s305 + $0xf8] sm:$0xff] %vm307, %v5471
      %p5504 = scmp.lt.s32.totalorder %s19, 1
      %s5505 = scalar_select %p5504, %s19, 1
      %s5506 = smul.addr %s5505, 32
      %s5507 = smul.addr %s5506, 8
      %s5508 = scalar_lea.vmem %s8, %s5507
      // Predicated region
      $region53: #{tpu_custom_call.1} parent=51 // pred_check
        %p5509 = pneg %p210
      $region54: #{tpu_custom_call.1} parent=51 // pred_check_branch
        %5511 = sbr.rel (%p5509) target = $region56
      $region55: #{tpu_custom_call.1} parent=51 // pred_region
        _
      $region56: #{tpu_custom_call.1} parent=51 // pred_fallthru
        _
    $region52: #{tpu_custom_call.1} parent=5 // pred_fallthru
      _
    %p5512 = scmp.le.s32.totalorder 2, %s14
    // Predicated region
    $region57: #{tpu_custom_call.1} parent=5 // pred_check
      %p5513 = pneg %p5512
    $region58: #{tpu_custom_call.1} parent=5 // pred_check_branch
      %5515 = sbr.rel (%p5513) target = $region60
    $region59: #{tpu_custom_call.1} parent=5 // pred_region
      %s5516 = ssub.s32 %s14, 2
      // Predicated region
      $region61: #{tpu_custom_call.1} parent=59 // pred_check
        %p5517 = pneg %p216
      $region62: #{tpu_custom_call.1} parent=59 // pred_check_branch
        %5519 = sbr.rel (%p5517) target = $region64
      $region63: #{tpu_custom_call.1} parent=59 // pred_region
        %p5520 = scmp.lt.s32.totalorder %s20, 1
        %s5521 = scalar_select %p5520, %s20, 1
        %s5522 = smul.addr %s5521, 32
        %s5523 = smul.addr %s5522, 8
        %s5524 = scalar_lea.vmem %s8, %s5523
      $region64: #{tpu_custom_call.1} parent=59 // pred_fallthru
        _
    $region60: #{tpu_custom_call.1} parent=5 // pred_fallthru
      _
  $region6: #{tpu_custom_call.1} parent=0 // loop_footer
    %s18 = sadd.s32 1, %s14
  $region7: #{tpu_custom_call.1} parent=0 // loop_footer_branch
    %13 = sbr.rel target = $region3
  $region8: #{tpu_custom_call.1} parent=0 // loop_exit
    _

</llo_original>
